<compile_context>
chip_gen: v7x
topology: tpu7x:2x2x1
jax: 0.10.0
libtpu: 0.0.40
codegen_flags: <defaults>
</compile_context>

<pallas_src>
import jax
import jax.numpy as jnp
from jax import lax
from jax.experimental import pallas as pl
from jax.experimental.pallas import tpu as pltpu

C_IN = 3            # ConvNeXtBlock(in_chs=3) and Linear(3, 6) force 3 channels
HIDDEN = 4 * C_IN   # ConvNeXt MLP expansion ratio = 4
KSIZE = 7
PAD = 3
LN_EPS = 1e-6       # ConvNeXt LayerNorm eps
NORM_EPS = 1e-6     # dynamic_normalize eps
LS_INIT = 1e-6      # ConvNeXt layer-scale init
SQRT_HALF = 0.7071067811865476


def _erf(z, recip):
    # float32-accurate rational approximation (Abramowitz & Stegun 7.1.26,
    # |err| < 1.5e-7), built only from exp/mul/add/where so it lowers on Mosaic
    # and also runs as plain JAX for the reference check.  `recip` is the
    # 1/x implementation (approx EUP reciprocal inside the kernel).
    a1, a2, a3, a4, a5 = 0.254829592, -0.284496736, 1.421413741, -1.453152027, 1.061405429
    p = 0.3275911
    s = jnp.where(z >= 0.0, 1.0, -1.0)
    az = jnp.abs(z)
    t = recip(1.0 + p * az)
    poly = ((((a5 * t + a4) * t + a3) * t + a2) * t + a1) * t
    return s * (1.0 - poly * jnp.exp(-az * az))


def _gelu_exact(x, recip=lambda v: 1.0 / v):
    return 0.5 * x * (1.0 + _erf(x * SQRT_HALF, recip))


def _make_augnet_kernel(H, W):
    n = H * W

    def kernel(x_ref, dw_w_ref, dw_b_ref, ln_g_ref, ln_b_ref,
               w1_ref, b1_ref, w2_ref, b2_ref, ls_ref,
               hw_ref, hb_ref, o_ref):
        bt = x_ref.shape[1]                      # batch-tile on the sublane axis
        recip = lambda v: pl.reciprocal(v, approx=True)   # EUP slot, VALU stays free

        # ---- read all (tiny) weights once from SMEM as unrolled scalars ----
        dw_w = [[dw_w_ref[c, t] for t in range(KSIZE * KSIZE)] for c in range(C_IN)]
        dw_b = [dw_b_ref[c] for c in range(C_IN)]
        ln_g = [ln_g_ref[c] for c in range(C_IN)]
        ln_b = [ln_b_ref[c] for c in range(C_IN)]
        w1 = [[w1_ref[c, j] for j in range(HIDDEN)] for c in range(C_IN)]
        b1 = [b1_ref[j] for j in range(HIDDEN)]
        w2 = [[w2_ref[j, c] for c in range(C_IN)] for j in range(HIDDEN)]
        b2 = [b2_ref[c] for c in range(C_IN)]
        ls = [ls_ref[c] for c in range(C_IN)]
        hw = [[hw_ref[c, j] for j in range(2 * C_IN)] for c in range(C_IN)]
        hb = [hb_ref[j] for j in range(2 * C_IN)]

        # ---- boundary masks for the implicit zero padding of the 7x7 conv ----
        # Built once per grid step at full (bt, n) shape so no per-use broadcasts.
        flat = lax.broadcasted_iota(jnp.int32, (bt, n), 1)   # flattened pixel index
        if (W & (W - 1)) == 0:
            col = flat & (W - 1)                 # x coordinate (power-of-two W)
        else:
            col = flat % W
        xmask, ymask = {}, {}
        for o in range(1, PAD + 1):
            xmask[o] = col <= (W - 1 - o)        # x + o in range
            xmask[-o] = col >= o                 # x - o in range
            ymask[o] = flat < (n - o * W)        # y + o in range
            ymask[-o] = flat >= o * W            # y - o in range

        def shift_flat(v, s):
            # out[i] = v[(i + s) mod n]; callers mask out the wrapped positions.
            if s == 0:
                return v
            return pltpu.roll(v, shift=(-s) % n, axis=1)

        def dw_conv_plane(xc, w_ch):
            # depthwise 7x7 conv (zero padded) on one flattened channel plane.
            # 6 x-rolls shared by all 7 kernel rows, then 6 y-rolls of the
            # row-convolved partials -> 12 XLU rolls + 49 VPU FMAs per plane.
            xs = []
            for ox in range(-PAD, PAD + 1):
                if ox == 0:
                    xs.append(xc)
                else:
                    xs.append(jnp.where(xmask[ox], shift_flat(xc, ox), 0.0))
            acc = None
            for oy in range(-PAD, PAD + 1):
                row = None
                for ox in range(-PAD, PAD + 1):
                    w = w_ch[(oy + PAD) * KSIZE + (ox + PAD)]
                    term = xs[ox + PAD] * w
                    row = term if row is None else row + term
                if oy != 0:
                    row = jnp.where(ymask[oy], shift_flat(row, oy * W), 0.0)
                acc = row if acc is None else acc + row
            return acc

        def convnext_block(x_pl):
            # depthwise conv + bias
            conv = [dw_conv_plane(x_pl[c], dw_w[c]) + dw_b[c] for c in range(C_IN)]
            # channels-last LayerNorm (per pixel over the 3 channels), explicit sums
            mean = (conv[0] + conv[1] + conv[2]) * (1.0 / C_IN)
            d = [conv[c] - mean for c in range(C_IN)]
            var = (d[0] * d[0] + d[1] * d[1] + d[2] * d[2]) * (1.0 / C_IN)
            inv = lax.rsqrt(var + LN_EPS)
            t = [d[c] * inv * ln_g[c] + ln_b[c] for c in range(C_IN)]
            # MLP 3 -> 12 -> 3 as unrolled scalar-broadcast FMAs (VPU, no MXU).
            # fc2 contributions are accumulated immediately to keep register
            # pressure low (only one hidden plane live at a time).
            y = [None] * C_IN
            for j in range(HIDDEN):
                acc = t[0] * w1[0][j]
                for c in range(1, C_IN):
                    acc = acc + t[c] * w1[c][j]
                hj = _gelu_exact(acc + b1[j], recip)        # exact (erf) GELU
                for c in range(C_IN):
                    contrib = hj * w2[j][c]
                    y[c] = contrib if y[c] is None else y[c] + contrib
            # bias, layer-scale, residual
            return [x_pl[c] + (y[c] + b2[c]) * ls[c] for c in range(C_IN)]

        # ------------- forward: block -> head -> normalize -> block -------------
        x_pl = [x_ref[c] for c in range(C_IN)]   # (bt, n): batch on sublanes, pixels on lanes

        feats = convnext_block(x_pl)

        # AdaptiveAvgPool2d(1) + Flatten + Linear(3, 6)
        inv_n = 1.0 / n
        pooled = [jnp.sum(feats[c], axis=1, keepdims=True) * inv_n
                  for c in range(C_IN)]                     # (bt, 1) each
        head = []
        for j in range(2 * C_IN):
            acc = pooled[0] * hw[0][j]
            for c in range(1, C_IN):
                acc = acc + pooled[c] * hw[c][j]
            head.append(acc + hb[j])

        # mu = params[:, :3]; sigma = softplus(params[:, 3:]); dynamic_normalize
        x_norm = []
        for c in range(C_IN):
            mu = head[c]
            z = head[C_IN + c]
            # F.softplus (beta=1, threshold=20), then std.clamp(min=eps)
            sp = jnp.where(z > 20.0, z, jnp.log(1.0 + jnp.exp(jnp.minimum(z, 20.0))))
            inv_sigma = 1.0 / jnp.maximum(sp, NORM_EPS)     # (bt,1) -> exact divide is free
            x_norm.append((x_pl[c] - mu) * inv_sigma)

        out = convnext_block(x_norm)
        for c in range(C_IN):                               # dense (bt, n) stores
            o_ref[c] = out[c]

    return kernel


@jax.jit
def augnet_forward(x_nchw, params):
    B, C, H, W = x_nchw.shape
    assert C == C_IN, "AugNet's param head (Linear(3, 6)) forces 3 channels"
    n = H * W
    # NCHW -> (C, B, H*W): batch on the sublane axis, flattened spatial on lanes.
    x_cbn = jnp.transpose(x_nchw.reshape(B, C, n), (1, 0, 2)).astype(jnp.float32)

    # Batch tile on the sublane axis.  Bt = B (<= 8) keeps the block's
    # second-to-last dim equal to the full array dim (always layout-legal);
    # otherwise Bt = 8 with B padded to a multiple of 8.
    # Note: for tiny B this yields a single grid step (one v7x TC); at B >= 16
    # the grid has >= 2 parallel steps so both TensorCores get work.
    if B <= 8:
        bt, b_pad = B, B
    else:
        bt = 8
        b_pad = ((B + 7) // 8) * 8
    if b_pad != B:
        x_cbn = jnp.pad(x_cbn, ((0, 0), (0, b_pad - B), (0, 0)))
    grid = (b_pad // bt,)

    smem = lambda: pl.BlockSpec(memory_space=pltpu.MemorySpace.SMEM)
    out = pl.pallas_call(
        _make_augnet_kernel(H, W),
        out_shape=jax.ShapeDtypeStruct((C, b_pad, n), jnp.float32),
        grid=grid,
        in_specs=[pl.BlockSpec((C, bt, n), lambda b: (0, b, 0))]
                 + [smem() for _ in range(11)],
        out_specs=pl.BlockSpec((C, bt, n), lambda b: (0, b, 0)),
        compiler_params=pltpu.CompilerParams(
            dimension_semantics=("parallel",)),
    )(x_cbn,
      params["dw_w"], params["dw_b"], params["ln_g"], params["ln_b"],
      params["w1"], params["b1"], params["w2"], params["b2"], params["ls"],
      params["head_w"], params["head_b"])
    out = jnp.transpose(out, (1, 0, 2))[:B]                 # (B, C, n), drop batch pad
    return out.reshape(B, C, H, W)


def init_params(key):
    ks = jax.random.split(key, 10)
    return {
        # depthwise 7x7 conv: torch weight (C,1,7,7) stored as (C, 49), dy-major
        "dw_w": 0.1 * jax.random.normal(ks[0], (C_IN, KSIZE * KSIZE), jnp.float32),
        "dw_b": 0.01 * jax.random.normal(ks[1], (C_IN,), jnp.float32),
        "ln_g": 1.0 + 0.05 * jax.random.normal(ks[2], (C_IN,), jnp.float32),
        "ln_b": 0.05 * jax.random.normal(ks[3], (C_IN,), jnp.float32),
        # Linear weights stored pre-transposed so y = x @ W + b
        "w1": 0.1 * jax.random.normal(ks[4], (C_IN, HIDDEN), jnp.float32),
        "b1": 0.05 * jax.random.normal(ks[5], (HIDDEN,), jnp.float32),
        "w2": 0.1 * jax.random.normal(ks[6], (HIDDEN, C_IN), jnp.float32),
        "b2": 0.05 * jax.random.normal(ks[7], (C_IN,), jnp.float32),
        "ls": jnp.full((C_IN,), LS_INIT, jnp.float32),      # ConvNeXt layer-scale init
        # nn.Linear(3, 6) stored as (3, 6)
        "head_w": 0.1 * jax.random.normal(ks[8], (C_IN, 2 * C_IN), jnp.float32),
        "head_b": 0.05 * jax.random.normal(ks[9], (2 * C_IN,), jnp.float32),
    }


def _reference_forward(x, p):
    # Pure-JAX (non-Pallas) reference of the same forward, NCHW.
    B, C, H, W = x.shape
    hi = jax.lax.Precision.HIGHEST

    def block(z):
        zp = jnp.pad(z, ((0, 0), (0, 0), (PAD, PAD), (PAD, PAD)))
        conv = jnp.zeros_like(z)
        for dy in range(KSIZE):
            for dx in range(KSIZE):
                w = p["dw_w"][:, dy * KSIZE + dx].reshape(1, C, 1, 1)
                conv = conv + zp[:, :, dy:dy + H, dx:dx + W] * w
        conv = conv + p["dw_b"].reshape(1, C, 1, 1)
        t = jnp.transpose(conv, (0, 2, 3, 1))               # NHWC
        mean = jnp.mean(t, axis=-1, keepdims=True)
        var = jnp.mean((t - mean) ** 2, axis=-1, keepdims=True)
        t = (t - mean) * jax.lax.rsqrt(var + LN_EPS) * p["ln_g"] + p["ln_b"]
        h = _gelu_exact(jnp.einsum("bhwc,cd->bhwd", t, p["w1"], precision=hi) + p["b1"])
        y = jnp.einsum("bhwd,dc->bhwc", h, p["w2"], precision=hi) + p["b2"]
        y = y * p["ls"]
        return z + jnp.transpose(y, (0, 3, 1, 2))

    feats = block(x)
    pooled = jnp.mean(feats, axis=(2, 3))                   # (B, C)
    head = jnp.dot(pooled, p["head_w"], precision=hi) + p["head_b"]
    mu, log_sigma = head[:, :C], head[:, C:]
    sigma = jnp.where(log_sigma > 20.0, log_sigma,
                      jnp.log(1.0 + jnp.exp(jnp.minimum(log_sigma, 20.0))))
    sigma = jnp.maximum(sigma, NORM_EPS)
    x_norm = (x - mu[:, :, None, None]) / sigma[:, :, None, None]
    return block(x_norm)


if __name__ == "__main__":
    B, H, W = 2, 16, 16
    k_x, k_p = jax.random.split(jax.random.PRNGKey(0))
    x = jax.random.normal(k_x, (B, C_IN, H, W), jnp.float32)
    params = init_params(k_p)

    # Correctness check vs. the pure-JAX reference.  Layer-scale is overridden to
    # an O(1) value so the conv/LN/MLP branch is actually exercised numerically
    # (with ls=1e-6 the block is ~identity and errors there would be invisible).
    # Tolerance 5e-3 catches mask/shift bugs while leaving headroom for the
    # in-kernel approx-EUP reciprocal used inside the erf-GELU.
    params_chk = dict(params)
    params_chk["ls"] = jnp.full((C_IN,), 0.5, jnp.float32)
    out_chk = augnet_forward(x, params_chk)
    ref_chk = _reference_forward(x, params_chk)
    err = float(jnp.max(jnp.abs(out_chk - ref_chk)))
    assert err < 5e-3, f"kernel/reference mismatch: max abs err = {err}"

    # Forward with the faithful (ConvNeXt-style) parameters.
    out = augnet_forward(x, params)
    jax.block_until_ready(out)
    assert out.shape == (B, C_IN, H, W), out.shape
    assert bool(jnp.all(jnp.isfinite(out)))
    print("KERNEL_OK")
</pallas_src>

<mosaic_0001>
module attributes {stable_mosaic.version = 11 : i64} {
  func.func @kernel(%arg0: i32, %arg1: memref<3x2x256xf32, #tpu.memory_space<vmem>>, %arg2: memref<3x49xf32, #tpu.memory_space<smem>>, %arg3: memref<3xf32, #tpu.memory_space<smem>>, %arg4: memref<3xf32, #tpu.memory_space<smem>>, %arg5: memref<3xf32, #tpu.memory_space<smem>>, %arg6: memref<3x12xf32, #tpu.memory_space<smem>>, %arg7: memref<12xf32, #tpu.memory_space<smem>>, %arg8: memref<12x3xf32, #tpu.memory_space<smem>>, %arg9: memref<3xf32, #tpu.memory_space<smem>>, %arg10: memref<3xf32, #tpu.memory_space<smem>>, %arg11: memref<3x6xf32, #tpu.memory_space<smem>>, %arg12: memref<6xf32, #tpu.memory_space<smem>>, %arg13: memref<3x2x256xf32, #tpu.memory_space<vmem>>) attributes {dimension_semantics = [#tpu.dimension_semantics<parallel>], iteration_bounds = array<i64: 1>, scalar_prefetch = 0 : i64, scratch_operands = 0 : i64, tpu.core_type = #tpu.core_type<tc>, window_params = [{transform_indices = @transform_0, window_bounds = array<i64: 3, 2, 256>}, {transform_indices = @transform_1, window_bounds = array<i64: 3, 49>}, {transform_indices = @transform_2, window_bounds = array<i64: 3>}, {transform_indices = @transform_3, window_bounds = array<i64: 3>}, {transform_indices = @transform_4, window_bounds = array<i64: 3>}, {transform_indices = @transform_5, window_bounds = array<i64: 3, 12>}, {transform_indices = @transform_6, window_bounds = array<i64: 12>}, {transform_indices = @transform_7, window_bounds = array<i64: 12, 3>}, {transform_indices = @transform_8, window_bounds = array<i64: 3>}, {transform_indices = @transform_9, window_bounds = array<i64: 3>}, {transform_indices = @transform_10, window_bounds = array<i64: 3, 6>}, {transform_indices = @transform_11, window_bounds = array<i64: 6>}, {transform_indices = @transform_12, window_bounds = array<i64: 3, 2, 256>}]} {
    %c0 = arith.constant 0 : index
    %c0_0 = arith.constant 0 : index
    %0 = memref.load %arg2[%c0, %c0_0] : memref<3x49xf32, #tpu.memory_space<smem>>
    %c0_1 = arith.constant 0 : index
    %c1 = arith.constant 1 : index
    %1 = memref.load %arg2[%c0_1, %c1] : memref<3x49xf32, #tpu.memory_space<smem>>
    %c0_2 = arith.constant 0 : index
    %c2 = arith.constant 2 : index
    %2 = memref.load %arg2[%c0_2, %c2] : memref<3x49xf32, #tpu.memory_space<smem>>
    %c0_3 = arith.constant 0 : index
    %c3 = arith.constant 3 : index
    %3 = memref.load %arg2[%c0_3, %c3] : memref<3x49xf32, #tpu.memory_space<smem>>
    %c0_4 = arith.constant 0 : index
    %c4 = arith.constant 4 : index
    %4 = memref.load %arg2[%c0_4, %c4] : memref<3x49xf32, #tpu.memory_space<smem>>
    %c0_5 = arith.constant 0 : index
    %c5 = arith.constant 5 : index
    %5 = memref.load %arg2[%c0_5, %c5] : memref<3x49xf32, #tpu.memory_space<smem>>
    %c0_6 = arith.constant 0 : index
    %c6 = arith.constant 6 : index
    %6 = memref.load %arg2[%c0_6, %c6] : memref<3x49xf32, #tpu.memory_space<smem>>
    %c0_7 = arith.constant 0 : index
    %c7 = arith.constant 7 : index
    %7 = memref.load %arg2[%c0_7, %c7] : memref<3x49xf32, #tpu.memory_space<smem>>
    %c0_8 = arith.constant 0 : index
    %c8 = arith.constant 8 : index
    %8 = memref.load %arg2[%c0_8, %c8] : memref<3x49xf32, #tpu.memory_space<smem>>
    %c0_9 = arith.constant 0 : index
    %c9 = arith.constant 9 : index
    %9 = memref.load %arg2[%c0_9, %c9] : memref<3x49xf32, #tpu.memory_space<smem>>
    %c0_10 = arith.constant 0 : index
    %c10 = arith.constant 10 : index
    %10 = memref.load %arg2[%c0_10, %c10] : memref<3x49xf32, #tpu.memory_space<smem>>
    %c0_11 = arith.constant 0 : index
    %c11 = arith.constant 11 : index
    %11 = memref.load %arg2[%c0_11, %c11] : memref<3x49xf32, #tpu.memory_space<smem>>
    %c0_12 = arith.constant 0 : index
    %c12 = arith.constant 12 : index
    %12 = memref.load %arg2[%c0_12, %c12] : memref<3x49xf32, #tpu.memory_space<smem>>
    %c0_13 = arith.constant 0 : index
    %c13 = arith.constant 13 : index
    %13 = memref.load %arg2[%c0_13, %c13] : memref<3x49xf32, #tpu.memory_space<smem>>
    %c0_14 = arith.constant 0 : index
    %c14 = arith.constant 14 : index
    %14 = memref.load %arg2[%c0_14, %c14] : memref<3x49xf32, #tpu.memory_space<smem>>
    %c0_15 = arith.constant 0 : index
    %c15 = arith.constant 15 : index
    %15 = memref.load %arg2[%c0_15, %c15] : memref<3x49xf32, #tpu.memory_space<smem>>
    %c0_16 = arith.constant 0 : index
    %c16 = arith.constant 16 : index
    %16 = memref.load %arg2[%c0_16, %c16] : memref<3x49xf32, #tpu.memory_space<smem>>
    %c0_17 = arith.constant 0 : index
    %c17 = arith.constant 17 : index
    %17 = memref.load %arg2[%c0_17, %c17] : memref<3x49xf32, #tpu.memory_space<smem>>
    %c0_18 = arith.constant 0 : index
    %c18 = arith.constant 18 : index
    %18 = memref.load %arg2[%c0_18, %c18] : memref<3x49xf32, #tpu.memory_space<smem>>
    %c0_19 = arith.constant 0 : index
    %c19 = arith.constant 19 : index
    %19 = memref.load %arg2[%c0_19, %c19] : memref<3x49xf32, #tpu.memory_space<smem>>
    %c0_20 = arith.constant 0 : index
    %c20 = arith.constant 20 : index
    %20 = memref.load %arg2[%c0_20, %c20] : memref<3x49xf32, #tpu.memory_space<smem>>
    %c0_21 = arith.constant 0 : index
    %c21 = arith.constant 21 : index
    %21 = memref.load %arg2[%c0_21, %c21] : memref<3x49xf32, #tpu.memory_space<smem>>
    %c0_22 = arith.constant 0 : index
    %c22 = arith.constant 22 : index
    %22 = memref.load %arg2[%c0_22, %c22] : memref<3x49xf32, #tpu.memory_space<smem>>
    %c0_23 = arith.constant 0 : index
    %c23 = arith.constant 23 : index
    %23 = memref.load %arg2[%c0_23, %c23] : memref<3x49xf32, #tpu.memory_space<smem>>
    %c0_24 = arith.constant 0 : index
    %c24 = arith.constant 24 : index
    %24 = memref.load %arg2[%c0_24, %c24] : memref<3x49xf32, #tpu.memory_space<smem>>
    %c0_25 = arith.constant 0 : index
    %c25 = arith.constant 25 : index
    %25 = memref.load %arg2[%c0_25, %c25] : memref<3x49xf32, #tpu.memory_space<smem>>
    %c0_26 = arith.constant 0 : index
    %c26 = arith.constant 26 : index
    %26 = memref.load %arg2[%c0_26, %c26] : memref<3x49xf32, #tpu.memory_space<smem>>
    %c0_27 = arith.constant 0 : index
    %c27 = arith.constant 27 : index
    %27 = memref.load %arg2[%c0_27, %c27] : memref<3x49xf32, #tpu.memory_space<smem>>
    %c0_28 = arith.constant 0 : index
    %c28 = arith.constant 28 : index
    %28 = memref.load %arg2[%c0_28, %c28] : memref<3x49xf32, #tpu.memory_space<smem>>
    %c0_29 = arith.constant 0 : index
    %c29 = arith.constant 29 : index
    %29 = memref.load %arg2[%c0_29, %c29] : memref<3x49xf32, #tpu.memory_space<smem>>
    %c0_30 = arith.constant 0 : index
    %c30 = arith.constant 30 : index
    %30 = memref.load %arg2[%c0_30, %c30] : memref<3x49xf32, #tpu.memory_space<smem>>
    %c0_31 = arith.constant 0 : index
    %c31 = arith.constant 31 : index
    %31 = memref.load %arg2[%c0_31, %c31] : memref<3x49xf32, #tpu.memory_space<smem>>
    %c0_32 = arith.constant 0 : index
    %c32 = arith.constant 32 : index
    %32 = memref.load %arg2[%c0_32, %c32] : memref<3x49xf32, #tpu.memory_space<smem>>
    %c0_33 = arith.constant 0 : index
    %c33 = arith.constant 33 : index
    %33 = memref.load %arg2[%c0_33, %c33] : memref<3x49xf32, #tpu.memory_space<smem>>
    %c0_34 = arith.constant 0 : index
    %c34 = arith.constant 34 : index
    %34 = memref.load %arg2[%c0_34, %c34] : memref<3x49xf32, #tpu.memory_space<smem>>
    %c0_35 = arith.constant 0 : index
    %c35 = arith.constant 35 : index
    %35 = memref.load %arg2[%c0_35, %c35] : memref<3x49xf32, #tpu.memory_space<smem>>
    %c0_36 = arith.constant 0 : index
    %c36 = arith.constant 36 : index
    %36 = memref.load %arg2[%c0_36, %c36] : memref<3x49xf32, #tpu.memory_space<smem>>
    %c0_37 = arith.constant 0 : index
    %c37 = arith.constant 37 : index
    %37 = memref.load %arg2[%c0_37, %c37] : memref<3x49xf32, #tpu.memory_space<smem>>
    %c0_38 = arith.constant 0 : index
    %c38 = arith.constant 38 : index
    %38 = memref.load %arg2[%c0_38, %c38] : memref<3x49xf32, #tpu.memory_space<smem>>
    %c0_39 = arith.constant 0 : index
    %c39 = arith.constant 39 : index
    %39 = memref.load %arg2[%c0_39, %c39] : memref<3x49xf32, #tpu.memory_space<smem>>
    %c0_40 = arith.constant 0 : index
    %c40 = arith.constant 40 : index
    %40 = memref.load %arg2[%c0_40, %c40] : memref<3x49xf32, #tpu.memory_space<smem>>
    %c0_41 = arith.constant 0 : index
    %c41 = arith.constant 41 : index
    %41 = memref.load %arg2[%c0_41, %c41] : memref<3x49xf32, #tpu.memory_space<smem>>
    %c0_42 = arith.constant 0 : index
    %c42 = arith.constant 42 : index
    %42 = memref.load %arg2[%c0_42, %c42] : memref<3x49xf32, #tpu.memory_space<smem>>
    %c0_43 = arith.constant 0 : index
    %c43 = arith.constant 43 : index
    %43 = memref.load %arg2[%c0_43, %c43] : memref<3x49xf32, #tpu.memory_space<smem>>
    %c0_44 = arith.constant 0 : index
    %c44 = arith.constant 44 : index
    %44 = memref.load %arg2[%c0_44, %c44] : memref<3x49xf32, #tpu.memory_space<smem>>
    %c0_45 = arith.constant 0 : index
    %c45 = arith.constant 45 : index
    %45 = memref.load %arg2[%c0_45, %c45] : memref<3x49xf32, #tpu.memory_space<smem>>
    %c0_46 = arith.constant 0 : index
    %c46 = arith.constant 46 : index
    %46 = memref.load %arg2[%c0_46, %c46] : memref<3x49xf32, #tpu.memory_space<smem>>
    %c0_47 = arith.constant 0 : index
    %c47 = arith.constant 47 : index
    %47 = memref.load %arg2[%c0_47, %c47] : memref<3x49xf32, #tpu.memory_space<smem>>
    %c0_48 = arith.constant 0 : index
    %c48 = arith.constant 48 : index
    %48 = memref.load %arg2[%c0_48, %c48] : memref<3x49xf32, #tpu.memory_space<smem>>
    %c1_49 = arith.constant 1 : index
    %c0_50 = arith.constant 0 : index
    %49 = memref.load %arg2[%c1_49, %c0_50] : memref<3x49xf32, #tpu.memory_space<smem>>
    %c1_51 = arith.constant 1 : index
    %c1_52 = arith.constant 1 : index
    %50 = memref.load %arg2[%c1_51, %c1_52] : memref<3x49xf32, #tpu.memory_space<smem>>
    %c1_53 = arith.constant 1 : index
    %c2_54 = arith.constant 2 : index
    %51 = memref.load %arg2[%c1_53, %c2_54] : memref<3x49xf32, #tpu.memory_space<smem>>
    %c1_55 = arith.constant 1 : index
    %c3_56 = arith.constant 3 : index
    %52 = memref.load %arg2[%c1_55, %c3_56] : memref<3x49xf32, #tpu.memory_space<smem>>
    %c1_57 = arith.constant 1 : index
    %c4_58 = arith.constant 4 : index
    %53 = memref.load %arg2[%c1_57, %c4_58] : memref<3x49xf32, #tpu.memory_space<smem>>
    %c1_59 = arith.constant 1 : index
    %c5_60 = arith.constant 5 : index
    %54 = memref.load %arg2[%c1_59, %c5_60] : memref<3x49xf32, #tpu.memory_space<smem>>
    %c1_61 = arith.constant 1 : index
    %c6_62 = arith.constant 6 : index
    %55 = memref.load %arg2[%c1_61, %c6_62] : memref<3x49xf32, #tpu.memory_space<smem>>
    %c1_63 = arith.constant 1 : index
    %c7_64 = arith.constant 7 : index
    %56 = memref.load %arg2[%c1_63, %c7_64] : memref<3x49xf32, #tpu.memory_space<smem>>
    %c1_65 = arith.constant 1 : index
    %c8_66 = arith.constant 8 : index
    %57 = memref.load %arg2[%c1_65, %c8_66] : memref<3x49xf32, #tpu.memory_space<smem>>
    %c1_67 = arith.constant 1 : index
    %c9_68 = arith.constant 9 : index
    %58 = memref.load %arg2[%c1_67, %c9_68] : memref<3x49xf32, #tpu.memory_space<smem>>
    %c1_69 = arith.constant 1 : index
    %c10_70 = arith.constant 10 : index
    %59 = memref.load %arg2[%c1_69, %c10_70] : memref<3x49xf32, #tpu.memory_space<smem>>
    %c1_71 = arith.constant 1 : index
    %c11_72 = arith.constant 11 : index
    %60 = memref.load %arg2[%c1_71, %c11_72] : memref<3x49xf32, #tpu.memory_space<smem>>
    %c1_73 = arith.constant 1 : index
    %c12_74 = arith.constant 12 : index
    %61 = memref.load %arg2[%c1_73, %c12_74] : memref<3x49xf32, #tpu.memory_space<smem>>
    %c1_75 = arith.constant 1 : index
    %c13_76 = arith.constant 13 : index
    %62 = memref.load %arg2[%c1_75, %c13_76] : memref<3x49xf32, #tpu.memory_space<smem>>
    %c1_77 = arith.constant 1 : index
    %c14_78 = arith.constant 14 : index
    %63 = memref.load %arg2[%c1_77, %c14_78] : memref<3x49xf32, #tpu.memory_space<smem>>
    %c1_79 = arith.constant 1 : index
    %c15_80 = arith.constant 15 : index
    %64 = memref.load %arg2[%c1_79, %c15_80] : memref<3x49xf32, #tpu.memory_space<smem>>
    %c1_81 = arith.constant 1 : index
    %c16_82 = arith.constant 16 : index
    %65 = memref.load %arg2[%c1_81, %c16_82] : memref<3x49xf32, #tpu.memory_space<smem>>
    %c1_83 = arith.constant 1 : index
    %c17_84 = arith.constant 17 : index
    %66 = memref.load %arg2[%c1_83, %c17_84] : memref<3x49xf32, #tpu.memory_space<smem>>
    %c1_85 = arith.constant 1 : index
    %c18_86 = arith.constant 18 : index
    %67 = memref.load %arg2[%c1_85, %c18_86] : memref<3x49xf32, #tpu.memory_space<smem>>
    %c1_87 = arith.constant 1 : index
    %c19_88 = arith.constant 19 : index
    %68 = memref.load %arg2[%c1_87, %c19_88] : memref<3x49xf32, #tpu.memory_space<smem>>
    %c1_89 = arith.constant 1 : index
    %c20_90 = arith.constant 20 : index
    %69 = memref.load %arg2[%c1_89, %c20_90] : memref<3x49xf32, #tpu.memory_space<smem>>
    %c1_91 = arith.constant 1 : index
    %c21_92 = arith.constant 21 : index
    %70 = memref.load %arg2[%c1_91, %c21_92] : memref<3x49xf32, #tpu.memory_space<smem>>
    %c1_93 = arith.constant 1 : index
    %c22_94 = arith.constant 22 : index
    %71 = memref.load %arg2[%c1_93, %c22_94] : memref<3x49xf32, #tpu.memory_space<smem>>
    %c1_95 = arith.constant 1 : index
    %c23_96 = arith.constant 23 : index
    %72 = memref.load %arg2[%c1_95, %c23_96] : memref<3x49xf32, #tpu.memory_space<smem>>
    %c1_97 = arith.constant 1 : index
    %c24_98 = arith.constant 24 : index
    %73 = memref.load %arg2[%c1_97, %c24_98] : memref<3x49xf32, #tpu.memory_space<smem>>
    %c1_99 = arith.constant 1 : index
    %c25_100 = arith.constant 25 : index
    %74 = memref.load %arg2[%c1_99, %c25_100] : memref<3x49xf32, #tpu.memory_space<smem>>
    %c1_101 = arith.constant 1 : index
    %c26_102 = arith.constant 26 : index
    %75 = memref.load %arg2[%c1_101, %c26_102] : memref<3x49xf32, #tpu.memory_space<smem>>
    %c1_103 = arith.constant 1 : index
    %c27_104 = arith.constant 27 : index
    %76 = memref.load %arg2[%c1_103, %c27_104] : memref<3x49xf32, #tpu.memory_space<smem>>
    %c1_105 = arith.constant 1 : index
    %c28_106 = arith.constant 28 : index
    %77 = memref.load %arg2[%c1_105, %c28_106] : memref<3x49xf32, #tpu.memory_space<smem>>
    %c1_107 = arith.constant 1 : index
    %c29_108 = arith.constant 29 : index
    %78 = memref.load %arg2[%c1_107, %c29_108] : memref<3x49xf32, #tpu.memory_space<smem>>
    %c1_109 = arith.constant 1 : index
    %c30_110 = arith.constant 30 : index
    %79 = memref.load %arg2[%c1_109, %c30_110] : memref<3x49xf32, #tpu.memory_space<smem>>
    %c1_111 = arith.constant 1 : index
    %c31_112 = arith.constant 31 : index
    %80 = memref.load %arg2[%c1_111, %c31_112] : memref<3x49xf32, #tpu.memory_space<smem>>
    %c1_113 = arith.constant 1 : index
    %c32_114 = arith.constant 32 : index
    %81 = memref.load %arg2[%c1_113, %c32_114] : memref<3x49xf32, #tpu.memory_space<smem>>
    %c1_115 = arith.constant 1 : index
    %c33_116 = arith.constant 33 : index
    %82 = memref.load %arg2[%c1_115, %c33_116] : memref<3x49xf32, #tpu.memory_space<smem>>
    %c1_117 = arith.constant 1 : index
    %c34_118 = arith.constant 34 : index
    %83 = memref.load %arg2[%c1_117, %c34_118] : memref<3x49xf32, #tpu.memory_space<smem>>
    %c1_119 = arith.constant 1 : index
    %c35_120 = arith.constant 35 : index
    %84 = memref.load %arg2[%c1_119, %c35_120] : memref<3x49xf32, #tpu.memory_space<smem>>
    %c1_121 = arith.constant 1 : index
    %c36_122 = arith.constant 36 : index
    %85 = memref.load %arg2[%c1_121, %c36_122] : memref<3x49xf32, #tpu.memory_space<smem>>
    %c1_123 = arith.constant 1 : index
    %c37_124 = arith.constant 37 : index
    %86 = memref.load %arg2[%c1_123, %c37_124] : memref<3x49xf32, #tpu.memory_space<smem>>
    %c1_125 = arith.constant 1 : index
    %c38_126 = arith.constant 38 : index
    %87 = memref.load %arg2[%c1_125, %c38_126] : memref<3x49xf32, #tpu.memory_space<smem>>
    %c1_127 = arith.constant 1 : index
    %c39_128 = arith.constant 39 : index
    %88 = memref.load %arg2[%c1_127, %c39_128] : memref<3x49xf32, #tpu.memory_space<smem>>
    %c1_129 = arith.constant 1 : index
    %c40_130 = arith.constant 40 : index
    %89 = memref.load %arg2[%c1_129, %c40_130] : memref<3x49xf32, #tpu.memory_space<smem>>
    %c1_131 = arith.constant 1 : index
    %c41_132 = arith.constant 41 : index
    %90 = memref.load %arg2[%c1_131, %c41_132] : memref<3x49xf32, #tpu.memory_space<smem>>
    %c1_133 = arith.constant 1 : index
    %c42_134 = arith.constant 42 : index
    %91 = memref.load %arg2[%c1_133, %c42_134] : memref<3x49xf32, #tpu.memory_space<smem>>
    %c1_135 = arith.constant 1 : index
    %c43_136 = arith.constant 43 : index
    %92 = memref.load %arg2[%c1_135, %c43_136] : memref<3x49xf32, #tpu.memory_space<smem>>
    %c1_137 = arith.constant 1 : index
    %c44_138 = arith.constant 44 : index
    %93 = memref.load %arg2[%c1_137, %c44_138] : memref<3x49xf32, #tpu.memory_space<smem>>
    %c1_139 = arith.constant 1 : index
    %c45_140 = arith.constant 45 : index
    %94 = memref.load %arg2[%c1_139, %c45_140] : memref<3x49xf32, #tpu.memory_space<smem>>
    %c1_141 = arith.constant 1 : index
    %c46_142 = arith.constant 46 : index
    %95 = memref.load %arg2[%c1_141, %c46_142] : memref<3x49xf32, #tpu.memory_space<smem>>
    %c1_143 = arith.constant 1 : index
    %c47_144 = arith.constant 47 : index
    %96 = memref.load %arg2[%c1_143, %c47_144] : memref<3x49xf32, #tpu.memory_space<smem>>
    %c1_145 = arith.constant 1 : index
    %c48_146 = arith.constant 48 : index
    %97 = memref.load %arg2[%c1_145, %c48_146] : memref<3x49xf32, #tpu.memory_space<smem>>
    %c2_147 = arith.constant 2 : index
    %c0_148 = arith.constant 0 : index
    %98 = memref.load %arg2[%c2_147, %c0_148] : memref<3x49xf32, #tpu.memory_space<smem>>
    %c2_149 = arith.constant 2 : index
    %c1_150 = arith.constant 1 : index
    %99 = memref.load %arg2[%c2_149, %c1_150] : memref<3x49xf32, #tpu.memory_space<smem>>
    %c2_151 = arith.constant 2 : index
    %c2_152 = arith.constant 2 : index
    %100 = memref.load %arg2[%c2_151, %c2_152] : memref<3x49xf32, #tpu.memory_space<smem>>
    %c2_153 = arith.constant 2 : index
    %c3_154 = arith.constant 3 : index
    %101 = memref.load %arg2[%c2_153, %c3_154] : memref<3x49xf32, #tpu.memory_space<smem>>
    %c2_155 = arith.constant 2 : index
    %c4_156 = arith.constant 4 : index
    %102 = memref.load %arg2[%c2_155, %c4_156] : memref<3x49xf32, #tpu.memory_space<smem>>
    %c2_157 = arith.constant 2 : index
    %c5_158 = arith.constant 5 : index
    %103 = memref.load %arg2[%c2_157, %c5_158] : memref<3x49xf32, #tpu.memory_space<smem>>
    %c2_159 = arith.constant 2 : index
    %c6_160 = arith.constant 6 : index
    %104 = memref.load %arg2[%c2_159, %c6_160] : memref<3x49xf32, #tpu.memory_space<smem>>
    %c2_161 = arith.constant 2 : index
    %c7_162 = arith.constant 7 : index
    %105 = memref.load %arg2[%c2_161, %c7_162] : memref<3x49xf32, #tpu.memory_space<smem>>
    %c2_163 = arith.constant 2 : index
    %c8_164 = arith.constant 8 : index
    %106 = memref.load %arg2[%c2_163, %c8_164] : memref<3x49xf32, #tpu.memory_space<smem>>
    %c2_165 = arith.constant 2 : index
    %c9_166 = arith.constant 9 : index
    %107 = memref.load %arg2[%c2_165, %c9_166] : memref<3x49xf32, #tpu.memory_space<smem>>
    %c2_167 = arith.constant 2 : index
    %c10_168 = arith.constant 10 : index
    %108 = memref.load %arg2[%c2_167, %c10_168] : memref<3x49xf32, #tpu.memory_space<smem>>
    %c2_169 = arith.constant 2 : index
    %c11_170 = arith.constant 11 : index
    %109 = memref.load %arg2[%c2_169, %c11_170] : memref<3x49xf32, #tpu.memory_space<smem>>
    %c2_171 = arith.constant 2 : index
    %c12_172 = arith.constant 12 : index
    %110 = memref.load %arg2[%c2_171, %c12_172] : memref<3x49xf32, #tpu.memory_space<smem>>
    %c2_173 = arith.constant 2 : index
    %c13_174 = arith.constant 13 : index
    %111 = memref.load %arg2[%c2_173, %c13_174] : memref<3x49xf32, #tpu.memory_space<smem>>
    %c2_175 = arith.constant 2 : index
    %c14_176 = arith.constant 14 : index
    %112 = memref.load %arg2[%c2_175, %c14_176] : memref<3x49xf32, #tpu.memory_space<smem>>
    %c2_177 = arith.constant 2 : index
    %c15_178 = arith.constant 15 : index
    %113 = memref.load %arg2[%c2_177, %c15_178] : memref<3x49xf32, #tpu.memory_space<smem>>
    %c2_179 = arith.constant 2 : index
    %c16_180 = arith.constant 16 : index
    %114 = memref.load %arg2[%c2_179, %c16_180] : memref<3x49xf32, #tpu.memory_space<smem>>
    %c2_181 = arith.constant 2 : index
    %c17_182 = arith.constant 17 : index
    %115 = memref.load %arg2[%c2_181, %c17_182] : memref<3x49xf32, #tpu.memory_space<smem>>
    %c2_183 = arith.constant 2 : index
    %c18_184 = arith.constant 18 : index
    %116 = memref.load %arg2[%c2_183, %c18_184] : memref<3x49xf32, #tpu.memory_space<smem>>
    %c2_185 = arith.constant 2 : index
    %c19_186 = arith.constant 19 : index
    %117 = memref.load %arg2[%c2_185, %c19_186] : memref<3x49xf32, #tpu.memory_space<smem>>
    %c2_187 = arith.constant 2 : index
    %c20_188 = arith.constant 20 : index
    %118 = memref.load %arg2[%c2_187, %c20_188] : memref<3x49xf32, #tpu.memory_space<smem>>
    %c2_189 = arith.constant 2 : index
    %c21_190 = arith.constant 21 : index
    %119 = memref.load %arg2[%c2_189, %c21_190] : memref<3x49xf32, #tpu.memory_space<smem>>
    %c2_191 = arith.constant 2 : index
    %c22_192 = arith.constant 22 : index
    %120 = memref.load %arg2[%c2_191, %c22_192] : memref<3x49xf32, #tpu.memory_space<smem>>
    %c2_193 = arith.constant 2 : index
    %c23_194 = arith.constant 23 : index
    %121 = memref.load %arg2[%c2_193, %c23_194] : memref<3x49xf32, #tpu.memory_space<smem>>
    %c2_195 = arith.constant 2 : index
    %c24_196 = arith.constant 24 : index
    %122 = memref.load %arg2[%c2_195, %c24_196] : memref<3x49xf32, #tpu.memory_space<smem>>
    %c2_197 = arith.constant 2 : index
    %c25_198 = arith.constant 25 : index
    %123 = memref.load %arg2[%c2_197, %c25_198] : memref<3x49xf32, #tpu.memory_space<smem>>
    %c2_199 = arith.constant 2 : index
    %c26_200 = arith.constant 26 : index
    %124 = memref.load %arg2[%c2_199, %c26_200] : memref<3x49xf32, #tpu.memory_space<smem>>
    %c2_201 = arith.constant 2 : index
    %c27_202 = arith.constant 27 : index
    %125 = memref.load %arg2[%c2_201, %c27_202] : memref<3x49xf32, #tpu.memory_space<smem>>
    %c2_203 = arith.constant 2 : index
    %c28_204 = arith.constant 28 : index
    %126 = memref.load %arg2[%c2_203, %c28_204] : memref<3x49xf32, #tpu.memory_space<smem>>
    %c2_205 = arith.constant 2 : index
    %c29_206 = arith.constant 29 : index
    %127 = memref.load %arg2[%c2_205, %c29_206] : memref<3x49xf32, #tpu.memory_space<smem>>
    %c2_207 = arith.constant 2 : index
    %c30_208 = arith.constant 30 : index
    %128 = memref.load %arg2[%c2_207, %c30_208] : memref<3x49xf32, #tpu.memory_space<smem>>
    %c2_209 = arith.constant 2 : index
    %c31_210 = arith.constant 31 : index
    %129 = memref.load %arg2[%c2_209, %c31_210] : memref<3x49xf32, #tpu.memory_space<smem>>
    %c2_211 = arith.constant 2 : index
    %c32_212 = arith.constant 32 : index
    %130 = memref.load %arg2[%c2_211, %c32_212] : memref<3x49xf32, #tpu.memory_space<smem>>
    %c2_213 = arith.constant 2 : index
    %c33_214 = arith.constant 33 : index
    %131 = memref.load %arg2[%c2_213, %c33_214] : memref<3x49xf32, #tpu.memory_space<smem>>
    %c2_215 = arith.constant 2 : index
    %c34_216 = arith.constant 34 : index
    %132 = memref.load %arg2[%c2_215, %c34_216] : memref<3x49xf32, #tpu.memory_space<smem>>
    %c2_217 = arith.constant 2 : index
    %c35_218 = arith.constant 35 : index
    %133 = memref.load %arg2[%c2_217, %c35_218] : memref<3x49xf32, #tpu.memory_space<smem>>
    %c2_219 = arith.constant 2 : index
    %c36_220 = arith.constant 36 : index
    %134 = memref.load %arg2[%c2_219, %c36_220] : memref<3x49xf32, #tpu.memory_space<smem>>
    %c2_221 = arith.constant 2 : index
    %c37_222 = arith.constant 37 : index
    %135 = memref.load %arg2[%c2_221, %c37_222] : memref<3x49xf32, #tpu.memory_space<smem>>
    %c2_223 = arith.constant 2 : index
    %c38_224 = arith.constant 38 : index
    %136 = memref.load %arg2[%c2_223, %c38_224] : memref<3x49xf32, #tpu.memory_space<smem>>
    %c2_225 = arith.constant 2 : index
    %c39_226 = arith.constant 39 : index
    %137 = memref.load %arg2[%c2_225, %c39_226] : memref<3x49xf32, #tpu.memory_space<smem>>
    %c2_227 = arith.constant 2 : index
    %c40_228 = arith.constant 40 : index
    %138 = memref.load %arg2[%c2_227, %c40_228] : memref<3x49xf32, #tpu.memory_space<smem>>
    %c2_229 = arith.constant 2 : index
    %c41_230 = arith.constant 41 : index
    %139 = memref.load %arg2[%c2_229, %c41_230] : memref<3x49xf32, #tpu.memory_space<smem>>
    %c2_231 = arith.constant 2 : index
    %c42_232 = arith.constant 42 : index
    %140 = memref.load %arg2[%c2_231, %c42_232] : memref<3x49xf32, #tpu.memory_space<smem>>
    %c2_233 = arith.constant 2 : index
    %c43_234 = arith.constant 43 : index
    %141 = memref.load %arg2[%c2_233, %c43_234] : memref<3x49xf32, #tpu.memory_space<smem>>
    %c2_235 = arith.constant 2 : index
    %c44_236 = arith.constant 44 : index
    %142 = memref.load %arg2[%c2_235, %c44_236] : memref<3x49xf32, #tpu.memory_space<smem>>
    %c2_237 = arith.constant 2 : index
    %c45_238 = arith.constant 45 : index
    %143 = memref.load %arg2[%c2_237, %c45_238] : memref<3x49xf32, #tpu.memory_space<smem>>
    %c2_239 = arith.constant 2 : index
    %c46_240 = arith.constant 46 : index
    %144 = memref.load %arg2[%c2_239, %c46_240] : memref<3x49xf32, #tpu.memory_space<smem>>
    %c2_241 = arith.constant 2 : index
    %c47_242 = arith.constant 47 : index
    %145 = memref.load %arg2[%c2_241, %c47_242] : memref<3x49xf32, #tpu.memory_space<smem>>
    %c2_243 = arith.constant 2 : index
    %c48_244 = arith.constant 48 : index
    %146 = memref.load %arg2[%c2_243, %c48_244] : memref<3x49xf32, #tpu.memory_space<smem>>
    %c0_245 = arith.constant 0 : index
    %147 = memref.load %arg3[%c0_245] : memref<3xf32, #tpu.memory_space<smem>>
    %c1_246 = arith.constant 1 : index
    %148 = memref.load %arg3[%c1_246] : memref<3xf32, #tpu.memory_space<smem>>
    %c2_247 = arith.constant 2 : index
    %149 = memref.load %arg3[%c2_247] : memref<3xf32, #tpu.memory_space<smem>>
    %c0_248 = arith.constant 0 : index
    %150 = memref.load %arg4[%c0_248] : memref<3xf32, #tpu.memory_space<smem>>
    %c1_249 = arith.constant 1 : index
    %151 = memref.load %arg4[%c1_249] : memref<3xf32, #tpu.memory_space<smem>>
    %c2_250 = arith.constant 2 : index
    %152 = memref.load %arg4[%c2_250] : memref<3xf32, #tpu.memory_space<smem>>
    %c0_251 = arith.constant 0 : index
    %153 = memref.load %arg5[%c0_251] : memref<3xf32, #tpu.memory_space<smem>>
    %c1_252 = arith.constant 1 : index
    %154 = memref.load %arg5[%c1_252] : memref<3xf32, #tpu.memory_space<smem>>
    %c2_253 = arith.constant 2 : index
    %155 = memref.load %arg5[%c2_253] : memref<3xf32, #tpu.memory_space<smem>>
    %c0_254 = arith.constant 0 : index
    %c0_255 = arith.constant 0 : index
    %156 = memref.load %arg6[%c0_254, %c0_255] : memref<3x12xf32, #tpu.memory_space<smem>>
    %c0_256 = arith.constant 0 : index
    %c1_257 = arith.constant 1 : index
    %157 = memref.load %arg6[%c0_256, %c1_257] : memref<3x12xf32, #tpu.memory_space<smem>>
    %c0_258 = arith.constant 0 : index
    %c2_259 = arith.constant 2 : index
    %158 = memref.load %arg6[%c0_258, %c2_259] : memref<3x12xf32, #tpu.memory_space<smem>>
    %c0_260 = arith.constant 0 : index
    %c3_261 = arith.constant 3 : index
    %159 = memref.load %arg6[%c0_260, %c3_261] : memref<3x12xf32, #tpu.memory_space<smem>>
    %c0_262 = arith.constant 0 : index
    %c4_263 = arith.constant 4 : index
    %160 = memref.load %arg6[%c0_262, %c4_263] : memref<3x12xf32, #tpu.memory_space<smem>>
    %c0_264 = arith.constant 0 : index
    %c5_265 = arith.constant 5 : index
    %161 = memref.load %arg6[%c0_264, %c5_265] : memref<3x12xf32, #tpu.memory_space<smem>>
    %c0_266 = arith.constant 0 : index
    %c6_267 = arith.constant 6 : index
    %162 = memref.load %arg6[%c0_266, %c6_267] : memref<3x12xf32, #tpu.memory_space<smem>>
    %c0_268 = arith.constant 0 : index
    %c7_269 = arith.constant 7 : index
    %163 = memref.load %arg6[%c0_268, %c7_269] : memref<3x12xf32, #tpu.memory_space<smem>>
    %c0_270 = arith.constant 0 : index
    %c8_271 = arith.constant 8 : index
    %164 = memref.load %arg6[%c0_270, %c8_271] : memref<3x12xf32, #tpu.memory_space<smem>>
    %c0_272 = arith.constant 0 : index
    %c9_273 = arith.constant 9 : index
    %165 = memref.load %arg6[%c0_272, %c9_273] : memref<3x12xf32, #tpu.memory_space<smem>>
    %c0_274 = arith.constant 0 : index
    %c10_275 = arith.constant 10 : index
    %166 = memref.load %arg6[%c0_274, %c10_275] : memref<3x12xf32, #tpu.memory_space<smem>>
    %c0_276 = arith.constant 0 : index
    %c11_277 = arith.constant 11 : index
    %167 = memref.load %arg6[%c0_276, %c11_277] : memref<3x12xf32, #tpu.memory_space<smem>>
    %c1_278 = arith.constant 1 : index
    %c0_279 = arith.constant 0 : index
    %168 = memref.load %arg6[%c1_278, %c0_279] : memref<3x12xf32, #tpu.memory_space<smem>>
    %c1_280 = arith.constant 1 : index
    %c1_281 = arith.constant 1 : index
    %169 = memref.load %arg6[%c1_280, %c1_281] : memref<3x12xf32, #tpu.memory_space<smem>>
    %c1_282 = arith.constant 1 : index
    %c2_283 = arith.constant 2 : index
    %170 = memref.load %arg6[%c1_282, %c2_283] : memref<3x12xf32, #tpu.memory_space<smem>>
    %c1_284 = arith.constant 1 : index
    %c3_285 = arith.constant 3 : index
    %171 = memref.load %arg6[%c1_284, %c3_285] : memref<3x12xf32, #tpu.memory_space<smem>>
    %c1_286 = arith.constant 1 : index
    %c4_287 = arith.constant 4 : index
    %172 = memref.load %arg6[%c1_286, %c4_287] : memref<3x12xf32, #tpu.memory_space<smem>>
    %c1_288 = arith.constant 1 : index
    %c5_289 = arith.constant 5 : index
    %173 = memref.load %arg6[%c1_288, %c5_289] : memref<3x12xf32, #tpu.memory_space<smem>>
    %c1_290 = arith.constant 1 : index
    %c6_291 = arith.constant 6 : index
    %174 = memref.load %arg6[%c1_290, %c6_291] : memref<3x12xf32, #tpu.memory_space<smem>>
    %c1_292 = arith.constant 1 : index
    %c7_293 = arith.constant 7 : index
    %175 = memref.load %arg6[%c1_292, %c7_293] : memref<3x12xf32, #tpu.memory_space<smem>>
    %c1_294 = arith.constant 1 : index
    %c8_295 = arith.constant 8 : index
    %176 = memref.load %arg6[%c1_294, %c8_295] : memref<3x12xf32, #tpu.memory_space<smem>>
    %c1_296 = arith.constant 1 : index
    %c9_297 = arith.constant 9 : index
    %177 = memref.load %arg6[%c1_296, %c9_297] : memref<3x12xf32, #tpu.memory_space<smem>>
    %c1_298 = arith.constant 1 : index
    %c10_299 = arith.constant 10 : index
    %178 = memref.load %arg6[%c1_298, %c10_299] : memref<3x12xf32, #tpu.memory_space<smem>>
    %c1_300 = arith.constant 1 : index
    %c11_301 = arith.constant 11 : index
    %179 = memref.load %arg6[%c1_300, %c11_301] : memref<3x12xf32, #tpu.memory_space<smem>>
    %c2_302 = arith.constant 2 : index
    %c0_303 = arith.constant 0 : index
    %180 = memref.load %arg6[%c2_302, %c0_303] : memref<3x12xf32, #tpu.memory_space<smem>>
    %c2_304 = arith.constant 2 : index
    %c1_305 = arith.constant 1 : index
    %181 = memref.load %arg6[%c2_304, %c1_305] : memref<3x12xf32, #tpu.memory_space<smem>>
    %c2_306 = arith.constant 2 : index
    %c2_307 = arith.constant 2 : index
    %182 = memref.load %arg6[%c2_306, %c2_307] : memref<3x12xf32, #tpu.memory_space<smem>>
    %c2_308 = arith.constant 2 : index
    %c3_309 = arith.constant 3 : index
    %183 = memref.load %arg6[%c2_308, %c3_309] : memref<3x12xf32, #tpu.memory_space<smem>>
    %c2_310 = arith.constant 2 : index
    %c4_311 = arith.constant 4 : index
    %184 = memref.load %arg6[%c2_310, %c4_311] : memref<3x12xf32, #tpu.memory_space<smem>>
    %c2_312 = arith.constant 2 : index
    %c5_313 = arith.constant 5 : index
    %185 = memref.load %arg6[%c2_312, %c5_313] : memref<3x12xf32, #tpu.memory_space<smem>>
    %c2_314 = arith.constant 2 : index
    %c6_315 = arith.constant 6 : index
    %186 = memref.load %arg6[%c2_314, %c6_315] : memref<3x12xf32, #tpu.memory_space<smem>>
    %c2_316 = arith.constant 2 : index
    %c7_317 = arith.constant 7 : index
    %187 = memref.load %arg6[%c2_316, %c7_317] : memref<3x12xf32, #tpu.memory_space<smem>>
    %c2_318 = arith.constant 2 : index
    %c8_319 = arith.constant 8 : index
    %188 = memref.load %arg6[%c2_318, %c8_319] : memref<3x12xf32, #tpu.memory_space<smem>>
    %c2_320 = arith.constant 2 : index
    %c9_321 = arith.constant 9 : index
    %189 = memref.load %arg6[%c2_320, %c9_321] : memref<3x12xf32, #tpu.memory_space<smem>>
    %c2_322 = arith.constant 2 : index
    %c10_323 = arith.constant 10 : index
    %190 = memref.load %arg6[%c2_322, %c10_323] : memref<3x12xf32, #tpu.memory_space<smem>>
    %c2_324 = arith.constant 2 : index
    %c11_325 = arith.constant 11 : index
    %191 = memref.load %arg6[%c2_324, %c11_325] : memref<3x12xf32, #tpu.memory_space<smem>>
    %c0_326 = arith.constant 0 : index
    %192 = memref.load %arg7[%c0_326] : memref<12xf32, #tpu.memory_space<smem>>
    %c1_327 = arith.constant 1 : index
    %193 = memref.load %arg7[%c1_327] : memref<12xf32, #tpu.memory_space<smem>>
    %c2_328 = arith.constant 2 : index
    %194 = memref.load %arg7[%c2_328] : memref<12xf32, #tpu.memory_space<smem>>
    %c3_329 = arith.constant 3 : index
    %195 = memref.load %arg7[%c3_329] : memref<12xf32, #tpu.memory_space<smem>>
    %c4_330 = arith.constant 4 : index
    %196 = memref.load %arg7[%c4_330] : memref<12xf32, #tpu.memory_space<smem>>
    %c5_331 = arith.constant 5 : index
    %197 = memref.load %arg7[%c5_331] : memref<12xf32, #tpu.memory_space<smem>>
    %c6_332 = arith.constant 6 : index
    %198 = memref.load %arg7[%c6_332] : memref<12xf32, #tpu.memory_space<smem>>
    %c7_333 = arith.constant 7 : index
    %199 = memref.load %arg7[%c7_333] : memref<12xf32, #tpu.memory_space<smem>>
    %c8_334 = arith.constant 8 : index
    %200 = memref.load %arg7[%c8_334] : memref<12xf32, #tpu.memory_space<smem>>
    %c9_335 = arith.constant 9 : index
    %201 = memref.load %arg7[%c9_335] : memref<12xf32, #tpu.memory_space<smem>>
    %c10_336 = arith.constant 10 : index
    %202 = memref.load %arg7[%c10_336] : memref<12xf32, #tpu.memory_space<smem>>
    %c11_337 = arith.constant 11 : index
    %203 = memref.load %arg7[%c11_337] : memref<12xf32, #tpu.memory_space<smem>>
    %c0_338 = arith.constant 0 : index
    %c0_339 = arith.constant 0 : index
    %204 = memref.load %arg8[%c0_338, %c0_339] : memref<12x3xf32, #tpu.memory_space<smem>>
    %c0_340 = arith.constant 0 : index
    %c1_341 = arith.constant 1 : index
    %205 = memref.load %arg8[%c0_340, %c1_341] : memref<12x3xf32, #tpu.memory_space<smem>>
    %c0_342 = arith.constant 0 : index
    %c2_343 = arith.constant 2 : index
    %206 = memref.load %arg8[%c0_342, %c2_343] : memref<12x3xf32, #tpu.memory_space<smem>>
    %c1_344 = arith.constant 1 : index
    %c0_345 = arith.constant 0 : index
    %207 = memref.load %arg8[%c1_344, %c0_345] : memref<12x3xf32, #tpu.memory_space<smem>>
    %c1_346 = arith.constant 1 : index
    %c1_347 = arith.constant 1 : index
    %208 = memref.load %arg8[%c1_346, %c1_347] : memref<12x3xf32, #tpu.memory_space<smem>>
    %c1_348 = arith.constant 1 : index
    %c2_349 = arith.constant 2 : index
    %209 = memref.load %arg8[%c1_348, %c2_349] : memref<12x3xf32, #tpu.memory_space<smem>>
    %c2_350 = arith.constant 2 : index
    %c0_351 = arith.constant 0 : index
    %210 = memref.load %arg8[%c2_350, %c0_351] : memref<12x3xf32, #tpu.memory_space<smem>>
    %c2_352 = arith.constant 2 : index
    %c1_353 = arith.constant 1 : index
    %211 = memref.load %arg8[%c2_352, %c1_353] : memref<12x3xf32, #tpu.memory_space<smem>>
    %c2_354 = arith.constant 2 : index
    %c2_355 = arith.constant 2 : index
    %212 = memref.load %arg8[%c2_354, %c2_355] : memref<12x3xf32, #tpu.memory_space<smem>>
    %c3_356 = arith.constant 3 : index
    %c0_357 = arith.constant 0 : index
    %213 = memref.load %arg8[%c3_356, %c0_357] : memref<12x3xf32, #tpu.memory_space<smem>>
    %c3_358 = arith.constant 3 : index
    %c1_359 = arith.constant 1 : index
    %214 = memref.load %arg8[%c3_358, %c1_359] : memref<12x3xf32, #tpu.memory_space<smem>>
    %c3_360 = arith.constant 3 : index
    %c2_361 = arith.constant 2 : index
    %215 = memref.load %arg8[%c3_360, %c2_361] : memref<12x3xf32, #tpu.memory_space<smem>>
    %c4_362 = arith.constant 4 : index
    %c0_363 = arith.constant 0 : index
    %216 = memref.load %arg8[%c4_362, %c0_363] : memref<12x3xf32, #tpu.memory_space<smem>>
    %c4_364 = arith.constant 4 : index
    %c1_365 = arith.constant 1 : index
    %217 = memref.load %arg8[%c4_364, %c1_365] : memref<12x3xf32, #tpu.memory_space<smem>>
    %c4_366 = arith.constant 4 : index
    %c2_367 = arith.constant 2 : index
    %218 = memref.load %arg8[%c4_366, %c2_367] : memref<12x3xf32, #tpu.memory_space<smem>>
    %c5_368 = arith.constant 5 : index
    %c0_369 = arith.constant 0 : index
    %219 = memref.load %arg8[%c5_368, %c0_369] : memref<12x3xf32, #tpu.memory_space<smem>>
    %c5_370 = arith.constant 5 : index
    %c1_371 = arith.constant 1 : index
    %220 = memref.load %arg8[%c5_370, %c1_371] : memref<12x3xf32, #tpu.memory_space<smem>>
    %c5_372 = arith.constant 5 : index
    %c2_373 = arith.constant 2 : index
    %221 = memref.load %arg8[%c5_372, %c2_373] : memref<12x3xf32, #tpu.memory_space<smem>>
    %c6_374 = arith.constant 6 : index
    %c0_375 = arith.constant 0 : index
    %222 = memref.load %arg8[%c6_374, %c0_375] : memref<12x3xf32, #tpu.memory_space<smem>>
    %c6_376 = arith.constant 6 : index
    %c1_377 = arith.constant 1 : index
    %223 = memref.load %arg8[%c6_376, %c1_377] : memref<12x3xf32, #tpu.memory_space<smem>>
    %c6_378 = arith.constant 6 : index
    %c2_379 = arith.constant 2 : index
    %224 = memref.load %arg8[%c6_378, %c2_379] : memref<12x3xf32, #tpu.memory_space<smem>>
    %c7_380 = arith.constant 7 : index
    %c0_381 = arith.constant 0 : index
    %225 = memref.load %arg8[%c7_380, %c0_381] : memref<12x3xf32, #tpu.memory_space<smem>>
    %c7_382 = arith.constant 7 : index
    %c1_383 = arith.constant 1 : index
    %226 = memref.load %arg8[%c7_382, %c1_383] : memref<12x3xf32, #tpu.memory_space<smem>>
    %c7_384 = arith.constant 7 : index
    %c2_385 = arith.constant 2 : index
    %227 = memref.load %arg8[%c7_384, %c2_385] : memref<12x3xf32, #tpu.memory_space<smem>>
    %c8_386 = arith.constant 8 : index
    %c0_387 = arith.constant 0 : index
    %228 = memref.load %arg8[%c8_386, %c0_387] : memref<12x3xf32, #tpu.memory_space<smem>>
    %c8_388 = arith.constant 8 : index
    %c1_389 = arith.constant 1 : index
    %229 = memref.load %arg8[%c8_388, %c1_389] : memref<12x3xf32, #tpu.memory_space<smem>>
    %c8_390 = arith.constant 8 : index
    %c2_391 = arith.constant 2 : index
    %230 = memref.load %arg8[%c8_390, %c2_391] : memref<12x3xf32, #tpu.memory_space<smem>>
    %c9_392 = arith.constant 9 : index
    %c0_393 = arith.constant 0 : index
    %231 = memref.load %arg8[%c9_392, %c0_393] : memref<12x3xf32, #tpu.memory_space<smem>>
    %c9_394 = arith.constant 9 : index
    %c1_395 = arith.constant 1 : index
    %232 = memref.load %arg8[%c9_394, %c1_395] : memref<12x3xf32, #tpu.memory_space<smem>>
    %c9_396 = arith.constant 9 : index
    %c2_397 = arith.constant 2 : index
    %233 = memref.load %arg8[%c9_396, %c2_397] : memref<12x3xf32, #tpu.memory_space<smem>>
    %c10_398 = arith.constant 10 : index
    %c0_399 = arith.constant 0 : index
    %234 = memref.load %arg8[%c10_398, %c0_399] : memref<12x3xf32, #tpu.memory_space<smem>>
    %c10_400 = arith.constant 10 : index
    %c1_401 = arith.constant 1 : index
    %235 = memref.load %arg8[%c10_400, %c1_401] : memref<12x3xf32, #tpu.memory_space<smem>>
    %c10_402 = arith.constant 10 : index
    %c2_403 = arith.constant 2 : index
    %236 = memref.load %arg8[%c10_402, %c2_403] : memref<12x3xf32, #tpu.memory_space<smem>>
    %c11_404 = arith.constant 11 : index
    %c0_405 = arith.constant 0 : index
    %237 = memref.load %arg8[%c11_404, %c0_405] : memref<12x3xf32, #tpu.memory_space<smem>>
    %c11_406 = arith.constant 11 : index
    %c1_407 = arith.constant 1 : index
    %238 = memref.load %arg8[%c11_406, %c1_407] : memref<12x3xf32, #tpu.memory_space<smem>>
    %c11_408 = arith.constant 11 : index
    %c2_409 = arith.constant 2 : index
    %239 = memref.load %arg8[%c11_408, %c2_409] : memref<12x3xf32, #tpu.memory_space<smem>>
    %c0_410 = arith.constant 0 : index
    %240 = memref.load %arg9[%c0_410] : memref<3xf32, #tpu.memory_space<smem>>
    %c1_411 = arith.constant 1 : index
    %241 = memref.load %arg9[%c1_411] : memref<3xf32, #tpu.memory_space<smem>>
    %c2_412 = arith.constant 2 : index
    %242 = memref.load %arg9[%c2_412] : memref<3xf32, #tpu.memory_space<smem>>
    %c0_413 = arith.constant 0 : index
    %243 = memref.load %arg10[%c0_413] : memref<3xf32, #tpu.memory_space<smem>>
    %c1_414 = arith.constant 1 : index
    %244 = memref.load %arg10[%c1_414] : memref<3xf32, #tpu.memory_space<smem>>
    %c2_415 = arith.constant 2 : index
    %245 = memref.load %arg10[%c2_415] : memref<3xf32, #tpu.memory_space<smem>>
    %c0_416 = arith.constant 0 : index
    %c0_417 = arith.constant 0 : index
    %246 = memref.load %arg11[%c0_416, %c0_417] : memref<3x6xf32, #tpu.memory_space<smem>>
    %c0_418 = arith.constant 0 : index
    %c1_419 = arith.constant 1 : index
    %247 = memref.load %arg11[%c0_418, %c1_419] : memref<3x6xf32, #tpu.memory_space<smem>>
    %c0_420 = arith.constant 0 : index
    %c2_421 = arith.constant 2 : index
    %248 = memref.load %arg11[%c0_420, %c2_421] : memref<3x6xf32, #tpu.memory_space<smem>>
    %c0_422 = arith.constant 0 : index
    %c3_423 = arith.constant 3 : index
    %249 = memref.load %arg11[%c0_422, %c3_423] : memref<3x6xf32, #tpu.memory_space<smem>>
    %c0_424 = arith.constant 0 : index
    %c4_425 = arith.constant 4 : index
    %250 = memref.load %arg11[%c0_424, %c4_425] : memref<3x6xf32, #tpu.memory_space<smem>>
    %c0_426 = arith.constant 0 : index
    %c5_427 = arith.constant 5 : index
    %251 = memref.load %arg11[%c0_426, %c5_427] : memref<3x6xf32, #tpu.memory_space<smem>>
    %c1_428 = arith.constant 1 : index
    %c0_429 = arith.constant 0 : index
    %252 = memref.load %arg11[%c1_428, %c0_429] : memref<3x6xf32, #tpu.memory_space<smem>>
    %c1_430 = arith.constant 1 : index
    %c1_431 = arith.constant 1 : index
    %253 = memref.load %arg11[%c1_430, %c1_431] : memref<3x6xf32, #tpu.memory_space<smem>>
    %c1_432 = arith.constant 1 : index
    %c2_433 = arith.constant 2 : index
    %254 = memref.load %arg11[%c1_432, %c2_433] : memref<3x6xf32, #tpu.memory_space<smem>>
    %c1_434 = arith.constant 1 : index
    %c3_435 = arith.constant 3 : index
    %255 = memref.load %arg11[%c1_434, %c3_435] : memref<3x6xf32, #tpu.memory_space<smem>>
    %c1_436 = arith.constant 1 : index
    %c4_437 = arith.constant 4 : index
    %256 = memref.load %arg11[%c1_436, %c4_437] : memref<3x6xf32, #tpu.memory_space<smem>>
    %c1_438 = arith.constant 1 : index
    %c5_439 = arith.constant 5 : index
    %257 = memref.load %arg11[%c1_438, %c5_439] : memref<3x6xf32, #tpu.memory_space<smem>>
    %c2_440 = arith.constant 2 : index
    %c0_441 = arith.constant 0 : index
    %258 = memref.load %arg11[%c2_440, %c0_441] : memref<3x6xf32, #tpu.memory_space<smem>>
    %c2_442 = arith.constant 2 : index
    %c1_443 = arith.constant 1 : index
    %259 = memref.load %arg11[%c2_442, %c1_443] : memref<3x6xf32, #tpu.memory_space<smem>>
    %c2_444 = arith.constant 2 : index
    %c2_445 = arith.constant 2 : index
    %260 = memref.load %arg11[%c2_444, %c2_445] : memref<3x6xf32, #tpu.memory_space<smem>>
    %c2_446 = arith.constant 2 : index
    %c3_447 = arith.constant 3 : index
    %261 = memref.load %arg11[%c2_446, %c3_447] : memref<3x6xf32, #tpu.memory_space<smem>>
    %c2_448 = arith.constant 2 : index
    %c4_449 = arith.constant 4 : index
    %262 = memref.load %arg11[%c2_448, %c4_449] : memref<3x6xf32, #tpu.memory_space<smem>>
    %c2_450 = arith.constant 2 : index
    %c5_451 = arith.constant 5 : index
    %263 = memref.load %arg11[%c2_450, %c5_451] : memref<3x6xf32, #tpu.memory_space<smem>>
    %c0_452 = arith.constant 0 : index
    %264 = memref.load %arg12[%c0_452] : memref<6xf32, #tpu.memory_space<smem>>
    %c1_453 = arith.constant 1 : index
    %265 = memref.load %arg12[%c1_453] : memref<6xf32, #tpu.memory_space<smem>>
    %c2_454 = arith.constant 2 : index
    %266 = memref.load %arg12[%c2_454] : memref<6xf32, #tpu.memory_space<smem>>
    %c3_455 = arith.constant 3 : index
    %267 = memref.load %arg12[%c3_455] : memref<6xf32, #tpu.memory_space<smem>>
    %c4_456 = arith.constant 4 : index
    %268 = memref.load %arg12[%c4_456] : memref<6xf32, #tpu.memory_space<smem>>
    %c5_457 = arith.constant 5 : index
    %269 = memref.load %arg12[%c5_457] : memref<6xf32, #tpu.memory_space<smem>>
    %270 = tpu.iota {dimensions = array<i32: 1>} : vector<2x256xi32>
    %c15_i32 = arith.constant 15 : i32
    %271 = vector.broadcast %c15_i32 : i32 to vector<2x256xi32>
    %272 = arith.andi %270, %271 : vector<2x256xi32>
    %c14_i32 = arith.constant 14 : i32
    %273 = vector.broadcast %c14_i32 : i32 to vector<2x256xi32>
    %274 = arith.cmpi sle, %272, %273 : vector<2x256xi32>
    %c1_i32 = arith.constant 1 : i32
    %275 = vector.broadcast %c1_i32 : i32 to vector<2x256xi32>
    %276 = arith.cmpi sge, %272, %275 : vector<2x256xi32>
    %c240_i32 = arith.constant 240 : i32
    %277 = vector.broadcast %c240_i32 : i32 to vector<2x256xi32>
    %278 = arith.cmpi slt, %270, %277 : vector<2x256xi32>
    %c16_i32 = arith.constant 16 : i32
    %279 = vector.broadcast %c16_i32 : i32 to vector<2x256xi32>
    %280 = arith.cmpi sge, %270, %279 : vector<2x256xi32>
    %c13_i32 = arith.constant 13 : i32
    %281 = vector.broadcast %c13_i32 : i32 to vector<2x256xi32>
    %282 = arith.cmpi sle, %272, %281 : vector<2x256xi32>
    %c2_i32 = arith.constant 2 : i32
    %283 = vector.broadcast %c2_i32 : i32 to vector<2x256xi32>
    %284 = arith.cmpi sge, %272, %283 : vector<2x256xi32>
    %c224_i32 = arith.constant 224 : i32
    %285 = vector.broadcast %c224_i32 : i32 to vector<2x256xi32>
    %286 = arith.cmpi slt, %270, %285 : vector<2x256xi32>
    %c32_i32 = arith.constant 32 : i32
    %287 = vector.broadcast %c32_i32 : i32 to vector<2x256xi32>
    %288 = arith.cmpi sge, %270, %287 : vector<2x256xi32>
    %c12_i32 = arith.constant 12 : i32
    %289 = vector.broadcast %c12_i32 : i32 to vector<2x256xi32>
    %290 = arith.cmpi sle, %272, %289 : vector<2x256xi32>
    %c3_i32 = arith.constant 3 : i32
    %291 = vector.broadcast %c3_i32 : i32 to vector<2x256xi32>
    %292 = arith.cmpi sge, %272, %291 : vector<2x256xi32>
    %c208_i32 = arith.constant 208 : i32
    %293 = vector.broadcast %c208_i32 : i32 to vector<2x256xi32>
    %294 = arith.cmpi slt, %270, %293 : vector<2x256xi32>
    %c48_i32 = arith.constant 48 : i32
    %295 = vector.broadcast %c48_i32 : i32 to vector<2x256xi32>
    %296 = arith.cmpi sge, %270, %295 : vector<2x256xi32>
    %c0_458 = arith.constant 0 : index
    %c0_459 = arith.constant 0 : index
    %c0_460 = arith.constant 0 : index
    %297 = vector.load %arg1[%c0_458, %c0_459, %c0_460] : memref<3x2x256xf32, #tpu.memory_space<vmem>>, vector<1x2x256xf32>
    %298 = vector.shape_cast %297 : vector<1x2x256xf32> to vector<2x256xf32>
    %c1_461 = arith.constant 1 : index
    %c0_462 = arith.constant 0 : index
    %c0_463 = arith.constant 0 : index
    %299 = vector.load %arg1[%c1_461, %c0_462, %c0_463] : memref<3x2x256xf32, #tpu.memory_space<vmem>>, vector<1x2x256xf32>
    %300 = vector.shape_cast %299 : vector<1x2x256xf32> to vector<2x256xf32>
    %c2_464 = arith.constant 2 : index
    %c0_465 = arith.constant 0 : index
    %c0_466 = arith.constant 0 : index
    %301 = vector.load %arg1[%c2_464, %c0_465, %c0_466] : memref<3x2x256xf32, #tpu.memory_space<vmem>>, vector<1x2x256xf32>
    %302 = vector.shape_cast %301 : vector<1x2x256xf32> to vector<2x256xf32>
    %c3_i32_467 = arith.constant 3 : i32
    %303 = tpu.dynamic_rotate %298 by %c3_i32_467 dim 1 : vector<2x256xf32>, i32 -> vector<2x256xf32>
    %cst = arith.constant 0.000000e+00 : f32
    %304 = vector.broadcast %cst : f32 to vector<2x256xf32>
    %305 = arith.select %292, %303, %304 : vector<2x256xi1>, vector<2x256xf32>
    %c2_i32_468 = arith.constant 2 : i32
    %306 = tpu.dynamic_rotate %298 by %c2_i32_468 dim 1 : vector<2x256xf32>, i32 -> vector<2x256xf32>
    %cst_469 = arith.constant 0.000000e+00 : f32
    %307 = vector.broadcast %cst_469 : f32 to vector<2x256xf32>
    %308 = arith.select %284, %306, %307 : vector<2x256xi1>, vector<2x256xf32>
    %c1_i32_470 = arith.constant 1 : i32
    %309 = tpu.dynamic_rotate %298 by %c1_i32_470 dim 1 : vector<2x256xf32>, i32 -> vector<2x256xf32>
    %cst_471 = arith.constant 0.000000e+00 : f32
    %310 = vector.broadcast %cst_471 : f32 to vector<2x256xf32>
    %311 = arith.select %276, %309, %310 : vector<2x256xi1>, vector<2x256xf32>
    %c255_i32 = arith.constant 255 : i32
    %312 = tpu.dynamic_rotate %298 by %c255_i32 dim 1 : vector<2x256xf32>, i32 -> vector<2x256xf32>
    %cst_472 = arith.constant 0.000000e+00 : f32
    %313 = vector.broadcast %cst_472 : f32 to vector<2x256xf32>
    %314 = arith.select %274, %312, %313 : vector<2x256xi1>, vector<2x256xf32>
    %c254_i32 = arith.constant 254 : i32
    %315 = tpu.dynamic_rotate %298 by %c254_i32 dim 1 : vector<2x256xf32>, i32 -> vector<2x256xf32>
    %cst_473 = arith.constant 0.000000e+00 : f32
    %316 = vector.broadcast %cst_473 : f32 to vector<2x256xf32>
    %317 = arith.select %282, %315, %316 : vector<2x256xi1>, vector<2x256xf32>
    %c253_i32 = arith.constant 253 : i32
    %318 = tpu.dynamic_rotate %298 by %c253_i32 dim 1 : vector<2x256xf32>, i32 -> vector<2x256xf32>
    %cst_474 = arith.constant 0.000000e+00 : f32
    %319 = vector.broadcast %cst_474 : f32 to vector<2x256xf32>
    %320 = arith.select %290, %318, %319 : vector<2x256xi1>, vector<2x256xf32>
    %321 = vector.broadcast %0 : f32 to vector<2x256xf32>
    %322 = arith.mulf %305, %321 : vector<2x256xf32>
    %323 = vector.broadcast %1 : f32 to vector<2x256xf32>
    %324 = arith.mulf %308, %323 : vector<2x256xf32>
    %325 = arith.addf %322, %324 : vector<2x256xf32>
    %326 = vector.broadcast %2 : f32 to vector<2x256xf32>
    %327 = arith.mulf %311, %326 : vector<2x256xf32>
    %328 = arith.addf %325, %327 : vector<2x256xf32>
    %329 = vector.broadcast %3 : f32 to vector<2x256xf32>
    %330 = arith.mulf %298, %329 : vector<2x256xf32>
    %331 = arith.addf %328, %330 : vector<2x256xf32>
    %332 = vector.broadcast %4 : f32 to vector<2x256xf32>
    %333 = arith.mulf %314, %332 : vector<2x256xf32>
    %334 = arith.addf %331, %333 : vector<2x256xf32>
    %335 = vector.broadcast %5 : f32 to vector<2x256xf32>
    %336 = arith.mulf %317, %335 : vector<2x256xf32>
    %337 = arith.addf %334, %336 : vector<2x256xf32>
    %338 = vector.broadcast %6 : f32 to vector<2x256xf32>
    %339 = arith.mulf %320, %338 : vector<2x256xf32>
    %340 = arith.addf %337, %339 : vector<2x256xf32>
    %c48_i32_475 = arith.constant 48 : i32
    %341 = tpu.dynamic_rotate %340 by %c48_i32_475 dim 1 : vector<2x256xf32>, i32 -> vector<2x256xf32>
    %cst_476 = arith.constant 0.000000e+00 : f32
    %342 = vector.broadcast %cst_476 : f32 to vector<2x256xf32>
    %343 = arith.select %296, %341, %342 : vector<2x256xi1>, vector<2x256xf32>
    %344 = vector.broadcast %7 : f32 to vector<2x256xf32>
    %345 = arith.mulf %305, %344 : vector<2x256xf32>
    %346 = vector.broadcast %8 : f32 to vector<2x256xf32>
    %347 = arith.mulf %308, %346 : vector<2x256xf32>
    %348 = arith.addf %345, %347 : vector<2x256xf32>
    %349 = vector.broadcast %9 : f32 to vector<2x256xf32>
    %350 = arith.mulf %311, %349 : vector<2x256xf32>
    %351 = arith.addf %348, %350 : vector<2x256xf32>
    %352 = vector.broadcast %10 : f32 to vector<2x256xf32>
    %353 = arith.mulf %298, %352 : vector<2x256xf32>
    %354 = arith.addf %351, %353 : vector<2x256xf32>
    %355 = vector.broadcast %11 : f32 to vector<2x256xf32>
    %356 = arith.mulf %314, %355 : vector<2x256xf32>
    %357 = arith.addf %354, %356 : vector<2x256xf32>
    %358 = vector.broadcast %12 : f32 to vector<2x256xf32>
    %359 = arith.mulf %317, %358 : vector<2x256xf32>
    %360 = arith.addf %357, %359 : vector<2x256xf32>
    %361 = vector.broadcast %13 : f32 to vector<2x256xf32>
    %362 = arith.mulf %320, %361 : vector<2x256xf32>
    %363 = arith.addf %360, %362 : vector<2x256xf32>
    %c32_i32_477 = arith.constant 32 : i32
    %364 = tpu.dynamic_rotate %363 by %c32_i32_477 dim 1 : vector<2x256xf32>, i32 -> vector<2x256xf32>
    %cst_478 = arith.constant 0.000000e+00 : f32
    %365 = vector.broadcast %cst_478 : f32 to vector<2x256xf32>
    %366 = arith.select %288, %364, %365 : vector<2x256xi1>, vector<2x256xf32>
    %367 = arith.addf %343, %366 : vector<2x256xf32>
    %368 = vector.broadcast %14 : f32 to vector<2x256xf32>
    %369 = arith.mulf %305, %368 : vector<2x256xf32>
    %370 = vector.broadcast %15 : f32 to vector<2x256xf32>
    %371 = arith.mulf %308, %370 : vector<2x256xf32>
    %372 = arith.addf %369, %371 : vector<2x256xf32>
    %373 = vector.broadcast %16 : f32 to vector<2x256xf32>
    %374 = arith.mulf %311, %373 : vector<2x256xf32>
    %375 = arith.addf %372, %374 : vector<2x256xf32>
    %376 = vector.broadcast %17 : f32 to vector<2x256xf32>
    %377 = arith.mulf %298, %376 : vector<2x256xf32>
    %378 = arith.addf %375, %377 : vector<2x256xf32>
    %379 = vector.broadcast %18 : f32 to vector<2x256xf32>
    %380 = arith.mulf %314, %379 : vector<2x256xf32>
    %381 = arith.addf %378, %380 : vector<2x256xf32>
    %382 = vector.broadcast %19 : f32 to vector<2x256xf32>
    %383 = arith.mulf %317, %382 : vector<2x256xf32>
    %384 = arith.addf %381, %383 : vector<2x256xf32>
    %385 = vector.broadcast %20 : f32 to vector<2x256xf32>
    %386 = arith.mulf %320, %385 : vector<2x256xf32>
    %387 = arith.addf %384, %386 : vector<2x256xf32>
    %c16_i32_479 = arith.constant 16 : i32
    %388 = tpu.dynamic_rotate %387 by %c16_i32_479 dim 1 : vector<2x256xf32>, i32 -> vector<2x256xf32>
    %cst_480 = arith.constant 0.000000e+00 : f32
    %389 = vector.broadcast %cst_480 : f32 to vector<2x256xf32>
    %390 = arith.select %280, %388, %389 : vector<2x256xi1>, vector<2x256xf32>
    %391 = arith.addf %367, %390 : vector<2x256xf32>
    %392 = vector.broadcast %21 : f32 to vector<2x256xf32>
    %393 = arith.mulf %305, %392 : vector<2x256xf32>
    %394 = vector.broadcast %22 : f32 to vector<2x256xf32>
    %395 = arith.mulf %308, %394 : vector<2x256xf32>
    %396 = arith.addf %393, %395 : vector<2x256xf32>
    %397 = vector.broadcast %23 : f32 to vector<2x256xf32>
    %398 = arith.mulf %311, %397 : vector<2x256xf32>
    %399 = arith.addf %396, %398 : vector<2x256xf32>
    %400 = vector.broadcast %24 : f32 to vector<2x256xf32>
    %401 = arith.mulf %298, %400 : vector<2x256xf32>
    %402 = arith.addf %399, %401 : vector<2x256xf32>
    %403 = vector.broadcast %25 : f32 to vector<2x256xf32>
    %404 = arith.mulf %314, %403 : vector<2x256xf32>
    %405 = arith.addf %402, %404 : vector<2x256xf32>
    %406 = vector.broadcast %26 : f32 to vector<2x256xf32>
    %407 = arith.mulf %317, %406 : vector<2x256xf32>
    %408 = arith.addf %405, %407 : vector<2x256xf32>
    %409 = vector.broadcast %27 : f32 to vector<2x256xf32>
    %410 = arith.mulf %320, %409 : vector<2x256xf32>
    %411 = arith.addf %408, %410 : vector<2x256xf32>
    %412 = arith.addf %391, %411 : vector<2x256xf32>
    %413 = vector.broadcast %28 : f32 to vector<2x256xf32>
    %414 = arith.mulf %305, %413 : vector<2x256xf32>
    %415 = vector.broadcast %29 : f32 to vector<2x256xf32>
    %416 = arith.mulf %308, %415 : vector<2x256xf32>
    %417 = arith.addf %414, %416 : vector<2x256xf32>
    %418 = vector.broadcast %30 : f32 to vector<2x256xf32>
    %419 = arith.mulf %311, %418 : vector<2x256xf32>
    %420 = arith.addf %417, %419 : vector<2x256xf32>
    %421 = vector.broadcast %31 : f32 to vector<2x256xf32>
    %422 = arith.mulf %298, %421 : vector<2x256xf32>
    %423 = arith.addf %420, %422 : vector<2x256xf32>
    %424 = vector.broadcast %32 : f32 to vector<2x256xf32>
    %425 = arith.mulf %314, %424 : vector<2x256xf32>
    %426 = arith.addf %423, %425 : vector<2x256xf32>
    %427 = vector.broadcast %33 : f32 to vector<2x256xf32>
    %428 = arith.mulf %317, %427 : vector<2x256xf32>
    %429 = arith.addf %426, %428 : vector<2x256xf32>
    %430 = vector.broadcast %34 : f32 to vector<2x256xf32>
    %431 = arith.mulf %320, %430 : vector<2x256xf32>
    %432 = arith.addf %429, %431 : vector<2x256xf32>
    %c240_i32_481 = arith.constant 240 : i32
    %433 = tpu.dynamic_rotate %432 by %c240_i32_481 dim 1 : vector<2x256xf32>, i32 -> vector<2x256xf32>
    %cst_482 = arith.constant 0.000000e+00 : f32
    %434 = vector.broadcast %cst_482 : f32 to vector<2x256xf32>
    %435 = arith.select %278, %433, %434 : vector<2x256xi1>, vector<2x256xf32>
    %436 = arith.addf %412, %435 : vector<2x256xf32>
    %437 = vector.broadcast %35 : f32 to vector<2x256xf32>
    %438 = arith.mulf %305, %437 : vector<2x256xf32>
    %439 = vector.broadcast %36 : f32 to vector<2x256xf32>
    %440 = arith.mulf %308, %439 : vector<2x256xf32>
    %441 = arith.addf %438, %440 : vector<2x256xf32>
    %442 = vector.broadcast %37 : f32 to vector<2x256xf32>
    %443 = arith.mulf %311, %442 : vector<2x256xf32>
    %444 = arith.addf %441, %443 : vector<2x256xf32>
    %445 = vector.broadcast %38 : f32 to vector<2x256xf32>
    %446 = arith.mulf %298, %445 : vector<2x256xf32>
    %447 = arith.addf %444, %446 : vector<2x256xf32>
    %448 = vector.broadcast %39 : f32 to vector<2x256xf32>
    %449 = arith.mulf %314, %448 : vector<2x256xf32>
    %450 = arith.addf %447, %449 : vector<2x256xf32>
    %451 = vector.broadcast %40 : f32 to vector<2x256xf32>
    %452 = arith.mulf %317, %451 : vector<2x256xf32>
    %453 = arith.addf %450, %452 : vector<2x256xf32>
    %454 = vector.broadcast %41 : f32 to vector<2x256xf32>
    %455 = arith.mulf %320, %454 : vector<2x256xf32>
    %456 = arith.addf %453, %455 : vector<2x256xf32>
    %c224_i32_483 = arith.constant 224 : i32
    %457 = tpu.dynamic_rotate %456 by %c224_i32_483 dim 1 : vector<2x256xf32>, i32 -> vector<2x256xf32>
    %cst_484 = arith.constant 0.000000e+00 : f32
    %458 = vector.broadcast %cst_484 : f32 to vector<2x256xf32>
    %459 = arith.select %286, %457, %458 : vector<2x256xi1>, vector<2x256xf32>
    %460 = arith.addf %436, %459 : vector<2x256xf32>
    %461 = vector.broadcast %42 : f32 to vector<2x256xf32>
    %462 = arith.mulf %305, %461 : vector<2x256xf32>
    %463 = vector.broadcast %43 : f32 to vector<2x256xf32>
    %464 = arith.mulf %308, %463 : vector<2x256xf32>
    %465 = arith.addf %462, %464 : vector<2x256xf32>
    %466 = vector.broadcast %44 : f32 to vector<2x256xf32>
    %467 = arith.mulf %311, %466 : vector<2x256xf32>
    %468 = arith.addf %465, %467 : vector<2x256xf32>
    %469 = vector.broadcast %45 : f32 to vector<2x256xf32>
    %470 = arith.mulf %298, %469 : vector<2x256xf32>
    %471 = arith.addf %468, %470 : vector<2x256xf32>
    %472 = vector.broadcast %46 : f32 to vector<2x256xf32>
    %473 = arith.mulf %314, %472 : vector<2x256xf32>
    %474 = arith.addf %471, %473 : vector<2x256xf32>
    %475 = vector.broadcast %47 : f32 to vector<2x256xf32>
    %476 = arith.mulf %317, %475 : vector<2x256xf32>
    %477 = arith.addf %474, %476 : vector<2x256xf32>
    %478 = vector.broadcast %48 : f32 to vector<2x256xf32>
    %479 = arith.mulf %320, %478 : vector<2x256xf32>
    %480 = arith.addf %477, %479 : vector<2x256xf32>
    %c208_i32_485 = arith.constant 208 : i32
    %481 = tpu.dynamic_rotate %480 by %c208_i32_485 dim 1 : vector<2x256xf32>, i32 -> vector<2x256xf32>
    %cst_486 = arith.constant 0.000000e+00 : f32
    %482 = vector.broadcast %cst_486 : f32 to vector<2x256xf32>
    %483 = arith.select %294, %481, %482 : vector<2x256xi1>, vector<2x256xf32>
    %484 = arith.addf %460, %483 : vector<2x256xf32>
    %485 = vector.broadcast %147 : f32 to vector<2x256xf32>
    %486 = arith.addf %484, %485 : vector<2x256xf32>
    %c3_i32_487 = arith.constant 3 : i32
    %487 = tpu.dynamic_rotate %300 by %c3_i32_487 dim 1 : vector<2x256xf32>, i32 -> vector<2x256xf32>
    %cst_488 = arith.constant 0.000000e+00 : f32
    %488 = vector.broadcast %cst_488 : f32 to vector<2x256xf32>
    %489 = arith.select %292, %487, %488 : vector<2x256xi1>, vector<2x256xf32>
    %c2_i32_489 = arith.constant 2 : i32
    %490 = tpu.dynamic_rotate %300 by %c2_i32_489 dim 1 : vector<2x256xf32>, i32 -> vector<2x256xf32>
    %cst_490 = arith.constant 0.000000e+00 : f32
    %491 = vector.broadcast %cst_490 : f32 to vector<2x256xf32>
    %492 = arith.select %284, %490, %491 : vector<2x256xi1>, vector<2x256xf32>
    %c1_i32_491 = arith.constant 1 : i32
    %493 = tpu.dynamic_rotate %300 by %c1_i32_491 dim 1 : vector<2x256xf32>, i32 -> vector<2x256xf32>
    %cst_492 = arith.constant 0.000000e+00 : f32
    %494 = vector.broadcast %cst_492 : f32 to vector<2x256xf32>
    %495 = arith.select %276, %493, %494 : vector<2x256xi1>, vector<2x256xf32>
    %c255_i32_493 = arith.constant 255 : i32
    %496 = tpu.dynamic_rotate %300 by %c255_i32_493 dim 1 : vector<2x256xf32>, i32 -> vector<2x256xf32>
    %cst_494 = arith.constant 0.000000e+00 : f32
    %497 = vector.broadcast %cst_494 : f32 to vector<2x256xf32>
    %498 = arith.select %274, %496, %497 : vector<2x256xi1>, vector<2x256xf32>
    %c254_i32_495 = arith.constant 254 : i32
    %499 = tpu.dynamic_rotate %300 by %c254_i32_495 dim 1 : vector<2x256xf32>, i32 -> vector<2x256xf32>
    %cst_496 = arith.constant 0.000000e+00 : f32
    %500 = vector.broadcast %cst_496 : f32 to vector<2x256xf32>
    %501 = arith.select %282, %499, %500 : vector<2x256xi1>, vector<2x256xf32>
    %c253_i32_497 = arith.constant 253 : i32
    %502 = tpu.dynamic_rotate %300 by %c253_i32_497 dim 1 : vector<2x256xf32>, i32 -> vector<2x256xf32>
    %cst_498 = arith.constant 0.000000e+00 : f32
    %503 = vector.broadcast %cst_498 : f32 to vector<2x256xf32>
    %504 = arith.select %290, %502, %503 : vector<2x256xi1>, vector<2x256xf32>
    %505 = vector.broadcast %49 : f32 to vector<2x256xf32>
    %506 = arith.mulf %489, %505 : vector<2x256xf32>
    %507 = vector.broadcast %50 : f32 to vector<2x256xf32>
    %508 = arith.mulf %492, %507 : vector<2x256xf32>
    %509 = arith.addf %506, %508 : vector<2x256xf32>
    %510 = vector.broadcast %51 : f32 to vector<2x256xf32>
    %511 = arith.mulf %495, %510 : vector<2x256xf32>
    %512 = arith.addf %509, %511 : vector<2x256xf32>
    %513 = vector.broadcast %52 : f32 to vector<2x256xf32>
    %514 = arith.mulf %300, %513 : vector<2x256xf32>
    %515 = arith.addf %512, %514 : vector<2x256xf32>
    %516 = vector.broadcast %53 : f32 to vector<2x256xf32>
    %517 = arith.mulf %498, %516 : vector<2x256xf32>
    %518 = arith.addf %515, %517 : vector<2x256xf32>
    %519 = vector.broadcast %54 : f32 to vector<2x256xf32>
    %520 = arith.mulf %501, %519 : vector<2x256xf32>
    %521 = arith.addf %518, %520 : vector<2x256xf32>
    %522 = vector.broadcast %55 : f32 to vector<2x256xf32>
    %523 = arith.mulf %504, %522 : vector<2x256xf32>
    %524 = arith.addf %521, %523 : vector<2x256xf32>
    %c48_i32_499 = arith.constant 48 : i32
    %525 = tpu.dynamic_rotate %524 by %c48_i32_499 dim 1 : vector<2x256xf32>, i32 -> vector<2x256xf32>
    %cst_500 = arith.constant 0.000000e+00 : f32
    %526 = vector.broadcast %cst_500 : f32 to vector<2x256xf32>
    %527 = arith.select %296, %525, %526 : vector<2x256xi1>, vector<2x256xf32>
    %528 = vector.broadcast %56 : f32 to vector<2x256xf32>
    %529 = arith.mulf %489, %528 : vector<2x256xf32>
    %530 = vector.broadcast %57 : f32 to vector<2x256xf32>
    %531 = arith.mulf %492, %530 : vector<2x256xf32>
    %532 = arith.addf %529, %531 : vector<2x256xf32>
    %533 = vector.broadcast %58 : f32 to vector<2x256xf32>
    %534 = arith.mulf %495, %533 : vector<2x256xf32>
    %535 = arith.addf %532, %534 : vector<2x256xf32>
    %536 = vector.broadcast %59 : f32 to vector<2x256xf32>
    %537 = arith.mulf %300, %536 : vector<2x256xf32>
    %538 = arith.addf %535, %537 : vector<2x256xf32>
    %539 = vector.broadcast %60 : f32 to vector<2x256xf32>
    %540 = arith.mulf %498, %539 : vector<2x256xf32>
    %541 = arith.addf %538, %540 : vector<2x256xf32>
    %542 = vector.broadcast %61 : f32 to vector<2x256xf32>
    %543 = arith.mulf %501, %542 : vector<2x256xf32>
    %544 = arith.addf %541, %543 : vector<2x256xf32>
    %545 = vector.broadcast %62 : f32 to vector<2x256xf32>
    %546 = arith.mulf %504, %545 : vector<2x256xf32>
    %547 = arith.addf %544, %546 : vector<2x256xf32>
    %c32_i32_501 = arith.constant 32 : i32
    %548 = tpu.dynamic_rotate %547 by %c32_i32_501 dim 1 : vector<2x256xf32>, i32 -> vector<2x256xf32>
    %cst_502 = arith.constant 0.000000e+00 : f32
    %549 = vector.broadcast %cst_502 : f32 to vector<2x256xf32>
    %550 = arith.select %288, %548, %549 : vector<2x256xi1>, vector<2x256xf32>
    %551 = arith.addf %527, %550 : vector<2x256xf32>
    %552 = vector.broadcast %63 : f32 to vector<2x256xf32>
    %553 = arith.mulf %489, %552 : vector<2x256xf32>
    %554 = vector.broadcast %64 : f32 to vector<2x256xf32>
    %555 = arith.mulf %492, %554 : vector<2x256xf32>
    %556 = arith.addf %553, %555 : vector<2x256xf32>
    %557 = vector.broadcast %65 : f32 to vector<2x256xf32>
    %558 = arith.mulf %495, %557 : vector<2x256xf32>
    %559 = arith.addf %556, %558 : vector<2x256xf32>
    %560 = vector.broadcast %66 : f32 to vector<2x256xf32>
    %561 = arith.mulf %300, %560 : vector<2x256xf32>
    %562 = arith.addf %559, %561 : vector<2x256xf32>
    %563 = vector.broadcast %67 : f32 to vector<2x256xf32>
    %564 = arith.mulf %498, %563 : vector<2x256xf32>
    %565 = arith.addf %562, %564 : vector<2x256xf32>
    %566 = vector.broadcast %68 : f32 to vector<2x256xf32>
    %567 = arith.mulf %501, %566 : vector<2x256xf32>
    %568 = arith.addf %565, %567 : vector<2x256xf32>
    %569 = vector.broadcast %69 : f32 to vector<2x256xf32>
    %570 = arith.mulf %504, %569 : vector<2x256xf32>
    %571 = arith.addf %568, %570 : vector<2x256xf32>
    %c16_i32_503 = arith.constant 16 : i32
    %572 = tpu.dynamic_rotate %571 by %c16_i32_503 dim 1 : vector<2x256xf32>, i32 -> vector<2x256xf32>
    %cst_504 = arith.constant 0.000000e+00 : f32
    %573 = vector.broadcast %cst_504 : f32 to vector<2x256xf32>
    %574 = arith.select %280, %572, %573 : vector<2x256xi1>, vector<2x256xf32>
    %575 = arith.addf %551, %574 : vector<2x256xf32>
    %576 = vector.broadcast %70 : f32 to vector<2x256xf32>
    %577 = arith.mulf %489, %576 : vector<2x256xf32>
    %578 = vector.broadcast %71 : f32 to vector<2x256xf32>
    %579 = arith.mulf %492, %578 : vector<2x256xf32>
    %580 = arith.addf %577, %579 : vector<2x256xf32>
    %581 = vector.broadcast %72 : f32 to vector<2x256xf32>
    %582 = arith.mulf %495, %581 : vector<2x256xf32>
    %583 = arith.addf %580, %582 : vector<2x256xf32>
    %584 = vector.broadcast %73 : f32 to vector<2x256xf32>
    %585 = arith.mulf %300, %584 : vector<2x256xf32>
    %586 = arith.addf %583, %585 : vector<2x256xf32>
    %587 = vector.broadcast %74 : f32 to vector<2x256xf32>
    %588 = arith.mulf %498, %587 : vector<2x256xf32>
    %589 = arith.addf %586, %588 : vector<2x256xf32>
    %590 = vector.broadcast %75 : f32 to vector<2x256xf32>
    %591 = arith.mulf %501, %590 : vector<2x256xf32>
    %592 = arith.addf %589, %591 : vector<2x256xf32>
    %593 = vector.broadcast %76 : f32 to vector<2x256xf32>
    %594 = arith.mulf %504, %593 : vector<2x256xf32>
    %595 = arith.addf %592, %594 : vector<2x256xf32>
    %596 = arith.addf %575, %595 : vector<2x256xf32>
    %597 = vector.broadcast %77 : f32 to vector<2x256xf32>
    %598 = arith.mulf %489, %597 : vector<2x256xf32>
    %599 = vector.broadcast %78 : f32 to vector<2x256xf32>
    %600 = arith.mulf %492, %599 : vector<2x256xf32>
    %601 = arith.addf %598, %600 : vector<2x256xf32>
    %602 = vector.broadcast %79 : f32 to vector<2x256xf32>
    %603 = arith.mulf %495, %602 : vector<2x256xf32>
    %604 = arith.addf %601, %603 : vector<2x256xf32>
    %605 = vector.broadcast %80 : f32 to vector<2x256xf32>
    %606 = arith.mulf %300, %605 : vector<2x256xf32>
    %607 = arith.addf %604, %606 : vector<2x256xf32>
    %608 = vector.broadcast %81 : f32 to vector<2x256xf32>
    %609 = arith.mulf %498, %608 : vector<2x256xf32>
    %610 = arith.addf %607, %609 : vector<2x256xf32>
    %611 = vector.broadcast %82 : f32 to vector<2x256xf32>
    %612 = arith.mulf %501, %611 : vector<2x256xf32>
    %613 = arith.addf %610, %612 : vector<2x256xf32>
    %614 = vector.broadcast %83 : f32 to vector<2x256xf32>
    %615 = arith.mulf %504, %614 : vector<2x256xf32>
    %616 = arith.addf %613, %615 : vector<2x256xf32>
    %c240_i32_505 = arith.constant 240 : i32
    %617 = tpu.dynamic_rotate %616 by %c240_i32_505 dim 1 : vector<2x256xf32>, i32 -> vector<2x256xf32>
    %cst_506 = arith.constant 0.000000e+00 : f32
    %618 = vector.broadcast %cst_506 : f32 to vector<2x256xf32>
    %619 = arith.select %278, %617, %618 : vector<2x256xi1>, vector<2x256xf32>
    %620 = arith.addf %596, %619 : vector<2x256xf32>
    %621 = vector.broadcast %84 : f32 to vector<2x256xf32>
    %622 = arith.mulf %489, %621 : vector<2x256xf32>
    %623 = vector.broadcast %85 : f32 to vector<2x256xf32>
    %624 = arith.mulf %492, %623 : vector<2x256xf32>
    %625 = arith.addf %622, %624 : vector<2x256xf32>
    %626 = vector.broadcast %86 : f32 to vector<2x256xf32>
    %627 = arith.mulf %495, %626 : vector<2x256xf32>
    %628 = arith.addf %625, %627 : vector<2x256xf32>
    %629 = vector.broadcast %87 : f32 to vector<2x256xf32>
    %630 = arith.mulf %300, %629 : vector<2x256xf32>
    %631 = arith.addf %628, %630 : vector<2x256xf32>
    %632 = vector.broadcast %88 : f32 to vector<2x256xf32>
    %633 = arith.mulf %498, %632 : vector<2x256xf32>
    %634 = arith.addf %631, %633 : vector<2x256xf32>
    %635 = vector.broadcast %89 : f32 to vector<2x256xf32>
    %636 = arith.mulf %501, %635 : vector<2x256xf32>
    %637 = arith.addf %634, %636 : vector<2x256xf32>
    %638 = vector.broadcast %90 : f32 to vector<2x256xf32>
    %639 = arith.mulf %504, %638 : vector<2x256xf32>
    %640 = arith.addf %637, %639 : vector<2x256xf32>
    %c224_i32_507 = arith.constant 224 : i32
    %641 = tpu.dynamic_rotate %640 by %c224_i32_507 dim 1 : vector<2x256xf32>, i32 -> vector<2x256xf32>
    %cst_508 = arith.constant 0.000000e+00 : f32
    %642 = vector.broadcast %cst_508 : f32 to vector<2x256xf32>
    %643 = arith.select %286, %641, %642 : vector<2x256xi1>, vector<2x256xf32>
    %644 = arith.addf %620, %643 : vector<2x256xf32>
    %645 = vector.broadcast %91 : f32 to vector<2x256xf32>
    %646 = arith.mulf %489, %645 : vector<2x256xf32>
    %647 = vector.broadcast %92 : f32 to vector<2x256xf32>
    %648 = arith.mulf %492, %647 : vector<2x256xf32>
    %649 = arith.addf %646, %648 : vector<2x256xf32>
    %650 = vector.broadcast %93 : f32 to vector<2x256xf32>
    %651 = arith.mulf %495, %650 : vector<2x256xf32>
    %652 = arith.addf %649, %651 : vector<2x256xf32>
    %653 = vector.broadcast %94 : f32 to vector<2x256xf32>
    %654 = arith.mulf %300, %653 : vector<2x256xf32>
    %655 = arith.addf %652, %654 : vector<2x256xf32>
    %656 = vector.broadcast %95 : f32 to vector<2x256xf32>
    %657 = arith.mulf %498, %656 : vector<2x256xf32>
    %658 = arith.addf %655, %657 : vector<2x256xf32>
    %659 = vector.broadcast %96 : f32 to vector<2x256xf32>
    %660 = arith.mulf %501, %659 : vector<2x256xf32>
    %661 = arith.addf %658, %660 : vector<2x256xf32>
    %662 = vector.broadcast %97 : f32 to vector<2x256xf32>
    %663 = arith.mulf %504, %662 : vector<2x256xf32>
    %664 = arith.addf %661, %663 : vector<2x256xf32>
    %c208_i32_509 = arith.constant 208 : i32
    %665 = tpu.dynamic_rotate %664 by %c208_i32_509 dim 1 : vector<2x256xf32>, i32 -> vector<2x256xf32>
    %cst_510 = arith.constant 0.000000e+00 : f32
    %666 = vector.broadcast %cst_510 : f32 to vector<2x256xf32>
    %667 = arith.select %294, %665, %666 : vector<2x256xi1>, vector<2x256xf32>
    %668 = arith.addf %644, %667 : vector<2x256xf32>
    %669 = vector.broadcast %148 : f32 to vector<2x256xf32>
    %670 = arith.addf %668, %669 : vector<2x256xf32>
    %c3_i32_511 = arith.constant 3 : i32
    %671 = tpu.dynamic_rotate %302 by %c3_i32_511 dim 1 : vector<2x256xf32>, i32 -> vector<2x256xf32>
    %cst_512 = arith.constant 0.000000e+00 : f32
    %672 = vector.broadcast %cst_512 : f32 to vector<2x256xf32>
    %673 = arith.select %292, %671, %672 : vector<2x256xi1>, vector<2x256xf32>
    %c2_i32_513 = arith.constant 2 : i32
    %674 = tpu.dynamic_rotate %302 by %c2_i32_513 dim 1 : vector<2x256xf32>, i32 -> vector<2x256xf32>
    %cst_514 = arith.constant 0.000000e+00 : f32
    %675 = vector.broadcast %cst_514 : f32 to vector<2x256xf32>
    %676 = arith.select %284, %674, %675 : vector<2x256xi1>, vector<2x256xf32>
    %c1_i32_515 = arith.constant 1 : i32
    %677 = tpu.dynamic_rotate %302 by %c1_i32_515 dim 1 : vector<2x256xf32>, i32 -> vector<2x256xf32>
    %cst_516 = arith.constant 0.000000e+00 : f32
    %678 = vector.broadcast %cst_516 : f32 to vector<2x256xf32>
    %679 = arith.select %276, %677, %678 : vector<2x256xi1>, vector<2x256xf32>
    %c255_i32_517 = arith.constant 255 : i32
    %680 = tpu.dynamic_rotate %302 by %c255_i32_517 dim 1 : vector<2x256xf32>, i32 -> vector<2x256xf32>
    %cst_518 = arith.constant 0.000000e+00 : f32
    %681 = vector.broadcast %cst_518 : f32 to vector<2x256xf32>
    %682 = arith.select %274, %680, %681 : vector<2x256xi1>, vector<2x256xf32>
    %c254_i32_519 = arith.constant 254 : i32
    %683 = tpu.dynamic_rotate %302 by %c254_i32_519 dim 1 : vector<2x256xf32>, i32 -> vector<2x256xf32>
    %cst_520 = arith.constant 0.000000e+00 : f32
    %684 = vector.broadcast %cst_520 : f32 to vector<2x256xf32>
    %685 = arith.select %282, %683, %684 : vector<2x256xi1>, vector<2x256xf32>
    %c253_i32_521 = arith.constant 253 : i32
    %686 = tpu.dynamic_rotate %302 by %c253_i32_521 dim 1 : vector<2x256xf32>, i32 -> vector<2x256xf32>
    %cst_522 = arith.constant 0.000000e+00 : f32
    %687 = vector.broadcast %cst_522 : f32 to vector<2x256xf32>
    %688 = arith.select %290, %686, %687 : vector<2x256xi1>, vector<2x256xf32>
    %689 = vector.broadcast %98 : f32 to vector<2x256xf32>
    %690 = arith.mulf %673, %689 : vector<2x256xf32>
    %691 = vector.broadcast %99 : f32 to vector<2x256xf32>
    %692 = arith.mulf %676, %691 : vector<2x256xf32>
    %693 = arith.addf %690, %692 : vector<2x256xf32>
    %694 = vector.broadcast %100 : f32 to vector<2x256xf32>
    %695 = arith.mulf %679, %694 : vector<2x256xf32>
    %696 = arith.addf %693, %695 : vector<2x256xf32>
    %697 = vector.broadcast %101 : f32 to vector<2x256xf32>
    %698 = arith.mulf %302, %697 : vector<2x256xf32>
    %699 = arith.addf %696, %698 : vector<2x256xf32>
    %700 = vector.broadcast %102 : f32 to vector<2x256xf32>
    %701 = arith.mulf %682, %700 : vector<2x256xf32>
    %702 = arith.addf %699, %701 : vector<2x256xf32>
    %703 = vector.broadcast %103 : f32 to vector<2x256xf32>
    %704 = arith.mulf %685, %703 : vector<2x256xf32>
    %705 = arith.addf %702, %704 : vector<2x256xf32>
    %706 = vector.broadcast %104 : f32 to vector<2x256xf32>
    %707 = arith.mulf %688, %706 : vector<2x256xf32>
    %708 = arith.addf %705, %707 : vector<2x256xf32>
    %c48_i32_523 = arith.constant 48 : i32
    %709 = tpu.dynamic_rotate %708 by %c48_i32_523 dim 1 : vector<2x256xf32>, i32 -> vector<2x256xf32>
    %cst_524 = arith.constant 0.000000e+00 : f32
    %710 = vector.broadcast %cst_524 : f32 to vector<2x256xf32>
    %711 = arith.select %296, %709, %710 : vector<2x256xi1>, vector<2x256xf32>
    %712 = vector.broadcast %105 : f32 to vector<2x256xf32>
    %713 = arith.mulf %673, %712 : vector<2x256xf32>
    %714 = vector.broadcast %106 : f32 to vector<2x256xf32>
    %715 = arith.mulf %676, %714 : vector<2x256xf32>
    %716 = arith.addf %713, %715 : vector<2x256xf32>
    %717 = vector.broadcast %107 : f32 to vector<2x256xf32>
    %718 = arith.mulf %679, %717 : vector<2x256xf32>
    %719 = arith.addf %716, %718 : vector<2x256xf32>
    %720 = vector.broadcast %108 : f32 to vector<2x256xf32>
    %721 = arith.mulf %302, %720 : vector<2x256xf32>
    %722 = arith.addf %719, %721 : vector<2x256xf32>
    %723 = vector.broadcast %109 : f32 to vector<2x256xf32>
    %724 = arith.mulf %682, %723 : vector<2x256xf32>
    %725 = arith.addf %722, %724 : vector<2x256xf32>
    %726 = vector.broadcast %110 : f32 to vector<2x256xf32>
    %727 = arith.mulf %685, %726 : vector<2x256xf32>
    %728 = arith.addf %725, %727 : vector<2x256xf32>
    %729 = vector.broadcast %111 : f32 to vector<2x256xf32>
    %730 = arith.mulf %688, %729 : vector<2x256xf32>
    %731 = arith.addf %728, %730 : vector<2x256xf32>
    %c32_i32_525 = arith.constant 32 : i32
    %732 = tpu.dynamic_rotate %731 by %c32_i32_525 dim 1 : vector<2x256xf32>, i32 -> vector<2x256xf32>
    %cst_526 = arith.constant 0.000000e+00 : f32
    %733 = vector.broadcast %cst_526 : f32 to vector<2x256xf32>
    %734 = arith.select %288, %732, %733 : vector<2x256xi1>, vector<2x256xf32>
    %735 = arith.addf %711, %734 : vector<2x256xf32>
    %736 = vector.broadcast %112 : f32 to vector<2x256xf32>
    %737 = arith.mulf %673, %736 : vector<2x256xf32>
    %738 = vector.broadcast %113 : f32 to vector<2x256xf32>
    %739 = arith.mulf %676, %738 : vector<2x256xf32>
    %740 = arith.addf %737, %739 : vector<2x256xf32>
    %741 = vector.broadcast %114 : f32 to vector<2x256xf32>
    %742 = arith.mulf %679, %741 : vector<2x256xf32>
    %743 = arith.addf %740, %742 : vector<2x256xf32>
    %744 = vector.broadcast %115 : f32 to vector<2x256xf32>
    %745 = arith.mulf %302, %744 : vector<2x256xf32>
    %746 = arith.addf %743, %745 : vector<2x256xf32>
    %747 = vector.broadcast %116 : f32 to vector<2x256xf32>
    %748 = arith.mulf %682, %747 : vector<2x256xf32>
    %749 = arith.addf %746, %748 : vector<2x256xf32>
    %750 = vector.broadcast %117 : f32 to vector<2x256xf32>
    %751 = arith.mulf %685, %750 : vector<2x256xf32>
    %752 = arith.addf %749, %751 : vector<2x256xf32>
    %753 = vector.broadcast %118 : f32 to vector<2x256xf32>
    %754 = arith.mulf %688, %753 : vector<2x256xf32>
    %755 = arith.addf %752, %754 : vector<2x256xf32>
    %c16_i32_527 = arith.constant 16 : i32
    %756 = tpu.dynamic_rotate %755 by %c16_i32_527 dim 1 : vector<2x256xf32>, i32 -> vector<2x256xf32>
    %cst_528 = arith.constant 0.000000e+00 : f32
    %757 = vector.broadcast %cst_528 : f32 to vector<2x256xf32>
    %758 = arith.select %280, %756, %757 : vector<2x256xi1>, vector<2x256xf32>
    %759 = arith.addf %735, %758 : vector<2x256xf32>
    %760 = vector.broadcast %119 : f32 to vector<2x256xf32>
    %761 = arith.mulf %673, %760 : vector<2x256xf32>
    %762 = vector.broadcast %120 : f32 to vector<2x256xf32>
    %763 = arith.mulf %676, %762 : vector<2x256xf32>
    %764 = arith.addf %761, %763 : vector<2x256xf32>
    %765 = vector.broadcast %121 : f32 to vector<2x256xf32>
    %766 = arith.mulf %679, %765 : vector<2x256xf32>
    %767 = arith.addf %764, %766 : vector<2x256xf32>
    %768 = vector.broadcast %122 : f32 to vector<2x256xf32>
    %769 = arith.mulf %302, %768 : vector<2x256xf32>
    %770 = arith.addf %767, %769 : vector<2x256xf32>
    %771 = vector.broadcast %123 : f32 to vector<2x256xf32>
    %772 = arith.mulf %682, %771 : vector<2x256xf32>
    %773 = arith.addf %770, %772 : vector<2x256xf32>
    %774 = vector.broadcast %124 : f32 to vector<2x256xf32>
    %775 = arith.mulf %685, %774 : vector<2x256xf32>
    %776 = arith.addf %773, %775 : vector<2x256xf32>
    %777 = vector.broadcast %125 : f32 to vector<2x256xf32>
    %778 = arith.mulf %688, %777 : vector<2x256xf32>
    %779 = arith.addf %776, %778 : vector<2x256xf32>
    %780 = arith.addf %759, %779 : vector<2x256xf32>
    %781 = vector.broadcast %126 : f32 to vector<2x256xf32>
    %782 = arith.mulf %673, %781 : vector<2x256xf32>
    %783 = vector.broadcast %127 : f32 to vector<2x256xf32>
    %784 = arith.mulf %676, %783 : vector<2x256xf32>
    %785 = arith.addf %782, %784 : vector<2x256xf32>
    %786 = vector.broadcast %128 : f32 to vector<2x256xf32>
    %787 = arith.mulf %679, %786 : vector<2x256xf32>
    %788 = arith.addf %785, %787 : vector<2x256xf32>
    %789 = vector.broadcast %129 : f32 to vector<2x256xf32>
    %790 = arith.mulf %302, %789 : vector<2x256xf32>
    %791 = arith.addf %788, %790 : vector<2x256xf32>
    %792 = vector.broadcast %130 : f32 to vector<2x256xf32>
    %793 = arith.mulf %682, %792 : vector<2x256xf32>
    %794 = arith.addf %791, %793 : vector<2x256xf32>
    %795 = vector.broadcast %131 : f32 to vector<2x256xf32>
    %796 = arith.mulf %685, %795 : vector<2x256xf32>
    %797 = arith.addf %794, %796 : vector<2x256xf32>
    %798 = vector.broadcast %132 : f32 to vector<2x256xf32>
    %799 = arith.mulf %688, %798 : vector<2x256xf32>
    %800 = arith.addf %797, %799 : vector<2x256xf32>
    %c240_i32_529 = arith.constant 240 : i32
    %801 = tpu.dynamic_rotate %800 by %c240_i32_529 dim 1 : vector<2x256xf32>, i32 -> vector<2x256xf32>
    %cst_530 = arith.constant 0.000000e+00 : f32
    %802 = vector.broadcast %cst_530 : f32 to vector<2x256xf32>
    %803 = arith.select %278, %801, %802 : vector<2x256xi1>, vector<2x256xf32>
    %804 = arith.addf %780, %803 : vector<2x256xf32>
    %805 = vector.broadcast %133 : f32 to vector<2x256xf32>
    %806 = arith.mulf %673, %805 : vector<2x256xf32>
    %807 = vector.broadcast %134 : f32 to vector<2x256xf32>
    %808 = arith.mulf %676, %807 : vector<2x256xf32>
    %809 = arith.addf %806, %808 : vector<2x256xf32>
    %810 = vector.broadcast %135 : f32 to vector<2x256xf32>
    %811 = arith.mulf %679, %810 : vector<2x256xf32>
    %812 = arith.addf %809, %811 : vector<2x256xf32>
    %813 = vector.broadcast %136 : f32 to vector<2x256xf32>
    %814 = arith.mulf %302, %813 : vector<2x256xf32>
    %815 = arith.addf %812, %814 : vector<2x256xf32>
    %816 = vector.broadcast %137 : f32 to vector<2x256xf32>
    %817 = arith.mulf %682, %816 : vector<2x256xf32>
    %818 = arith.addf %815, %817 : vector<2x256xf32>
    %819 = vector.broadcast %138 : f32 to vector<2x256xf32>
    %820 = arith.mulf %685, %819 : vector<2x256xf32>
    %821 = arith.addf %818, %820 : vector<2x256xf32>
    %822 = vector.broadcast %139 : f32 to vector<2x256xf32>
    %823 = arith.mulf %688, %822 : vector<2x256xf32>
    %824 = arith.addf %821, %823 : vector<2x256xf32>
    %c224_i32_531 = arith.constant 224 : i32
    %825 = tpu.dynamic_rotate %824 by %c224_i32_531 dim 1 : vector<2x256xf32>, i32 -> vector<2x256xf32>
    %cst_532 = arith.constant 0.000000e+00 : f32
    %826 = vector.broadcast %cst_532 : f32 to vector<2x256xf32>
    %827 = arith.select %286, %825, %826 : vector<2x256xi1>, vector<2x256xf32>
    %828 = arith.addf %804, %827 : vector<2x256xf32>
    %829 = vector.broadcast %140 : f32 to vector<2x256xf32>
    %830 = arith.mulf %673, %829 : vector<2x256xf32>
    %831 = vector.broadcast %141 : f32 to vector<2x256xf32>
    %832 = arith.mulf %676, %831 : vector<2x256xf32>
    %833 = arith.addf %830, %832 : vector<2x256xf32>
    %834 = vector.broadcast %142 : f32 to vector<2x256xf32>
    %835 = arith.mulf %679, %834 : vector<2x256xf32>
    %836 = arith.addf %833, %835 : vector<2x256xf32>
    %837 = vector.broadcast %143 : f32 to vector<2x256xf32>
    %838 = arith.mulf %302, %837 : vector<2x256xf32>
    %839 = arith.addf %836, %838 : vector<2x256xf32>
    %840 = vector.broadcast %144 : f32 to vector<2x256xf32>
    %841 = arith.mulf %682, %840 : vector<2x256xf32>
    %842 = arith.addf %839, %841 : vector<2x256xf32>
    %843 = vector.broadcast %145 : f32 to vector<2x256xf32>
    %844 = arith.mulf %685, %843 : vector<2x256xf32>
    %845 = arith.addf %842, %844 : vector<2x256xf32>
    %846 = vector.broadcast %146 : f32 to vector<2x256xf32>
    %847 = arith.mulf %688, %846 : vector<2x256xf32>
    %848 = arith.addf %845, %847 : vector<2x256xf32>
    %c208_i32_533 = arith.constant 208 : i32
    %849 = tpu.dynamic_rotate %848 by %c208_i32_533 dim 1 : vector<2x256xf32>, i32 -> vector<2x256xf32>
    %cst_534 = arith.constant 0.000000e+00 : f32
    %850 = vector.broadcast %cst_534 : f32 to vector<2x256xf32>
    %851 = arith.select %294, %849, %850 : vector<2x256xi1>, vector<2x256xf32>
    %852 = arith.addf %828, %851 : vector<2x256xf32>
    %853 = vector.broadcast %149 : f32 to vector<2x256xf32>
    %854 = arith.addf %852, %853 : vector<2x256xf32>
    %855 = arith.addf %486, %670 : vector<2x256xf32>
    %856 = arith.addf %855, %854 : vector<2x256xf32>
    %cst_535 = arith.constant 0.333333343 : f32
    %857 = vector.broadcast %cst_535 : f32 to vector<2x256xf32>
    %858 = arith.mulf %856, %857 : vector<2x256xf32>
    %859 = arith.subf %486, %858 : vector<2x256xf32>
    %860 = arith.subf %670, %858 : vector<2x256xf32>
    %861 = arith.subf %854, %858 : vector<2x256xf32>
    %862 = arith.mulf %859, %859 : vector<2x256xf32>
    %863 = arith.mulf %860, %860 : vector<2x256xf32>
    %864 = arith.addf %862, %863 : vector<2x256xf32>
    %865 = arith.mulf %861, %861 : vector<2x256xf32>
    %866 = arith.addf %864, %865 : vector<2x256xf32>
    %cst_536 = arith.constant 0.333333343 : f32
    %867 = vector.broadcast %cst_536 : f32 to vector<2x256xf32>
    %868 = arith.mulf %866, %867 : vector<2x256xf32>
    %cst_537 = arith.constant 9.99999997E-7 : f32
    %869 = vector.broadcast %cst_537 : f32 to vector<2x256xf32>
    %870 = arith.addf %868, %869 : vector<2x256xf32>
    %871 = math.rsqrt %870 : vector<2x256xf32>
    %872 = arith.mulf %859, %871 : vector<2x256xf32>
    %873 = vector.broadcast %150 : f32 to vector<2x256xf32>
    %874 = arith.mulf %872, %873 : vector<2x256xf32>
    %875 = vector.broadcast %153 : f32 to vector<2x256xf32>
    %876 = arith.addf %874, %875 : vector<2x256xf32>
    %877 = arith.mulf %860, %871 : vector<2x256xf32>
    %878 = vector.broadcast %151 : f32 to vector<2x256xf32>
    %879 = arith.mulf %877, %878 : vector<2x256xf32>
    %880 = vector.broadcast %154 : f32 to vector<2x256xf32>
    %881 = arith.addf %879, %880 : vector<2x256xf32>
    %882 = arith.mulf %861, %871 : vector<2x256xf32>
    %883 = vector.broadcast %152 : f32 to vector<2x256xf32>
    %884 = arith.mulf %882, %883 : vector<2x256xf32>
    %885 = vector.broadcast %155 : f32 to vector<2x256xf32>
    %886 = arith.addf %884, %885 : vector<2x256xf32>
    %887 = vector.broadcast %156 : f32 to vector<2x256xf32>
    %888 = arith.mulf %876, %887 : vector<2x256xf32>
    %889 = vector.broadcast %168 : f32 to vector<2x256xf32>
    %890 = arith.mulf %881, %889 : vector<2x256xf32>
    %891 = arith.addf %888, %890 : vector<2x256xf32>
    %892 = vector.broadcast %180 : f32 to vector<2x256xf32>
    %893 = arith.mulf %886, %892 : vector<2x256xf32>
    %894 = arith.addf %891, %893 : vector<2x256xf32>
    %895 = vector.broadcast %192 : f32 to vector<2x256xf32>
    %896 = arith.addf %894, %895 : vector<2x256xf32>
    %cst_538 = arith.constant 5.000000e-01 : f32
    %897 = vector.broadcast %cst_538 : f32 to vector<2x256xf32>
    %898 = arith.mulf %897, %896 : vector<2x256xf32>
    %cst_539 = arith.constant 0.707106769 : f32
    %899 = vector.broadcast %cst_539 : f32 to vector<2x256xf32>
    %900 = arith.mulf %896, %899 : vector<2x256xf32>
    %cst_540 = arith.constant 0.000000e+00 : f32
    %901 = vector.broadcast %cst_540 : f32 to vector<2x256xf32>
    %902 = arith.cmpf oge, %900, %901 : vector<2x256xf32>
    %cst_541 = arith.constant 1.000000e+00 : f32
    %cst_542 = arith.constant -1.000000e+00 : f32
    %903 = vector.broadcast %cst_541 : f32 to vector<2x256xf32>
    %904 = vector.broadcast %cst_542 : f32 to vector<2x256xf32>
    %905 = arith.select %902, %903, %904 : vector<2x256xi1>, vector<2x256xf32>
    %906 = math.absf %900 : vector<2x256xf32>
    %cst_543 = arith.constant 0.327591091 : f32
    %907 = vector.broadcast %cst_543 : f32 to vector<2x256xf32>
    %908 = arith.mulf %907, %906 : vector<2x256xf32>
    %cst_544 = arith.constant 1.000000e+00 : f32
    %909 = vector.broadcast %cst_544 : f32 to vector<2x256xf32>
    %910 = arith.addf %909, %908 : vector<2x256xf32>
    %911 = tpu.reciprocal %910 {approx = true} : vector<2x256xf32> -> vector<2x256xf32>
    %cst_545 = arith.constant 1.06140542 : f32
    %912 = vector.broadcast %cst_545 : f32 to vector<2x256xf32>
    %913 = arith.mulf %912, %911 : vector<2x256xf32>
    %cst_546 = arith.constant -1.45315206 : f32
    %914 = vector.broadcast %cst_546 : f32 to vector<2x256xf32>
    %915 = arith.addf %913, %914 : vector<2x256xf32>
    %916 = arith.mulf %915, %911 : vector<2x256xf32>
    %cst_547 = arith.constant 1.42141378 : f32
    %917 = vector.broadcast %cst_547 : f32 to vector<2x256xf32>
    %918 = arith.addf %916, %917 : vector<2x256xf32>
    %919 = arith.mulf %918, %911 : vector<2x256xf32>
    %cst_548 = arith.constant -0.284496725 : f32
    %920 = vector.broadcast %cst_548 : f32 to vector<2x256xf32>
    %921 = arith.addf %919, %920 : vector<2x256xf32>
    %922 = arith.mulf %921, %911 : vector<2x256xf32>
    %cst_549 = arith.constant 0.254829586 : f32
    %923 = vector.broadcast %cst_549 : f32 to vector<2x256xf32>
    %924 = arith.addf %922, %923 : vector<2x256xf32>
    %925 = arith.mulf %924, %911 : vector<2x256xf32>
    %cst_550 = arith.constant 0.000000e+00 : f32
    %926 = vector.broadcast %cst_550 : f32 to vector<2x256xf32>
    %927 = arith.subf %926, %906 : vector<2x256xf32>
    %928 = arith.mulf %927, %906 : vector<2x256xf32>
    %929 = math.exp %928 : vector<2x256xf32>
    %930 = arith.mulf %925, %929 : vector<2x256xf32>
    %cst_551 = arith.constant 1.000000e+00 : f32
    %931 = vector.broadcast %cst_551 : f32 to vector<2x256xf32>
    %932 = arith.subf %931, %930 : vector<2x256xf32>
    %933 = arith.mulf %905, %932 : vector<2x256xf32>
    %cst_552 = arith.constant 1.000000e+00 : f32
    %934 = vector.broadcast %cst_552 : f32 to vector<2x256xf32>
    %935 = arith.addf %934, %933 : vector<2x256xf32>
    %936 = arith.mulf %898, %935 : vector<2x256xf32>
    %937 = vector.broadcast %204 : f32 to vector<2x256xf32>
    %938 = arith.mulf %936, %937 : vector<2x256xf32>
    %939 = vector.broadcast %205 : f32 to vector<2x256xf32>
    %940 = arith.mulf %936, %939 : vector<2x256xf32>
    %941 = vector.broadcast %206 : f32 to vector<2x256xf32>
    %942 = arith.mulf %936, %941 : vector<2x256xf32>
    %943 = vector.broadcast %157 : f32 to vector<2x256xf32>
    %944 = arith.mulf %876, %943 : vector<2x256xf32>
    %945 = vector.broadcast %169 : f32 to vector<2x256xf32>
    %946 = arith.mulf %881, %945 : vector<2x256xf32>
    %947 = arith.addf %944, %946 : vector<2x256xf32>
    %948 = vector.broadcast %181 : f32 to vector<2x256xf32>
    %949 = arith.mulf %886, %948 : vector<2x256xf32>
    %950 = arith.addf %947, %949 : vector<2x256xf32>
    %951 = vector.broadcast %193 : f32 to vector<2x256xf32>
    %952 = arith.addf %950, %951 : vector<2x256xf32>
    %cst_553 = arith.constant 5.000000e-01 : f32
    %953 = vector.broadcast %cst_553 : f32 to vector<2x256xf32>
    %954 = arith.mulf %953, %952 : vector<2x256xf32>
    %cst_554 = arith.constant 0.707106769 : f32
    %955 = vector.broadcast %cst_554 : f32 to vector<2x256xf32>
    %956 = arith.mulf %952, %955 : vector<2x256xf32>
    %cst_555 = arith.constant 0.000000e+00 : f32
    %957 = vector.broadcast %cst_555 : f32 to vector<2x256xf32>
    %958 = arith.cmpf oge, %956, %957 : vector<2x256xf32>
    %cst_556 = arith.constant 1.000000e+00 : f32
    %cst_557 = arith.constant -1.000000e+00 : f32
    %959 = vector.broadcast %cst_556 : f32 to vector<2x256xf32>
    %960 = vector.broadcast %cst_557 : f32 to vector<2x256xf32>
    %961 = arith.select %958, %959, %960 : vector<2x256xi1>, vector<2x256xf32>
    %962 = math.absf %956 : vector<2x256xf32>
    %cst_558 = arith.constant 0.327591091 : f32
    %963 = vector.broadcast %cst_558 : f32 to vector<2x256xf32>
    %964 = arith.mulf %963, %962 : vector<2x256xf32>
    %cst_559 = arith.constant 1.000000e+00 : f32
    %965 = vector.broadcast %cst_559 : f32 to vector<2x256xf32>
    %966 = arith.addf %965, %964 : vector<2x256xf32>
    %967 = tpu.reciprocal %966 {approx = true} : vector<2x256xf32> -> vector<2x256xf32>
    %cst_560 = arith.constant 1.06140542 : f32
    %968 = vector.broadcast %cst_560 : f32 to vector<2x256xf32>
    %969 = arith.mulf %968, %967 : vector<2x256xf32>
    %cst_561 = arith.constant -1.45315206 : f32
    %970 = vector.broadcast %cst_561 : f32 to vector<2x256xf32>
    %971 = arith.addf %969, %970 : vector<2x256xf32>
    %972 = arith.mulf %971, %967 : vector<2x256xf32>
    %cst_562 = arith.constant 1.42141378 : f32
    %973 = vector.broadcast %cst_562 : f32 to vector<2x256xf32>
    %974 = arith.addf %972, %973 : vector<2x256xf32>
    %975 = arith.mulf %974, %967 : vector<2x256xf32>
    %cst_563 = arith.constant -0.284496725 : f32
    %976 = vector.broadcast %cst_563 : f32 to vector<2x256xf32>
    %977 = arith.addf %975, %976 : vector<2x256xf32>
    %978 = arith.mulf %977, %967 : vector<2x256xf32>
    %cst_564 = arith.constant 0.254829586 : f32
    %979 = vector.broadcast %cst_564 : f32 to vector<2x256xf32>
    %980 = arith.addf %978, %979 : vector<2x256xf32>
    %981 = arith.mulf %980, %967 : vector<2x256xf32>
    %cst_565 = arith.constant 0.000000e+00 : f32
    %982 = vector.broadcast %cst_565 : f32 to vector<2x256xf32>
    %983 = arith.subf %982, %962 : vector<2x256xf32>
    %984 = arith.mulf %983, %962 : vector<2x256xf32>
    %985 = math.exp %984 : vector<2x256xf32>
    %986 = arith.mulf %981, %985 : vector<2x256xf32>
    %cst_566 = arith.constant 1.000000e+00 : f32
    %987 = vector.broadcast %cst_566 : f32 to vector<2x256xf32>
    %988 = arith.subf %987, %986 : vector<2x256xf32>
    %989 = arith.mulf %961, %988 : vector<2x256xf32>
    %cst_567 = arith.constant 1.000000e+00 : f32
    %990 = vector.broadcast %cst_567 : f32 to vector<2x256xf32>
    %991 = arith.addf %990, %989 : vector<2x256xf32>
    %992 = arith.mulf %954, %991 : vector<2x256xf32>
    %993 = vector.broadcast %207 : f32 to vector<2x256xf32>
    %994 = arith.mulf %992, %993 : vector<2x256xf32>
    %995 = arith.addf %938, %994 : vector<2x256xf32>
    %996 = vector.broadcast %208 : f32 to vector<2x256xf32>
    %997 = arith.mulf %992, %996 : vector<2x256xf32>
    %998 = arith.addf %940, %997 : vector<2x256xf32>
    %999 = vector.broadcast %209 : f32 to vector<2x256xf32>
    %1000 = arith.mulf %992, %999 : vector<2x256xf32>
    %1001 = arith.addf %942, %1000 : vector<2x256xf32>
    %1002 = vector.broadcast %158 : f32 to vector<2x256xf32>
    %1003 = arith.mulf %876, %1002 : vector<2x256xf32>
    %1004 = vector.broadcast %170 : f32 to vector<2x256xf32>
    %1005 = arith.mulf %881, %1004 : vector<2x256xf32>
    %1006 = arith.addf %1003, %1005 : vector<2x256xf32>
    %1007 = vector.broadcast %182 : f32 to vector<2x256xf32>
    %1008 = arith.mulf %886, %1007 : vector<2x256xf32>
    %1009 = arith.addf %1006, %1008 : vector<2x256xf32>
    %1010 = vector.broadcast %194 : f32 to vector<2x256xf32>
    %1011 = arith.addf %1009, %1010 : vector<2x256xf32>
    %cst_568 = arith.constant 5.000000e-01 : f32
    %1012 = vector.broadcast %cst_568 : f32 to vector<2x256xf32>
    %1013 = arith.mulf %1012, %1011 : vector<2x256xf32>
    %cst_569 = arith.constant 0.707106769 : f32
    %1014 = vector.broadcast %cst_569 : f32 to vector<2x256xf32>
    %1015 = arith.mulf %1011, %1014 : vector<2x256xf32>
    %cst_570 = arith.constant 0.000000e+00 : f32
    %1016 = vector.broadcast %cst_570 : f32 to vector<2x256xf32>
    %1017 = arith.cmpf oge, %1015, %1016 : vector<2x256xf32>
    %cst_571 = arith.constant 1.000000e+00 : f32
    %cst_572 = arith.constant -1.000000e+00 : f32
    %1018 = vector.broadcast %cst_571 : f32 to vector<2x256xf32>
    %1019 = vector.broadcast %cst_572 : f32 to vector<2x256xf32>
    %1020 = arith.select %1017, %1018, %1019 : vector<2x256xi1>, vector<2x256xf32>
    %1021 = math.absf %1015 : vector<2x256xf32>
    %cst_573 = arith.constant 0.327591091 : f32
    %1022 = vector.broadcast %cst_573 : f32 to vector<2x256xf32>
    %1023 = arith.mulf %1022, %1021 : vector<2x256xf32>
    %cst_574 = arith.constant 1.000000e+00 : f32
    %1024 = vector.broadcast %cst_574 : f32 to vector<2x256xf32>
    %1025 = arith.addf %1024, %1023 : vector<2x256xf32>
    %1026 = tpu.reciprocal %1025 {approx = true} : vector<2x256xf32> -> vector<2x256xf32>
    %cst_575 = arith.constant 1.06140542 : f32
    %1027 = vector.broadcast %cst_575 : f32 to vector<2x256xf32>
    %1028 = arith.mulf %1027, %1026 : vector<2x256xf32>
    %cst_576 = arith.constant -1.45315206 : f32
    %1029 = vector.broadcast %cst_576 : f32 to vector<2x256xf32>
    %1030 = arith.addf %1028, %1029 : vector<2x256xf32>
    %1031 = arith.mulf %1030, %1026 : vector<2x256xf32>
    %cst_577 = arith.constant 1.42141378 : f32
    %1032 = vector.broadcast %cst_577 : f32 to vector<2x256xf32>
    %1033 = arith.addf %1031, %1032 : vector<2x256xf32>
    %1034 = arith.mulf %1033, %1026 : vector<2x256xf32>
    %cst_578 = arith.constant -0.284496725 : f32
    %1035 = vector.broadcast %cst_578 : f32 to vector<2x256xf32>
    %1036 = arith.addf %1034, %1035 : vector<2x256xf32>
    %1037 = arith.mulf %1036, %1026 : vector<2x256xf32>
    %cst_579 = arith.constant 0.254829586 : f32
    %1038 = vector.broadcast %cst_579 : f32 to vector<2x256xf32>
    %1039 = arith.addf %1037, %1038 : vector<2x256xf32>
    %1040 = arith.mulf %1039, %1026 : vector<2x256xf32>
    %cst_580 = arith.constant 0.000000e+00 : f32
    %1041 = vector.broadcast %cst_580 : f32 to vector<2x256xf32>
    %1042 = arith.subf %1041, %1021 : vector<2x256xf32>
    %1043 = arith.mulf %1042, %1021 : vector<2x256xf32>
    %1044 = math.exp %1043 : vector<2x256xf32>
    %1045 = arith.mulf %1040, %1044 : vector<2x256xf32>
    %cst_581 = arith.constant 1.000000e+00 : f32
    %1046 = vector.broadcast %cst_581 : f32 to vector<2x256xf32>
    %1047 = arith.subf %1046, %1045 : vector<2x256xf32>
    %1048 = arith.mulf %1020, %1047 : vector<2x256xf32>
    %cst_582 = arith.constant 1.000000e+00 : f32
    %1049 = vector.broadcast %cst_582 : f32 to vector<2x256xf32>
    %1050 = arith.addf %1049, %1048 : vector<2x256xf32>
    %1051 = arith.mulf %1013, %1050 : vector<2x256xf32>
    %1052 = vector.broadcast %210 : f32 to vector<2x256xf32>
    %1053 = arith.mulf %1051, %1052 : vector<2x256xf32>
    %1054 = arith.addf %995, %1053 : vector<2x256xf32>
    %1055 = vector.broadcast %211 : f32 to vector<2x256xf32>
    %1056 = arith.mulf %1051, %1055 : vector<2x256xf32>
    %1057 = arith.addf %998, %1056 : vector<2x256xf32>
    %1058 = vector.broadcast %212 : f32 to vector<2x256xf32>
    %1059 = arith.mulf %1051, %1058 : vector<2x256xf32>
    %1060 = arith.addf %1001, %1059 : vector<2x256xf32>
    %1061 = vector.broadcast %159 : f32 to vector<2x256xf32>
    %1062 = arith.mulf %876, %1061 : vector<2x256xf32>
    %1063 = vector.broadcast %171 : f32 to vector<2x256xf32>
    %1064 = arith.mulf %881, %1063 : vector<2x256xf32>
    %1065 = arith.addf %1062, %1064 : vector<2x256xf32>
    %1066 = vector.broadcast %183 : f32 to vector<2x256xf32>
    %1067 = arith.mulf %886, %1066 : vector<2x256xf32>
    %1068 = arith.addf %1065, %1067 : vector<2x256xf32>
    %1069 = vector.broadcast %195 : f32 to vector<2x256xf32>
    %1070 = arith.addf %1068, %1069 : vector<2x256xf32>
    %cst_583 = arith.constant 5.000000e-01 : f32
    %1071 = vector.broadcast %cst_583 : f32 to vector<2x256xf32>
    %1072 = arith.mulf %1071, %1070 : vector<2x256xf32>
    %cst_584 = arith.constant 0.707106769 : f32
    %1073 = vector.broadcast %cst_584 : f32 to vector<2x256xf32>
    %1074 = arith.mulf %1070, %1073 : vector<2x256xf32>
    %cst_585 = arith.constant 0.000000e+00 : f32
    %1075 = vector.broadcast %cst_585 : f32 to vector<2x256xf32>
    %1076 = arith.cmpf oge, %1074, %1075 : vector<2x256xf32>
    %cst_586 = arith.constant 1.000000e+00 : f32
    %cst_587 = arith.constant -1.000000e+00 : f32
    %1077 = vector.broadcast %cst_586 : f32 to vector<2x256xf32>
    %1078 = vector.broadcast %cst_587 : f32 to vector<2x256xf32>
    %1079 = arith.select %1076, %1077, %1078 : vector<2x256xi1>, vector<2x256xf32>
    %1080 = math.absf %1074 : vector<2x256xf32>
    %cst_588 = arith.constant 0.327591091 : f32
    %1081 = vector.broadcast %cst_588 : f32 to vector<2x256xf32>
    %1082 = arith.mulf %1081, %1080 : vector<2x256xf32>
    %cst_589 = arith.constant 1.000000e+00 : f32
    %1083 = vector.broadcast %cst_589 : f32 to vector<2x256xf32>
    %1084 = arith.addf %1083, %1082 : vector<2x256xf32>
    %1085 = tpu.reciprocal %1084 {approx = true} : vector<2x256xf32> -> vector<2x256xf32>
    %cst_590 = arith.constant 1.06140542 : f32
    %1086 = vector.broadcast %cst_590 : f32 to vector<2x256xf32>
    %1087 = arith.mulf %1086, %1085 : vector<2x256xf32>
    %cst_591 = arith.constant -1.45315206 : f32
    %1088 = vector.broadcast %cst_591 : f32 to vector<2x256xf32>
    %1089 = arith.addf %1087, %1088 : vector<2x256xf32>
    %1090 = arith.mulf %1089, %1085 : vector<2x256xf32>
    %cst_592 = arith.constant 1.42141378 : f32
    %1091 = vector.broadcast %cst_592 : f32 to vector<2x256xf32>
    %1092 = arith.addf %1090, %1091 : vector<2x256xf32>
    %1093 = arith.mulf %1092, %1085 : vector<2x256xf32>
    %cst_593 = arith.constant -0.284496725 : f32
    %1094 = vector.broadcast %cst_593 : f32 to vector<2x256xf32>
    %1095 = arith.addf %1093, %1094 : vector<2x256xf32>
    %1096 = arith.mulf %1095, %1085 : vector<2x256xf32>
    %cst_594 = arith.constant 0.254829586 : f32
    %1097 = vector.broadcast %cst_594 : f32 to vector<2x256xf32>
    %1098 = arith.addf %1096, %1097 : vector<2x256xf32>
    %1099 = arith.mulf %1098, %1085 : vector<2x256xf32>
    %cst_595 = arith.constant 0.000000e+00 : f32
    %1100 = vector.broadcast %cst_595 : f32 to vector<2x256xf32>
    %1101 = arith.subf %1100, %1080 : vector<2x256xf32>
    %1102 = arith.mulf %1101, %1080 : vector<2x256xf32>
    %1103 = math.exp %1102 : vector<2x256xf32>
    %1104 = arith.mulf %1099, %1103 : vector<2x256xf32>
    %cst_596 = arith.constant 1.000000e+00 : f32
    %1105 = vector.broadcast %cst_596 : f32 to vector<2x256xf32>
    %1106 = arith.subf %1105, %1104 : vector<2x256xf32>
    %1107 = arith.mulf %1079, %1106 : vector<2x256xf32>
    %cst_597 = arith.constant 1.000000e+00 : f32
    %1108 = vector.broadcast %cst_597 : f32 to vector<2x256xf32>
    %1109 = arith.addf %1108, %1107 : vector<2x256xf32>
    %1110 = arith.mulf %1072, %1109 : vector<2x256xf32>
    %1111 = vector.broadcast %213 : f32 to vector<2x256xf32>
    %1112 = arith.mulf %1110, %1111 : vector<2x256xf32>
    %1113 = arith.addf %1054, %1112 : vector<2x256xf32>
    %1114 = vector.broadcast %214 : f32 to vector<2x256xf32>
    %1115 = arith.mulf %1110, %1114 : vector<2x256xf32>
    %1116 = arith.addf %1057, %1115 : vector<2x256xf32>
    %1117 = vector.broadcast %215 : f32 to vector<2x256xf32>
    %1118 = arith.mulf %1110, %1117 : vector<2x256xf32>
    %1119 = arith.addf %1060, %1118 : vector<2x256xf32>
    %1120 = vector.broadcast %160 : f32 to vector<2x256xf32>
    %1121 = arith.mulf %876, %1120 : vector<2x256xf32>
    %1122 = vector.broadcast %172 : f32 to vector<2x256xf32>
    %1123 = arith.mulf %881, %1122 : vector<2x256xf32>
    %1124 = arith.addf %1121, %1123 : vector<2x256xf32>
    %1125 = vector.broadcast %184 : f32 to vector<2x256xf32>
    %1126 = arith.mulf %886, %1125 : vector<2x256xf32>
    %1127 = arith.addf %1124, %1126 : vector<2x256xf32>
    %1128 = vector.broadcast %196 : f32 to vector<2x256xf32>
    %1129 = arith.addf %1127, %1128 : vector<2x256xf32>
    %cst_598 = arith.constant 5.000000e-01 : f32
    %1130 = vector.broadcast %cst_598 : f32 to vector<2x256xf32>
    %1131 = arith.mulf %1130, %1129 : vector<2x256xf32>
    %cst_599 = arith.constant 0.707106769 : f32
    %1132 = vector.broadcast %cst_599 : f32 to vector<2x256xf32>
    %1133 = arith.mulf %1129, %1132 : vector<2x256xf32>
    %cst_600 = arith.constant 0.000000e+00 : f32
    %1134 = vector.broadcast %cst_600 : f32 to vector<2x256xf32>
    %1135 = arith.cmpf oge, %1133, %1134 : vector<2x256xf32>
    %cst_601 = arith.constant 1.000000e+00 : f32
    %cst_602 = arith.constant -1.000000e+00 : f32
    %1136 = vector.broadcast %cst_601 : f32 to vector<2x256xf32>
    %1137 = vector.broadcast %cst_602 : f32 to vector<2x256xf32>
    %1138 = arith.select %1135, %1136, %1137 : vector<2x256xi1>, vector<2x256xf32>
    %1139 = math.absf %1133 : vector<2x256xf32>
    %cst_603 = arith.constant 0.327591091 : f32
    %1140 = vector.broadcast %cst_603 : f32 to vector<2x256xf32>
    %1141 = arith.mulf %1140, %1139 : vector<2x256xf32>
    %cst_604 = arith.constant 1.000000e+00 : f32
    %1142 = vector.broadcast %cst_604 : f32 to vector<2x256xf32>
    %1143 = arith.addf %1142, %1141 : vector<2x256xf32>
    %1144 = tpu.reciprocal %1143 {approx = true} : vector<2x256xf32> -> vector<2x256xf32>
    %cst_605 = arith.constant 1.06140542 : f32
    %1145 = vector.broadcast %cst_605 : f32 to vector<2x256xf32>
    %1146 = arith.mulf %1145, %1144 : vector<2x256xf32>
    %cst_606 = arith.constant -1.45315206 : f32
    %1147 = vector.broadcast %cst_606 : f32 to vector<2x256xf32>
    %1148 = arith.addf %1146, %1147 : vector<2x256xf32>
    %1149 = arith.mulf %1148, %1144 : vector<2x256xf32>
    %cst_607 = arith.constant 1.42141378 : f32
    %1150 = vector.broadcast %cst_607 : f32 to vector<2x256xf32>
    %1151 = arith.addf %1149, %1150 : vector<2x256xf32>
    %1152 = arith.mulf %1151, %1144 : vector<2x256xf32>
    %cst_608 = arith.constant -0.284496725 : f32
    %1153 = vector.broadcast %cst_608 : f32 to vector<2x256xf32>
    %1154 = arith.addf %1152, %1153 : vector<2x256xf32>
    %1155 = arith.mulf %1154, %1144 : vector<2x256xf32>
    %cst_609 = arith.constant 0.254829586 : f32
    %1156 = vector.broadcast %cst_609 : f32 to vector<2x256xf32>
    %1157 = arith.addf %1155, %1156 : vector<2x256xf32>
    %1158 = arith.mulf %1157, %1144 : vector<2x256xf32>
    %cst_610 = arith.constant 0.000000e+00 : f32
    %1159 = vector.broadcast %cst_610 : f32 to vector<2x256xf32>
    %1160 = arith.subf %1159, %1139 : vector<2x256xf32>
    %1161 = arith.mulf %1160, %1139 : vector<2x256xf32>
    %1162 = math.exp %1161 : vector<2x256xf32>
    %1163 = arith.mulf %1158, %1162 : vector<2x256xf32>
    %cst_611 = arith.constant 1.000000e+00 : f32
    %1164 = vector.broadcast %cst_611 : f32 to vector<2x256xf32>
    %1165 = arith.subf %1164, %1163 : vector<2x256xf32>
    %1166 = arith.mulf %1138, %1165 : vector<2x256xf32>
    %cst_612 = arith.constant 1.000000e+00 : f32
    %1167 = vector.broadcast %cst_612 : f32 to vector<2x256xf32>
    %1168 = arith.addf %1167, %1166 : vector<2x256xf32>
    %1169 = arith.mulf %1131, %1168 : vector<2x256xf32>
    %1170 = vector.broadcast %216 : f32 to vector<2x256xf32>
    %1171 = arith.mulf %1169, %1170 : vector<2x256xf32>
    %1172 = arith.addf %1113, %1171 : vector<2x256xf32>
    %1173 = vector.broadcast %217 : f32 to vector<2x256xf32>
    %1174 = arith.mulf %1169, %1173 : vector<2x256xf32>
    %1175 = arith.addf %1116, %1174 : vector<2x256xf32>
    %1176 = vector.broadcast %218 : f32 to vector<2x256xf32>
    %1177 = arith.mulf %1169, %1176 : vector<2x256xf32>
    %1178 = arith.addf %1119, %1177 : vector<2x256xf32>
    %1179 = vector.broadcast %161 : f32 to vector<2x256xf32>
    %1180 = arith.mulf %876, %1179 : vector<2x256xf32>
    %1181 = vector.broadcast %173 : f32 to vector<2x256xf32>
    %1182 = arith.mulf %881, %1181 : vector<2x256xf32>
    %1183 = arith.addf %1180, %1182 : vector<2x256xf32>
    %1184 = vector.broadcast %185 : f32 to vector<2x256xf32>
    %1185 = arith.mulf %886, %1184 : vector<2x256xf32>
    %1186 = arith.addf %1183, %1185 : vector<2x256xf32>
    %1187 = vector.broadcast %197 : f32 to vector<2x256xf32>
    %1188 = arith.addf %1186, %1187 : vector<2x256xf32>
    %cst_613 = arith.constant 5.000000e-01 : f32
    %1189 = vector.broadcast %cst_613 : f32 to vector<2x256xf32>
    %1190 = arith.mulf %1189, %1188 : vector<2x256xf32>
    %cst_614 = arith.constant 0.707106769 : f32
    %1191 = vector.broadcast %cst_614 : f32 to vector<2x256xf32>
    %1192 = arith.mulf %1188, %1191 : vector<2x256xf32>
    %cst_615 = arith.constant 0.000000e+00 : f32
    %1193 = vector.broadcast %cst_615 : f32 to vector<2x256xf32>
    %1194 = arith.cmpf oge, %1192, %1193 : vector<2x256xf32>
    %cst_616 = arith.constant 1.000000e+00 : f32
    %cst_617 = arith.constant -1.000000e+00 : f32
    %1195 = vector.broadcast %cst_616 : f32 to vector<2x256xf32>
    %1196 = vector.broadcast %cst_617 : f32 to vector<2x256xf32>
    %1197 = arith.select %1194, %1195, %1196 : vector<2x256xi1>, vector<2x256xf32>
    %1198 = math.absf %1192 : vector<2x256xf32>
    %cst_618 = arith.constant 0.327591091 : f32
    %1199 = vector.broadcast %cst_618 : f32 to vector<2x256xf32>
    %1200 = arith.mulf %1199, %1198 : vector<2x256xf32>
    %cst_619 = arith.constant 1.000000e+00 : f32
    %1201 = vector.broadcast %cst_619 : f32 to vector<2x256xf32>
    %1202 = arith.addf %1201, %1200 : vector<2x256xf32>
    %1203 = tpu.reciprocal %1202 {approx = true} : vector<2x256xf32> -> vector<2x256xf32>
    %cst_620 = arith.constant 1.06140542 : f32
    %1204 = vector.broadcast %cst_620 : f32 to vector<2x256xf32>
    %1205 = arith.mulf %1204, %1203 : vector<2x256xf32>
    %cst_621 = arith.constant -1.45315206 : f32
    %1206 = vector.broadcast %cst_621 : f32 to vector<2x256xf32>
    %1207 = arith.addf %1205, %1206 : vector<2x256xf32>
    %1208 = arith.mulf %1207, %1203 : vector<2x256xf32>
    %cst_622 = arith.constant 1.42141378 : f32
    %1209 = vector.broadcast %cst_622 : f32 to vector<2x256xf32>
    %1210 = arith.addf %1208, %1209 : vector<2x256xf32>
    %1211 = arith.mulf %1210, %1203 : vector<2x256xf32>
    %cst_623 = arith.constant -0.284496725 : f32
    %1212 = vector.broadcast %cst_623 : f32 to vector<2x256xf32>
    %1213 = arith.addf %1211, %1212 : vector<2x256xf32>
    %1214 = arith.mulf %1213, %1203 : vector<2x256xf32>
    %cst_624 = arith.constant 0.254829586 : f32
    %1215 = vector.broadcast %cst_624 : f32 to vector<2x256xf32>
    %1216 = arith.addf %1214, %1215 : vector<2x256xf32>
    %1217 = arith.mulf %1216, %1203 : vector<2x256xf32>
    %cst_625 = arith.constant 0.000000e+00 : f32
    %1218 = vector.broadcast %cst_625 : f32 to vector<2x256xf32>
    %1219 = arith.subf %1218, %1198 : vector<2x256xf32>
    %1220 = arith.mulf %1219, %1198 : vector<2x256xf32>
    %1221 = math.exp %1220 : vector<2x256xf32>
    %1222 = arith.mulf %1217, %1221 : vector<2x256xf32>
    %cst_626 = arith.constant 1.000000e+00 : f32
    %1223 = vector.broadcast %cst_626 : f32 to vector<2x256xf32>
    %1224 = arith.subf %1223, %1222 : vector<2x256xf32>
    %1225 = arith.mulf %1197, %1224 : vector<2x256xf32>
    %cst_627 = arith.constant 1.000000e+00 : f32
    %1226 = vector.broadcast %cst_627 : f32 to vector<2x256xf32>
    %1227 = arith.addf %1226, %1225 : vector<2x256xf32>
    %1228 = arith.mulf %1190, %1227 : vector<2x256xf32>
    %1229 = vector.broadcast %219 : f32 to vector<2x256xf32>
    %1230 = arith.mulf %1228, %1229 : vector<2x256xf32>
    %1231 = arith.addf %1172, %1230 : vector<2x256xf32>
    %1232 = vector.broadcast %220 : f32 to vector<2x256xf32>
    %1233 = arith.mulf %1228, %1232 : vector<2x256xf32>
    %1234 = arith.addf %1175, %1233 : vector<2x256xf32>
    %1235 = vector.broadcast %221 : f32 to vector<2x256xf32>
    %1236 = arith.mulf %1228, %1235 : vector<2x256xf32>
    %1237 = arith.addf %1178, %1236 : vector<2x256xf32>
    %1238 = vector.broadcast %162 : f32 to vector<2x256xf32>
    %1239 = arith.mulf %876, %1238 : vector<2x256xf32>
    %1240 = vector.broadcast %174 : f32 to vector<2x256xf32>
    %1241 = arith.mulf %881, %1240 : vector<2x256xf32>
    %1242 = arith.addf %1239, %1241 : vector<2x256xf32>
    %1243 = vector.broadcast %186 : f32 to vector<2x256xf32>
    %1244 = arith.mulf %886, %1243 : vector<2x256xf32>
    %1245 = arith.addf %1242, %1244 : vector<2x256xf32>
    %1246 = vector.broadcast %198 : f32 to vector<2x256xf32>
    %1247 = arith.addf %1245, %1246 : vector<2x256xf32>
    %cst_628 = arith.constant 5.000000e-01 : f32
    %1248 = vector.broadcast %cst_628 : f32 to vector<2x256xf32>
    %1249 = arith.mulf %1248, %1247 : vector<2x256xf32>
    %cst_629 = arith.constant 0.707106769 : f32
    %1250 = vector.broadcast %cst_629 : f32 to vector<2x256xf32>
    %1251 = arith.mulf %1247, %1250 : vector<2x256xf32>
    %cst_630 = arith.constant 0.000000e+00 : f32
    %1252 = vector.broadcast %cst_630 : f32 to vector<2x256xf32>
    %1253 = arith.cmpf oge, %1251, %1252 : vector<2x256xf32>
    %cst_631 = arith.constant 1.000000e+00 : f32
    %cst_632 = arith.constant -1.000000e+00 : f32
    %1254 = vector.broadcast %cst_631 : f32 to vector<2x256xf32>
    %1255 = vector.broadcast %cst_632 : f32 to vector<2x256xf32>
    %1256 = arith.select %1253, %1254, %1255 : vector<2x256xi1>, vector<2x256xf32>
    %1257 = math.absf %1251 : vector<2x256xf32>
    %cst_633 = arith.constant 0.327591091 : f32
    %1258 = vector.broadcast %cst_633 : f32 to vector<2x256xf32>
    %1259 = arith.mulf %1258, %1257 : vector<2x256xf32>
    %cst_634 = arith.constant 1.000000e+00 : f32
    %1260 = vector.broadcast %cst_634 : f32 to vector<2x256xf32>
    %1261 = arith.addf %1260, %1259 : vector<2x256xf32>
    %1262 = tpu.reciprocal %1261 {approx = true} : vector<2x256xf32> -> vector<2x256xf32>
    %cst_635 = arith.constant 1.06140542 : f32
    %1263 = vector.broadcast %cst_635 : f32 to vector<2x256xf32>
    %1264 = arith.mulf %1263, %1262 : vector<2x256xf32>
    %cst_636 = arith.constant -1.45315206 : f32
    %1265 = vector.broadcast %cst_636 : f32 to vector<2x256xf32>
    %1266 = arith.addf %1264, %1265 : vector<2x256xf32>
    %1267 = arith.mulf %1266, %1262 : vector<2x256xf32>
    %cst_637 = arith.constant 1.42141378 : f32
    %1268 = vector.broadcast %cst_637 : f32 to vector<2x256xf32>
    %1269 = arith.addf %1267, %1268 : vector<2x256xf32>
    %1270 = arith.mulf %1269, %1262 : vector<2x256xf32>
    %cst_638 = arith.constant -0.284496725 : f32
    %1271 = vector.broadcast %cst_638 : f32 to vector<2x256xf32>
    %1272 = arith.addf %1270, %1271 : vector<2x256xf32>
    %1273 = arith.mulf %1272, %1262 : vector<2x256xf32>
    %cst_639 = arith.constant 0.254829586 : f32
    %1274 = vector.broadcast %cst_639 : f32 to vector<2x256xf32>
    %1275 = arith.addf %1273, %1274 : vector<2x256xf32>
    %1276 = arith.mulf %1275, %1262 : vector<2x256xf32>
    %cst_640 = arith.constant 0.000000e+00 : f32
    %1277 = vector.broadcast %cst_640 : f32 to vector<2x256xf32>
    %1278 = arith.subf %1277, %1257 : vector<2x256xf32>
    %1279 = arith.mulf %1278, %1257 : vector<2x256xf32>
    %1280 = math.exp %1279 : vector<2x256xf32>
    %1281 = arith.mulf %1276, %1280 : vector<2x256xf32>
    %cst_641 = arith.constant 1.000000e+00 : f32
    %1282 = vector.broadcast %cst_641 : f32 to vector<2x256xf32>
    %1283 = arith.subf %1282, %1281 : vector<2x256xf32>
    %1284 = arith.mulf %1256, %1283 : vector<2x256xf32>
    %cst_642 = arith.constant 1.000000e+00 : f32
    %1285 = vector.broadcast %cst_642 : f32 to vector<2x256xf32>
    %1286 = arith.addf %1285, %1284 : vector<2x256xf32>
    %1287 = arith.mulf %1249, %1286 : vector<2x256xf32>
    %1288 = vector.broadcast %222 : f32 to vector<2x256xf32>
    %1289 = arith.mulf %1287, %1288 : vector<2x256xf32>
    %1290 = arith.addf %1231, %1289 : vector<2x256xf32>
    %1291 = vector.broadcast %223 : f32 to vector<2x256xf32>
    %1292 = arith.mulf %1287, %1291 : vector<2x256xf32>
    %1293 = arith.addf %1234, %1292 : vector<2x256xf32>
    %1294 = vector.broadcast %224 : f32 to vector<2x256xf32>
    %1295 = arith.mulf %1287, %1294 : vector<2x256xf32>
    %1296 = arith.addf %1237, %1295 : vector<2x256xf32>
    %1297 = vector.broadcast %163 : f32 to vector<2x256xf32>
    %1298 = arith.mulf %876, %1297 : vector<2x256xf32>
    %1299 = vector.broadcast %175 : f32 to vector<2x256xf32>
    %1300 = arith.mulf %881, %1299 : vector<2x256xf32>
    %1301 = arith.addf %1298, %1300 : vector<2x256xf32>
    %1302 = vector.broadcast %187 : f32 to vector<2x256xf32>
    %1303 = arith.mulf %886, %1302 : vector<2x256xf32>
    %1304 = arith.addf %1301, %1303 : vector<2x256xf32>
    %1305 = vector.broadcast %199 : f32 to vector<2x256xf32>
    %1306 = arith.addf %1304, %1305 : vector<2x256xf32>
    %cst_643 = arith.constant 5.000000e-01 : f32
    %1307 = vector.broadcast %cst_643 : f32 to vector<2x256xf32>
    %1308 = arith.mulf %1307, %1306 : vector<2x256xf32>
    %cst_644 = arith.constant 0.707106769 : f32
    %1309 = vector.broadcast %cst_644 : f32 to vector<2x256xf32>
    %1310 = arith.mulf %1306, %1309 : vector<2x256xf32>
    %cst_645 = arith.constant 0.000000e+00 : f32
    %1311 = vector.broadcast %cst_645 : f32 to vector<2x256xf32>
    %1312 = arith.cmpf oge, %1310, %1311 : vector<2x256xf32>
    %cst_646 = arith.constant 1.000000e+00 : f32
    %cst_647 = arith.constant -1.000000e+00 : f32
    %1313 = vector.broadcast %cst_646 : f32 to vector<2x256xf32>
    %1314 = vector.broadcast %cst_647 : f32 to vector<2x256xf32>
    %1315 = arith.select %1312, %1313, %1314 : vector<2x256xi1>, vector<2x256xf32>
    %1316 = math.absf %1310 : vector<2x256xf32>
    %cst_648 = arith.constant 0.327591091 : f32
    %1317 = vector.broadcast %cst_648 : f32 to vector<2x256xf32>
    %1318 = arith.mulf %1317, %1316 : vector<2x256xf32>
    %cst_649 = arith.constant 1.000000e+00 : f32
    %1319 = vector.broadcast %cst_649 : f32 to vector<2x256xf32>
    %1320 = arith.addf %1319, %1318 : vector<2x256xf32>
    %1321 = tpu.reciprocal %1320 {approx = true} : vector<2x256xf32> -> vector<2x256xf32>
    %cst_650 = arith.constant 1.06140542 : f32
    %1322 = vector.broadcast %cst_650 : f32 to vector<2x256xf32>
    %1323 = arith.mulf %1322, %1321 : vector<2x256xf32>
    %cst_651 = arith.constant -1.45315206 : f32
    %1324 = vector.broadcast %cst_651 : f32 to vector<2x256xf32>
    %1325 = arith.addf %1323, %1324 : vector<2x256xf32>
    %1326 = arith.mulf %1325, %1321 : vector<2x256xf32>
    %cst_652 = arith.constant 1.42141378 : f32
    %1327 = vector.broadcast %cst_652 : f32 to vector<2x256xf32>
    %1328 = arith.addf %1326, %1327 : vector<2x256xf32>
    %1329 = arith.mulf %1328, %1321 : vector<2x256xf32>
    %cst_653 = arith.constant -0.284496725 : f32
    %1330 = vector.broadcast %cst_653 : f32 to vector<2x256xf32>
    %1331 = arith.addf %1329, %1330 : vector<2x256xf32>
    %1332 = arith.mulf %1331, %1321 : vector<2x256xf32>
    %cst_654 = arith.constant 0.254829586 : f32
    %1333 = vector.broadcast %cst_654 : f32 to vector<2x256xf32>
    %1334 = arith.addf %1332, %1333 : vector<2x256xf32>
    %1335 = arith.mulf %1334, %1321 : vector<2x256xf32>
    %cst_655 = arith.constant 0.000000e+00 : f32
    %1336 = vector.broadcast %cst_655 : f32 to vector<2x256xf32>
    %1337 = arith.subf %1336, %1316 : vector<2x256xf32>
    %1338 = arith.mulf %1337, %1316 : vector<2x256xf32>
    %1339 = math.exp %1338 : vector<2x256xf32>
    %1340 = arith.mulf %1335, %1339 : vector<2x256xf32>
    %cst_656 = arith.constant 1.000000e+00 : f32
    %1341 = vector.broadcast %cst_656 : f32 to vector<2x256xf32>
    %1342 = arith.subf %1341, %1340 : vector<2x256xf32>
    %1343 = arith.mulf %1315, %1342 : vector<2x256xf32>
    %cst_657 = arith.constant 1.000000e+00 : f32
    %1344 = vector.broadcast %cst_657 : f32 to vector<2x256xf32>
    %1345 = arith.addf %1344, %1343 : vector<2x256xf32>
    %1346 = arith.mulf %1308, %1345 : vector<2x256xf32>
    %1347 = vector.broadcast %225 : f32 to vector<2x256xf32>
    %1348 = arith.mulf %1346, %1347 : vector<2x256xf32>
    %1349 = arith.addf %1290, %1348 : vector<2x256xf32>
    %1350 = vector.broadcast %226 : f32 to vector<2x256xf32>
    %1351 = arith.mulf %1346, %1350 : vector<2x256xf32>
    %1352 = arith.addf %1293, %1351 : vector<2x256xf32>
    %1353 = vector.broadcast %227 : f32 to vector<2x256xf32>
    %1354 = arith.mulf %1346, %1353 : vector<2x256xf32>
    %1355 = arith.addf %1296, %1354 : vector<2x256xf32>
    %1356 = vector.broadcast %164 : f32 to vector<2x256xf32>
    %1357 = arith.mulf %876, %1356 : vector<2x256xf32>
    %1358 = vector.broadcast %176 : f32 to vector<2x256xf32>
    %1359 = arith.mulf %881, %1358 : vector<2x256xf32>
    %1360 = arith.addf %1357, %1359 : vector<2x256xf32>
    %1361 = vector.broadcast %188 : f32 to vector<2x256xf32>
    %1362 = arith.mulf %886, %1361 : vector<2x256xf32>
    %1363 = arith.addf %1360, %1362 : vector<2x256xf32>
    %1364 = vector.broadcast %200 : f32 to vector<2x256xf32>
    %1365 = arith.addf %1363, %1364 : vector<2x256xf32>
    %cst_658 = arith.constant 5.000000e-01 : f32
    %1366 = vector.broadcast %cst_658 : f32 to vector<2x256xf32>
    %1367 = arith.mulf %1366, %1365 : vector<2x256xf32>
    %cst_659 = arith.constant 0.707106769 : f32
    %1368 = vector.broadcast %cst_659 : f32 to vector<2x256xf32>
    %1369 = arith.mulf %1365, %1368 : vector<2x256xf32>
    %cst_660 = arith.constant 0.000000e+00 : f32
    %1370 = vector.broadcast %cst_660 : f32 to vector<2x256xf32>
    %1371 = arith.cmpf oge, %1369, %1370 : vector<2x256xf32>
    %cst_661 = arith.constant 1.000000e+00 : f32
    %cst_662 = arith.constant -1.000000e+00 : f32
    %1372 = vector.broadcast %cst_661 : f32 to vector<2x256xf32>
    %1373 = vector.broadcast %cst_662 : f32 to vector<2x256xf32>
    %1374 = arith.select %1371, %1372, %1373 : vector<2x256xi1>, vector<2x256xf32>
    %1375 = math.absf %1369 : vector<2x256xf32>
    %cst_663 = arith.constant 0.327591091 : f32
    %1376 = vector.broadcast %cst_663 : f32 to vector<2x256xf32>
    %1377 = arith.mulf %1376, %1375 : vector<2x256xf32>
    %cst_664 = arith.constant 1.000000e+00 : f32
    %1378 = vector.broadcast %cst_664 : f32 to vector<2x256xf32>
    %1379 = arith.addf %1378, %1377 : vector<2x256xf32>
    %1380 = tpu.reciprocal %1379 {approx = true} : vector<2x256xf32> -> vector<2x256xf32>
    %cst_665 = arith.constant 1.06140542 : f32
    %1381 = vector.broadcast %cst_665 : f32 to vector<2x256xf32>
    %1382 = arith.mulf %1381, %1380 : vector<2x256xf32>
    %cst_666 = arith.constant -1.45315206 : f32
    %1383 = vector.broadcast %cst_666 : f32 to vector<2x256xf32>
    %1384 = arith.addf %1382, %1383 : vector<2x256xf32>
    %1385 = arith.mulf %1384, %1380 : vector<2x256xf32>
    %cst_667 = arith.constant 1.42141378 : f32
    %1386 = vector.broadcast %cst_667 : f32 to vector<2x256xf32>
    %1387 = arith.addf %1385, %1386 : vector<2x256xf32>
    %1388 = arith.mulf %1387, %1380 : vector<2x256xf32>
    %cst_668 = arith.constant -0.284496725 : f32
    %1389 = vector.broadcast %cst_668 : f32 to vector<2x256xf32>
    %1390 = arith.addf %1388, %1389 : vector<2x256xf32>
    %1391 = arith.mulf %1390, %1380 : vector<2x256xf32>
    %cst_669 = arith.constant 0.254829586 : f32
    %1392 = vector.broadcast %cst_669 : f32 to vector<2x256xf32>
    %1393 = arith.addf %1391, %1392 : vector<2x256xf32>
    %1394 = arith.mulf %1393, %1380 : vector<2x256xf32>
    %cst_670 = arith.constant 0.000000e+00 : f32
    %1395 = vector.broadcast %cst_670 : f32 to vector<2x256xf32>
    %1396 = arith.subf %1395, %1375 : vector<2x256xf32>
    %1397 = arith.mulf %1396, %1375 : vector<2x256xf32>
    %1398 = math.exp %1397 : vector<2x256xf32>
    %1399 = arith.mulf %1394, %1398 : vector<2x256xf32>
    %cst_671 = arith.constant 1.000000e+00 : f32
    %1400 = vector.broadcast %cst_671 : f32 to vector<2x256xf32>
    %1401 = arith.subf %1400, %1399 : vector<2x256xf32>
    %1402 = arith.mulf %1374, %1401 : vector<2x256xf32>
    %cst_672 = arith.constant 1.000000e+00 : f32
    %1403 = vector.broadcast %cst_672 : f32 to vector<2x256xf32>
    %1404 = arith.addf %1403, %1402 : vector<2x256xf32>
    %1405 = arith.mulf %1367, %1404 : vector<2x256xf32>
    %1406 = vector.broadcast %228 : f32 to vector<2x256xf32>
    %1407 = arith.mulf %1405, %1406 : vector<2x256xf32>
    %1408 = arith.addf %1349, %1407 : vector<2x256xf32>
    %1409 = vector.broadcast %229 : f32 to vector<2x256xf32>
    %1410 = arith.mulf %1405, %1409 : vector<2x256xf32>
    %1411 = arith.addf %1352, %1410 : vector<2x256xf32>
    %1412 = vector.broadcast %230 : f32 to vector<2x256xf32>
    %1413 = arith.mulf %1405, %1412 : vector<2x256xf32>
    %1414 = arith.addf %1355, %1413 : vector<2x256xf32>
    %1415 = vector.broadcast %165 : f32 to vector<2x256xf32>
    %1416 = arith.mulf %876, %1415 : vector<2x256xf32>
    %1417 = vector.broadcast %177 : f32 to vector<2x256xf32>
    %1418 = arith.mulf %881, %1417 : vector<2x256xf32>
    %1419 = arith.addf %1416, %1418 : vector<2x256xf32>
    %1420 = vector.broadcast %189 : f32 to vector<2x256xf32>
    %1421 = arith.mulf %886, %1420 : vector<2x256xf32>
    %1422 = arith.addf %1419, %1421 : vector<2x256xf32>
    %1423 = vector.broadcast %201 : f32 to vector<2x256xf32>
    %1424 = arith.addf %1422, %1423 : vector<2x256xf32>
    %cst_673 = arith.constant 5.000000e-01 : f32
    %1425 = vector.broadcast %cst_673 : f32 to vector<2x256xf32>
    %1426 = arith.mulf %1425, %1424 : vector<2x256xf32>
    %cst_674 = arith.constant 0.707106769 : f32
    %1427 = vector.broadcast %cst_674 : f32 to vector<2x256xf32>
    %1428 = arith.mulf %1424, %1427 : vector<2x256xf32>
    %cst_675 = arith.constant 0.000000e+00 : f32
    %1429 = vector.broadcast %cst_675 : f32 to vector<2x256xf32>
    %1430 = arith.cmpf oge, %1428, %1429 : vector<2x256xf32>
    %cst_676 = arith.constant 1.000000e+00 : f32
    %cst_677 = arith.constant -1.000000e+00 : f32
    %1431 = vector.broadcast %cst_676 : f32 to vector<2x256xf32>
    %1432 = vector.broadcast %cst_677 : f32 to vector<2x256xf32>
    %1433 = arith.select %1430, %1431, %1432 : vector<2x256xi1>, vector<2x256xf32>
    %1434 = math.absf %1428 : vector<2x256xf32>
    %cst_678 = arith.constant 0.327591091 : f32
    %1435 = vector.broadcast %cst_678 : f32 to vector<2x256xf32>
    %1436 = arith.mulf %1435, %1434 : vector<2x256xf32>
    %cst_679 = arith.constant 1.000000e+00 : f32
    %1437 = vector.broadcast %cst_679 : f32 to vector<2x256xf32>
    %1438 = arith.addf %1437, %1436 : vector<2x256xf32>
    %1439 = tpu.reciprocal %1438 {approx = true} : vector<2x256xf32> -> vector<2x256xf32>
    %cst_680 = arith.constant 1.06140542 : f32
    %1440 = vector.broadcast %cst_680 : f32 to vector<2x256xf32>
    %1441 = arith.mulf %1440, %1439 : vector<2x256xf32>
    %cst_681 = arith.constant -1.45315206 : f32
    %1442 = vector.broadcast %cst_681 : f32 to vector<2x256xf32>
    %1443 = arith.addf %1441, %1442 : vector<2x256xf32>
    %1444 = arith.mulf %1443, %1439 : vector<2x256xf32>
    %cst_682 = arith.constant 1.42141378 : f32
    %1445 = vector.broadcast %cst_682 : f32 to vector<2x256xf32>
    %1446 = arith.addf %1444, %1445 : vector<2x256xf32>
    %1447 = arith.mulf %1446, %1439 : vector<2x256xf32>
    %cst_683 = arith.constant -0.284496725 : f32
    %1448 = vector.broadcast %cst_683 : f32 to vector<2x256xf32>
    %1449 = arith.addf %1447, %1448 : vector<2x256xf32>
    %1450 = arith.mulf %1449, %1439 : vector<2x256xf32>
    %cst_684 = arith.constant 0.254829586 : f32
    %1451 = vector.broadcast %cst_684 : f32 to vector<2x256xf32>
    %1452 = arith.addf %1450, %1451 : vector<2x256xf32>
    %1453 = arith.mulf %1452, %1439 : vector<2x256xf32>
    %cst_685 = arith.constant 0.000000e+00 : f32
    %1454 = vector.broadcast %cst_685 : f32 to vector<2x256xf32>
    %1455 = arith.subf %1454, %1434 : vector<2x256xf32>
    %1456 = arith.mulf %1455, %1434 : vector<2x256xf32>
    %1457 = math.exp %1456 : vector<2x256xf32>
    %1458 = arith.mulf %1453, %1457 : vector<2x256xf32>
    %cst_686 = arith.constant 1.000000e+00 : f32
    %1459 = vector.broadcast %cst_686 : f32 to vector<2x256xf32>
    %1460 = arith.subf %1459, %1458 : vector<2x256xf32>
    %1461 = arith.mulf %1433, %1460 : vector<2x256xf32>
    %cst_687 = arith.constant 1.000000e+00 : f32
    %1462 = vector.broadcast %cst_687 : f32 to vector<2x256xf32>
    %1463 = arith.addf %1462, %1461 : vector<2x256xf32>
    %1464 = arith.mulf %1426, %1463 : vector<2x256xf32>
    %1465 = vector.broadcast %231 : f32 to vector<2x256xf32>
    %1466 = arith.mulf %1464, %1465 : vector<2x256xf32>
    %1467 = arith.addf %1408, %1466 : vector<2x256xf32>
    %1468 = vector.broadcast %232 : f32 to vector<2x256xf32>
    %1469 = arith.mulf %1464, %1468 : vector<2x256xf32>
    %1470 = arith.addf %1411, %1469 : vector<2x256xf32>
    %1471 = vector.broadcast %233 : f32 to vector<2x256xf32>
    %1472 = arith.mulf %1464, %1471 : vector<2x256xf32>
    %1473 = arith.addf %1414, %1472 : vector<2x256xf32>
    %1474 = vector.broadcast %166 : f32 to vector<2x256xf32>
    %1475 = arith.mulf %876, %1474 : vector<2x256xf32>
    %1476 = vector.broadcast %178 : f32 to vector<2x256xf32>
    %1477 = arith.mulf %881, %1476 : vector<2x256xf32>
    %1478 = arith.addf %1475, %1477 : vector<2x256xf32>
    %1479 = vector.broadcast %190 : f32 to vector<2x256xf32>
    %1480 = arith.mulf %886, %1479 : vector<2x256xf32>
    %1481 = arith.addf %1478, %1480 : vector<2x256xf32>
    %1482 = vector.broadcast %202 : f32 to vector<2x256xf32>
    %1483 = arith.addf %1481, %1482 : vector<2x256xf32>
    %cst_688 = arith.constant 5.000000e-01 : f32
    %1484 = vector.broadcast %cst_688 : f32 to vector<2x256xf32>
    %1485 = arith.mulf %1484, %1483 : vector<2x256xf32>
    %cst_689 = arith.constant 0.707106769 : f32
    %1486 = vector.broadcast %cst_689 : f32 to vector<2x256xf32>
    %1487 = arith.mulf %1483, %1486 : vector<2x256xf32>
    %cst_690 = arith.constant 0.000000e+00 : f32
    %1488 = vector.broadcast %cst_690 : f32 to vector<2x256xf32>
    %1489 = arith.cmpf oge, %1487, %1488 : vector<2x256xf32>
    %cst_691 = arith.constant 1.000000e+00 : f32
    %cst_692 = arith.constant -1.000000e+00 : f32
    %1490 = vector.broadcast %cst_691 : f32 to vector<2x256xf32>
    %1491 = vector.broadcast %cst_692 : f32 to vector<2x256xf32>
    %1492 = arith.select %1489, %1490, %1491 : vector<2x256xi1>, vector<2x256xf32>
    %1493 = math.absf %1487 : vector<2x256xf32>
    %cst_693 = arith.constant 0.327591091 : f32
    %1494 = vector.broadcast %cst_693 : f32 to vector<2x256xf32>
    %1495 = arith.mulf %1494, %1493 : vector<2x256xf32>
    %cst_694 = arith.constant 1.000000e+00 : f32
    %1496 = vector.broadcast %cst_694 : f32 to vector<2x256xf32>
    %1497 = arith.addf %1496, %1495 : vector<2x256xf32>
    %1498 = tpu.reciprocal %1497 {approx = true} : vector<2x256xf32> -> vector<2x256xf32>
    %cst_695 = arith.constant 1.06140542 : f32
    %1499 = vector.broadcast %cst_695 : f32 to vector<2x256xf32>
    %1500 = arith.mulf %1499, %1498 : vector<2x256xf32>
    %cst_696 = arith.constant -1.45315206 : f32
    %1501 = vector.broadcast %cst_696 : f32 to vector<2x256xf32>
    %1502 = arith.addf %1500, %1501 : vector<2x256xf32>
    %1503 = arith.mulf %1502, %1498 : vector<2x256xf32>
    %cst_697 = arith.constant 1.42141378 : f32
    %1504 = vector.broadcast %cst_697 : f32 to vector<2x256xf32>
    %1505 = arith.addf %1503, %1504 : vector<2x256xf32>
    %1506 = arith.mulf %1505, %1498 : vector<2x256xf32>
    %cst_698 = arith.constant -0.284496725 : f32
    %1507 = vector.broadcast %cst_698 : f32 to vector<2x256xf32>
    %1508 = arith.addf %1506, %1507 : vector<2x256xf32>
    %1509 = arith.mulf %1508, %1498 : vector<2x256xf32>
    %cst_699 = arith.constant 0.254829586 : f32
    %1510 = vector.broadcast %cst_699 : f32 to vector<2x256xf32>
    %1511 = arith.addf %1509, %1510 : vector<2x256xf32>
    %1512 = arith.mulf %1511, %1498 : vector<2x256xf32>
    %cst_700 = arith.constant 0.000000e+00 : f32
    %1513 = vector.broadcast %cst_700 : f32 to vector<2x256xf32>
    %1514 = arith.subf %1513, %1493 : vector<2x256xf32>
    %1515 = arith.mulf %1514, %1493 : vector<2x256xf32>
    %1516 = math.exp %1515 : vector<2x256xf32>
    %1517 = arith.mulf %1512, %1516 : vector<2x256xf32>
    %cst_701 = arith.constant 1.000000e+00 : f32
    %1518 = vector.broadcast %cst_701 : f32 to vector<2x256xf32>
    %1519 = arith.subf %1518, %1517 : vector<2x256xf32>
    %1520 = arith.mulf %1492, %1519 : vector<2x256xf32>
    %cst_702 = arith.constant 1.000000e+00 : f32
    %1521 = vector.broadcast %cst_702 : f32 to vector<2x256xf32>
    %1522 = arith.addf %1521, %1520 : vector<2x256xf32>
    %1523 = arith.mulf %1485, %1522 : vector<2x256xf32>
    %1524 = vector.broadcast %234 : f32 to vector<2x256xf32>
    %1525 = arith.mulf %1523, %1524 : vector<2x256xf32>
    %1526 = arith.addf %1467, %1525 : vector<2x256xf32>
    %1527 = vector.broadcast %235 : f32 to vector<2x256xf32>
    %1528 = arith.mulf %1523, %1527 : vector<2x256xf32>
    %1529 = arith.addf %1470, %1528 : vector<2x256xf32>
    %1530 = vector.broadcast %236 : f32 to vector<2x256xf32>
    %1531 = arith.mulf %1523, %1530 : vector<2x256xf32>
    %1532 = arith.addf %1473, %1531 : vector<2x256xf32>
    %1533 = vector.broadcast %167 : f32 to vector<2x256xf32>
    %1534 = arith.mulf %876, %1533 : vector<2x256xf32>
    %1535 = vector.broadcast %179 : f32 to vector<2x256xf32>
    %1536 = arith.mulf %881, %1535 : vector<2x256xf32>
    %1537 = arith.addf %1534, %1536 : vector<2x256xf32>
    %1538 = vector.broadcast %191 : f32 to vector<2x256xf32>
    %1539 = arith.mulf %886, %1538 : vector<2x256xf32>
    %1540 = arith.addf %1537, %1539 : vector<2x256xf32>
    %1541 = vector.broadcast %203 : f32 to vector<2x256xf32>
    %1542 = arith.addf %1540, %1541 : vector<2x256xf32>
    %cst_703 = arith.constant 5.000000e-01 : f32
    %1543 = vector.broadcast %cst_703 : f32 to vector<2x256xf32>
    %1544 = arith.mulf %1543, %1542 : vector<2x256xf32>
    %cst_704 = arith.constant 0.707106769 : f32
    %1545 = vector.broadcast %cst_704 : f32 to vector<2x256xf32>
    %1546 = arith.mulf %1542, %1545 : vector<2x256xf32>
    %cst_705 = arith.constant 0.000000e+00 : f32
    %1547 = vector.broadcast %cst_705 : f32 to vector<2x256xf32>
    %1548 = arith.cmpf oge, %1546, %1547 : vector<2x256xf32>
    %cst_706 = arith.constant 1.000000e+00 : f32
    %cst_707 = arith.constant -1.000000e+00 : f32
    %1549 = vector.broadcast %cst_706 : f32 to vector<2x256xf32>
    %1550 = vector.broadcast %cst_707 : f32 to vector<2x256xf32>
    %1551 = arith.select %1548, %1549, %1550 : vector<2x256xi1>, vector<2x256xf32>
    %1552 = math.absf %1546 : vector<2x256xf32>
    %cst_708 = arith.constant 0.327591091 : f32
    %1553 = vector.broadcast %cst_708 : f32 to vector<2x256xf32>
    %1554 = arith.mulf %1553, %1552 : vector<2x256xf32>
    %cst_709 = arith.constant 1.000000e+00 : f32
    %1555 = vector.broadcast %cst_709 : f32 to vector<2x256xf32>
    %1556 = arith.addf %1555, %1554 : vector<2x256xf32>
    %1557 = tpu.reciprocal %1556 {approx = true} : vector<2x256xf32> -> vector<2x256xf32>
    %cst_710 = arith.constant 1.06140542 : f32
    %1558 = vector.broadcast %cst_710 : f32 to vector<2x256xf32>
    %1559 = arith.mulf %1558, %1557 : vector<2x256xf32>
    %cst_711 = arith.constant -1.45315206 : f32
    %1560 = vector.broadcast %cst_711 : f32 to vector<2x256xf32>
    %1561 = arith.addf %1559, %1560 : vector<2x256xf32>
    %1562 = arith.mulf %1561, %1557 : vector<2x256xf32>
    %cst_712 = arith.constant 1.42141378 : f32
    %1563 = vector.broadcast %cst_712 : f32 to vector<2x256xf32>
    %1564 = arith.addf %1562, %1563 : vector<2x256xf32>
    %1565 = arith.mulf %1564, %1557 : vector<2x256xf32>
    %cst_713 = arith.constant -0.284496725 : f32
    %1566 = vector.broadcast %cst_713 : f32 to vector<2x256xf32>
    %1567 = arith.addf %1565, %1566 : vector<2x256xf32>
    %1568 = arith.mulf %1567, %1557 : vector<2x256xf32>
    %cst_714 = arith.constant 0.254829586 : f32
    %1569 = vector.broadcast %cst_714 : f32 to vector<2x256xf32>
    %1570 = arith.addf %1568, %1569 : vector<2x256xf32>
    %1571 = arith.mulf %1570, %1557 : vector<2x256xf32>
    %cst_715 = arith.constant 0.000000e+00 : f32
    %1572 = vector.broadcast %cst_715 : f32 to vector<2x256xf32>
    %1573 = arith.subf %1572, %1552 : vector<2x256xf32>
    %1574 = arith.mulf %1573, %1552 : vector<2x256xf32>
    %1575 = math.exp %1574 : vector<2x256xf32>
    %1576 = arith.mulf %1571, %1575 : vector<2x256xf32>
    %cst_716 = arith.constant 1.000000e+00 : f32
    %1577 = vector.broadcast %cst_716 : f32 to vector<2x256xf32>
    %1578 = arith.subf %1577, %1576 : vector<2x256xf32>
    %1579 = arith.mulf %1551, %1578 : vector<2x256xf32>
    %cst_717 = arith.constant 1.000000e+00 : f32
    %1580 = vector.broadcast %cst_717 : f32 to vector<2x256xf32>
    %1581 = arith.addf %1580, %1579 : vector<2x256xf32>
    %1582 = arith.mulf %1544, %1581 : vector<2x256xf32>
    %1583 = vector.broadcast %237 : f32 to vector<2x256xf32>
    %1584 = arith.mulf %1582, %1583 : vector<2x256xf32>
    %1585 = arith.addf %1526, %1584 : vector<2x256xf32>
    %1586 = vector.broadcast %238 : f32 to vector<2x256xf32>
    %1587 = arith.mulf %1582, %1586 : vector<2x256xf32>
    %1588 = arith.addf %1529, %1587 : vector<2x256xf32>
    %1589 = vector.broadcast %239 : f32 to vector<2x256xf32>
    %1590 = arith.mulf %1582, %1589 : vector<2x256xf32>
    %1591 = arith.addf %1532, %1590 : vector<2x256xf32>
    %1592 = vector.broadcast %240 : f32 to vector<2x256xf32>
    %1593 = arith.addf %1585, %1592 : vector<2x256xf32>
    %1594 = vector.broadcast %243 : f32 to vector<2x256xf32>
    %1595 = arith.mulf %1593, %1594 : vector<2x256xf32>
    %1596 = arith.addf %298, %1595 : vector<2x256xf32>
    %1597 = vector.broadcast %241 : f32 to vector<2x256xf32>
    %1598 = arith.addf %1588, %1597 : vector<2x256xf32>
    %1599 = vector.broadcast %244 : f32 to vector<2x256xf32>
    %1600 = arith.mulf %1598, %1599 : vector<2x256xf32>
    %1601 = arith.addf %300, %1600 : vector<2x256xf32>
    %1602 = vector.broadcast %242 : f32 to vector<2x256xf32>
    %1603 = arith.addf %1591, %1602 : vector<2x256xf32>
    %1604 = vector.broadcast %245 : f32 to vector<2x256xf32>
    %1605 = arith.mulf %1603, %1604 : vector<2x256xf32>
    %1606 = arith.addf %302, %1605 : vector<2x256xf32>
    %cst_718 = arith.constant dense<0.000000e+00> : vector<2xf32>
    %1607 = vector.multi_reduction <add>, %1596, %cst_718 [1] : vector<2x256xf32> to vector<2xf32>
    %1608 = vector.shape_cast %1607 : vector<2xf32> to vector<2x1xf32>
    %cst_719 = arith.constant 3.906250e-03 : f32
    %1609 = vector.broadcast %cst_719 : f32 to vector<2x1xf32>
    %1610 = arith.mulf %1608, %1609 : vector<2x1xf32>
    %cst_720 = arith.constant dense<0.000000e+00> : vector<2xf32>
    %1611 = vector.multi_reduction <add>, %1601, %cst_720 [1] : vector<2x256xf32> to vector<2xf32>
    %1612 = vector.shape_cast %1611 : vector<2xf32> to vector<2x1xf32>
    %cst_721 = arith.constant 3.906250e-03 : f32
    %1613 = vector.broadcast %cst_721 : f32 to vector<2x1xf32>
    %1614 = arith.mulf %1612, %1613 : vector<2x1xf32>
    %cst_722 = arith.constant dense<0.000000e+00> : vector<2xf32>
    %1615 = vector.multi_reduction <add>, %1606, %cst_722 [1] : vector<2x256xf32> to vector<2xf32>
    %1616 = vector.shape_cast %1615 : vector<2xf32> to vector<2x1xf32>
    %cst_723 = arith.constant 3.906250e-03 : f32
    %1617 = vector.broadcast %cst_723 : f32 to vector<2x1xf32>
    %1618 = arith.mulf %1616, %1617 : vector<2x1xf32>
    %1619 = vector.broadcast %246 : f32 to vector<2x1xf32>
    %1620 = arith.mulf %1610, %1619 : vector<2x1xf32>
    %1621 = vector.broadcast %252 : f32 to vector<2x1xf32>
    %1622 = arith.mulf %1614, %1621 : vector<2x1xf32>
    %1623 = arith.addf %1620, %1622 : vector<2x1xf32>
    %1624 = vector.broadcast %258 : f32 to vector<2x1xf32>
    %1625 = arith.mulf %1618, %1624 : vector<2x1xf32>
    %1626 = arith.addf %1623, %1625 : vector<2x1xf32>
    %1627 = vector.broadcast %264 : f32 to vector<2x1xf32>
    %1628 = arith.addf %1626, %1627 : vector<2x1xf32>
    %1629 = vector.broadcast %247 : f32 to vector<2x1xf32>
    %1630 = arith.mulf %1610, %1629 : vector<2x1xf32>
    %1631 = vector.broadcast %253 : f32 to vector<2x1xf32>
    %1632 = arith.mulf %1614, %1631 : vector<2x1xf32>
    %1633 = arith.addf %1630, %1632 : vector<2x1xf32>
    %1634 = vector.broadcast %259 : f32 to vector<2x1xf32>
    %1635 = arith.mulf %1618, %1634 : vector<2x1xf32>
    %1636 = arith.addf %1633, %1635 : vector<2x1xf32>
    %1637 = vector.broadcast %265 : f32 to vector<2x1xf32>
    %1638 = arith.addf %1636, %1637 : vector<2x1xf32>
    %1639 = vector.broadcast %248 : f32 to vector<2x1xf32>
    %1640 = arith.mulf %1610, %1639 : vector<2x1xf32>
    %1641 = vector.broadcast %254 : f32 to vector<2x1xf32>
    %1642 = arith.mulf %1614, %1641 : vector<2x1xf32>
    %1643 = arith.addf %1640, %1642 : vector<2x1xf32>
    %1644 = vector.broadcast %260 : f32 to vector<2x1xf32>
    %1645 = arith.mulf %1618, %1644 : vector<2x1xf32>
    %1646 = arith.addf %1643, %1645 : vector<2x1xf32>
    %1647 = vector.broadcast %266 : f32 to vector<2x1xf32>
    %1648 = arith.addf %1646, %1647 : vector<2x1xf32>
    %1649 = vector.broadcast %249 : f32 to vector<2x1xf32>
    %1650 = arith.mulf %1610, %1649 : vector<2x1xf32>
    %1651 = vector.broadcast %255 : f32 to vector<2x1xf32>
    %1652 = arith.mulf %1614, %1651 : vector<2x1xf32>
    %1653 = arith.addf %1650, %1652 : vector<2x1xf32>
    %1654 = vector.broadcast %261 : f32 to vector<2x1xf32>
    %1655 = arith.mulf %1618, %1654 : vector<2x1xf32>
    %1656 = arith.addf %1653, %1655 : vector<2x1xf32>
    %1657 = vector.broadcast %267 : f32 to vector<2x1xf32>
    %1658 = arith.addf %1656, %1657 : vector<2x1xf32>
    %1659 = vector.broadcast %250 : f32 to vector<2x1xf32>
    %1660 = arith.mulf %1610, %1659 : vector<2x1xf32>
    %1661 = vector.broadcast %256 : f32 to vector<2x1xf32>
    %1662 = arith.mulf %1614, %1661 : vector<2x1xf32>
    %1663 = arith.addf %1660, %1662 : vector<2x1xf32>
    %1664 = vector.broadcast %262 : f32 to vector<2x1xf32>
    %1665 = arith.mulf %1618, %1664 : vector<2x1xf32>
    %1666 = arith.addf %1663, %1665 : vector<2x1xf32>
    %1667 = vector.broadcast %268 : f32 to vector<2x1xf32>
    %1668 = arith.addf %1666, %1667 : vector<2x1xf32>
    %1669 = vector.broadcast %251 : f32 to vector<2x1xf32>
    %1670 = arith.mulf %1610, %1669 : vector<2x1xf32>
    %1671 = vector.broadcast %257 : f32 to vector<2x1xf32>
    %1672 = arith.mulf %1614, %1671 : vector<2x1xf32>
    %1673 = arith.addf %1670, %1672 : vector<2x1xf32>
    %1674 = vector.broadcast %263 : f32 to vector<2x1xf32>
    %1675 = arith.mulf %1618, %1674 : vector<2x1xf32>
    %1676 = arith.addf %1673, %1675 : vector<2x1xf32>
    %1677 = vector.broadcast %269 : f32 to vector<2x1xf32>
    %1678 = arith.addf %1676, %1677 : vector<2x1xf32>
    %cst_724 = arith.constant 2.000000e+01 : f32
    %1679 = vector.broadcast %cst_724 : f32 to vector<2x1xf32>
    %1680 = arith.cmpf ogt, %1658, %1679 : vector<2x1xf32>
    %cst_725 = arith.constant 2.000000e+01 : f32
    %1681 = vector.broadcast %cst_725 : f32 to vector<2x1xf32>
    %1682 = arith.minimumf %1658, %1681 : vector<2x1xf32>
    %1683 = math.exp %1682 : vector<2x1xf32>
    %cst_726 = arith.constant 1.000000e+00 : f32
    %1684 = vector.broadcast %cst_726 : f32 to vector<2x1xf32>
    %1685 = arith.addf %1684, %1683 : vector<2x1xf32>
    %1686 = math.log %1685 : vector<2x1xf32>
    %1687 = arith.select %1680, %1658, %1686 : vector<2x1xi1>, vector<2x1xf32>
    %cst_727 = arith.constant 9.99999997E-7 : f32
    %1688 = vector.broadcast %cst_727 : f32 to vector<2x1xf32>
    %1689 = arith.maximumf %1687, %1688 : vector<2x1xf32>
    %cst_728 = arith.constant 1.000000e+00 : f32
    %1690 = vector.broadcast %cst_728 : f32 to vector<2x1xf32>
    %1691 = arith.divf %1690, %1689 : vector<2x1xf32>
    %1692 = vector.broadcast %1628 : vector<2x1xf32> to vector<2x256xf32>
    %1693 = arith.subf %298, %1692 : vector<2x256xf32>
    %1694 = vector.broadcast %1691 : vector<2x1xf32> to vector<2x256xf32>
    %1695 = arith.mulf %1693, %1694 : vector<2x256xf32>
    %cst_729 = arith.constant 2.000000e+01 : f32
    %1696 = vector.broadcast %cst_729 : f32 to vector<2x1xf32>
    %1697 = arith.cmpf ogt, %1668, %1696 : vector<2x1xf32>
    %cst_730 = arith.constant 2.000000e+01 : f32
    %1698 = vector.broadcast %cst_730 : f32 to vector<2x1xf32>
    %1699 = arith.minimumf %1668, %1698 : vector<2x1xf32>
    %1700 = math.exp %1699 : vector<2x1xf32>
    %cst_731 = arith.constant 1.000000e+00 : f32
    %1701 = vector.broadcast %cst_731 : f32 to vector<2x1xf32>
    %1702 = arith.addf %1701, %1700 : vector<2x1xf32>
    %1703 = math.log %1702 : vector<2x1xf32>
    %1704 = arith.select %1697, %1668, %1703 : vector<2x1xi1>, vector<2x1xf32>
    %cst_732 = arith.constant 9.99999997E-7 : f32
    %1705 = vector.broadcast %cst_732 : f32 to vector<2x1xf32>
    %1706 = arith.maximumf %1704, %1705 : vector<2x1xf32>
    %cst_733 = arith.constant 1.000000e+00 : f32
    %1707 = vector.broadcast %cst_733 : f32 to vector<2x1xf32>
    %1708 = arith.divf %1707, %1706 : vector<2x1xf32>
    %1709 = vector.broadcast %1638 : vector<2x1xf32> to vector<2x256xf32>
    %1710 = arith.subf %300, %1709 : vector<2x256xf32>
    %1711 = vector.broadcast %1708 : vector<2x1xf32> to vector<2x256xf32>
    %1712 = arith.mulf %1710, %1711 : vector<2x256xf32>
    %cst_734 = arith.constant 2.000000e+01 : f32
    %1713 = vector.broadcast %cst_734 : f32 to vector<2x1xf32>
    %1714 = arith.cmpf ogt, %1678, %1713 : vector<2x1xf32>
    %cst_735 = arith.constant 2.000000e+01 : f32
    %1715 = vector.broadcast %cst_735 : f32 to vector<2x1xf32>
    %1716 = arith.minimumf %1678, %1715 : vector<2x1xf32>
    %1717 = math.exp %1716 : vector<2x1xf32>
    %cst_736 = arith.constant 1.000000e+00 : f32
    %1718 = vector.broadcast %cst_736 : f32 to vector<2x1xf32>
    %1719 = arith.addf %1718, %1717 : vector<2x1xf32>
    %1720 = math.log %1719 : vector<2x1xf32>
    %1721 = arith.select %1714, %1678, %1720 : vector<2x1xi1>, vector<2x1xf32>
    %cst_737 = arith.constant 9.99999997E-7 : f32
    %1722 = vector.broadcast %cst_737 : f32 to vector<2x1xf32>
    %1723 = arith.maximumf %1721, %1722 : vector<2x1xf32>
    %cst_738 = arith.constant 1.000000e+00 : f32
    %1724 = vector.broadcast %cst_738 : f32 to vector<2x1xf32>
    %1725 = arith.divf %1724, %1723 : vector<2x1xf32>
    %1726 = vector.broadcast %1648 : vector<2x1xf32> to vector<2x256xf32>
    %1727 = arith.subf %302, %1726 : vector<2x256xf32>
    %1728 = vector.broadcast %1725 : vector<2x1xf32> to vector<2x256xf32>
    %1729 = arith.mulf %1727, %1728 : vector<2x256xf32>
    %c3_i32_739 = arith.constant 3 : i32
    %1730 = tpu.dynamic_rotate %1695 by %c3_i32_739 dim 1 : vector<2x256xf32>, i32 -> vector<2x256xf32>
    %cst_740 = arith.constant 0.000000e+00 : f32
    %1731 = vector.broadcast %cst_740 : f32 to vector<2x256xf32>
    %1732 = arith.select %292, %1730, %1731 : vector<2x256xi1>, vector<2x256xf32>
    %c2_i32_741 = arith.constant 2 : i32
    %1733 = tpu.dynamic_rotate %1695 by %c2_i32_741 dim 1 : vector<2x256xf32>, i32 -> vector<2x256xf32>
    %cst_742 = arith.constant 0.000000e+00 : f32
    %1734 = vector.broadcast %cst_742 : f32 to vector<2x256xf32>
    %1735 = arith.select %284, %1733, %1734 : vector<2x256xi1>, vector<2x256xf32>
    %c1_i32_743 = arith.constant 1 : i32
    %1736 = tpu.dynamic_rotate %1695 by %c1_i32_743 dim 1 : vector<2x256xf32>, i32 -> vector<2x256xf32>
    %cst_744 = arith.constant 0.000000e+00 : f32
    %1737 = vector.broadcast %cst_744 : f32 to vector<2x256xf32>
    %1738 = arith.select %276, %1736, %1737 : vector<2x256xi1>, vector<2x256xf32>
    %c255_i32_745 = arith.constant 255 : i32
    %1739 = tpu.dynamic_rotate %1695 by %c255_i32_745 dim 1 : vector<2x256xf32>, i32 -> vector<2x256xf32>
    %cst_746 = arith.constant 0.000000e+00 : f32
    %1740 = vector.broadcast %cst_746 : f32 to vector<2x256xf32>
    %1741 = arith.select %274, %1739, %1740 : vector<2x256xi1>, vector<2x256xf32>
    %c254_i32_747 = arith.constant 254 : i32
    %1742 = tpu.dynamic_rotate %1695 by %c254_i32_747 dim 1 : vector<2x256xf32>, i32 -> vector<2x256xf32>
    %cst_748 = arith.constant 0.000000e+00 : f32
    %1743 = vector.broadcast %cst_748 : f32 to vector<2x256xf32>
    %1744 = arith.select %282, %1742, %1743 : vector<2x256xi1>, vector<2x256xf32>
    %c253_i32_749 = arith.constant 253 : i32
    %1745 = tpu.dynamic_rotate %1695 by %c253_i32_749 dim 1 : vector<2x256xf32>, i32 -> vector<2x256xf32>
    %cst_750 = arith.constant 0.000000e+00 : f32
    %1746 = vector.broadcast %cst_750 : f32 to vector<2x256xf32>
    %1747 = arith.select %290, %1745, %1746 : vector<2x256xi1>, vector<2x256xf32>
    %1748 = vector.broadcast %0 : f32 to vector<2x256xf32>
    %1749 = arith.mulf %1732, %1748 : vector<2x256xf32>
    %1750 = vector.broadcast %1 : f32 to vector<2x256xf32>
    %1751 = arith.mulf %1735, %1750 : vector<2x256xf32>
    %1752 = arith.addf %1749, %1751 : vector<2x256xf32>
    %1753 = vector.broadcast %2 : f32 to vector<2x256xf32>
    %1754 = arith.mulf %1738, %1753 : vector<2x256xf32>
    %1755 = arith.addf %1752, %1754 : vector<2x256xf32>
    %1756 = vector.broadcast %3 : f32 to vector<2x256xf32>
    %1757 = arith.mulf %1695, %1756 : vector<2x256xf32>
    %1758 = arith.addf %1755, %1757 : vector<2x256xf32>
    %1759 = vector.broadcast %4 : f32 to vector<2x256xf32>
    %1760 = arith.mulf %1741, %1759 : vector<2x256xf32>
    %1761 = arith.addf %1758, %1760 : vector<2x256xf32>
    %1762 = vector.broadcast %5 : f32 to vector<2x256xf32>
    %1763 = arith.mulf %1744, %1762 : vector<2x256xf32>
    %1764 = arith.addf %1761, %1763 : vector<2x256xf32>
    %1765 = vector.broadcast %6 : f32 to vector<2x256xf32>
    %1766 = arith.mulf %1747, %1765 : vector<2x256xf32>
    %1767 = arith.addf %1764, %1766 : vector<2x256xf32>
    %c48_i32_751 = arith.constant 48 : i32
    %1768 = tpu.dynamic_rotate %1767 by %c48_i32_751 dim 1 : vector<2x256xf32>, i32 -> vector<2x256xf32>
    %cst_752 = arith.constant 0.000000e+00 : f32
    %1769 = vector.broadcast %cst_752 : f32 to vector<2x256xf32>
    %1770 = arith.select %296, %1768, %1769 : vector<2x256xi1>, vector<2x256xf32>
    %1771 = vector.broadcast %7 : f32 to vector<2x256xf32>
    %1772 = arith.mulf %1732, %1771 : vector<2x256xf32>
    %1773 = vector.broadcast %8 : f32 to vector<2x256xf32>
    %1774 = arith.mulf %1735, %1773 : vector<2x256xf32>
    %1775 = arith.addf %1772, %1774 : vector<2x256xf32>
    %1776 = vector.broadcast %9 : f32 to vector<2x256xf32>
    %1777 = arith.mulf %1738, %1776 : vector<2x256xf32>
    %1778 = arith.addf %1775, %1777 : vector<2x256xf32>
    %1779 = vector.broadcast %10 : f32 to vector<2x256xf32>
    %1780 = arith.mulf %1695, %1779 : vector<2x256xf32>
    %1781 = arith.addf %1778, %1780 : vector<2x256xf32>
    %1782 = vector.broadcast %11 : f32 to vector<2x256xf32>
    %1783 = arith.mulf %1741, %1782 : vector<2x256xf32>
    %1784 = arith.addf %1781, %1783 : vector<2x256xf32>
    %1785 = vector.broadcast %12 : f32 to vector<2x256xf32>
    %1786 = arith.mulf %1744, %1785 : vector<2x256xf32>
    %1787 = arith.addf %1784, %1786 : vector<2x256xf32>
    %1788 = vector.broadcast %13 : f32 to vector<2x256xf32>
    %1789 = arith.mulf %1747, %1788 : vector<2x256xf32>
    %1790 = arith.addf %1787, %1789 : vector<2x256xf32>
    %c32_i32_753 = arith.constant 32 : i32
    %1791 = tpu.dynamic_rotate %1790 by %c32_i32_753 dim 1 : vector<2x256xf32>, i32 -> vector<2x256xf32>
    %cst_754 = arith.constant 0.000000e+00 : f32
    %1792 = vector.broadcast %cst_754 : f32 to vector<2x256xf32>
    %1793 = arith.select %288, %1791, %1792 : vector<2x256xi1>, vector<2x256xf32>
    %1794 = arith.addf %1770, %1793 : vector<2x256xf32>
    %1795 = vector.broadcast %14 : f32 to vector<2x256xf32>
    %1796 = arith.mulf %1732, %1795 : vector<2x256xf32>
    %1797 = vector.broadcast %15 : f32 to vector<2x256xf32>
    %1798 = arith.mulf %1735, %1797 : vector<2x256xf32>
    %1799 = arith.addf %1796, %1798 : vector<2x256xf32>
    %1800 = vector.broadcast %16 : f32 to vector<2x256xf32>
    %1801 = arith.mulf %1738, %1800 : vector<2x256xf32>
    %1802 = arith.addf %1799, %1801 : vector<2x256xf32>
    %1803 = vector.broadcast %17 : f32 to vector<2x256xf32>
    %1804 = arith.mulf %1695, %1803 : vector<2x256xf32>
    %1805 = arith.addf %1802, %1804 : vector<2x256xf32>
    %1806 = vector.broadcast %18 : f32 to vector<2x256xf32>
    %1807 = arith.mulf %1741, %1806 : vector<2x256xf32>
    %1808 = arith.addf %1805, %1807 : vector<2x256xf32>
    %1809 = vector.broadcast %19 : f32 to vector<2x256xf32>
    %1810 = arith.mulf %1744, %1809 : vector<2x256xf32>
    %1811 = arith.addf %1808, %1810 : vector<2x256xf32>
    %1812 = vector.broadcast %20 : f32 to vector<2x256xf32>
    %1813 = arith.mulf %1747, %1812 : vector<2x256xf32>
    %1814 = arith.addf %1811, %1813 : vector<2x256xf32>
    %c16_i32_755 = arith.constant 16 : i32
    %1815 = tpu.dynamic_rotate %1814 by %c16_i32_755 dim 1 : vector<2x256xf32>, i32 -> vector<2x256xf32>
    %cst_756 = arith.constant 0.000000e+00 : f32
    %1816 = vector.broadcast %cst_756 : f32 to vector<2x256xf32>
    %1817 = arith.select %280, %1815, %1816 : vector<2x256xi1>, vector<2x256xf32>
    %1818 = arith.addf %1794, %1817 : vector<2x256xf32>
    %1819 = vector.broadcast %21 : f32 to vector<2x256xf32>
    %1820 = arith.mulf %1732, %1819 : vector<2x256xf32>
    %1821 = vector.broadcast %22 : f32 to vector<2x256xf32>
    %1822 = arith.mulf %1735, %1821 : vector<2x256xf32>
    %1823 = arith.addf %1820, %1822 : vector<2x256xf32>
    %1824 = vector.broadcast %23 : f32 to vector<2x256xf32>
    %1825 = arith.mulf %1738, %1824 : vector<2x256xf32>
    %1826 = arith.addf %1823, %1825 : vector<2x256xf32>
    %1827 = vector.broadcast %24 : f32 to vector<2x256xf32>
    %1828 = arith.mulf %1695, %1827 : vector<2x256xf32>
    %1829 = arith.addf %1826, %1828 : vector<2x256xf32>
    %1830 = vector.broadcast %25 : f32 to vector<2x256xf32>
    %1831 = arith.mulf %1741, %1830 : vector<2x256xf32>
    %1832 = arith.addf %1829, %1831 : vector<2x256xf32>
    %1833 = vector.broadcast %26 : f32 to vector<2x256xf32>
    %1834 = arith.mulf %1744, %1833 : vector<2x256xf32>
    %1835 = arith.addf %1832, %1834 : vector<2x256xf32>
    %1836 = vector.broadcast %27 : f32 to vector<2x256xf32>
    %1837 = arith.mulf %1747, %1836 : vector<2x256xf32>
    %1838 = arith.addf %1835, %1837 : vector<2x256xf32>
    %1839 = arith.addf %1818, %1838 : vector<2x256xf32>
    %1840 = vector.broadcast %28 : f32 to vector<2x256xf32>
    %1841 = arith.mulf %1732, %1840 : vector<2x256xf32>
    %1842 = vector.broadcast %29 : f32 to vector<2x256xf32>
    %1843 = arith.mulf %1735, %1842 : vector<2x256xf32>
    %1844 = arith.addf %1841, %1843 : vector<2x256xf32>
    %1845 = vector.broadcast %30 : f32 to vector<2x256xf32>
    %1846 = arith.mulf %1738, %1845 : vector<2x256xf32>
    %1847 = arith.addf %1844, %1846 : vector<2x256xf32>
    %1848 = vector.broadcast %31 : f32 to vector<2x256xf32>
    %1849 = arith.mulf %1695, %1848 : vector<2x256xf32>
    %1850 = arith.addf %1847, %1849 : vector<2x256xf32>
    %1851 = vector.broadcast %32 : f32 to vector<2x256xf32>
    %1852 = arith.mulf %1741, %1851 : vector<2x256xf32>
    %1853 = arith.addf %1850, %1852 : vector<2x256xf32>
    %1854 = vector.broadcast %33 : f32 to vector<2x256xf32>
    %1855 = arith.mulf %1744, %1854 : vector<2x256xf32>
    %1856 = arith.addf %1853, %1855 : vector<2x256xf32>
    %1857 = vector.broadcast %34 : f32 to vector<2x256xf32>
    %1858 = arith.mulf %1747, %1857 : vector<2x256xf32>
    %1859 = arith.addf %1856, %1858 : vector<2x256xf32>
    %c240_i32_757 = arith.constant 240 : i32
    %1860 = tpu.dynamic_rotate %1859 by %c240_i32_757 dim 1 : vector<2x256xf32>, i32 -> vector<2x256xf32>
    %cst_758 = arith.constant 0.000000e+00 : f32
    %1861 = vector.broadcast %cst_758 : f32 to vector<2x256xf32>
    %1862 = arith.select %278, %1860, %1861 : vector<2x256xi1>, vector<2x256xf32>
    %1863 = arith.addf %1839, %1862 : vector<2x256xf32>
    %1864 = vector.broadcast %35 : f32 to vector<2x256xf32>
    %1865 = arith.mulf %1732, %1864 : vector<2x256xf32>
    %1866 = vector.broadcast %36 : f32 to vector<2x256xf32>
    %1867 = arith.mulf %1735, %1866 : vector<2x256xf32>
    %1868 = arith.addf %1865, %1867 : vector<2x256xf32>
    %1869 = vector.broadcast %37 : f32 to vector<2x256xf32>
    %1870 = arith.mulf %1738, %1869 : vector<2x256xf32>
    %1871 = arith.addf %1868, %1870 : vector<2x256xf32>
    %1872 = vector.broadcast %38 : f32 to vector<2x256xf32>
    %1873 = arith.mulf %1695, %1872 : vector<2x256xf32>
    %1874 = arith.addf %1871, %1873 : vector<2x256xf32>
    %1875 = vector.broadcast %39 : f32 to vector<2x256xf32>
    %1876 = arith.mulf %1741, %1875 : vector<2x256xf32>
    %1877 = arith.addf %1874, %1876 : vector<2x256xf32>
    %1878 = vector.broadcast %40 : f32 to vector<2x256xf32>
    %1879 = arith.mulf %1744, %1878 : vector<2x256xf32>
    %1880 = arith.addf %1877, %1879 : vector<2x256xf32>
    %1881 = vector.broadcast %41 : f32 to vector<2x256xf32>
    %1882 = arith.mulf %1747, %1881 : vector<2x256xf32>
    %1883 = arith.addf %1880, %1882 : vector<2x256xf32>
    %c224_i32_759 = arith.constant 224 : i32
    %1884 = tpu.dynamic_rotate %1883 by %c224_i32_759 dim 1 : vector<2x256xf32>, i32 -> vector<2x256xf32>
    %cst_760 = arith.constant 0.000000e+00 : f32
    %1885 = vector.broadcast %cst_760 : f32 to vector<2x256xf32>
    %1886 = arith.select %286, %1884, %1885 : vector<2x256xi1>, vector<2x256xf32>
    %1887 = arith.addf %1863, %1886 : vector<2x256xf32>
    %1888 = vector.broadcast %42 : f32 to vector<2x256xf32>
    %1889 = arith.mulf %1732, %1888 : vector<2x256xf32>
    %1890 = vector.broadcast %43 : f32 to vector<2x256xf32>
    %1891 = arith.mulf %1735, %1890 : vector<2x256xf32>
    %1892 = arith.addf %1889, %1891 : vector<2x256xf32>
    %1893 = vector.broadcast %44 : f32 to vector<2x256xf32>
    %1894 = arith.mulf %1738, %1893 : vector<2x256xf32>
    %1895 = arith.addf %1892, %1894 : vector<2x256xf32>
    %1896 = vector.broadcast %45 : f32 to vector<2x256xf32>
    %1897 = arith.mulf %1695, %1896 : vector<2x256xf32>
    %1898 = arith.addf %1895, %1897 : vector<2x256xf32>
    %1899 = vector.broadcast %46 : f32 to vector<2x256xf32>
    %1900 = arith.mulf %1741, %1899 : vector<2x256xf32>
    %1901 = arith.addf %1898, %1900 : vector<2x256xf32>
    %1902 = vector.broadcast %47 : f32 to vector<2x256xf32>
    %1903 = arith.mulf %1744, %1902 : vector<2x256xf32>
    %1904 = arith.addf %1901, %1903 : vector<2x256xf32>
    %1905 = vector.broadcast %48 : f32 to vector<2x256xf32>
    %1906 = arith.mulf %1747, %1905 : vector<2x256xf32>
    %1907 = arith.addf %1904, %1906 : vector<2x256xf32>
    %c208_i32_761 = arith.constant 208 : i32
    %1908 = tpu.dynamic_rotate %1907 by %c208_i32_761 dim 1 : vector<2x256xf32>, i32 -> vector<2x256xf32>
    %cst_762 = arith.constant 0.000000e+00 : f32
    %1909 = vector.broadcast %cst_762 : f32 to vector<2x256xf32>
    %1910 = arith.select %294, %1908, %1909 : vector<2x256xi1>, vector<2x256xf32>
    %1911 = arith.addf %1887, %1910 : vector<2x256xf32>
    %1912 = vector.broadcast %147 : f32 to vector<2x256xf32>
    %1913 = arith.addf %1911, %1912 : vector<2x256xf32>
    %c3_i32_763 = arith.constant 3 : i32
    %1914 = tpu.dynamic_rotate %1712 by %c3_i32_763 dim 1 : vector<2x256xf32>, i32 -> vector<2x256xf32>
    %cst_764 = arith.constant 0.000000e+00 : f32
    %1915 = vector.broadcast %cst_764 : f32 to vector<2x256xf32>
    %1916 = arith.select %292, %1914, %1915 : vector<2x256xi1>, vector<2x256xf32>
    %c2_i32_765 = arith.constant 2 : i32
    %1917 = tpu.dynamic_rotate %1712 by %c2_i32_765 dim 1 : vector<2x256xf32>, i32 -> vector<2x256xf32>
    %cst_766 = arith.constant 0.000000e+00 : f32
    %1918 = vector.broadcast %cst_766 : f32 to vector<2x256xf32>
    %1919 = arith.select %284, %1917, %1918 : vector<2x256xi1>, vector<2x256xf32>
    %c1_i32_767 = arith.constant 1 : i32
    %1920 = tpu.dynamic_rotate %1712 by %c1_i32_767 dim 1 : vector<2x256xf32>, i32 -> vector<2x256xf32>
    %cst_768 = arith.constant 0.000000e+00 : f32
    %1921 = vector.broadcast %cst_768 : f32 to vector<2x256xf32>
    %1922 = arith.select %276, %1920, %1921 : vector<2x256xi1>, vector<2x256xf32>
    %c255_i32_769 = arith.constant 255 : i32
    %1923 = tpu.dynamic_rotate %1712 by %c255_i32_769 dim 1 : vector<2x256xf32>, i32 -> vector<2x256xf32>
    %cst_770 = arith.constant 0.000000e+00 : f32
    %1924 = vector.broadcast %cst_770 : f32 to vector<2x256xf32>
    %1925 = arith.select %274, %1923, %1924 : vector<2x256xi1>, vector<2x256xf32>
    %c254_i32_771 = arith.constant 254 : i32
    %1926 = tpu.dynamic_rotate %1712 by %c254_i32_771 dim 1 : vector<2x256xf32>, i32 -> vector<2x256xf32>
    %cst_772 = arith.constant 0.000000e+00 : f32
    %1927 = vector.broadcast %cst_772 : f32 to vector<2x256xf32>
    %1928 = arith.select %282, %1926, %1927 : vector<2x256xi1>, vector<2x256xf32>
    %c253_i32_773 = arith.constant 253 : i32
    %1929 = tpu.dynamic_rotate %1712 by %c253_i32_773 dim 1 : vector<2x256xf32>, i32 -> vector<2x256xf32>
    %cst_774 = arith.constant 0.000000e+00 : f32
    %1930 = vector.broadcast %cst_774 : f32 to vector<2x256xf32>
    %1931 = arith.select %290, %1929, %1930 : vector<2x256xi1>, vector<2x256xf32>
    %1932 = vector.broadcast %49 : f32 to vector<2x256xf32>
    %1933 = arith.mulf %1916, %1932 : vector<2x256xf32>
    %1934 = vector.broadcast %50 : f32 to vector<2x256xf32>
    %1935 = arith.mulf %1919, %1934 : vector<2x256xf32>
    %1936 = arith.addf %1933, %1935 : vector<2x256xf32>
    %1937 = vector.broadcast %51 : f32 to vector<2x256xf32>
    %1938 = arith.mulf %1922, %1937 : vector<2x256xf32>
    %1939 = arith.addf %1936, %1938 : vector<2x256xf32>
    %1940 = vector.broadcast %52 : f32 to vector<2x256xf32>
    %1941 = arith.mulf %1712, %1940 : vector<2x256xf32>
    %1942 = arith.addf %1939, %1941 : vector<2x256xf32>
    %1943 = vector.broadcast %53 : f32 to vector<2x256xf32>
    %1944 = arith.mulf %1925, %1943 : vector<2x256xf32>
    %1945 = arith.addf %1942, %1944 : vector<2x256xf32>
    %1946 = vector.broadcast %54 : f32 to vector<2x256xf32>
    %1947 = arith.mulf %1928, %1946 : vector<2x256xf32>
    %1948 = arith.addf %1945, %1947 : vector<2x256xf32>
    %1949 = vector.broadcast %55 : f32 to vector<2x256xf32>
    %1950 = arith.mulf %1931, %1949 : vector<2x256xf32>
    %1951 = arith.addf %1948, %1950 : vector<2x256xf32>
    %c48_i32_775 = arith.constant 48 : i32
    %1952 = tpu.dynamic_rotate %1951 by %c48_i32_775 dim 1 : vector<2x256xf32>, i32 -> vector<2x256xf32>
    %cst_776 = arith.constant 0.000000e+00 : f32
    %1953 = vector.broadcast %cst_776 : f32 to vector<2x256xf32>
    %1954 = arith.select %296, %1952, %1953 : vector<2x256xi1>, vector<2x256xf32>
    %1955 = vector.broadcast %56 : f32 to vector<2x256xf32>
    %1956 = arith.mulf %1916, %1955 : vector<2x256xf32>
    %1957 = vector.broadcast %57 : f32 to vector<2x256xf32>
    %1958 = arith.mulf %1919, %1957 : vector<2x256xf32>
    %1959 = arith.addf %1956, %1958 : vector<2x256xf32>
    %1960 = vector.broadcast %58 : f32 to vector<2x256xf32>
    %1961 = arith.mulf %1922, %1960 : vector<2x256xf32>
    %1962 = arith.addf %1959, %1961 : vector<2x256xf32>
    %1963 = vector.broadcast %59 : f32 to vector<2x256xf32>
    %1964 = arith.mulf %1712, %1963 : vector<2x256xf32>
    %1965 = arith.addf %1962, %1964 : vector<2x256xf32>
    %1966 = vector.broadcast %60 : f32 to vector<2x256xf32>
    %1967 = arith.mulf %1925, %1966 : vector<2x256xf32>
    %1968 = arith.addf %1965, %1967 : vector<2x256xf32>
    %1969 = vector.broadcast %61 : f32 to vector<2x256xf32>
    %1970 = arith.mulf %1928, %1969 : vector<2x256xf32>
    %1971 = arith.addf %1968, %1970 : vector<2x256xf32>
    %1972 = vector.broadcast %62 : f32 to vector<2x256xf32>
    %1973 = arith.mulf %1931, %1972 : vector<2x256xf32>
    %1974 = arith.addf %1971, %1973 : vector<2x256xf32>
    %c32_i32_777 = arith.constant 32 : i32
    %1975 = tpu.dynamic_rotate %1974 by %c32_i32_777 dim 1 : vector<2x256xf32>, i32 -> vector<2x256xf32>
    %cst_778 = arith.constant 0.000000e+00 : f32
    %1976 = vector.broadcast %cst_778 : f32 to vector<2x256xf32>
    %1977 = arith.select %288, %1975, %1976 : vector<2x256xi1>, vector<2x256xf32>
    %1978 = arith.addf %1954, %1977 : vector<2x256xf32>
    %1979 = vector.broadcast %63 : f32 to vector<2x256xf32>
    %1980 = arith.mulf %1916, %1979 : vector<2x256xf32>
    %1981 = vector.broadcast %64 : f32 to vector<2x256xf32>
    %1982 = arith.mulf %1919, %1981 : vector<2x256xf32>
    %1983 = arith.addf %1980, %1982 : vector<2x256xf32>
    %1984 = vector.broadcast %65 : f32 to vector<2x256xf32>
    %1985 = arith.mulf %1922, %1984 : vector<2x256xf32>
    %1986 = arith.addf %1983, %1985 : vector<2x256xf32>
    %1987 = vector.broadcast %66 : f32 to vector<2x256xf32>
    %1988 = arith.mulf %1712, %1987 : vector<2x256xf32>
    %1989 = arith.addf %1986, %1988 : vector<2x256xf32>
    %1990 = vector.broadcast %67 : f32 to vector<2x256xf32>
    %1991 = arith.mulf %1925, %1990 : vector<2x256xf32>
    %1992 = arith.addf %1989, %1991 : vector<2x256xf32>
    %1993 = vector.broadcast %68 : f32 to vector<2x256xf32>
    %1994 = arith.mulf %1928, %1993 : vector<2x256xf32>
    %1995 = arith.addf %1992, %1994 : vector<2x256xf32>
    %1996 = vector.broadcast %69 : f32 to vector<2x256xf32>
    %1997 = arith.mulf %1931, %1996 : vector<2x256xf32>
    %1998 = arith.addf %1995, %1997 : vector<2x256xf32>
    %c16_i32_779 = arith.constant 16 : i32
    %1999 = tpu.dynamic_rotate %1998 by %c16_i32_779 dim 1 : vector<2x256xf32>, i32 -> vector<2x256xf32>
    %cst_780 = arith.constant 0.000000e+00 : f32
    %2000 = vector.broadcast %cst_780 : f32 to vector<2x256xf32>
    %2001 = arith.select %280, %1999, %2000 : vector<2x256xi1>, vector<2x256xf32>
    %2002 = arith.addf %1978, %2001 : vector<2x256xf32>
    %2003 = vector.broadcast %70 : f32 to vector<2x256xf32>
    %2004 = arith.mulf %1916, %2003 : vector<2x256xf32>
    %2005 = vector.broadcast %71 : f32 to vector<2x256xf32>
    %2006 = arith.mulf %1919, %2005 : vector<2x256xf32>
    %2007 = arith.addf %2004, %2006 : vector<2x256xf32>
    %2008 = vector.broadcast %72 : f32 to vector<2x256xf32>
    %2009 = arith.mulf %1922, %2008 : vector<2x256xf32>
    %2010 = arith.addf %2007, %2009 : vector<2x256xf32>
    %2011 = vector.broadcast %73 : f32 to vector<2x256xf32>
    %2012 = arith.mulf %1712, %2011 : vector<2x256xf32>
    %2013 = arith.addf %2010, %2012 : vector<2x256xf32>
    %2014 = vector.broadcast %74 : f32 to vector<2x256xf32>
    %2015 = arith.mulf %1925, %2014 : vector<2x256xf32>
    %2016 = arith.addf %2013, %2015 : vector<2x256xf32>
    %2017 = vector.broadcast %75 : f32 to vector<2x256xf32>
    %2018 = arith.mulf %1928, %2017 : vector<2x256xf32>
    %2019 = arith.addf %2016, %2018 : vector<2x256xf32>
    %2020 = vector.broadcast %76 : f32 to vector<2x256xf32>
    %2021 = arith.mulf %1931, %2020 : vector<2x256xf32>
    %2022 = arith.addf %2019, %2021 : vector<2x256xf32>
    %2023 = arith.addf %2002, %2022 : vector<2x256xf32>
    %2024 = vector.broadcast %77 : f32 to vector<2x256xf32>
    %2025 = arith.mulf %1916, %2024 : vector<2x256xf32>
    %2026 = vector.broadcast %78 : f32 to vector<2x256xf32>
    %2027 = arith.mulf %1919, %2026 : vector<2x256xf32>
    %2028 = arith.addf %2025, %2027 : vector<2x256xf32>
    %2029 = vector.broadcast %79 : f32 to vector<2x256xf32>
    %2030 = arith.mulf %1922, %2029 : vector<2x256xf32>
    %2031 = arith.addf %2028, %2030 : vector<2x256xf32>
    %2032 = vector.broadcast %80 : f32 to vector<2x256xf32>
    %2033 = arith.mulf %1712, %2032 : vector<2x256xf32>
    %2034 = arith.addf %2031, %2033 : vector<2x256xf32>
    %2035 = vector.broadcast %81 : f32 to vector<2x256xf32>
    %2036 = arith.mulf %1925, %2035 : vector<2x256xf32>
    %2037 = arith.addf %2034, %2036 : vector<2x256xf32>
    %2038 = vector.broadcast %82 : f32 to vector<2x256xf32>
    %2039 = arith.mulf %1928, %2038 : vector<2x256xf32>
    %2040 = arith.addf %2037, %2039 : vector<2x256xf32>
    %2041 = vector.broadcast %83 : f32 to vector<2x256xf32>
    %2042 = arith.mulf %1931, %2041 : vector<2x256xf32>
    %2043 = arith.addf %2040, %2042 : vector<2x256xf32>
    %c240_i32_781 = arith.constant 240 : i32
    %2044 = tpu.dynamic_rotate %2043 by %c240_i32_781 dim 1 : vector<2x256xf32>, i32 -> vector<2x256xf32>
    %cst_782 = arith.constant 0.000000e+00 : f32
    %2045 = vector.broadcast %cst_782 : f32 to vector<2x256xf32>
    %2046 = arith.select %278, %2044, %2045 : vector<2x256xi1>, vector<2x256xf32>
    %2047 = arith.addf %2023, %2046 : vector<2x256xf32>
    %2048 = vector.broadcast %84 : f32 to vector<2x256xf32>
    %2049 = arith.mulf %1916, %2048 : vector<2x256xf32>
    %2050 = vector.broadcast %85 : f32 to vector<2x256xf32>
    %2051 = arith.mulf %1919, %2050 : vector<2x256xf32>
    %2052 = arith.addf %2049, %2051 : vector<2x256xf32>
    %2053 = vector.broadcast %86 : f32 to vector<2x256xf32>
    %2054 = arith.mulf %1922, %2053 : vector<2x256xf32>
    %2055 = arith.addf %2052, %2054 : vector<2x256xf32>
    %2056 = vector.broadcast %87 : f32 to vector<2x256xf32>
    %2057 = arith.mulf %1712, %2056 : vector<2x256xf32>
    %2058 = arith.addf %2055, %2057 : vector<2x256xf32>
    %2059 = vector.broadcast %88 : f32 to vector<2x256xf32>
    %2060 = arith.mulf %1925, %2059 : vector<2x256xf32>
    %2061 = arith.addf %2058, %2060 : vector<2x256xf32>
    %2062 = vector.broadcast %89 : f32 to vector<2x256xf32>
    %2063 = arith.mulf %1928, %2062 : vector<2x256xf32>
    %2064 = arith.addf %2061, %2063 : vector<2x256xf32>
    %2065 = vector.broadcast %90 : f32 to vector<2x256xf32>
    %2066 = arith.mulf %1931, %2065 : vector<2x256xf32>
    %2067 = arith.addf %2064, %2066 : vector<2x256xf32>
    %c224_i32_783 = arith.constant 224 : i32
    %2068 = tpu.dynamic_rotate %2067 by %c224_i32_783 dim 1 : vector<2x256xf32>, i32 -> vector<2x256xf32>
    %cst_784 = arith.constant 0.000000e+00 : f32
    %2069 = vector.broadcast %cst_784 : f32 to vector<2x256xf32>
    %2070 = arith.select %286, %2068, %2069 : vector<2x256xi1>, vector<2x256xf32>
    %2071 = arith.addf %2047, %2070 : vector<2x256xf32>
    %2072 = vector.broadcast %91 : f32 to vector<2x256xf32>
    %2073 = arith.mulf %1916, %2072 : vector<2x256xf32>
    %2074 = vector.broadcast %92 : f32 to vector<2x256xf32>
    %2075 = arith.mulf %1919, %2074 : vector<2x256xf32>
    %2076 = arith.addf %2073, %2075 : vector<2x256xf32>
    %2077 = vector.broadcast %93 : f32 to vector<2x256xf32>
    %2078 = arith.mulf %1922, %2077 : vector<2x256xf32>
    %2079 = arith.addf %2076, %2078 : vector<2x256xf32>
    %2080 = vector.broadcast %94 : f32 to vector<2x256xf32>
    %2081 = arith.mulf %1712, %2080 : vector<2x256xf32>
    %2082 = arith.addf %2079, %2081 : vector<2x256xf32>
    %2083 = vector.broadcast %95 : f32 to vector<2x256xf32>
    %2084 = arith.mulf %1925, %2083 : vector<2x256xf32>
    %2085 = arith.addf %2082, %2084 : vector<2x256xf32>
    %2086 = vector.broadcast %96 : f32 to vector<2x256xf32>
    %2087 = arith.mulf %1928, %2086 : vector<2x256xf32>
    %2088 = arith.addf %2085, %2087 : vector<2x256xf32>
    %2089 = vector.broadcast %97 : f32 to vector<2x256xf32>
    %2090 = arith.mulf %1931, %2089 : vector<2x256xf32>
    %2091 = arith.addf %2088, %2090 : vector<2x256xf32>
    %c208_i32_785 = arith.constant 208 : i32
    %2092 = tpu.dynamic_rotate %2091 by %c208_i32_785 dim 1 : vector<2x256xf32>, i32 -> vector<2x256xf32>
    %cst_786 = arith.constant 0.000000e+00 : f32
    %2093 = vector.broadcast %cst_786 : f32 to vector<2x256xf32>
    %2094 = arith.select %294, %2092, %2093 : vector<2x256xi1>, vector<2x256xf32>
    %2095 = arith.addf %2071, %2094 : vector<2x256xf32>
    %2096 = vector.broadcast %148 : f32 to vector<2x256xf32>
    %2097 = arith.addf %2095, %2096 : vector<2x256xf32>
    %c3_i32_787 = arith.constant 3 : i32
    %2098 = tpu.dynamic_rotate %1729 by %c3_i32_787 dim 1 : vector<2x256xf32>, i32 -> vector<2x256xf32>
    %cst_788 = arith.constant 0.000000e+00 : f32
    %2099 = vector.broadcast %cst_788 : f32 to vector<2x256xf32>
    %2100 = arith.select %292, %2098, %2099 : vector<2x256xi1>, vector<2x256xf32>
    %c2_i32_789 = arith.constant 2 : i32
    %2101 = tpu.dynamic_rotate %1729 by %c2_i32_789 dim 1 : vector<2x256xf32>, i32 -> vector<2x256xf32>
    %cst_790 = arith.constant 0.000000e+00 : f32
    %2102 = vector.broadcast %cst_790 : f32 to vector<2x256xf32>
    %2103 = arith.select %284, %2101, %2102 : vector<2x256xi1>, vector<2x256xf32>
    %c1_i32_791 = arith.constant 1 : i32
    %2104 = tpu.dynamic_rotate %1729 by %c1_i32_791 dim 1 : vector<2x256xf32>, i32 -> vector<2x256xf32>
    %cst_792 = arith.constant 0.000000e+00 : f32
    %2105 = vector.broadcast %cst_792 : f32 to vector<2x256xf32>
    %2106 = arith.select %276, %2104, %2105 : vector<2x256xi1>, vector<2x256xf32>
    %c255_i32_793 = arith.constant 255 : i32
    %2107 = tpu.dynamic_rotate %1729 by %c255_i32_793 dim 1 : vector<2x256xf32>, i32 -> vector<2x256xf32>
    %cst_794 = arith.constant 0.000000e+00 : f32
    %2108 = vector.broadcast %cst_794 : f32 to vector<2x256xf32>
    %2109 = arith.select %274, %2107, %2108 : vector<2x256xi1>, vector<2x256xf32>
    %c254_i32_795 = arith.constant 254 : i32
    %2110 = tpu.dynamic_rotate %1729 by %c254_i32_795 dim 1 : vector<2x256xf32>, i32 -> vector<2x256xf32>
    %cst_796 = arith.constant 0.000000e+00 : f32
    %2111 = vector.broadcast %cst_796 : f32 to vector<2x256xf32>
    %2112 = arith.select %282, %2110, %2111 : vector<2x256xi1>, vector<2x256xf32>
    %c253_i32_797 = arith.constant 253 : i32
    %2113 = tpu.dynamic_rotate %1729 by %c253_i32_797 dim 1 : vector<2x256xf32>, i32 -> vector<2x256xf32>
    %cst_798 = arith.constant 0.000000e+00 : f32
    %2114 = vector.broadcast %cst_798 : f32 to vector<2x256xf32>
    %2115 = arith.select %290, %2113, %2114 : vector<2x256xi1>, vector<2x256xf32>
    %2116 = vector.broadcast %98 : f32 to vector<2x256xf32>
    %2117 = arith.mulf %2100, %2116 : vector<2x256xf32>
    %2118 = vector.broadcast %99 : f32 to vector<2x256xf32>
    %2119 = arith.mulf %2103, %2118 : vector<2x256xf32>
    %2120 = arith.addf %2117, %2119 : vector<2x256xf32>
    %2121 = vector.broadcast %100 : f32 to vector<2x256xf32>
    %2122 = arith.mulf %2106, %2121 : vector<2x256xf32>
    %2123 = arith.addf %2120, %2122 : vector<2x256xf32>
    %2124 = vector.broadcast %101 : f32 to vector<2x256xf32>
    %2125 = arith.mulf %1729, %2124 : vector<2x256xf32>
    %2126 = arith.addf %2123, %2125 : vector<2x256xf32>
    %2127 = vector.broadcast %102 : f32 to vector<2x256xf32>
    %2128 = arith.mulf %2109, %2127 : vector<2x256xf32>
    %2129 = arith.addf %2126, %2128 : vector<2x256xf32>
    %2130 = vector.broadcast %103 : f32 to vector<2x256xf32>
    %2131 = arith.mulf %2112, %2130 : vector<2x256xf32>
    %2132 = arith.addf %2129, %2131 : vector<2x256xf32>
    %2133 = vector.broadcast %104 : f32 to vector<2x256xf32>
    %2134 = arith.mulf %2115, %2133 : vector<2x256xf32>
    %2135 = arith.addf %2132, %2134 : vector<2x256xf32>
    %c48_i32_799 = arith.constant 48 : i32
    %2136 = tpu.dynamic_rotate %2135 by %c48_i32_799 dim 1 : vector<2x256xf32>, i32 -> vector<2x256xf32>
    %cst_800 = arith.constant 0.000000e+00 : f32
    %2137 = vector.broadcast %cst_800 : f32 to vector<2x256xf32>
    %2138 = arith.select %296, %2136, %2137 : vector<2x256xi1>, vector<2x256xf32>
    %2139 = vector.broadcast %105 : f32 to vector<2x256xf32>
    %2140 = arith.mulf %2100, %2139 : vector<2x256xf32>
    %2141 = vector.broadcast %106 : f32 to vector<2x256xf32>
    %2142 = arith.mulf %2103, %2141 : vector<2x256xf32>
    %2143 = arith.addf %2140, %2142 : vector<2x256xf32>
    %2144 = vector.broadcast %107 : f32 to vector<2x256xf32>
    %2145 = arith.mulf %2106, %2144 : vector<2x256xf32>
    %2146 = arith.addf %2143, %2145 : vector<2x256xf32>
    %2147 = vector.broadcast %108 : f32 to vector<2x256xf32>
    %2148 = arith.mulf %1729, %2147 : vector<2x256xf32>
    %2149 = arith.addf %2146, %2148 : vector<2x256xf32>
    %2150 = vector.broadcast %109 : f32 to vector<2x256xf32>
    %2151 = arith.mulf %2109, %2150 : vector<2x256xf32>
    %2152 = arith.addf %2149, %2151 : vector<2x256xf32>
    %2153 = vector.broadcast %110 : f32 to vector<2x256xf32>
    %2154 = arith.mulf %2112, %2153 : vector<2x256xf32>
    %2155 = arith.addf %2152, %2154 : vector<2x256xf32>
    %2156 = vector.broadcast %111 : f32 to vector<2x256xf32>
    %2157 = arith.mulf %2115, %2156 : vector<2x256xf32>
    %2158 = arith.addf %2155, %2157 : vector<2x256xf32>
    %c32_i32_801 = arith.constant 32 : i32
    %2159 = tpu.dynamic_rotate %2158 by %c32_i32_801 dim 1 : vector<2x256xf32>, i32 -> vector<2x256xf32>
    %cst_802 = arith.constant 0.000000e+00 : f32
    %2160 = vector.broadcast %cst_802 : f32 to vector<2x256xf32>
    %2161 = arith.select %288, %2159, %2160 : vector<2x256xi1>, vector<2x256xf32>
    %2162 = arith.addf %2138, %2161 : vector<2x256xf32>
    %2163 = vector.broadcast %112 : f32 to vector<2x256xf32>
    %2164 = arith.mulf %2100, %2163 : vector<2x256xf32>
    %2165 = vector.broadcast %113 : f32 to vector<2x256xf32>
    %2166 = arith.mulf %2103, %2165 : vector<2x256xf32>
    %2167 = arith.addf %2164, %2166 : vector<2x256xf32>
    %2168 = vector.broadcast %114 : f32 to vector<2x256xf32>
    %2169 = arith.mulf %2106, %2168 : vector<2x256xf32>
    %2170 = arith.addf %2167, %2169 : vector<2x256xf32>
    %2171 = vector.broadcast %115 : f32 to vector<2x256xf32>
    %2172 = arith.mulf %1729, %2171 : vector<2x256xf32>
    %2173 = arith.addf %2170, %2172 : vector<2x256xf32>
    %2174 = vector.broadcast %116 : f32 to vector<2x256xf32>
    %2175 = arith.mulf %2109, %2174 : vector<2x256xf32>
    %2176 = arith.addf %2173, %2175 : vector<2x256xf32>
    %2177 = vector.broadcast %117 : f32 to vector<2x256xf32>
    %2178 = arith.mulf %2112, %2177 : vector<2x256xf32>
    %2179 = arith.addf %2176, %2178 : vector<2x256xf32>
    %2180 = vector.broadcast %118 : f32 to vector<2x256xf32>
    %2181 = arith.mulf %2115, %2180 : vector<2x256xf32>
    %2182 = arith.addf %2179, %2181 : vector<2x256xf32>
    %c16_i32_803 = arith.constant 16 : i32
    %2183 = tpu.dynamic_rotate %2182 by %c16_i32_803 dim 1 : vector<2x256xf32>, i32 -> vector<2x256xf32>
    %cst_804 = arith.constant 0.000000e+00 : f32
    %2184 = vector.broadcast %cst_804 : f32 to vector<2x256xf32>
    %2185 = arith.select %280, %2183, %2184 : vector<2x256xi1>, vector<2x256xf32>
    %2186 = arith.addf %2162, %2185 : vector<2x256xf32>
    %2187 = vector.broadcast %119 : f32 to vector<2x256xf32>
    %2188 = arith.mulf %2100, %2187 : vector<2x256xf32>
    %2189 = vector.broadcast %120 : f32 to vector<2x256xf32>
    %2190 = arith.mulf %2103, %2189 : vector<2x256xf32>
    %2191 = arith.addf %2188, %2190 : vector<2x256xf32>
    %2192 = vector.broadcast %121 : f32 to vector<2x256xf32>
    %2193 = arith.mulf %2106, %2192 : vector<2x256xf32>
    %2194 = arith.addf %2191, %2193 : vector<2x256xf32>
    %2195 = vector.broadcast %122 : f32 to vector<2x256xf32>
    %2196 = arith.mulf %1729, %2195 : vector<2x256xf32>
    %2197 = arith.addf %2194, %2196 : vector<2x256xf32>
    %2198 = vector.broadcast %123 : f32 to vector<2x256xf32>
    %2199 = arith.mulf %2109, %2198 : vector<2x256xf32>
    %2200 = arith.addf %2197, %2199 : vector<2x256xf32>
    %2201 = vector.broadcast %124 : f32 to vector<2x256xf32>
    %2202 = arith.mulf %2112, %2201 : vector<2x256xf32>
    %2203 = arith.addf %2200, %2202 : vector<2x256xf32>
    %2204 = vector.broadcast %125 : f32 to vector<2x256xf32>
    %2205 = arith.mulf %2115, %2204 : vector<2x256xf32>
    %2206 = arith.addf %2203, %2205 : vector<2x256xf32>
    %2207 = arith.addf %2186, %2206 : vector<2x256xf32>
    %2208 = vector.broadcast %126 : f32 to vector<2x256xf32>
    %2209 = arith.mulf %2100, %2208 : vector<2x256xf32>
    %2210 = vector.broadcast %127 : f32 to vector<2x256xf32>
    %2211 = arith.mulf %2103, %2210 : vector<2x256xf32>
    %2212 = arith.addf %2209, %2211 : vector<2x256xf32>
    %2213 = vector.broadcast %128 : f32 to vector<2x256xf32>
    %2214 = arith.mulf %2106, %2213 : vector<2x256xf32>
    %2215 = arith.addf %2212, %2214 : vector<2x256xf32>
    %2216 = vector.broadcast %129 : f32 to vector<2x256xf32>
    %2217 = arith.mulf %1729, %2216 : vector<2x256xf32>
    %2218 = arith.addf %2215, %2217 : vector<2x256xf32>
    %2219 = vector.broadcast %130 : f32 to vector<2x256xf32>
    %2220 = arith.mulf %2109, %2219 : vector<2x256xf32>
    %2221 = arith.addf %2218, %2220 : vector<2x256xf32>
    %2222 = vector.broadcast %131 : f32 to vector<2x256xf32>
    %2223 = arith.mulf %2112, %2222 : vector<2x256xf32>
    %2224 = arith.addf %2221, %2223 : vector<2x256xf32>
    %2225 = vector.broadcast %132 : f32 to vector<2x256xf32>
    %2226 = arith.mulf %2115, %2225 : vector<2x256xf32>
    %2227 = arith.addf %2224, %2226 : vector<2x256xf32>
    %c240_i32_805 = arith.constant 240 : i32
    %2228 = tpu.dynamic_rotate %2227 by %c240_i32_805 dim 1 : vector<2x256xf32>, i32 -> vector<2x256xf32>
    %cst_806 = arith.constant 0.000000e+00 : f32
    %2229 = vector.broadcast %cst_806 : f32 to vector<2x256xf32>
    %2230 = arith.select %278, %2228, %2229 : vector<2x256xi1>, vector<2x256xf32>
    %2231 = arith.addf %2207, %2230 : vector<2x256xf32>
    %2232 = vector.broadcast %133 : f32 to vector<2x256xf32>
    %2233 = arith.mulf %2100, %2232 : vector<2x256xf32>
    %2234 = vector.broadcast %134 : f32 to vector<2x256xf32>
    %2235 = arith.mulf %2103, %2234 : vector<2x256xf32>
    %2236 = arith.addf %2233, %2235 : vector<2x256xf32>
    %2237 = vector.broadcast %135 : f32 to vector<2x256xf32>
    %2238 = arith.mulf %2106, %2237 : vector<2x256xf32>
    %2239 = arith.addf %2236, %2238 : vector<2x256xf32>
    %2240 = vector.broadcast %136 : f32 to vector<2x256xf32>
    %2241 = arith.mulf %1729, %2240 : vector<2x256xf32>
    %2242 = arith.addf %2239, %2241 : vector<2x256xf32>
    %2243 = vector.broadcast %137 : f32 to vector<2x256xf32>
    %2244 = arith.mulf %2109, %2243 : vector<2x256xf32>
    %2245 = arith.addf %2242, %2244 : vector<2x256xf32>
    %2246 = vector.broadcast %138 : f32 to vector<2x256xf32>
    %2247 = arith.mulf %2112, %2246 : vector<2x256xf32>
    %2248 = arith.addf %2245, %2247 : vector<2x256xf32>
    %2249 = vector.broadcast %139 : f32 to vector<2x256xf32>
    %2250 = arith.mulf %2115, %2249 : vector<2x256xf32>
    %2251 = arith.addf %2248, %2250 : vector<2x256xf32>
    %c224_i32_807 = arith.constant 224 : i32
    %2252 = tpu.dynamic_rotate %2251 by %c224_i32_807 dim 1 : vector<2x256xf32>, i32 -> vector<2x256xf32>
    %cst_808 = arith.constant 0.000000e+00 : f32
    %2253 = vector.broadcast %cst_808 : f32 to vector<2x256xf32>
    %2254 = arith.select %286, %2252, %2253 : vector<2x256xi1>, vector<2x256xf32>
    %2255 = arith.addf %2231, %2254 : vector<2x256xf32>
    %2256 = vector.broadcast %140 : f32 to vector<2x256xf32>
    %2257 = arith.mulf %2100, %2256 : vector<2x256xf32>
    %2258 = vector.broadcast %141 : f32 to vector<2x256xf32>
    %2259 = arith.mulf %2103, %2258 : vector<2x256xf32>
    %2260 = arith.addf %2257, %2259 : vector<2x256xf32>
    %2261 = vector.broadcast %142 : f32 to vector<2x256xf32>
    %2262 = arith.mulf %2106, %2261 : vector<2x256xf32>
    %2263 = arith.addf %2260, %2262 : vector<2x256xf32>
    %2264 = vector.broadcast %143 : f32 to vector<2x256xf32>
    %2265 = arith.mulf %1729, %2264 : vector<2x256xf32>
    %2266 = arith.addf %2263, %2265 : vector<2x256xf32>
    %2267 = vector.broadcast %144 : f32 to vector<2x256xf32>
    %2268 = arith.mulf %2109, %2267 : vector<2x256xf32>
    %2269 = arith.addf %2266, %2268 : vector<2x256xf32>
    %2270 = vector.broadcast %145 : f32 to vector<2x256xf32>
    %2271 = arith.mulf %2112, %2270 : vector<2x256xf32>
    %2272 = arith.addf %2269, %2271 : vector<2x256xf32>
    %2273 = vector.broadcast %146 : f32 to vector<2x256xf32>
    %2274 = arith.mulf %2115, %2273 : vector<2x256xf32>
    %2275 = arith.addf %2272, %2274 : vector<2x256xf32>
    %c208_i32_809 = arith.constant 208 : i32
    %2276 = tpu.dynamic_rotate %2275 by %c208_i32_809 dim 1 : vector<2x256xf32>, i32 -> vector<2x256xf32>
    %cst_810 = arith.constant 0.000000e+00 : f32
    %2277 = vector.broadcast %cst_810 : f32 to vector<2x256xf32>
    %2278 = arith.select %294, %2276, %2277 : vector<2x256xi1>, vector<2x256xf32>
    %2279 = arith.addf %2255, %2278 : vector<2x256xf32>
    %2280 = vector.broadcast %149 : f32 to vector<2x256xf32>
    %2281 = arith.addf %2279, %2280 : vector<2x256xf32>
    %2282 = arith.addf %1913, %2097 : vector<2x256xf32>
    %2283 = arith.addf %2282, %2281 : vector<2x256xf32>
    %cst_811 = arith.constant 0.333333343 : f32
    %2284 = vector.broadcast %cst_811 : f32 to vector<2x256xf32>
    %2285 = arith.mulf %2283, %2284 : vector<2x256xf32>
    %2286 = arith.subf %1913, %2285 : vector<2x256xf32>
    %2287 = arith.subf %2097, %2285 : vector<2x256xf32>
    %2288 = arith.subf %2281, %2285 : vector<2x256xf32>
    %2289 = arith.mulf %2286, %2286 : vector<2x256xf32>
    %2290 = arith.mulf %2287, %2287 : vector<2x256xf32>
    %2291 = arith.addf %2289, %2290 : vector<2x256xf32>
    %2292 = arith.mulf %2288, %2288 : vector<2x256xf32>
    %2293 = arith.addf %2291, %2292 : vector<2x256xf32>
    %cst_812 = arith.constant 0.333333343 : f32
    %2294 = vector.broadcast %cst_812 : f32 to vector<2x256xf32>
    %2295 = arith.mulf %2293, %2294 : vector<2x256xf32>
    %cst_813 = arith.constant 9.99999997E-7 : f32
    %2296 = vector.broadcast %cst_813 : f32 to vector<2x256xf32>
    %2297 = arith.addf %2295, %2296 : vector<2x256xf32>
    %2298 = math.rsqrt %2297 : vector<2x256xf32>
    %2299 = arith.mulf %2286, %2298 : vector<2x256xf32>
    %2300 = vector.broadcast %150 : f32 to vector<2x256xf32>
    %2301 = arith.mulf %2299, %2300 : vector<2x256xf32>
    %2302 = vector.broadcast %153 : f32 to vector<2x256xf32>
    %2303 = arith.addf %2301, %2302 : vector<2x256xf32>
    %2304 = arith.mulf %2287, %2298 : vector<2x256xf32>
    %2305 = vector.broadcast %151 : f32 to vector<2x256xf32>
    %2306 = arith.mulf %2304, %2305 : vector<2x256xf32>
    %2307 = vector.broadcast %154 : f32 to vector<2x256xf32>
    %2308 = arith.addf %2306, %2307 : vector<2x256xf32>
    %2309 = arith.mulf %2288, %2298 : vector<2x256xf32>
    %2310 = vector.broadcast %152 : f32 to vector<2x256xf32>
    %2311 = arith.mulf %2309, %2310 : vector<2x256xf32>
    %2312 = vector.broadcast %155 : f32 to vector<2x256xf32>
    %2313 = arith.addf %2311, %2312 : vector<2x256xf32>
    %2314 = vector.broadcast %156 : f32 to vector<2x256xf32>
    %2315 = arith.mulf %2303, %2314 : vector<2x256xf32>
    %2316 = vector.broadcast %168 : f32 to vector<2x256xf32>
    %2317 = arith.mulf %2308, %2316 : vector<2x256xf32>
    %2318 = arith.addf %2315, %2317 : vector<2x256xf32>
    %2319 = vector.broadcast %180 : f32 to vector<2x256xf32>
    %2320 = arith.mulf %2313, %2319 : vector<2x256xf32>
    %2321 = arith.addf %2318, %2320 : vector<2x256xf32>
    %2322 = vector.broadcast %192 : f32 to vector<2x256xf32>
    %2323 = arith.addf %2321, %2322 : vector<2x256xf32>
    %cst_814 = arith.constant 5.000000e-01 : f32
    %2324 = vector.broadcast %cst_814 : f32 to vector<2x256xf32>
    %2325 = arith.mulf %2324, %2323 : vector<2x256xf32>
    %cst_815 = arith.constant 0.707106769 : f32
    %2326 = vector.broadcast %cst_815 : f32 to vector<2x256xf32>
    %2327 = arith.mulf %2323, %2326 : vector<2x256xf32>
    %cst_816 = arith.constant 0.000000e+00 : f32
    %2328 = vector.broadcast %cst_816 : f32 to vector<2x256xf32>
    %2329 = arith.cmpf oge, %2327, %2328 : vector<2x256xf32>
    %cst_817 = arith.constant 1.000000e+00 : f32
    %cst_818 = arith.constant -1.000000e+00 : f32
    %2330 = vector.broadcast %cst_817 : f32 to vector<2x256xf32>
    %2331 = vector.broadcast %cst_818 : f32 to vector<2x256xf32>
    %2332 = arith.select %2329, %2330, %2331 : vector<2x256xi1>, vector<2x256xf32>
    %2333 = math.absf %2327 : vector<2x256xf32>
    %cst_819 = arith.constant 0.327591091 : f32
    %2334 = vector.broadcast %cst_819 : f32 to vector<2x256xf32>
    %2335 = arith.mulf %2334, %2333 : vector<2x256xf32>
    %cst_820 = arith.constant 1.000000e+00 : f32
    %2336 = vector.broadcast %cst_820 : f32 to vector<2x256xf32>
    %2337 = arith.addf %2336, %2335 : vector<2x256xf32>
    %2338 = tpu.reciprocal %2337 {approx = true} : vector<2x256xf32> -> vector<2x256xf32>
    %cst_821 = arith.constant 1.06140542 : f32
    %2339 = vector.broadcast %cst_821 : f32 to vector<2x256xf32>
    %2340 = arith.mulf %2339, %2338 : vector<2x256xf32>
    %cst_822 = arith.constant -1.45315206 : f32
    %2341 = vector.broadcast %cst_822 : f32 to vector<2x256xf32>
    %2342 = arith.addf %2340, %2341 : vector<2x256xf32>
    %2343 = arith.mulf %2342, %2338 : vector<2x256xf32>
    %cst_823 = arith.constant 1.42141378 : f32
    %2344 = vector.broadcast %cst_823 : f32 to vector<2x256xf32>
    %2345 = arith.addf %2343, %2344 : vector<2x256xf32>
    %2346 = arith.mulf %2345, %2338 : vector<2x256xf32>
    %cst_824 = arith.constant -0.284496725 : f32
    %2347 = vector.broadcast %cst_824 : f32 to vector<2x256xf32>
    %2348 = arith.addf %2346, %2347 : vector<2x256xf32>
    %2349 = arith.mulf %2348, %2338 : vector<2x256xf32>
    %cst_825 = arith.constant 0.254829586 : f32
    %2350 = vector.broadcast %cst_825 : f32 to vector<2x256xf32>
    %2351 = arith.addf %2349, %2350 : vector<2x256xf32>
    %2352 = arith.mulf %2351, %2338 : vector<2x256xf32>
    %cst_826 = arith.constant 0.000000e+00 : f32
    %2353 = vector.broadcast %cst_826 : f32 to vector<2x256xf32>
    %2354 = arith.subf %2353, %2333 : vector<2x256xf32>
    %2355 = arith.mulf %2354, %2333 : vector<2x256xf32>
    %2356 = math.exp %2355 : vector<2x256xf32>
    %2357 = arith.mulf %2352, %2356 : vector<2x256xf32>
    %cst_827 = arith.constant 1.000000e+00 : f32
    %2358 = vector.broadcast %cst_827 : f32 to vector<2x256xf32>
    %2359 = arith.subf %2358, %2357 : vector<2x256xf32>
    %2360 = arith.mulf %2332, %2359 : vector<2x256xf32>
    %cst_828 = arith.constant 1.000000e+00 : f32
    %2361 = vector.broadcast %cst_828 : f32 to vector<2x256xf32>
    %2362 = arith.addf %2361, %2360 : vector<2x256xf32>
    %2363 = arith.mulf %2325, %2362 : vector<2x256xf32>
    %2364 = vector.broadcast %204 : f32 to vector<2x256xf32>
    %2365 = arith.mulf %2363, %2364 : vector<2x256xf32>
    %2366 = vector.broadcast %205 : f32 to vector<2x256xf32>
    %2367 = arith.mulf %2363, %2366 : vector<2x256xf32>
    %2368 = vector.broadcast %206 : f32 to vector<2x256xf32>
    %2369 = arith.mulf %2363, %2368 : vector<2x256xf32>
    %2370 = vector.broadcast %157 : f32 to vector<2x256xf32>
    %2371 = arith.mulf %2303, %2370 : vector<2x256xf32>
    %2372 = vector.broadcast %169 : f32 to vector<2x256xf32>
    %2373 = arith.mulf %2308, %2372 : vector<2x256xf32>
    %2374 = arith.addf %2371, %2373 : vector<2x256xf32>
    %2375 = vector.broadcast %181 : f32 to vector<2x256xf32>
    %2376 = arith.mulf %2313, %2375 : vector<2x256xf32>
    %2377 = arith.addf %2374, %2376 : vector<2x256xf32>
    %2378 = vector.broadcast %193 : f32 to vector<2x256xf32>
    %2379 = arith.addf %2377, %2378 : vector<2x256xf32>
    %cst_829 = arith.constant 5.000000e-01 : f32
    %2380 = vector.broadcast %cst_829 : f32 to vector<2x256xf32>
    %2381 = arith.mulf %2380, %2379 : vector<2x256xf32>
    %cst_830 = arith.constant 0.707106769 : f32
    %2382 = vector.broadcast %cst_830 : f32 to vector<2x256xf32>
    %2383 = arith.mulf %2379, %2382 : vector<2x256xf32>
    %cst_831 = arith.constant 0.000000e+00 : f32
    %2384 = vector.broadcast %cst_831 : f32 to vector<2x256xf32>
    %2385 = arith.cmpf oge, %2383, %2384 : vector<2x256xf32>
    %cst_832 = arith.constant 1.000000e+00 : f32
    %cst_833 = arith.constant -1.000000e+00 : f32
    %2386 = vector.broadcast %cst_832 : f32 to vector<2x256xf32>
    %2387 = vector.broadcast %cst_833 : f32 to vector<2x256xf32>
    %2388 = arith.select %2385, %2386, %2387 : vector<2x256xi1>, vector<2x256xf32>
    %2389 = math.absf %2383 : vector<2x256xf32>
    %cst_834 = arith.constant 0.327591091 : f32
    %2390 = vector.broadcast %cst_834 : f32 to vector<2x256xf32>
    %2391 = arith.mulf %2390, %2389 : vector<2x256xf32>
    %cst_835 = arith.constant 1.000000e+00 : f32
    %2392 = vector.broadcast %cst_835 : f32 to vector<2x256xf32>
    %2393 = arith.addf %2392, %2391 : vector<2x256xf32>
    %2394 = tpu.reciprocal %2393 {approx = true} : vector<2x256xf32> -> vector<2x256xf32>
    %cst_836 = arith.constant 1.06140542 : f32
    %2395 = vector.broadcast %cst_836 : f32 to vector<2x256xf32>
    %2396 = arith.mulf %2395, %2394 : vector<2x256xf32>
    %cst_837 = arith.constant -1.45315206 : f32
    %2397 = vector.broadcast %cst_837 : f32 to vector<2x256xf32>
    %2398 = arith.addf %2396, %2397 : vector<2x256xf32>
    %2399 = arith.mulf %2398, %2394 : vector<2x256xf32>
    %cst_838 = arith.constant 1.42141378 : f32
    %2400 = vector.broadcast %cst_838 : f32 to vector<2x256xf32>
    %2401 = arith.addf %2399, %2400 : vector<2x256xf32>
    %2402 = arith.mulf %2401, %2394 : vector<2x256xf32>
    %cst_839 = arith.constant -0.284496725 : f32
    %2403 = vector.broadcast %cst_839 : f32 to vector<2x256xf32>
    %2404 = arith.addf %2402, %2403 : vector<2x256xf32>
    %2405 = arith.mulf %2404, %2394 : vector<2x256xf32>
    %cst_840 = arith.constant 0.254829586 : f32
    %2406 = vector.broadcast %cst_840 : f32 to vector<2x256xf32>
    %2407 = arith.addf %2405, %2406 : vector<2x256xf32>
    %2408 = arith.mulf %2407, %2394 : vector<2x256xf32>
    %cst_841 = arith.constant 0.000000e+00 : f32
    %2409 = vector.broadcast %cst_841 : f32 to vector<2x256xf32>
    %2410 = arith.subf %2409, %2389 : vector<2x256xf32>
    %2411 = arith.mulf %2410, %2389 : vector<2x256xf32>
    %2412 = math.exp %2411 : vector<2x256xf32>
    %2413 = arith.mulf %2408, %2412 : vector<2x256xf32>
    %cst_842 = arith.constant 1.000000e+00 : f32
    %2414 = vector.broadcast %cst_842 : f32 to vector<2x256xf32>
    %2415 = arith.subf %2414, %2413 : vector<2x256xf32>
    %2416 = arith.mulf %2388, %2415 : vector<2x256xf32>
    %cst_843 = arith.constant 1.000000e+00 : f32
    %2417 = vector.broadcast %cst_843 : f32 to vector<2x256xf32>
    %2418 = arith.addf %2417, %2416 : vector<2x256xf32>
    %2419 = arith.mulf %2381, %2418 : vector<2x256xf32>
    %2420 = vector.broadcast %207 : f32 to vector<2x256xf32>
    %2421 = arith.mulf %2419, %2420 : vector<2x256xf32>
    %2422 = arith.addf %2365, %2421 : vector<2x256xf32>
    %2423 = vector.broadcast %208 : f32 to vector<2x256xf32>
    %2424 = arith.mulf %2419, %2423 : vector<2x256xf32>
    %2425 = arith.addf %2367, %2424 : vector<2x256xf32>
    %2426 = vector.broadcast %209 : f32 to vector<2x256xf32>
    %2427 = arith.mulf %2419, %2426 : vector<2x256xf32>
    %2428 = arith.addf %2369, %2427 : vector<2x256xf32>
    %2429 = vector.broadcast %158 : f32 to vector<2x256xf32>
    %2430 = arith.mulf %2303, %2429 : vector<2x256xf32>
    %2431 = vector.broadcast %170 : f32 to vector<2x256xf32>
    %2432 = arith.mulf %2308, %2431 : vector<2x256xf32>
    %2433 = arith.addf %2430, %2432 : vector<2x256xf32>
    %2434 = vector.broadcast %182 : f32 to vector<2x256xf32>
    %2435 = arith.mulf %2313, %2434 : vector<2x256xf32>
    %2436 = arith.addf %2433, %2435 : vector<2x256xf32>
    %2437 = vector.broadcast %194 : f32 to vector<2x256xf32>
    %2438 = arith.addf %2436, %2437 : vector<2x256xf32>
    %cst_844 = arith.constant 5.000000e-01 : f32
    %2439 = vector.broadcast %cst_844 : f32 to vector<2x256xf32>
    %2440 = arith.mulf %2439, %2438 : vector<2x256xf32>
    %cst_845 = arith.constant 0.707106769 : f32
    %2441 = vector.broadcast %cst_845 : f32 to vector<2x256xf32>
    %2442 = arith.mulf %2438, %2441 : vector<2x256xf32>
    %cst_846 = arith.constant 0.000000e+00 : f32
    %2443 = vector.broadcast %cst_846 : f32 to vector<2x256xf32>
    %2444 = arith.cmpf oge, %2442, %2443 : vector<2x256xf32>
    %cst_847 = arith.constant 1.000000e+00 : f32
    %cst_848 = arith.constant -1.000000e+00 : f32
    %2445 = vector.broadcast %cst_847 : f32 to vector<2x256xf32>
    %2446 = vector.broadcast %cst_848 : f32 to vector<2x256xf32>
    %2447 = arith.select %2444, %2445, %2446 : vector<2x256xi1>, vector<2x256xf32>
    %2448 = math.absf %2442 : vector<2x256xf32>
    %cst_849 = arith.constant 0.327591091 : f32
    %2449 = vector.broadcast %cst_849 : f32 to vector<2x256xf32>
    %2450 = arith.mulf %2449, %2448 : vector<2x256xf32>
    %cst_850 = arith.constant 1.000000e+00 : f32
    %2451 = vector.broadcast %cst_850 : f32 to vector<2x256xf32>
    %2452 = arith.addf %2451, %2450 : vector<2x256xf32>
    %2453 = tpu.reciprocal %2452 {approx = true} : vector<2x256xf32> -> vector<2x256xf32>
    %cst_851 = arith.constant 1.06140542 : f32
    %2454 = vector.broadcast %cst_851 : f32 to vector<2x256xf32>
    %2455 = arith.mulf %2454, %2453 : vector<2x256xf32>
    %cst_852 = arith.constant -1.45315206 : f32
    %2456 = vector.broadcast %cst_852 : f32 to vector<2x256xf32>
    %2457 = arith.addf %2455, %2456 : vector<2x256xf32>
    %2458 = arith.mulf %2457, %2453 : vector<2x256xf32>
    %cst_853 = arith.constant 1.42141378 : f32
    %2459 = vector.broadcast %cst_853 : f32 to vector<2x256xf32>
    %2460 = arith.addf %2458, %2459 : vector<2x256xf32>
    %2461 = arith.mulf %2460, %2453 : vector<2x256xf32>
    %cst_854 = arith.constant -0.284496725 : f32
    %2462 = vector.broadcast %cst_854 : f32 to vector<2x256xf32>
    %2463 = arith.addf %2461, %2462 : vector<2x256xf32>
    %2464 = arith.mulf %2463, %2453 : vector<2x256xf32>
    %cst_855 = arith.constant 0.254829586 : f32
    %2465 = vector.broadcast %cst_855 : f32 to vector<2x256xf32>
    %2466 = arith.addf %2464, %2465 : vector<2x256xf32>
    %2467 = arith.mulf %2466, %2453 : vector<2x256xf32>
    %cst_856 = arith.constant 0.000000e+00 : f32
    %2468 = vector.broadcast %cst_856 : f32 to vector<2x256xf32>
    %2469 = arith.subf %2468, %2448 : vector<2x256xf32>
    %2470 = arith.mulf %2469, %2448 : vector<2x256xf32>
    %2471 = math.exp %2470 : vector<2x256xf32>
    %2472 = arith.mulf %2467, %2471 : vector<2x256xf32>
    %cst_857 = arith.constant 1.000000e+00 : f32
    %2473 = vector.broadcast %cst_857 : f32 to vector<2x256xf32>
    %2474 = arith.subf %2473, %2472 : vector<2x256xf32>
    %2475 = arith.mulf %2447, %2474 : vector<2x256xf32>
    %cst_858 = arith.constant 1.000000e+00 : f32
    %2476 = vector.broadcast %cst_858 : f32 to vector<2x256xf32>
    %2477 = arith.addf %2476, %2475 : vector<2x256xf32>
    %2478 = arith.mulf %2440, %2477 : vector<2x256xf32>
    %2479 = vector.broadcast %210 : f32 to vector<2x256xf32>
    %2480 = arith.mulf %2478, %2479 : vector<2x256xf32>
    %2481 = arith.addf %2422, %2480 : vector<2x256xf32>
    %2482 = vector.broadcast %211 : f32 to vector<2x256xf32>
    %2483 = arith.mulf %2478, %2482 : vector<2x256xf32>
    %2484 = arith.addf %2425, %2483 : vector<2x256xf32>
    %2485 = vector.broadcast %212 : f32 to vector<2x256xf32>
    %2486 = arith.mulf %2478, %2485 : vector<2x256xf32>
    %2487 = arith.addf %2428, %2486 : vector<2x256xf32>
    %2488 = vector.broadcast %159 : f32 to vector<2x256xf32>
    %2489 = arith.mulf %2303, %2488 : vector<2x256xf32>
    %2490 = vector.broadcast %171 : f32 to vector<2x256xf32>
    %2491 = arith.mulf %2308, %2490 : vector<2x256xf32>
    %2492 = arith.addf %2489, %2491 : vector<2x256xf32>
    %2493 = vector.broadcast %183 : f32 to vector<2x256xf32>
    %2494 = arith.mulf %2313, %2493 : vector<2x256xf32>
    %2495 = arith.addf %2492, %2494 : vector<2x256xf32>
    %2496 = vector.broadcast %195 : f32 to vector<2x256xf32>
    %2497 = arith.addf %2495, %2496 : vector<2x256xf32>
    %cst_859 = arith.constant 5.000000e-01 : f32
    %2498 = vector.broadcast %cst_859 : f32 to vector<2x256xf32>
    %2499 = arith.mulf %2498, %2497 : vector<2x256xf32>
    %cst_860 = arith.constant 0.707106769 : f32
    %2500 = vector.broadcast %cst_860 : f32 to vector<2x256xf32>
    %2501 = arith.mulf %2497, %2500 : vector<2x256xf32>
    %cst_861 = arith.constant 0.000000e+00 : f32
    %2502 = vector.broadcast %cst_861 : f32 to vector<2x256xf32>
    %2503 = arith.cmpf oge, %2501, %2502 : vector<2x256xf32>
    %cst_862 = arith.constant 1.000000e+00 : f32
    %cst_863 = arith.constant -1.000000e+00 : f32
    %2504 = vector.broadcast %cst_862 : f32 to vector<2x256xf32>
    %2505 = vector.broadcast %cst_863 : f32 to vector<2x256xf32>
    %2506 = arith.select %2503, %2504, %2505 : vector<2x256xi1>, vector<2x256xf32>
    %2507 = math.absf %2501 : vector<2x256xf32>
    %cst_864 = arith.constant 0.327591091 : f32
    %2508 = vector.broadcast %cst_864 : f32 to vector<2x256xf32>
    %2509 = arith.mulf %2508, %2507 : vector<2x256xf32>
    %cst_865 = arith.constant 1.000000e+00 : f32
    %2510 = vector.broadcast %cst_865 : f32 to vector<2x256xf32>
    %2511 = arith.addf %2510, %2509 : vector<2x256xf32>
    %2512 = tpu.reciprocal %2511 {approx = true} : vector<2x256xf32> -> vector<2x256xf32>
    %cst_866 = arith.constant 1.06140542 : f32
    %2513 = vector.broadcast %cst_866 : f32 to vector<2x256xf32>
    %2514 = arith.mulf %2513, %2512 : vector<2x256xf32>
    %cst_867 = arith.constant -1.45315206 : f32
    %2515 = vector.broadcast %cst_867 : f32 to vector<2x256xf32>
    %2516 = arith.addf %2514, %2515 : vector<2x256xf32>
    %2517 = arith.mulf %2516, %2512 : vector<2x256xf32>
    %cst_868 = arith.constant 1.42141378 : f32
    %2518 = vector.broadcast %cst_868 : f32 to vector<2x256xf32>
    %2519 = arith.addf %2517, %2518 : vector<2x256xf32>
    %2520 = arith.mulf %2519, %2512 : vector<2x256xf32>
    %cst_869 = arith.constant -0.284496725 : f32
    %2521 = vector.broadcast %cst_869 : f32 to vector<2x256xf32>
    %2522 = arith.addf %2520, %2521 : vector<2x256xf32>
    %2523 = arith.mulf %2522, %2512 : vector<2x256xf32>
    %cst_870 = arith.constant 0.254829586 : f32
    %2524 = vector.broadcast %cst_870 : f32 to vector<2x256xf32>
    %2525 = arith.addf %2523, %2524 : vector<2x256xf32>
    %2526 = arith.mulf %2525, %2512 : vector<2x256xf32>
    %cst_871 = arith.constant 0.000000e+00 : f32
    %2527 = vector.broadcast %cst_871 : f32 to vector<2x256xf32>
    %2528 = arith.subf %2527, %2507 : vector<2x256xf32>
    %2529 = arith.mulf %2528, %2507 : vector<2x256xf32>
    %2530 = math.exp %2529 : vector<2x256xf32>
    %2531 = arith.mulf %2526, %2530 : vector<2x256xf32>
    %cst_872 = arith.constant 1.000000e+00 : f32
    %2532 = vector.broadcast %cst_872 : f32 to vector<2x256xf32>
    %2533 = arith.subf %2532, %2531 : vector<2x256xf32>
    %2534 = arith.mulf %2506, %2533 : vector<2x256xf32>
    %cst_873 = arith.constant 1.000000e+00 : f32
    %2535 = vector.broadcast %cst_873 : f32 to vector<2x256xf32>
    %2536 = arith.addf %2535, %2534 : vector<2x256xf32>
    %2537 = arith.mulf %2499, %2536 : vector<2x256xf32>
    %2538 = vector.broadcast %213 : f32 to vector<2x256xf32>
    %2539 = arith.mulf %2537, %2538 : vector<2x256xf32>
    %2540 = arith.addf %2481, %2539 : vector<2x256xf32>
    %2541 = vector.broadcast %214 : f32 to vector<2x256xf32>
    %2542 = arith.mulf %2537, %2541 : vector<2x256xf32>
    %2543 = arith.addf %2484, %2542 : vector<2x256xf32>
    %2544 = vector.broadcast %215 : f32 to vector<2x256xf32>
    %2545 = arith.mulf %2537, %2544 : vector<2x256xf32>
    %2546 = arith.addf %2487, %2545 : vector<2x256xf32>
    %2547 = vector.broadcast %160 : f32 to vector<2x256xf32>
    %2548 = arith.mulf %2303, %2547 : vector<2x256xf32>
    %2549 = vector.broadcast %172 : f32 to vector<2x256xf32>
    %2550 = arith.mulf %2308, %2549 : vector<2x256xf32>
    %2551 = arith.addf %2548, %2550 : vector<2x256xf32>
    %2552 = vector.broadcast %184 : f32 to vector<2x256xf32>
    %2553 = arith.mulf %2313, %2552 : vector<2x256xf32>
    %2554 = arith.addf %2551, %2553 : vector<2x256xf32>
    %2555 = vector.broadcast %196 : f32 to vector<2x256xf32>
    %2556 = arith.addf %2554, %2555 : vector<2x256xf32>
    %cst_874 = arith.constant 5.000000e-01 : f32
    %2557 = vector.broadcast %cst_874 : f32 to vector<2x256xf32>
    %2558 = arith.mulf %2557, %2556 : vector<2x256xf32>
    %cst_875 = arith.constant 0.707106769 : f32
    %2559 = vector.broadcast %cst_875 : f32 to vector<2x256xf32>
    %2560 = arith.mulf %2556, %2559 : vector<2x256xf32>
    %cst_876 = arith.constant 0.000000e+00 : f32
    %2561 = vector.broadcast %cst_876 : f32 to vector<2x256xf32>
    %2562 = arith.cmpf oge, %2560, %2561 : vector<2x256xf32>
    %cst_877 = arith.constant 1.000000e+00 : f32
    %cst_878 = arith.constant -1.000000e+00 : f32
    %2563 = vector.broadcast %cst_877 : f32 to vector<2x256xf32>
    %2564 = vector.broadcast %cst_878 : f32 to vector<2x256xf32>
    %2565 = arith.select %2562, %2563, %2564 : vector<2x256xi1>, vector<2x256xf32>
    %2566 = math.absf %2560 : vector<2x256xf32>
    %cst_879 = arith.constant 0.327591091 : f32
    %2567 = vector.broadcast %cst_879 : f32 to vector<2x256xf32>
    %2568 = arith.mulf %2567, %2566 : vector<2x256xf32>
    %cst_880 = arith.constant 1.000000e+00 : f32
    %2569 = vector.broadcast %cst_880 : f32 to vector<2x256xf32>
    %2570 = arith.addf %2569, %2568 : vector<2x256xf32>
    %2571 = tpu.reciprocal %2570 {approx = true} : vector<2x256xf32> -> vector<2x256xf32>
    %cst_881 = arith.constant 1.06140542 : f32
    %2572 = vector.broadcast %cst_881 : f32 to vector<2x256xf32>
    %2573 = arith.mulf %2572, %2571 : vector<2x256xf32>
    %cst_882 = arith.constant -1.45315206 : f32
    %2574 = vector.broadcast %cst_882 : f32 to vector<2x256xf32>
    %2575 = arith.addf %2573, %2574 : vector<2x256xf32>
    %2576 = arith.mulf %2575, %2571 : vector<2x256xf32>
    %cst_883 = arith.constant 1.42141378 : f32
    %2577 = vector.broadcast %cst_883 : f32 to vector<2x256xf32>
    %2578 = arith.addf %2576, %2577 : vector<2x256xf32>
    %2579 = arith.mulf %2578, %2571 : vector<2x256xf32>
    %cst_884 = arith.constant -0.284496725 : f32
    %2580 = vector.broadcast %cst_884 : f32 to vector<2x256xf32>
    %2581 = arith.addf %2579, %2580 : vector<2x256xf32>
    %2582 = arith.mulf %2581, %2571 : vector<2x256xf32>
    %cst_885 = arith.constant 0.254829586 : f32
    %2583 = vector.broadcast %cst_885 : f32 to vector<2x256xf32>
    %2584 = arith.addf %2582, %2583 : vector<2x256xf32>
    %2585 = arith.mulf %2584, %2571 : vector<2x256xf32>
    %cst_886 = arith.constant 0.000000e+00 : f32
    %2586 = vector.broadcast %cst_886 : f32 to vector<2x256xf32>
    %2587 = arith.subf %2586, %2566 : vector<2x256xf32>
    %2588 = arith.mulf %2587, %2566 : vector<2x256xf32>
    %2589 = math.exp %2588 : vector<2x256xf32>
    %2590 = arith.mulf %2585, %2589 : vector<2x256xf32>
    %cst_887 = arith.constant 1.000000e+00 : f32
    %2591 = vector.broadcast %cst_887 : f32 to vector<2x256xf32>
    %2592 = arith.subf %2591, %2590 : vector<2x256xf32>
    %2593 = arith.mulf %2565, %2592 : vector<2x256xf32>
    %cst_888 = arith.constant 1.000000e+00 : f32
    %2594 = vector.broadcast %cst_888 : f32 to vector<2x256xf32>
    %2595 = arith.addf %2594, %2593 : vector<2x256xf32>
    %2596 = arith.mulf %2558, %2595 : vector<2x256xf32>
    %2597 = vector.broadcast %216 : f32 to vector<2x256xf32>
    %2598 = arith.mulf %2596, %2597 : vector<2x256xf32>
    %2599 = arith.addf %2540, %2598 : vector<2x256xf32>
    %2600 = vector.broadcast %217 : f32 to vector<2x256xf32>
    %2601 = arith.mulf %2596, %2600 : vector<2x256xf32>
    %2602 = arith.addf %2543, %2601 : vector<2x256xf32>
    %2603 = vector.broadcast %218 : f32 to vector<2x256xf32>
    %2604 = arith.mulf %2596, %2603 : vector<2x256xf32>
    %2605 = arith.addf %2546, %2604 : vector<2x256xf32>
    %2606 = vector.broadcast %161 : f32 to vector<2x256xf32>
    %2607 = arith.mulf %2303, %2606 : vector<2x256xf32>
    %2608 = vector.broadcast %173 : f32 to vector<2x256xf32>
    %2609 = arith.mulf %2308, %2608 : vector<2x256xf32>
    %2610 = arith.addf %2607, %2609 : vector<2x256xf32>
    %2611 = vector.broadcast %185 : f32 to vector<2x256xf32>
    %2612 = arith.mulf %2313, %2611 : vector<2x256xf32>
    %2613 = arith.addf %2610, %2612 : vector<2x256xf32>
    %2614 = vector.broadcast %197 : f32 to vector<2x256xf32>
    %2615 = arith.addf %2613, %2614 : vector<2x256xf32>
    %cst_889 = arith.constant 5.000000e-01 : f32
    %2616 = vector.broadcast %cst_889 : f32 to vector<2x256xf32>
    %2617 = arith.mulf %2616, %2615 : vector<2x256xf32>
    %cst_890 = arith.constant 0.707106769 : f32
    %2618 = vector.broadcast %cst_890 : f32 to vector<2x256xf32>
    %2619 = arith.mulf %2615, %2618 : vector<2x256xf32>
    %cst_891 = arith.constant 0.000000e+00 : f32
    %2620 = vector.broadcast %cst_891 : f32 to vector<2x256xf32>
    %2621 = arith.cmpf oge, %2619, %2620 : vector<2x256xf32>
    %cst_892 = arith.constant 1.000000e+00 : f32
    %cst_893 = arith.constant -1.000000e+00 : f32
    %2622 = vector.broadcast %cst_892 : f32 to vector<2x256xf32>
    %2623 = vector.broadcast %cst_893 : f32 to vector<2x256xf32>
    %2624 = arith.select %2621, %2622, %2623 : vector<2x256xi1>, vector<2x256xf32>
    %2625 = math.absf %2619 : vector<2x256xf32>
    %cst_894 = arith.constant 0.327591091 : f32
    %2626 = vector.broadcast %cst_894 : f32 to vector<2x256xf32>
    %2627 = arith.mulf %2626, %2625 : vector<2x256xf32>
    %cst_895 = arith.constant 1.000000e+00 : f32
    %2628 = vector.broadcast %cst_895 : f32 to vector<2x256xf32>
    %2629 = arith.addf %2628, %2627 : vector<2x256xf32>
    %2630 = tpu.reciprocal %2629 {approx = true} : vector<2x256xf32> -> vector<2x256xf32>
    %cst_896 = arith.constant 1.06140542 : f32
    %2631 = vector.broadcast %cst_896 : f32 to vector<2x256xf32>
    %2632 = arith.mulf %2631, %2630 : vector<2x256xf32>
    %cst_897 = arith.constant -1.45315206 : f32
    %2633 = vector.broadcast %cst_897 : f32 to vector<2x256xf32>
    %2634 = arith.addf %2632, %2633 : vector<2x256xf32>
    %2635 = arith.mulf %2634, %2630 : vector<2x256xf32>
    %cst_898 = arith.constant 1.42141378 : f32
    %2636 = vector.broadcast %cst_898 : f32 to vector<2x256xf32>
    %2637 = arith.addf %2635, %2636 : vector<2x256xf32>
    %2638 = arith.mulf %2637, %2630 : vector<2x256xf32>
    %cst_899 = arith.constant -0.284496725 : f32
    %2639 = vector.broadcast %cst_899 : f32 to vector<2x256xf32>
    %2640 = arith.addf %2638, %2639 : vector<2x256xf32>
    %2641 = arith.mulf %2640, %2630 : vector<2x256xf32>
    %cst_900 = arith.constant 0.254829586 : f32
    %2642 = vector.broadcast %cst_900 : f32 to vector<2x256xf32>
    %2643 = arith.addf %2641, %2642 : vector<2x256xf32>
    %2644 = arith.mulf %2643, %2630 : vector<2x256xf32>
    %cst_901 = arith.constant 0.000000e+00 : f32
    %2645 = vector.broadcast %cst_901 : f32 to vector<2x256xf32>
    %2646 = arith.subf %2645, %2625 : vector<2x256xf32>
    %2647 = arith.mulf %2646, %2625 : vector<2x256xf32>
    %2648 = math.exp %2647 : vector<2x256xf32>
    %2649 = arith.mulf %2644, %2648 : vector<2x256xf32>
    %cst_902 = arith.constant 1.000000e+00 : f32
    %2650 = vector.broadcast %cst_902 : f32 to vector<2x256xf32>
    %2651 = arith.subf %2650, %2649 : vector<2x256xf32>
    %2652 = arith.mulf %2624, %2651 : vector<2x256xf32>
    %cst_903 = arith.constant 1.000000e+00 : f32
    %2653 = vector.broadcast %cst_903 : f32 to vector<2x256xf32>
    %2654 = arith.addf %2653, %2652 : vector<2x256xf32>
    %2655 = arith.mulf %2617, %2654 : vector<2x256xf32>
    %2656 = vector.broadcast %219 : f32 to vector<2x256xf32>
    %2657 = arith.mulf %2655, %2656 : vector<2x256xf32>
    %2658 = arith.addf %2599, %2657 : vector<2x256xf32>
    %2659 = vector.broadcast %220 : f32 to vector<2x256xf32>
    %2660 = arith.mulf %2655, %2659 : vector<2x256xf32>
    %2661 = arith.addf %2602, %2660 : vector<2x256xf32>
    %2662 = vector.broadcast %221 : f32 to vector<2x256xf32>
    %2663 = arith.mulf %2655, %2662 : vector<2x256xf32>
    %2664 = arith.addf %2605, %2663 : vector<2x256xf32>
    %2665 = vector.broadcast %162 : f32 to vector<2x256xf32>
    %2666 = arith.mulf %2303, %2665 : vector<2x256xf32>
    %2667 = vector.broadcast %174 : f32 to vector<2x256xf32>
    %2668 = arith.mulf %2308, %2667 : vector<2x256xf32>
    %2669 = arith.addf %2666, %2668 : vector<2x256xf32>
    %2670 = vector.broadcast %186 : f32 to vector<2x256xf32>
    %2671 = arith.mulf %2313, %2670 : vector<2x256xf32>
    %2672 = arith.addf %2669, %2671 : vector<2x256xf32>
    %2673 = vector.broadcast %198 : f32 to vector<2x256xf32>
    %2674 = arith.addf %2672, %2673 : vector<2x256xf32>
    %cst_904 = arith.constant 5.000000e-01 : f32
    %2675 = vector.broadcast %cst_904 : f32 to vector<2x256xf32>
    %2676 = arith.mulf %2675, %2674 : vector<2x256xf32>
    %cst_905 = arith.constant 0.707106769 : f32
    %2677 = vector.broadcast %cst_905 : f32 to vector<2x256xf32>
    %2678 = arith.mulf %2674, %2677 : vector<2x256xf32>
    %cst_906 = arith.constant 0.000000e+00 : f32
    %2679 = vector.broadcast %cst_906 : f32 to vector<2x256xf32>
    %2680 = arith.cmpf oge, %2678, %2679 : vector<2x256xf32>
    %cst_907 = arith.constant 1.000000e+00 : f32
    %cst_908 = arith.constant -1.000000e+00 : f32
    %2681 = vector.broadcast %cst_907 : f32 to vector<2x256xf32>
    %2682 = vector.broadcast %cst_908 : f32 to vector<2x256xf32>
    %2683 = arith.select %2680, %2681, %2682 : vector<2x256xi1>, vector<2x256xf32>
    %2684 = math.absf %2678 : vector<2x256xf32>
    %cst_909 = arith.constant 0.327591091 : f32
    %2685 = vector.broadcast %cst_909 : f32 to vector<2x256xf32>
    %2686 = arith.mulf %2685, %2684 : vector<2x256xf32>
    %cst_910 = arith.constant 1.000000e+00 : f32
    %2687 = vector.broadcast %cst_910 : f32 to vector<2x256xf32>
    %2688 = arith.addf %2687, %2686 : vector<2x256xf32>
    %2689 = tpu.reciprocal %2688 {approx = true} : vector<2x256xf32> -> vector<2x256xf32>
    %cst_911 = arith.constant 1.06140542 : f32
    %2690 = vector.broadcast %cst_911 : f32 to vector<2x256xf32>
    %2691 = arith.mulf %2690, %2689 : vector<2x256xf32>
    %cst_912 = arith.constant -1.45315206 : f32
    %2692 = vector.broadcast %cst_912 : f32 to vector<2x256xf32>
    %2693 = arith.addf %2691, %2692 : vector<2x256xf32>
    %2694 = arith.mulf %2693, %2689 : vector<2x256xf32>
    %cst_913 = arith.constant 1.42141378 : f32
    %2695 = vector.broadcast %cst_913 : f32 to vector<2x256xf32>
    %2696 = arith.addf %2694, %2695 : vector<2x256xf32>
    %2697 = arith.mulf %2696, %2689 : vector<2x256xf32>
    %cst_914 = arith.constant -0.284496725 : f32
    %2698 = vector.broadcast %cst_914 : f32 to vector<2x256xf32>
    %2699 = arith.addf %2697, %2698 : vector<2x256xf32>
    %2700 = arith.mulf %2699, %2689 : vector<2x256xf32>
    %cst_915 = arith.constant 0.254829586 : f32
    %2701 = vector.broadcast %cst_915 : f32 to vector<2x256xf32>
    %2702 = arith.addf %2700, %2701 : vector<2x256xf32>
    %2703 = arith.mulf %2702, %2689 : vector<2x256xf32>
    %cst_916 = arith.constant 0.000000e+00 : f32
    %2704 = vector.broadcast %cst_916 : f32 to vector<2x256xf32>
    %2705 = arith.subf %2704, %2684 : vector<2x256xf32>
    %2706 = arith.mulf %2705, %2684 : vector<2x256xf32>
    %2707 = math.exp %2706 : vector<2x256xf32>
    %2708 = arith.mulf %2703, %2707 : vector<2x256xf32>
    %cst_917 = arith.constant 1.000000e+00 : f32
    %2709 = vector.broadcast %cst_917 : f32 to vector<2x256xf32>
    %2710 = arith.subf %2709, %2708 : vector<2x256xf32>
    %2711 = arith.mulf %2683, %2710 : vector<2x256xf32>
    %cst_918 = arith.constant 1.000000e+00 : f32
    %2712 = vector.broadcast %cst_918 : f32 to vector<2x256xf32>
    %2713 = arith.addf %2712, %2711 : vector<2x256xf32>
    %2714 = arith.mulf %2676, %2713 : vector<2x256xf32>
    %2715 = vector.broadcast %222 : f32 to vector<2x256xf32>
    %2716 = arith.mulf %2714, %2715 : vector<2x256xf32>
    %2717 = arith.addf %2658, %2716 : vector<2x256xf32>
    %2718 = vector.broadcast %223 : f32 to vector<2x256xf32>
    %2719 = arith.mulf %2714, %2718 : vector<2x256xf32>
    %2720 = arith.addf %2661, %2719 : vector<2x256xf32>
    %2721 = vector.broadcast %224 : f32 to vector<2x256xf32>
    %2722 = arith.mulf %2714, %2721 : vector<2x256xf32>
    %2723 = arith.addf %2664, %2722 : vector<2x256xf32>
    %2724 = vector.broadcast %163 : f32 to vector<2x256xf32>
    %2725 = arith.mulf %2303, %2724 : vector<2x256xf32>
    %2726 = vector.broadcast %175 : f32 to vector<2x256xf32>
    %2727 = arith.mulf %2308, %2726 : vector<2x256xf32>
    %2728 = arith.addf %2725, %2727 : vector<2x256xf32>
    %2729 = vector.broadcast %187 : f32 to vector<2x256xf32>
    %2730 = arith.mulf %2313, %2729 : vector<2x256xf32>
    %2731 = arith.addf %2728, %2730 : vector<2x256xf32>
    %2732 = vector.broadcast %199 : f32 to vector<2x256xf32>
    %2733 = arith.addf %2731, %2732 : vector<2x256xf32>
    %cst_919 = arith.constant 5.000000e-01 : f32
    %2734 = vector.broadcast %cst_919 : f32 to vector<2x256xf32>
    %2735 = arith.mulf %2734, %2733 : vector<2x256xf32>
    %cst_920 = arith.constant 0.707106769 : f32
    %2736 = vector.broadcast %cst_920 : f32 to vector<2x256xf32>
    %2737 = arith.mulf %2733, %2736 : vector<2x256xf32>
    %cst_921 = arith.constant 0.000000e+00 : f32
    %2738 = vector.broadcast %cst_921 : f32 to vector<2x256xf32>
    %2739 = arith.cmpf oge, %2737, %2738 : vector<2x256xf32>
    %cst_922 = arith.constant 1.000000e+00 : f32
    %cst_923 = arith.constant -1.000000e+00 : f32
    %2740 = vector.broadcast %cst_922 : f32 to vector<2x256xf32>
    %2741 = vector.broadcast %cst_923 : f32 to vector<2x256xf32>
    %2742 = arith.select %2739, %2740, %2741 : vector<2x256xi1>, vector<2x256xf32>
    %2743 = math.absf %2737 : vector<2x256xf32>
    %cst_924 = arith.constant 0.327591091 : f32
    %2744 = vector.broadcast %cst_924 : f32 to vector<2x256xf32>
    %2745 = arith.mulf %2744, %2743 : vector<2x256xf32>
    %cst_925 = arith.constant 1.000000e+00 : f32
    %2746 = vector.broadcast %cst_925 : f32 to vector<2x256xf32>
    %2747 = arith.addf %2746, %2745 : vector<2x256xf32>
    %2748 = tpu.reciprocal %2747 {approx = true} : vector<2x256xf32> -> vector<2x256xf32>
    %cst_926 = arith.constant 1.06140542 : f32
    %2749 = vector.broadcast %cst_926 : f32 to vector<2x256xf32>
    %2750 = arith.mulf %2749, %2748 : vector<2x256xf32>
    %cst_927 = arith.constant -1.45315206 : f32
    %2751 = vector.broadcast %cst_927 : f32 to vector<2x256xf32>
    %2752 = arith.addf %2750, %2751 : vector<2x256xf32>
    %2753 = arith.mulf %2752, %2748 : vector<2x256xf32>
    %cst_928 = arith.constant 1.42141378 : f32
    %2754 = vector.broadcast %cst_928 : f32 to vector<2x256xf32>
    %2755 = arith.addf %2753, %2754 : vector<2x256xf32>
    %2756 = arith.mulf %2755, %2748 : vector<2x256xf32>
    %cst_929 = arith.constant -0.284496725 : f32
    %2757 = vector.broadcast %cst_929 : f32 to vector<2x256xf32>
    %2758 = arith.addf %2756, %2757 : vector<2x256xf32>
    %2759 = arith.mulf %2758, %2748 : vector<2x256xf32>
    %cst_930 = arith.constant 0.254829586 : f32
    %2760 = vector.broadcast %cst_930 : f32 to vector<2x256xf32>
    %2761 = arith.addf %2759, %2760 : vector<2x256xf32>
    %2762 = arith.mulf %2761, %2748 : vector<2x256xf32>
    %cst_931 = arith.constant 0.000000e+00 : f32
    %2763 = vector.broadcast %cst_931 : f32 to vector<2x256xf32>
    %2764 = arith.subf %2763, %2743 : vector<2x256xf32>
    %2765 = arith.mulf %2764, %2743 : vector<2x256xf32>
    %2766 = math.exp %2765 : vector<2x256xf32>
    %2767 = arith.mulf %2762, %2766 : vector<2x256xf32>
    %cst_932 = arith.constant 1.000000e+00 : f32
    %2768 = vector.broadcast %cst_932 : f32 to vector<2x256xf32>
    %2769 = arith.subf %2768, %2767 : vector<2x256xf32>
    %2770 = arith.mulf %2742, %2769 : vector<2x256xf32>
    %cst_933 = arith.constant 1.000000e+00 : f32
    %2771 = vector.broadcast %cst_933 : f32 to vector<2x256xf32>
    %2772 = arith.addf %2771, %2770 : vector<2x256xf32>
    %2773 = arith.mulf %2735, %2772 : vector<2x256xf32>
    %2774 = vector.broadcast %225 : f32 to vector<2x256xf32>
    %2775 = arith.mulf %2773, %2774 : vector<2x256xf32>
    %2776 = arith.addf %2717, %2775 : vector<2x256xf32>
    %2777 = vector.broadcast %226 : f32 to vector<2x256xf32>
    %2778 = arith.mulf %2773, %2777 : vector<2x256xf32>
    %2779 = arith.addf %2720, %2778 : vector<2x256xf32>
    %2780 = vector.broadcast %227 : f32 to vector<2x256xf32>
    %2781 = arith.mulf %2773, %2780 : vector<2x256xf32>
    %2782 = arith.addf %2723, %2781 : vector<2x256xf32>
    %2783 = vector.broadcast %164 : f32 to vector<2x256xf32>
    %2784 = arith.mulf %2303, %2783 : vector<2x256xf32>
    %2785 = vector.broadcast %176 : f32 to vector<2x256xf32>
    %2786 = arith.mulf %2308, %2785 : vector<2x256xf32>
    %2787 = arith.addf %2784, %2786 : vector<2x256xf32>
    %2788 = vector.broadcast %188 : f32 to vector<2x256xf32>
    %2789 = arith.mulf %2313, %2788 : vector<2x256xf32>
    %2790 = arith.addf %2787, %2789 : vector<2x256xf32>
    %2791 = vector.broadcast %200 : f32 to vector<2x256xf32>
    %2792 = arith.addf %2790, %2791 : vector<2x256xf32>
    %cst_934 = arith.constant 5.000000e-01 : f32
    %2793 = vector.broadcast %cst_934 : f32 to vector<2x256xf32>
    %2794 = arith.mulf %2793, %2792 : vector<2x256xf32>
    %cst_935 = arith.constant 0.707106769 : f32
    %2795 = vector.broadcast %cst_935 : f32 to vector<2x256xf32>
    %2796 = arith.mulf %2792, %2795 : vector<2x256xf32>
    %cst_936 = arith.constant 0.000000e+00 : f32
    %2797 = vector.broadcast %cst_936 : f32 to vector<2x256xf32>
    %2798 = arith.cmpf oge, %2796, %2797 : vector<2x256xf32>
    %cst_937 = arith.constant 1.000000e+00 : f32
    %cst_938 = arith.constant -1.000000e+00 : f32
    %2799 = vector.broadcast %cst_937 : f32 to vector<2x256xf32>
    %2800 = vector.broadcast %cst_938 : f32 to vector<2x256xf32>
    %2801 = arith.select %2798, %2799, %2800 : vector<2x256xi1>, vector<2x256xf32>
    %2802 = math.absf %2796 : vector<2x256xf32>
    %cst_939 = arith.constant 0.327591091 : f32
    %2803 = vector.broadcast %cst_939 : f32 to vector<2x256xf32>
    %2804 = arith.mulf %2803, %2802 : vector<2x256xf32>
    %cst_940 = arith.constant 1.000000e+00 : f32
    %2805 = vector.broadcast %cst_940 : f32 to vector<2x256xf32>
    %2806 = arith.addf %2805, %2804 : vector<2x256xf32>
    %2807 = tpu.reciprocal %2806 {approx = true} : vector<2x256xf32> -> vector<2x256xf32>
    %cst_941 = arith.constant 1.06140542 : f32
    %2808 = vector.broadcast %cst_941 : f32 to vector<2x256xf32>
    %2809 = arith.mulf %2808, %2807 : vector<2x256xf32>
    %cst_942 = arith.constant -1.45315206 : f32
    %2810 = vector.broadcast %cst_942 : f32 to vector<2x256xf32>
    %2811 = arith.addf %2809, %2810 : vector<2x256xf32>
    %2812 = arith.mulf %2811, %2807 : vector<2x256xf32>
    %cst_943 = arith.constant 1.42141378 : f32
    %2813 = vector.broadcast %cst_943 : f32 to vector<2x256xf32>
    %2814 = arith.addf %2812, %2813 : vector<2x256xf32>
    %2815 = arith.mulf %2814, %2807 : vector<2x256xf32>
    %cst_944 = arith.constant -0.284496725 : f32
    %2816 = vector.broadcast %cst_944 : f32 to vector<2x256xf32>
    %2817 = arith.addf %2815, %2816 : vector<2x256xf32>
    %2818 = arith.mulf %2817, %2807 : vector<2x256xf32>
    %cst_945 = arith.constant 0.254829586 : f32
    %2819 = vector.broadcast %cst_945 : f32 to vector<2x256xf32>
    %2820 = arith.addf %2818, %2819 : vector<2x256xf32>
    %2821 = arith.mulf %2820, %2807 : vector<2x256xf32>
    %cst_946 = arith.constant 0.000000e+00 : f32
    %2822 = vector.broadcast %cst_946 : f32 to vector<2x256xf32>
    %2823 = arith.subf %2822, %2802 : vector<2x256xf32>
    %2824 = arith.mulf %2823, %2802 : vector<2x256xf32>
    %2825 = math.exp %2824 : vector<2x256xf32>
    %2826 = arith.mulf %2821, %2825 : vector<2x256xf32>
    %cst_947 = arith.constant 1.000000e+00 : f32
    %2827 = vector.broadcast %cst_947 : f32 to vector<2x256xf32>
    %2828 = arith.subf %2827, %2826 : vector<2x256xf32>
    %2829 = arith.mulf %2801, %2828 : vector<2x256xf32>
    %cst_948 = arith.constant 1.000000e+00 : f32
    %2830 = vector.broadcast %cst_948 : f32 to vector<2x256xf32>
    %2831 = arith.addf %2830, %2829 : vector<2x256xf32>
    %2832 = arith.mulf %2794, %2831 : vector<2x256xf32>
    %2833 = vector.broadcast %228 : f32 to vector<2x256xf32>
    %2834 = arith.mulf %2832, %2833 : vector<2x256xf32>
    %2835 = arith.addf %2776, %2834 : vector<2x256xf32>
    %2836 = vector.broadcast %229 : f32 to vector<2x256xf32>
    %2837 = arith.mulf %2832, %2836 : vector<2x256xf32>
    %2838 = arith.addf %2779, %2837 : vector<2x256xf32>
    %2839 = vector.broadcast %230 : f32 to vector<2x256xf32>
    %2840 = arith.mulf %2832, %2839 : vector<2x256xf32>
    %2841 = arith.addf %2782, %2840 : vector<2x256xf32>
    %2842 = vector.broadcast %165 : f32 to vector<2x256xf32>
    %2843 = arith.mulf %2303, %2842 : vector<2x256xf32>
    %2844 = vector.broadcast %177 : f32 to vector<2x256xf32>
    %2845 = arith.mulf %2308, %2844 : vector<2x256xf32>
    %2846 = arith.addf %2843, %2845 : vector<2x256xf32>
    %2847 = vector.broadcast %189 : f32 to vector<2x256xf32>
    %2848 = arith.mulf %2313, %2847 : vector<2x256xf32>
    %2849 = arith.addf %2846, %2848 : vector<2x256xf32>
    %2850 = vector.broadcast %201 : f32 to vector<2x256xf32>
    %2851 = arith.addf %2849, %2850 : vector<2x256xf32>
    %cst_949 = arith.constant 5.000000e-01 : f32
    %2852 = vector.broadcast %cst_949 : f32 to vector<2x256xf32>
    %2853 = arith.mulf %2852, %2851 : vector<2x256xf32>
    %cst_950 = arith.constant 0.707106769 : f32
    %2854 = vector.broadcast %cst_950 : f32 to vector<2x256xf32>
    %2855 = arith.mulf %2851, %2854 : vector<2x256xf32>
    %cst_951 = arith.constant 0.000000e+00 : f32
    %2856 = vector.broadcast %cst_951 : f32 to vector<2x256xf32>
    %2857 = arith.cmpf oge, %2855, %2856 : vector<2x256xf32>
    %cst_952 = arith.constant 1.000000e+00 : f32
    %cst_953 = arith.constant -1.000000e+00 : f32
    %2858 = vector.broadcast %cst_952 : f32 to vector<2x256xf32>
    %2859 = vector.broadcast %cst_953 : f32 to vector<2x256xf32>
    %2860 = arith.select %2857, %2858, %2859 : vector<2x256xi1>, vector<2x256xf32>
    %2861 = math.absf %2855 : vector<2x256xf32>
    %cst_954 = arith.constant 0.327591091 : f32
    %2862 = vector.broadcast %cst_954 : f32 to vector<2x256xf32>
    %2863 = arith.mulf %2862, %2861 : vector<2x256xf32>
    %cst_955 = arith.constant 1.000000e+00 : f32
    %2864 = vector.broadcast %cst_955 : f32 to vector<2x256xf32>
    %2865 = arith.addf %2864, %2863 : vector<2x256xf32>
    %2866 = tpu.reciprocal %2865 {approx = true} : vector<2x256xf32> -> vector<2x256xf32>
    %cst_956 = arith.constant 1.06140542 : f32
    %2867 = vector.broadcast %cst_956 : f32 to vector<2x256xf32>
    %2868 = arith.mulf %2867, %2866 : vector<2x256xf32>
    %cst_957 = arith.constant -1.45315206 : f32
    %2869 = vector.broadcast %cst_957 : f32 to vector<2x256xf32>
    %2870 = arith.addf %2868, %2869 : vector<2x256xf32>
    %2871 = arith.mulf %2870, %2866 : vector<2x256xf32>
    %cst_958 = arith.constant 1.42141378 : f32
    %2872 = vector.broadcast %cst_958 : f32 to vector<2x256xf32>
    %2873 = arith.addf %2871, %2872 : vector<2x256xf32>
    %2874 = arith.mulf %2873, %2866 : vector<2x256xf32>
    %cst_959 = arith.constant -0.284496725 : f32
    %2875 = vector.broadcast %cst_959 : f32 to vector<2x256xf32>
    %2876 = arith.addf %2874, %2875 : vector<2x256xf32>
    %2877 = arith.mulf %2876, %2866 : vector<2x256xf32>
    %cst_960 = arith.constant 0.254829586 : f32
    %2878 = vector.broadcast %cst_960 : f32 to vector<2x256xf32>
    %2879 = arith.addf %2877, %2878 : vector<2x256xf32>
    %2880 = arith.mulf %2879, %2866 : vector<2x256xf32>
    %cst_961 = arith.constant 0.000000e+00 : f32
    %2881 = vector.broadcast %cst_961 : f32 to vector<2x256xf32>
    %2882 = arith.subf %2881, %2861 : vector<2x256xf32>
    %2883 = arith.mulf %2882, %2861 : vector<2x256xf32>
    %2884 = math.exp %2883 : vector<2x256xf32>
    %2885 = arith.mulf %2880, %2884 : vector<2x256xf32>
    %cst_962 = arith.constant 1.000000e+00 : f32
    %2886 = vector.broadcast %cst_962 : f32 to vector<2x256xf32>
    %2887 = arith.subf %2886, %2885 : vector<2x256xf32>
    %2888 = arith.mulf %2860, %2887 : vector<2x256xf32>
    %cst_963 = arith.constant 1.000000e+00 : f32
    %2889 = vector.broadcast %cst_963 : f32 to vector<2x256xf32>
    %2890 = arith.addf %2889, %2888 : vector<2x256xf32>
    %2891 = arith.mulf %2853, %2890 : vector<2x256xf32>
    %2892 = vector.broadcast %231 : f32 to vector<2x256xf32>
    %2893 = arith.mulf %2891, %2892 : vector<2x256xf32>
    %2894 = arith.addf %2835, %2893 : vector<2x256xf32>
    %2895 = vector.broadcast %232 : f32 to vector<2x256xf32>
    %2896 = arith.mulf %2891, %2895 : vector<2x256xf32>
    %2897 = arith.addf %2838, %2896 : vector<2x256xf32>
    %2898 = vector.broadcast %233 : f32 to vector<2x256xf32>
    %2899 = arith.mulf %2891, %2898 : vector<2x256xf32>
    %2900 = arith.addf %2841, %2899 : vector<2x256xf32>
    %2901 = vector.broadcast %166 : f32 to vector<2x256xf32>
    %2902 = arith.mulf %2303, %2901 : vector<2x256xf32>
    %2903 = vector.broadcast %178 : f32 to vector<2x256xf32>
    %2904 = arith.mulf %2308, %2903 : vector<2x256xf32>
    %2905 = arith.addf %2902, %2904 : vector<2x256xf32>
    %2906 = vector.broadcast %190 : f32 to vector<2x256xf32>
    %2907 = arith.mulf %2313, %2906 : vector<2x256xf32>
    %2908 = arith.addf %2905, %2907 : vector<2x256xf32>
    %2909 = vector.broadcast %202 : f32 to vector<2x256xf32>
    %2910 = arith.addf %2908, %2909 : vector<2x256xf32>
    %cst_964 = arith.constant 5.000000e-01 : f32
    %2911 = vector.broadcast %cst_964 : f32 to vector<2x256xf32>
    %2912 = arith.mulf %2911, %2910 : vector<2x256xf32>
    %cst_965 = arith.constant 0.707106769 : f32
    %2913 = vector.broadcast %cst_965 : f32 to vector<2x256xf32>
    %2914 = arith.mulf %2910, %2913 : vector<2x256xf32>
    %cst_966 = arith.constant 0.000000e+00 : f32
    %2915 = vector.broadcast %cst_966 : f32 to vector<2x256xf32>
    %2916 = arith.cmpf oge, %2914, %2915 : vector<2x256xf32>
    %cst_967 = arith.constant 1.000000e+00 : f32
    %cst_968 = arith.constant -1.000000e+00 : f32
    %2917 = vector.broadcast %cst_967 : f32 to vector<2x256xf32>
    %2918 = vector.broadcast %cst_968 : f32 to vector<2x256xf32>
    %2919 = arith.select %2916, %2917, %2918 : vector<2x256xi1>, vector<2x256xf32>
    %2920 = math.absf %2914 : vector<2x256xf32>
    %cst_969 = arith.constant 0.327591091 : f32
    %2921 = vector.broadcast %cst_969 : f32 to vector<2x256xf32>
    %2922 = arith.mulf %2921, %2920 : vector<2x256xf32>
    %cst_970 = arith.constant 1.000000e+00 : f32
    %2923 = vector.broadcast %cst_970 : f32 to vector<2x256xf32>
    %2924 = arith.addf %2923, %2922 : vector<2x256xf32>
    %2925 = tpu.reciprocal %2924 {approx = true} : vector<2x256xf32> -> vector<2x256xf32>
    %cst_971 = arith.constant 1.06140542 : f32
    %2926 = vector.broadcast %cst_971 : f32 to vector<2x256xf32>
    %2927 = arith.mulf %2926, %2925 : vector<2x256xf32>
    %cst_972 = arith.constant -1.45315206 : f32
    %2928 = vector.broadcast %cst_972 : f32 to vector<2x256xf32>
    %2929 = arith.addf %2927, %2928 : vector<2x256xf32>
    %2930 = arith.mulf %2929, %2925 : vector<2x256xf32>
    %cst_973 = arith.constant 1.42141378 : f32
    %2931 = vector.broadcast %cst_973 : f32 to vector<2x256xf32>
    %2932 = arith.addf %2930, %2931 : vector<2x256xf32>
    %2933 = arith.mulf %2932, %2925 : vector<2x256xf32>
    %cst_974 = arith.constant -0.284496725 : f32
    %2934 = vector.broadcast %cst_974 : f32 to vector<2x256xf32>
    %2935 = arith.addf %2933, %2934 : vector<2x256xf32>
    %2936 = arith.mulf %2935, %2925 : vector<2x256xf32>
    %cst_975 = arith.constant 0.254829586 : f32
    %2937 = vector.broadcast %cst_975 : f32 to vector<2x256xf32>
    %2938 = arith.addf %2936, %2937 : vector<2x256xf32>
    %2939 = arith.mulf %2938, %2925 : vector<2x256xf32>
    %cst_976 = arith.constant 0.000000e+00 : f32
    %2940 = vector.broadcast %cst_976 : f32 to vector<2x256xf32>
    %2941 = arith.subf %2940, %2920 : vector<2x256xf32>
    %2942 = arith.mulf %2941, %2920 : vector<2x256xf32>
    %2943 = math.exp %2942 : vector<2x256xf32>
    %2944 = arith.mulf %2939, %2943 : vector<2x256xf32>
    %cst_977 = arith.constant 1.000000e+00 : f32
    %2945 = vector.broadcast %cst_977 : f32 to vector<2x256xf32>
    %2946 = arith.subf %2945, %2944 : vector<2x256xf32>
    %2947 = arith.mulf %2919, %2946 : vector<2x256xf32>
    %cst_978 = arith.constant 1.000000e+00 : f32
    %2948 = vector.broadcast %cst_978 : f32 to vector<2x256xf32>
    %2949 = arith.addf %2948, %2947 : vector<2x256xf32>
    %2950 = arith.mulf %2912, %2949 : vector<2x256xf32>
    %2951 = vector.broadcast %234 : f32 to vector<2x256xf32>
    %2952 = arith.mulf %2950, %2951 : vector<2x256xf32>
    %2953 = arith.addf %2894, %2952 : vector<2x256xf32>
    %2954 = vector.broadcast %235 : f32 to vector<2x256xf32>
    %2955 = arith.mulf %2950, %2954 : vector<2x256xf32>
    %2956 = arith.addf %2897, %2955 : vector<2x256xf32>
    %2957 = vector.broadcast %236 : f32 to vector<2x256xf32>
    %2958 = arith.mulf %2950, %2957 : vector<2x256xf32>
    %2959 = arith.addf %2900, %2958 : vector<2x256xf32>
    %2960 = vector.broadcast %167 : f32 to vector<2x256xf32>
    %2961 = arith.mulf %2303, %2960 : vector<2x256xf32>
    %2962 = vector.broadcast %179 : f32 to vector<2x256xf32>
    %2963 = arith.mulf %2308, %2962 : vector<2x256xf32>
    %2964 = arith.addf %2961, %2963 : vector<2x256xf32>
    %2965 = vector.broadcast %191 : f32 to vector<2x256xf32>
    %2966 = arith.mulf %2313, %2965 : vector<2x256xf32>
    %2967 = arith.addf %2964, %2966 : vector<2x256xf32>
    %2968 = vector.broadcast %203 : f32 to vector<2x256xf32>
    %2969 = arith.addf %2967, %2968 : vector<2x256xf32>
    %cst_979 = arith.constant 5.000000e-01 : f32
    %2970 = vector.broadcast %cst_979 : f32 to vector<2x256xf32>
    %2971 = arith.mulf %2970, %2969 : vector<2x256xf32>
    %cst_980 = arith.constant 0.707106769 : f32
    %2972 = vector.broadcast %cst_980 : f32 to vector<2x256xf32>
    %2973 = arith.mulf %2969, %2972 : vector<2x256xf32>
    %cst_981 = arith.constant 0.000000e+00 : f32
    %2974 = vector.broadcast %cst_981 : f32 to vector<2x256xf32>
    %2975 = arith.cmpf oge, %2973, %2974 : vector<2x256xf32>
    %cst_982 = arith.constant 1.000000e+00 : f32
    %cst_983 = arith.constant -1.000000e+00 : f32
    %2976 = vector.broadcast %cst_982 : f32 to vector<2x256xf32>
    %2977 = vector.broadcast %cst_983 : f32 to vector<2x256xf32>
    %2978 = arith.select %2975, %2976, %2977 : vector<2x256xi1>, vector<2x256xf32>
    %2979 = math.absf %2973 : vector<2x256xf32>
    %cst_984 = arith.constant 0.327591091 : f32
    %2980 = vector.broadcast %cst_984 : f32 to vector<2x256xf32>
    %2981 = arith.mulf %2980, %2979 : vector<2x256xf32>
    %cst_985 = arith.constant 1.000000e+00 : f32
    %2982 = vector.broadcast %cst_985 : f32 to vector<2x256xf32>
    %2983 = arith.addf %2982, %2981 : vector<2x256xf32>
    %2984 = tpu.reciprocal %2983 {approx = true} : vector<2x256xf32> -> vector<2x256xf32>
    %cst_986 = arith.constant 1.06140542 : f32
    %2985 = vector.broadcast %cst_986 : f32 to vector<2x256xf32>
    %2986 = arith.mulf %2985, %2984 : vector<2x256xf32>
    %cst_987 = arith.constant -1.45315206 : f32
    %2987 = vector.broadcast %cst_987 : f32 to vector<2x256xf32>
    %2988 = arith.addf %2986, %2987 : vector<2x256xf32>
    %2989 = arith.mulf %2988, %2984 : vector<2x256xf32>
    %cst_988 = arith.constant 1.42141378 : f32
    %2990 = vector.broadcast %cst_988 : f32 to vector<2x256xf32>
    %2991 = arith.addf %2989, %2990 : vector<2x256xf32>
    %2992 = arith.mulf %2991, %2984 : vector<2x256xf32>
    %cst_989 = arith.constant -0.284496725 : f32
    %2993 = vector.broadcast %cst_989 : f32 to vector<2x256xf32>
    %2994 = arith.addf %2992, %2993 : vector<2x256xf32>
    %2995 = arith.mulf %2994, %2984 : vector<2x256xf32>
    %cst_990 = arith.constant 0.254829586 : f32
    %2996 = vector.broadcast %cst_990 : f32 to vector<2x256xf32>
    %2997 = arith.addf %2995, %2996 : vector<2x256xf32>
    %2998 = arith.mulf %2997, %2984 : vector<2x256xf32>
    %cst_991 = arith.constant 0.000000e+00 : f32
    %2999 = vector.broadcast %cst_991 : f32 to vector<2x256xf32>
    %3000 = arith.subf %2999, %2979 : vector<2x256xf32>
    %3001 = arith.mulf %3000, %2979 : vector<2x256xf32>
    %3002 = math.exp %3001 : vector<2x256xf32>
    %3003 = arith.mulf %2998, %3002 : vector<2x256xf32>
    %cst_992 = arith.constant 1.000000e+00 : f32
    %3004 = vector.broadcast %cst_992 : f32 to vector<2x256xf32>
    %3005 = arith.subf %3004, %3003 : vector<2x256xf32>
    %3006 = arith.mulf %2978, %3005 : vector<2x256xf32>
    %cst_993 = arith.constant 1.000000e+00 : f32
    %3007 = vector.broadcast %cst_993 : f32 to vector<2x256xf32>
    %3008 = arith.addf %3007, %3006 : vector<2x256xf32>
    %3009 = arith.mulf %2971, %3008 : vector<2x256xf32>
    %3010 = vector.broadcast %237 : f32 to vector<2x256xf32>
    %3011 = arith.mulf %3009, %3010 : vector<2x256xf32>
    %3012 = arith.addf %2953, %3011 : vector<2x256xf32>
    %3013 = vector.broadcast %238 : f32 to vector<2x256xf32>
    %3014 = arith.mulf %3009, %3013 : vector<2x256xf32>
    %3015 = arith.addf %2956, %3014 : vector<2x256xf32>
    %3016 = vector.broadcast %239 : f32 to vector<2x256xf32>
    %3017 = arith.mulf %3009, %3016 : vector<2x256xf32>
    %3018 = arith.addf %2959, %3017 : vector<2x256xf32>
    %3019 = vector.broadcast %240 : f32 to vector<2x256xf32>
    %3020 = arith.addf %3012, %3019 : vector<2x256xf32>
    %3021 = vector.broadcast %243 : f32 to vector<2x256xf32>
    %3022 = arith.mulf %3020, %3021 : vector<2x256xf32>
    %3023 = arith.addf %1695, %3022 : vector<2x256xf32>
    %3024 = vector.broadcast %241 : f32 to vector<2x256xf32>
    %3025 = arith.addf %3015, %3024 : vector<2x256xf32>
    %3026 = vector.broadcast %244 : f32 to vector<2x256xf32>
    %3027 = arith.mulf %3025, %3026 : vector<2x256xf32>
    %3028 = arith.addf %1712, %3027 : vector<2x256xf32>
    %3029 = vector.broadcast %242 : f32 to vector<2x256xf32>
    %3030 = arith.addf %3018, %3029 : vector<2x256xf32>
    %3031 = vector.broadcast %245 : f32 to vector<2x256xf32>
    %3032 = arith.mulf %3030, %3031 : vector<2x256xf32>
    %3033 = arith.addf %1729, %3032 : vector<2x256xf32>
    %c0_994 = arith.constant 0 : index
    %c0_995 = arith.constant 0 : index
    %c0_996 = arith.constant 0 : index
    %3034 = vector.load %arg13[%c0_994, %c0_995, %c0_996] : memref<3x2x256xf32, #tpu.memory_space<vmem>>, vector<1x2x256xf32>
    %3035 = vector.shape_cast %3034 : vector<1x2x256xf32> to vector<2x256xf32>
    %3036 = vector.shape_cast %3023 : vector<2x256xf32> to vector<1x2x256xf32>
    tpu.vector_store %arg13[%c0_994, %c0_995, %c0_996], %3036 {strides = array<i32>} : memref<3x2x256xf32, #tpu.memory_space<vmem>>, vector<1x2x256xf32>,
    %c1_997 = arith.constant 1 : index
    %c0_998 = arith.constant 0 : index
    %c0_999 = arith.constant 0 : index
    %3037 = vector.load %arg13[%c1_997, %c0_998, %c0_999] : memref<3x2x256xf32, #tpu.memory_space<vmem>>, vector<1x2x256xf32>
    %3038 = vector.shape_cast %3037 : vector<1x2x256xf32> to vector<2x256xf32>
    %3039 = vector.shape_cast %3028 : vector<2x256xf32> to vector<1x2x256xf32>
    tpu.vector_store %arg13[%c1_997, %c0_998, %c0_999], %3039 {strides = array<i32>} : memref<3x2x256xf32, #tpu.memory_space<vmem>>, vector<1x2x256xf32>,
    %c2_1000 = arith.constant 2 : index
    %c0_1001 = arith.constant 0 : index
    %c0_1002 = arith.constant 0 : index
    %3040 = vector.load %arg13[%c2_1000, %c0_1001, %c0_1002] : memref<3x2x256xf32, #tpu.memory_space<vmem>>, vector<1x2x256xf32>
    %3041 = vector.shape_cast %3040 : vector<1x2x256xf32> to vector<2x256xf32>
    %3042 = vector.shape_cast %3033 : vector<2x256xf32> to vector<1x2x256xf32>
    tpu.vector_store %arg13[%c2_1000, %c0_1001, %c0_1002], %3042 {strides = array<i32>} : memref<3x2x256xf32, #tpu.memory_space<vmem>>, vector<1x2x256xf32>,
    return
  }
  func.func @transform_0(%arg0: i32) -> (i32, i32, i32) {
    %c0_i32 = arith.constant 0 : i32
    %c0_i32_0 = arith.constant 0 : i32
    %c0_i32_1 = arith.constant 0 : i32
    return %c0_i32, %arg0, %c0_i32_0 : i32, i32, i32
  }
  func.func @transform_1(%arg0: i32) -> (i32, i32) {
    %c0_i32 = arith.constant 0 : i32
    %c0_i32_0 = arith.constant 0 : i32
    %c0_i32_1 = arith.constant 0 : i32
    return %c0_i32, %c0_i32_0 : i32, i32
  }
  func.func @transform_2(%arg0: i32) -> i32 {
    %c0_i32 = arith.constant 0 : i32
    %c0_i32_0 = arith.constant 0 : i32
    return %c0_i32 : i32
  }
  func.func @transform_3(%arg0: i32) -> i32 {
    %c0_i32 = arith.constant 0 : i32
    %c0_i32_0 = arith.constant 0 : i32
    return %c0_i32 : i32
  }
  func.func @transform_4(%arg0: i32) -> i32 {
    %c0_i32 = arith.constant 0 : i32
    %c0_i32_0 = arith.constant 0 : i32
    return %c0_i32 : i32
  }
  func.func @transform_5(%arg0: i32) -> (i32, i32) {
    %c0_i32 = arith.constant 0 : i32
    %c0_i32_0 = arith.constant 0 : i32
    %c0_i32_1 = arith.constant 0 : i32
    return %c0_i32, %c0_i32_0 : i32, i32
  }
  func.func @transform_6(%arg0: i32) -> i32 {
    %c0_i32 = arith.constant 0 : i32
    %c0_i32_0 = arith.constant 0 : i32
    return %c0_i32 : i32
  }
  func.func @transform_7(%arg0: i32) -> (i32, i32) {
    %c0_i32 = arith.constant 0 : i32
    %c0_i32_0 = arith.constant 0 : i32
    %c0_i32_1 = arith.constant 0 : i32
    return %c0_i32, %c0_i32_0 : i32, i32
  }
  func.func @transform_8(%arg0: i32) -> i32 {
    %c0_i32 = arith.constant 0 : i32
    %c0_i32_0 = arith.constant 0 : i32
    return %c0_i32 : i32
  }
  func.func @transform_9(%arg0: i32) -> i32 {
    %c0_i32 = arith.constant 0 : i32
    %c0_i32_0 = arith.constant 0 : i32
    return %c0_i32 : i32
  }
  func.func @transform_10(%arg0: i32) -> (i32, i32) {
    %c0_i32 = arith.constant 0 : i32
    %c0_i32_0 = arith.constant 0 : i32
    %c0_i32_1 = arith.constant 0 : i32
    return %c0_i32, %c0_i32_0 : i32, i32
  }
  func.func @transform_11(%arg0: i32) -> i32 {
    %c0_i32 = arith.constant 0 : i32
    %c0_i32_0 = arith.constant 0 : i32
    return %c0_i32 : i32
  }
  func.func @transform_12(%arg0: i32) -> (i32, i32, i32) {
    %c0_i32 = arith.constant 0 : i32
    %c0_i32_0 = arith.constant 0 : i32
    %c0_i32_1 = arith.constant 0 : i32
    return %c0_i32, %arg0, %c0_i32_0 : i32, i32, i32
  }
}

</mosaic_0001>

<llo_original>
// kernel: augnet_forward.1
$region0: #{augnet_forward.1}
  #allocation0 [shape = 'u32[]', space=smem, size = 0x4, offset = 0x4, fixed_abs, tag = 'smem constant byte address 0x4 - core index']
  #allocation1 [shape = 'u32[144,128]{1,0:T(1,128)}', space=vmem, size = 0x12000, scoped, tag = 'internal scratch']
  %s0 = inlined_call_operand.vmem [shape: f32[3,2,256], index: 0, kind: input, shape index: {}]
  %s1 = inlined_call_operand.vmem [shape: f32[3,49], index: 1, kind: input, shape index: {}]
  %s2 = inlined_call_operand.vmem [shape: f32[3], index: 2, kind: input, shape index: {}]
  %s3 = inlined_call_operand.vmem [shape: f32[3], index: 3, kind: input, shape index: {}]
  %s4 = inlined_call_operand.vmem [shape: f32[3], index: 4, kind: input, shape index: {}]
  %s5 = inlined_call_operand.vmem [shape: f32[3,12], index: 5, kind: input, shape index: {}]
  %s6 = inlined_call_operand.vmem [shape: f32[12], index: 6, kind: input, shape index: {}]
  %s7 = inlined_call_operand.vmem [shape: f32[12,3], index: 7, kind: input, shape index: {}]
  %s8 = inlined_call_operand.vmem [shape: f32[3], index: 8, kind: input, shape index: {}]
  %s9 = inlined_call_operand.vmem [shape: f32[3], index: 9, kind: input, shape index: {}]
  %s10 = inlined_call_operand.vmem [shape: f32[3,6], index: 10, kind: input, shape index: {}]
  %s11 = inlined_call_operand.vmem [shape: f32[6], index: 11, kind: input, shape index: {}]
  %s12 = inlined_call_operand.vmem [shape: f32[3,2,256], index: 12, kind: output, shape index: {}]
  %s13 = sld [smem:[#allocation0]]
  $region102: #{augnet_forward.1} parent=0
    _
  %s15 = ssub.s32 1, %s13
  %s16 = scalar_select 0, %s15, %s13
  $region1: #{augnet_forward.1} parent=0
    #allocation2 [shape = 'u8[2048]{0}', space=smem, size = 0x800, scoped, tag = 'input window, operand 1, single buffered']
    #allocation3 [shape = 's32[1]{0}', space=sflag, size = 0x4, scoped, tag = 'scoped memory for augnet_forward.1']
    #allocation4 [shape = 'u8[512]{0}', space=smem, size = 0x200, scoped, tag = 'input window, operand 2, single buffered']
    #allocation5 [shape = 's32[1]{0}', space=sflag, size = 0x4, scoped, tag = 'scoped memory for augnet_forward.1']
    #allocation6 [shape = 'u8[512]{0}', space=smem, size = 0x200, scoped, tag = 'input window, operand 3, single buffered']
    #allocation7 [shape = 'u8[512]{0}', space=smem, size = 0x200, scoped, tag = 'input window, operand 4, single buffered']
    #allocation8 [shape = 's32[1]{0}', space=sflag, size = 0x4, scoped, tag = 'scoped memory for augnet_forward.1']
    #allocation9 [shape = 'u8[2048]{0}', space=smem, size = 0x800, scoped, tag = 'input window, operand 5, single buffered']
    #allocation10 [shape = 'u8[512]{0}', space=smem, size = 0x200, scoped, tag = 'input window, operand 6, single buffered']
    #allocation11 [shape = 's32[1]{0}', space=sflag, size = 0x4, scoped, tag = 'scoped memory for augnet_forward.1']
    #allocation12 [shape = 'u8[8192]{0}', space=smem, size = 0x2000, scoped, tag = 'input window, operand 7, single buffered']
    #allocation13 [shape = 'u8[512]{0}', space=smem, size = 0x200, scoped, tag = 'input window, operand 8, single buffered']
    #allocation14 [shape = 's32[1]{0}', space=sflag, size = 0x4, scoped, tag = 'scoped memory for augnet_forward.1']
    #allocation15 [shape = 'u8[512]{0}', space=smem, size = 0x200, scoped, tag = 'input window, operand 9, single buffered']
    #allocation16 [shape = 'u8[2048]{0}', space=smem, size = 0x800, scoped, tag = 'input window, operand 10, single buffered']
    #allocation17 [shape = 's32[1]{0}', space=sflag, size = 0x4, scoped, tag = 'scoped memory for augnet_forward.1']
    #allocation18 [shape = 'u8[512]{0}', space=smem, size = 0x200, scoped, tag = 'input window, operand 11, single buffered']
    %17 = vsyncpa [#allocation3], 0
    %18 = vsyncpa [#allocation5], 0
    %19 = vsyncpa [#allocation8], 0
    %20 = vsyncpa [#allocation11], 0
    %21 = vsyncpa [#allocation14], 0
    %22 = vsyncpa [#allocation17], 0
    // Predicated region
    $region2: #{augnet_forward.1} parent=1 // pred_check
      _
    $region3: #{augnet_forward.1} parent=1 // pred_check_branch
      %24 = sbr.rel (0) target = $region5
    $region4: #{augnet_forward.1} parent=1 // pred_region
      _
    $region5: #{augnet_forward.1} parent=1 // pred_fallthru
      _
    // Predicated region
    $region6: #{augnet_forward.1} parent=1 // pred_check
      _
    $region7: #{augnet_forward.1} parent=1 // pred_check_branch
      %26 = sbr.rel (0) target = $region9
    $region8: #{augnet_forward.1} parent=1 // pred_region
      %s28 = ssub.s32 64, 64
      %29 = vsyncadd [#allocation3], %s28
      %s31 = sshll.u32 %s1, 4
      %s32 = int_to_ptr.vmem [resolvable:$true] %s31
      %34 = dma.vmem_to_smem %s32, 64, [#allocation2], [#allocation3]
    $region9: #{augnet_forward.1} parent=1 // pred_fallthru
      _
    // Predicated region
    $region10: #{augnet_forward.1} parent=1 // pred_check
      _
    $region11: #{augnet_forward.1} parent=1 // pred_check_branch
      %36 = sbr.rel (0) target = $region13
    $region12: #{augnet_forward.1} parent=1 // pred_region
      %s38 = ssub.s32 16, 16
      %39 = vsyncadd [#allocation5], %s38
      %s41 = sshll.u32 %s2, 4
      %s42 = int_to_ptr.vmem [resolvable:$true] %s41
      %44 = dma.vmem_to_smem %s42, 16, [#allocation4], [#allocation5]
    $region13: #{augnet_forward.1} parent=1 // pred_fallthru
      _
    // Predicated region
    $region14: #{augnet_forward.1} parent=1 // pred_check
      _
    $region15: #{augnet_forward.1} parent=1 // pred_check_branch
      %46 = sbr.rel (0) target = $region17
    $region16: #{augnet_forward.1} parent=1 // pred_region
      %s48 = ssub.s32 16, 16
      %49 = vsyncadd [#allocation5], %s48
      %s51 = sshll.u32 %s3, 4
      %s52 = int_to_ptr.vmem [resolvable:$true] %s51
      %54 = dma.vmem_to_smem %s52, 16, [#allocation6], [#allocation5]
    $region17: #{augnet_forward.1} parent=1 // pred_fallthru
      _
    // Predicated region
    $region18: #{augnet_forward.1} parent=1 // pred_check
      _
    $region19: #{augnet_forward.1} parent=1 // pred_check_branch
      %56 = sbr.rel (0) target = $region21
    $region20: #{augnet_forward.1} parent=1 // pred_region
      %s58 = ssub.s32 16, 16
      %59 = vsyncadd [#allocation8], %s58
      %s61 = sshll.u32 %s4, 4
      %s62 = int_to_ptr.vmem [resolvable:$true] %s61
      %64 = dma.vmem_to_smem %s62, 16, [#allocation7], [#allocation8]
    $region21: #{augnet_forward.1} parent=1 // pred_fallthru
      _
    // Predicated region
    $region22: #{augnet_forward.1} parent=1 // pred_check
      _
    $region23: #{augnet_forward.1} parent=1 // pred_check_branch
      %66 = sbr.rel (0) target = $region25
    $region24: #{augnet_forward.1} parent=1 // pred_region
      %s68 = ssub.s32 64, 64
      %69 = vsyncadd [#allocation8], %s68
      %s71 = sshll.u32 %s5, 4
      %s72 = int_to_ptr.vmem [resolvable:$true] %s71
      %74 = dma.vmem_to_smem %s72, 64, [#allocation9], [#allocation8]
    $region25: #{augnet_forward.1} parent=1 // pred_fallthru
      _
    // Predicated region
    $region26: #{augnet_forward.1} parent=1 // pred_check
      _
    $region27: #{augnet_forward.1} parent=1 // pred_check_branch
      %76 = sbr.rel (0) target = $region29
    $region28: #{augnet_forward.1} parent=1 // pred_region
      %s78 = ssub.s32 16, 16
      %79 = vsyncadd [#allocation11], %s78
      %s81 = sshll.u32 %s6, 4
      %s82 = int_to_ptr.vmem [resolvable:$true] %s81
      %84 = dma.vmem_to_smem %s82, 16, [#allocation10], [#allocation11]
    $region29: #{augnet_forward.1} parent=1 // pred_fallthru
      _
    // Predicated region
    $region30: #{augnet_forward.1} parent=1 // pred_check
      _
    $region31: #{augnet_forward.1} parent=1 // pred_check_branch
      %86 = sbr.rel (0) target = $region33
    $region32: #{augnet_forward.1} parent=1 // pred_region
      %s88 = ssub.s32 256, 256
      %89 = vsyncadd [#allocation11], %s88
      %s90 = sshll.u32 %s7, 4
      %s91 = int_to_ptr.vmem [resolvable:$true] %s90
      %96 = dma.vmem_to_smem %s91, 256, [#allocation12], [#allocation11], 128, 128, 8
    $region33: #{augnet_forward.1} parent=1 // pred_fallthru
      _
    // Predicated region
    $region34: #{augnet_forward.1} parent=1 // pred_check
      _
    $region35: #{augnet_forward.1} parent=1 // pred_check_branch
      %98 = sbr.rel (0) target = $region37
    $region36: #{augnet_forward.1} parent=1 // pred_region
      %s100 = ssub.s32 16, 16
      %101 = vsyncadd [#allocation14], %s100
      %s103 = sshll.u32 %s8, 4
      %s104 = int_to_ptr.vmem [resolvable:$true] %s103
      %106 = dma.vmem_to_smem %s104, 16, [#allocation13], [#allocation14]
    $region37: #{augnet_forward.1} parent=1 // pred_fallthru
      _
    // Predicated region
    $region38: #{augnet_forward.1} parent=1 // pred_check
      _
    $region39: #{augnet_forward.1} parent=1 // pred_check_branch
      %108 = sbr.rel (0) target = $region41
    $region40: #{augnet_forward.1} parent=1 // pred_region
      %s110 = ssub.s32 16, 16
      %111 = vsyncadd [#allocation14], %s110
      %s113 = sshll.u32 %s9, 4
      %s114 = int_to_ptr.vmem [resolvable:$true] %s113
      %116 = dma.vmem_to_smem %s114, 16, [#allocation15], [#allocation14]
    $region41: #{augnet_forward.1} parent=1 // pred_fallthru
      _
    // Predicated region
    $region42: #{augnet_forward.1} parent=1 // pred_check
      _
    $region43: #{augnet_forward.1} parent=1 // pred_check_branch
      %118 = sbr.rel (0) target = $region45
    $region44: #{augnet_forward.1} parent=1 // pred_region
      %s120 = ssub.s32 64, 64
      %121 = vsyncadd [#allocation17], %s120
      %s123 = sshll.u32 %s10, 4
      %s124 = int_to_ptr.vmem [resolvable:$true] %s123
      %126 = dma.vmem_to_smem %s124, 64, [#allocation16], [#allocation17]
    $region45: #{augnet_forward.1} parent=1 // pred_fallthru
      _
    // Predicated region
    $region46: #{augnet_forward.1} parent=1 // pred_check
      _
    $region47: #{augnet_forward.1} parent=1 // pred_check_branch
      %128 = sbr.rel (0) target = $region49
    $region48: #{augnet_forward.1} parent=1 // pred_region
      %s130 = ssub.s32 16, 16
      %131 = vsyncadd [#allocation17], %s130
      %s133 = sshll.u32 %s11, 4
      %s134 = int_to_ptr.vmem [resolvable:$true] %s133
      %136 = dma.vmem_to_smem %s134, 16, [#allocation18], [#allocation17]
    $region49: #{augnet_forward.1} parent=1 // pred_fallthru
      _
    // Predicated region
    $region50: #{augnet_forward.1} parent=1 // pred_check
      _
    $region51: #{augnet_forward.1} parent=1 // pred_check_branch
      %138 = sbr.rel (0) target = $region53
    $region52: #{augnet_forward.1} parent=1 // pred_region
      %139 = dma.done [#allocation3], 64
    $region53: #{augnet_forward.1} parent=1 // pred_fallthru
      _
    // Predicated region
    $region54: #{augnet_forward.1} parent=1 // pred_check
      _
    $region55: #{augnet_forward.1} parent=1 // pred_check_branch
      %141 = sbr.rel (0) target = $region57
    $region56: #{augnet_forward.1} parent=1 // pred_region
      %142 = dma.done [#allocation5], 16
    $region57: #{augnet_forward.1} parent=1 // pred_fallthru
      _
    // Predicated region
    $region58: #{augnet_forward.1} parent=1 // pred_check
      _
    $region59: #{augnet_forward.1} parent=1 // pred_check_branch
      %144 = sbr.rel (0) target = $region61
    $region60: #{augnet_forward.1} parent=1 // pred_region
      %145 = dma.done [#allocation5], 16
    $region61: #{augnet_forward.1} parent=1 // pred_fallthru
      _
    // Predicated region
    $region62: #{augnet_forward.1} parent=1 // pred_check
      _
    $region63: #{augnet_forward.1} parent=1 // pred_check_branch
      %147 = sbr.rel (0) target = $region65
    $region64: #{augnet_forward.1} parent=1 // pred_region
      %148 = dma.done [#allocation8], 16
    $region65: #{augnet_forward.1} parent=1 // pred_fallthru
      _
    // Predicated region
    $region66: #{augnet_forward.1} parent=1 // pred_check
      _
    $region67: #{augnet_forward.1} parent=1 // pred_check_branch
      %150 = sbr.rel (0) target = $region69
    $region68: #{augnet_forward.1} parent=1 // pred_region
      %151 = dma.done [#allocation8], 64
    $region69: #{augnet_forward.1} parent=1 // pred_fallthru
      _
    // Predicated region
    $region70: #{augnet_forward.1} parent=1 // pred_check
      _
    $region71: #{augnet_forward.1} parent=1 // pred_check_branch
      %153 = sbr.rel (0) target = $region73
    $region72: #{augnet_forward.1} parent=1 // pred_region
      %154 = dma.done [#allocation11], 16
    $region73: #{augnet_forward.1} parent=1 // pred_fallthru
      _
    // Predicated region
    $region74: #{augnet_forward.1} parent=1 // pred_check
      _
    $region75: #{augnet_forward.1} parent=1 // pred_check_branch
      %156 = sbr.rel (0) target = $region77
    $region76: #{augnet_forward.1} parent=1 // pred_region
      %157 = dma.done [#allocation11], 256
    $region77: #{augnet_forward.1} parent=1 // pred_fallthru
      _
    // Predicated region
    $region78: #{augnet_forward.1} parent=1 // pred_check
      _
    $region79: #{augnet_forward.1} parent=1 // pred_check_branch
      %159 = sbr.rel (0) target = $region81
    $region80: #{augnet_forward.1} parent=1 // pred_region
      %160 = dma.done [#allocation14], 16
    $region81: #{augnet_forward.1} parent=1 // pred_fallthru
      _
    // Predicated region
    $region82: #{augnet_forward.1} parent=1 // pred_check
      _
    $region83: #{augnet_forward.1} parent=1 // pred_check_branch
      %162 = sbr.rel (0) target = $region85
    $region84: #{augnet_forward.1} parent=1 // pred_region
      %163 = dma.done [#allocation14], 16
    $region85: #{augnet_forward.1} parent=1 // pred_fallthru
      _
    // Predicated region
    $region86: #{augnet_forward.1} parent=1 // pred_check
      _
    $region87: #{augnet_forward.1} parent=1 // pred_check_branch
      %165 = sbr.rel (0) target = $region89
    $region88: #{augnet_forward.1} parent=1 // pred_region
      %166 = dma.done [#allocation17], 64
    $region89: #{augnet_forward.1} parent=1 // pred_fallthru
      _
    // Predicated region
    $region90: #{augnet_forward.1} parent=1 // pred_check
      _
    $region91: #{augnet_forward.1} parent=1 // pred_check_branch
      %168 = sbr.rel (0) target = $region93
    $region92: #{augnet_forward.1} parent=1 // pred_region
      %169 = dma.done [#allocation17], 16
    $region93: #{augnet_forward.1} parent=1 // pred_fallthru
      _
    %170 = sfence
    %s171 = sld [smem:[#allocation2]]
    %s172 = sld [smem:[#allocation2 + $0x1]]
    %s173 = sld [smem:[#allocation2 + $0x2]]
    %s174 = sld [smem:[#allocation2 + $0x3]]
    %s175 = sld [smem:[#allocation2 + $0x4]]
    %s176 = sld [smem:[#allocation2 + $0x5]]
    %s177 = sld [smem:[#allocation2 + $0x6]]
    %s178 = sld [smem:[#allocation2 + $0x7]]
    %s179 = sld [smem:[#allocation2 + $0x8]]
    %s180 = sld [smem:[#allocation2 + $0x9]]
    %s181 = sld [smem:[#allocation2 + $0xa]]
    %s182 = sld [smem:[#allocation2 + $0xb]]
    %s183 = sld [smem:[#allocation2 + $0xc]]
    %s184 = sld [smem:[#allocation2 + $0xd]]
    %s185 = sld [smem:[#allocation2 + $0xe]]
    %s186 = sld [smem:[#allocation2 + $0xf]]
    %s187 = sld [smem:[#allocation2 + $0x10]]
    %s188 = sld [smem:[#allocation2 + $0x11]]
    %s189 = sld [smem:[#allocation2 + $0x12]]
    %s190 = sld [smem:[#allocation2 + $0x13]]
    %s191 = sld [smem:[#allocation2 + $0x14]]
    %s192 = sld [smem:[#allocation2 + $0x15]]
    %s193 = sld [smem:[#allocation2 + $0x16]]
    %s194 = sld [smem:[#allocation2 + $0x17]]
    %s195 = sld [smem:[#allocation2 + $0x18]]
    %s196 = sld [smem:[#allocation2 + $0x19]]
    %s197 = sld [smem:[#allocation2 + $0x1a]]
    %s198 = sld [smem:[#allocation2 + $0x1b]]
    %s199 = sld [smem:[#allocation2 + $0x1c]]
    %s200 = sld [smem:[#allocation2 + $0x1d]]
    %s201 = sld [smem:[#allocation2 + $0x1e]]
    %s202 = sld [smem:[#allocation2 + $0x1f]]
    %s203 = sld [smem:[#allocation2 + $0x20]]
    %s204 = sld [smem:[#allocation2 + $0x21]]
    %s205 = sld [smem:[#allocation2 + $0x22]]
    %s206 = sld [smem:[#allocation2 + $0x23]]
    %s207 = sld [smem:[#allocation2 + $0x24]]
    %s208 = sld [smem:[#allocation2 + $0x25]]
    %s209 = sld [smem:[#allocation2 + $0x26]]
    %s210 = sld [smem:[#allocation2 + $0x27]]
    %s211 = sld [smem:[#allocation2 + $0x28]]
    %s212 = sld [smem:[#allocation2 + $0x29]]
    %s213 = sld [smem:[#allocation2 + $0x2a]]
    %s214 = sld [smem:[#allocation2 + $0x2b]]
    %s215 = sld [smem:[#allocation2 + $0x2c]]
    %s216 = sld [smem:[#allocation2 + $0x2d]]
    %s217 = sld [smem:[#allocation2 + $0x2e]]
    %s218 = sld [smem:[#allocation2 + $0x2f]]
    %s219 = sld [smem:[#allocation2 + $0x30]]
    %s220 = sld [smem:[#allocation2 + $0x80]]
    %s221 = sld [smem:[#allocation2 + $0x81]]
    %s222 = sld [smem:[#allocation2 + $0x82]]
    %s223 = sld [smem:[#allocation2 + $0x83]]
    %s224 = sld [smem:[#allocation2 + $0x84]]
    %s225 = sld [smem:[#allocation2 + $0x85]]
    %s226 = sld [smem:[#allocation2 + $0x86]]
    %s227 = sld [smem:[#allocation2 + $0x87]]
    %s228 = sld [smem:[#allocation2 + $0x88]]
    %s229 = sld [smem:[#allocation2 + $0x89]]
    %s230 = sld [smem:[#allocation2 + $0x8a]]
    %s231 = sld [smem:[#allocation2 + $0x8b]]
    %s232 = sld [smem:[#allocation2 + $0x8c]]
    %s233 = sld [smem:[#allocation2 + $0x8d]]
    %s234 = sld [smem:[#allocation2 + $0x8e]]
    %s235 = sld [smem:[#allocation2 + $0x8f]]
    %s236 = sld [smem:[#allocation2 + $0x90]]
    %s237 = sld [smem:[#allocation2 + $0x91]]
    %s238 = sld [smem:[#allocation2 + $0x92]]
    %s239 = sld [smem:[#allocation2 + $0x93]]
    %s240 = sld [smem:[#allocation2 + $0x94]]
    %s241 = sld [smem:[#allocation2 + $0x95]]
    %s242 = sld [smem:[#allocation2 + $0x96]]
    %s243 = sld [smem:[#allocation2 + $0x97]]
    %s244 = sld [smem:[#allocation2 + $0x98]]
    %s245 = sld [smem:[#allocation2 + $0x99]]
    %s246 = sld [smem:[#allocation2 + $0x9a]]
    %s247 = sld [smem:[#allocation2 + $0x9b]]
    %s248 = sld [smem:[#allocation2 + $0x9c]]
    %s249 = sld [smem:[#allocation2 + $0x9d]]
    %s250 = sld [smem:[#allocation2 + $0x9e]]
    %s251 = sld [smem:[#allocation2 + $0x9f]]
    %s252 = sld [smem:[#allocation2 + $0xa0]]
    %s253 = sld [smem:[#allocation2 + $0xa1]]
    %s254 = sld [smem:[#allocation2 + $0xa2]]
    %s255 = sld [smem:[#allocation2 + $0xa3]]
    %s256 = sld [smem:[#allocation2 + $0xa4]]
    %s257 = sld [smem:[#allocation2 + $0xa5]]
    %s258 = sld [smem:[#allocation2 + $0xa6]]
    %s259 = sld [smem:[#allocation2 + $0xa7]]
    %s260 = sld [smem:[#allocation2 + $0xa8]]
    %s261 = sld [smem:[#allocation2 + $0xa9]]
    %s262 = sld [smem:[#allocation2 + $0xaa]]
    %s263 = sld [smem:[#allocation2 + $0xab]]
    %s264 = sld [smem:[#allocation2 + $0xac]]
    %s265 = sld [smem:[#allocation2 + $0xad]]
    %s266 = sld [smem:[#allocation2 + $0xae]]
    %s267 = sld [smem:[#allocation2 + $0xaf]]
    %s268 = sld [smem:[#allocation2 + $0xb0]]
    %s269 = sld [smem:[#allocation2 + $0x100]]
    %s270 = sld [smem:[#allocation2 + $0x101]]
    %s271 = sld [smem:[#allocation2 + $0x102]]
    %s272 = sld [smem:[#allocation2 + $0x103]]
    %s273 = sld [smem:[#allocation2 + $0x104]]
    %s274 = sld [smem:[#allocation2 + $0x105]]
    %s275 = sld [smem:[#allocation2 + $0x106]]
    %s276 = sld [smem:[#allocation2 + $0x107]]
    %s277 = sld [smem:[#allocation2 + $0x108]]
    %s278 = sld [smem:[#allocation2 + $0x109]]
    %s279 = sld [smem:[#allocation2 + $0x10a]]
    %s280 = sld [smem:[#allocation2 + $0x10b]]
    %s281 = sld [smem:[#allocation2 + $0x10c]]
    %s282 = sld [smem:[#allocation2 + $0x10d]]
    %s283 = sld [smem:[#allocation2 + $0x10e]]
    %s284 = sld [smem:[#allocation2 + $0x10f]]
    %s285 = sld [smem:[#allocation2 + $0x110]]
    %s286 = sld [smem:[#allocation2 + $0x111]]
    %s287 = sld [smem:[#allocation2 + $0x112]]
    %s288 = sld [smem:[#allocation2 + $0x113]]
    %s289 = sld [smem:[#allocation2 + $0x114]]
    %s290 = sld [smem:[#allocation2 + $0x115]]
    %s291 = sld [smem:[#allocation2 + $0x116]]
    %s292 = sld [smem:[#allocation2 + $0x117]]
    %s293 = sld [smem:[#allocation2 + $0x118]]
    %s294 = sld [smem:[#allocation2 + $0x119]]
    %s295 = sld [smem:[#allocation2 + $0x11a]]
    %s296 = sld [smem:[#allocation2 + $0x11b]]
    %s297 = sld [smem:[#allocation2 + $0x11c]]
    %s298 = sld [smem:[#allocation2 + $0x11d]]
    %s299 = sld [smem:[#allocation2 + $0x11e]]
    %s300 = sld [smem:[#allocation2 + $0x11f]]
    %s301 = sld [smem:[#allocation2 + $0x120]]
    %s302 = sld [smem:[#allocation2 + $0x121]]
    %s303 = sld [smem:[#allocation2 + $0x122]]
    %s304 = sld [smem:[#allocation2 + $0x123]]
    %s305 = sld [smem:[#allocation2 + $0x124]]
    %s306 = sld [smem:[#allocation2 + $0x125]]
    %s307 = sld [smem:[#allocation2 + $0x126]]
    %s308 = sld [smem:[#allocation2 + $0x127]]
    %s309 = sld [smem:[#allocation2 + $0x128]]
    %s310 = sld [smem:[#allocation2 + $0x129]]
    %s311 = sld [smem:[#allocation2 + $0x12a]]
    %s312 = sld [smem:[#allocation2 + $0x12b]]
    %s313 = sld [smem:[#allocation2 + $0x12c]]
    %s314 = sld [smem:[#allocation2 + $0x12d]]
    %s315 = sld [smem:[#allocation2 + $0x12e]]
    %s316 = sld [smem:[#allocation2 + $0x12f]]
    %s317 = sld [smem:[#allocation2 + $0x130]]
    %s318 = sld [smem:[#allocation4]]
    %s319 = sld [smem:[#allocation4 + $0x1]]
    %s320 = sld [smem:[#allocation4 + $0x2]]
    %s321 = sld [smem:[#allocation6]]
    %s322 = sld [smem:[#allocation6 + $0x1]]
    %s323 = sld [smem:[#allocation6 + $0x2]]
    %s324 = sld [smem:[#allocation7]]
    %s325 = sld [smem:[#allocation7 + $0x1]]
    %s326 = sld [smem:[#allocation7 + $0x2]]
    %s327 = sld [smem:[#allocation9]]
    %s328 = sld [smem:[#allocation9 + $0x1]]
    %s329 = sld [smem:[#allocation9 + $0x2]]
    %s330 = sld [smem:[#allocation9 + $0x3]]
    %s331 = sld [smem:[#allocation9 + $0x4]]
    %s332 = sld [smem:[#allocation9 + $0x5]]
    %s333 = sld [smem:[#allocation9 + $0x6]]
    %s334 = sld [smem:[#allocation9 + $0x7]]
    %s335 = sld [smem:[#allocation9 + $0x8]]
    %s336 = sld [smem:[#allocation9 + $0x9]]
    %s337 = sld [smem:[#allocation9 + $0xa]]
    %s338 = sld [smem:[#allocation9 + $0xb]]
    %s339 = sld [smem:[#allocation9 + $0x80]]
    %s340 = sld [smem:[#allocation9 + $0x81]]
    %s341 = sld [smem:[#allocation9 + $0x82]]
    %s342 = sld [smem:[#allocation9 + $0x83]]
    %s343 = sld [smem:[#allocation9 + $0x84]]
    %s344 = sld [smem:[#allocation9 + $0x85]]
    %s345 = sld [smem:[#allocation9 + $0x86]]
    %s346 = sld [smem:[#allocation9 + $0x87]]
    %s347 = sld [smem:[#allocation9 + $0x88]]
    %s348 = sld [smem:[#allocation9 + $0x89]]
    %s349 = sld [smem:[#allocation9 + $0x8a]]
    %s350 = sld [smem:[#allocation9 + $0x8b]]
    %s351 = sld [smem:[#allocation9 + $0x100]]
    %s352 = sld [smem:[#allocation9 + $0x101]]
    %s353 = sld [smem:[#allocation9 + $0x102]]
    %s354 = sld [smem:[#allocation9 + $0x103]]
    %s355 = sld [smem:[#allocation9 + $0x104]]
    %s356 = sld [smem:[#allocation9 + $0x105]]
    %s357 = sld [smem:[#allocation9 + $0x106]]
    %s358 = sld [smem:[#allocation9 + $0x107]]
    %s359 = sld [smem:[#allocation9 + $0x108]]
    %s360 = sld [smem:[#allocation9 + $0x109]]
    %s361 = sld [smem:[#allocation9 + $0x10a]]
    %s362 = sld [smem:[#allocation9 + $0x10b]]
    %s363 = sld [smem:[#allocation10]]
    %s364 = sld [smem:[#allocation10 + $0x1]]
    %s365 = sld [smem:[#allocation10 + $0x2]]
    %s366 = sld [smem:[#allocation10 + $0x3]]
    %s367 = sld [smem:[#allocation10 + $0x4]]
    %s368 = sld [smem:[#allocation10 + $0x5]]
    %s369 = sld [smem:[#allocation10 + $0x6]]
    %s370 = sld [smem:[#allocation10 + $0x7]]
    %s371 = sld [smem:[#allocation10 + $0x8]]
    %s372 = sld [smem:[#allocation10 + $0x9]]
    %s373 = sld [smem:[#allocation10 + $0xa]]
    %s374 = sld [smem:[#allocation10 + $0xb]]
    %s375 = sld [smem:[#allocation12]]
    %s376 = sld [smem:[#allocation12 + $0x1]]
    %s377 = sld [smem:[#allocation12 + $0x2]]
    %s378 = sld [smem:[#allocation12 + $0x80]]
    %s379 = sld [smem:[#allocation12 + $0x81]]
    %s380 = sld [smem:[#allocation12 + $0x82]]
    %s381 = sld [smem:[#allocation12 + $0x100]]
    %s382 = sld [smem:[#allocation12 + $0x101]]
    %s383 = sld [smem:[#allocation12 + $0x102]]
    %s384 = sld [smem:[#allocation12 + $0x180]]
    %s385 = sld [smem:[#allocation12 + $0x181]]
    %s386 = sld [smem:[#allocation12 + $0x182]]
    %s387 = sld [smem:[#allocation12 + $0x200]]
    %s388 = sld [smem:[#allocation12 + $0x201]]
    %s389 = sld [smem:[#allocation12 + $0x202]]
    %s390 = sld [smem:[#allocation12 + $0x280]]
    %s391 = sld [smem:[#allocation12 + $0x281]]
    %s392 = sld [smem:[#allocation12 + $0x282]]
    %s393 = sld [smem:[#allocation12 + $0x300]]
    %s394 = sld [smem:[#allocation12 + $0x301]]
    %s395 = sld [smem:[#allocation12 + $0x302]]
    %s396 = sld [smem:[#allocation12 + $0x380]]
    %s397 = sld [smem:[#allocation12 + $0x381]]
    %s398 = sld [smem:[#allocation12 + $0x382]]
    %s399 = sld [smem:[#allocation12 + $0x400]]
    %s400 = sld [smem:[#allocation12 + $0x401]]
    %s401 = sld [smem:[#allocation12 + $0x402]]
    %s402 = sld [smem:[#allocation12 + $0x480]]
    %s403 = sld [smem:[#allocation12 + $0x481]]
    %s404 = sld [smem:[#allocation12 + $0x482]]
    %s405 = sld [smem:[#allocation12 + $0x500]]
    %s406 = sld [smem:[#allocation12 + $0x501]]
    %s407 = sld [smem:[#allocation12 + $0x502]]
    %s408 = sld [smem:[#allocation12 + $0x580]]
    %s409 = sld [smem:[#allocation12 + $0x581]]
    %s410 = sld [smem:[#allocation12 + $0x582]]
    %s411 = sld [smem:[#allocation13]]
    %s412 = sld [smem:[#allocation13 + $0x1]]
    %s413 = sld [smem:[#allocation13 + $0x2]]
    %s414 = sld [smem:[#allocation15]]
    %s415 = sld [smem:[#allocation15 + $0x1]]
    %s416 = sld [smem:[#allocation15 + $0x2]]
    %s417 = sld [smem:[#allocation16]]
    %s418 = sld [smem:[#allocation16 + $0x1]]
    %s419 = sld [smem:[#allocation16 + $0x2]]
    %s420 = sld [smem:[#allocation16 + $0x3]]
    %s421 = sld [smem:[#allocation16 + $0x4]]
    %s422 = sld [smem:[#allocation16 + $0x5]]
    %s423 = sld [smem:[#allocation16 + $0x80]]
    %s424 = sld [smem:[#allocation16 + $0x81]]
    %s425 = sld [smem:[#allocation16 + $0x82]]
    %s426 = sld [smem:[#allocation16 + $0x83]]
    %s427 = sld [smem:[#allocation16 + $0x84]]
    %s428 = sld [smem:[#allocation16 + $0x85]]
    %s429 = sld [smem:[#allocation16 + $0x100]]
    %s430 = sld [smem:[#allocation16 + $0x101]]
    %s431 = sld [smem:[#allocation16 + $0x102]]
    %s432 = sld [smem:[#allocation16 + $0x103]]
    %s433 = sld [smem:[#allocation16 + $0x104]]
    %s434 = sld [smem:[#allocation16 + $0x105]]
    %s435 = sld [smem:[#allocation18]]
    %s436 = sld [smem:[#allocation18 + $0x1]]
    %s437 = sld [smem:[#allocation18 + $0x2]]
    %s438 = sld [smem:[#allocation18 + $0x3]]
    %s439 = sld [smem:[#allocation18 + $0x4]]
    %s440 = sld [smem:[#allocation18 + $0x5]]
    %v441 = vlaneseq
    %v442 = vand.u32 %v441, 127
    %v443 = vadd.s32 %v442, 128
    %v444 = vand.u32 %v442, 15
    %v445 = vand.u32 %v443, 15
    %vm446 = vcmp.le.s32.totalorder %v444, 14
    %vm447 = vcmp.le.s32.totalorder %v445, 14
    %vm448 = vcmp.ge.s32.totalorder %v444, 1
    %vm449 = vcmp.ge.s32.totalorder %v445, 1
    %vm450 = vcmp.lt.s32.totalorder %v442, 240
    %vm451 = vcmp.lt.s32.totalorder %v443, 240
    %vm452 = vcmp.ge.s32.totalorder %v442, 16
    %vm453 = vcmp.ge.s32.totalorder %v443, 16
    %vm454 = vcmp.le.s32.totalorder %v444, 13
    %vm455 = vcmp.le.s32.totalorder %v445, 13
    %vm456 = vcmp.ge.s32.totalorder %v444, 2
    %vm457 = vcmp.ge.s32.totalorder %v445, 2
    %vm458 = vcmp.lt.s32.totalorder %v442, 224
    %vm459 = vcmp.lt.s32.totalorder %v443, 224
    %vm460 = vcmp.ge.s32.totalorder %v442, 32
    %vm461 = vcmp.ge.s32.totalorder %v443, 32
    %vm462 = vcmp.le.s32.totalorder %v444, 12
    %vm463 = vcmp.le.s32.totalorder %v445, 12
    %vm464 = vcmp.ge.s32.totalorder %v444, 3
    %vm465 = vcmp.ge.s32.totalorder %v445, 3
    %vm466 = vcmp.lt.s32.totalorder %v442, 208
    %vm467 = vcmp.lt.s32.totalorder %v443, 208
    %vm468 = vcmp.ge.s32.totalorder %v442, 48
    %vm469 = vcmp.ge.s32.totalorder %v443, 48
    %v470 = vld [vmem:[%s0] sm:$0xf]
    %s471 = scalar_lea.vmem %s0, 4
    %v472 = vld [vmem:[%s471] sm:$0xf]
    %s473 = scalar_lea.vmem %s0, 8
    %v474 = vld [vmem:[%s473] sm:$0xf]
    %v477 = vunpack.c.l.s4 1983009808
    %v478 = vunpack.c.0.s8 %v477
    %v479 = vlaneseq
    %v480 = vshrl.u32 %v479, 7
    %v481 = vsub.s32 %v478, %v480
    %v482 = vrot.slane %v470, %v481
    %v483 = vcombine.high %v482, %v482
    %486 = vrot.lane.b32.xlu0 %v482, 3
    %v487 = vpop.permute.xlu0 %486
    %488 = vrot.lane.b32.xlu0 %v483, 3
    %v489 = vpop.permute.xlu0 %488
    %vm490 = vcmp.lt.s32.totalorder %v442, 3
    %v491 = vsel %vm490, %v487, %v489
    %v492 = vsel %vm490, %v489, %v487
    %v493 = vsel %vm464, %v492, 0.0
    %v494 = vsel %vm465, %v491, 0.0
    %495 = vrot.lane.b32.xlu0 %v482, 2
    %v496 = vpop.permute.xlu0 %495
    %497 = vrot.lane.b32.xlu0 %v483, 2
    %v498 = vpop.permute.xlu0 %497
    %vm499 = vcmp.lt.s32.totalorder %v442, 2
    %v500 = vsel %vm499, %v496, %v498
    %v501 = vsel %vm499, %v498, %v496
    %v502 = vsel %vm456, %v501, 0.0
    %v503 = vsel %vm457, %v500, 0.0
    %504 = vrot.lane.b32.xlu0 %v482, 1
    %v505 = vpop.permute.xlu0 %504
    %506 = vrot.lane.b32.xlu0 %v483, 1
    %v507 = vpop.permute.xlu0 %506
    %vm508 = vcmp.lt.s32.totalorder %v442, 1
    %v509 = vsel %vm508, %v505, %v507
    %v510 = vsel %vm508, %v507, %v505
    %v511 = vsel %vm448, %v510, 0.0
    %v512 = vsel %vm449, %v509, 0.0
    %513 = vrot.lane.b32.xlu0 %v482, 127
    %v514 = vpop.permute.xlu0 %513
    %515 = vrot.lane.b32.xlu0 %v483, 127
    %v516 = vpop.permute.xlu0 %515
    %vm517 = vcmp.lt.s32.totalorder %v442, 127
    %v518 = vsel %vm517, %v514, %v516
    %v519 = vsel %vm517, %v516, %v514
    %v520 = vsel %vm446, %v518, 0.0
    %v521 = vsel %vm447, %v519, 0.0
    %522 = vrot.lane.b32.xlu0 %v482, 126
    %v523 = vpop.permute.xlu0 %522
    %524 = vrot.lane.b32.xlu0 %v483, 126
    %v525 = vpop.permute.xlu0 %524
    %vm526 = vcmp.lt.s32.totalorder %v442, 126
    %v527 = vsel %vm526, %v523, %v525
    %v528 = vsel %vm526, %v525, %v523
    %v529 = vsel %vm454, %v527, 0.0
    %v530 = vsel %vm455, %v528, 0.0
    %531 = vrot.lane.b32.xlu0 %v482, 125
    %v532 = vpop.permute.xlu0 %531
    %533 = vrot.lane.b32.xlu0 %v483, 125
    %v534 = vpop.permute.xlu0 %533
    %vm535 = vcmp.lt.s32.totalorder %v442, 125
    %v536 = vsel %vm535, %v532, %v534
    %v537 = vsel %vm535, %v534, %v532
    %v538 = vsel %vm462, %v536, 0.0
    %v539 = vsel %vm463, %v537, 0.0
    %v540 = vstv %s171
    %v541 = vmul.f32 %v493, %v540
    %v542 = vmul.f32 %v494, %v540
    %v543 = vstv %s172
    %v544 = vmul.f32 %v502, %v543
    %v545 = vmul.f32 %v503, %v543
    %v546 = vadd.f32 %v541, %v544
    %v547 = vadd.f32 %v542, %v545
    %v548 = vstv %s173
    %v549 = vmul.f32 %v511, %v548
    %v550 = vmul.f32 %v512, %v548
    %v551 = vadd.f32 %v546, %v549
    %v552 = vadd.f32 %v547, %v550
    %v553 = vstv %s174
    %v554 = vmul.f32 %v470, %v553
    %v557 = vunpack.c.l.s4 1983009808
    %v558 = vunpack.c.0.s8 %v557
    %v559 = vlaneseq
    %v560 = vshrl.u32 %v559, 7
    %v561 = vsub.s32 %v558, %v560
    %v562 = vrot.slane %v554, %v561
    %v563 = vcombine.high %v562, %v562
    %v566 = vadd.f32 %v551, %v562
    %v567 = vadd.f32 %v552, %v563
    %v568 = vstv %s175
    %v569 = vmul.f32 %v520, %v568
    %v570 = vmul.f32 %v521, %v568
    %v571 = vadd.f32 %v566, %v569
    %v572 = vadd.f32 %v567, %v570
    %v573 = vstv %s176
    %v574 = vmul.f32 %v529, %v573
    %v575 = vmul.f32 %v530, %v573
    %v576 = vadd.f32 %v571, %v574
    %v577 = vadd.f32 %v572, %v575
    %v578 = vstv %s177
    %v579 = vmul.f32 %v538, %v578
    %v580 = vmul.f32 %v539, %v578
    %v581 = vadd.f32 %v576, %v579
    %v582 = vadd.f32 %v577, %v580
    %583 = vrot.lane.b32.xlu0 %v581, 48
    %v584 = vpop.permute.xlu0 %583
    %585 = vrot.lane.b32.xlu0 %v582, 48
    %v586 = vpop.permute.xlu0 %585
    %vm587 = vcmp.lt.s32.totalorder %v442, 48
    %v588 = vsel %vm587, %v584, %v586
    %v589 = vsel %vm587, %v586, %v584
    %v590 = vsel %vm468, %v589, 0.0
    %v591 = vsel %vm469, %v588, 0.0
    %v592 = vstv %s178
    %v593 = vmul.f32 %v493, %v592
    %v594 = vmul.f32 %v494, %v592
    %v595 = vstv %s179
    %v596 = vmul.f32 %v502, %v595
    %v597 = vmul.f32 %v503, %v595
    %v598 = vadd.f32 %v593, %v596
    %v599 = vadd.f32 %v594, %v597
    %v600 = vstv %s180
    %v601 = vmul.f32 %v511, %v600
    %v602 = vmul.f32 %v512, %v600
    %v603 = vadd.f32 %v598, %v601
    %v604 = vadd.f32 %v599, %v602
    %v605 = vstv %s181
    %v606 = vmul.f32 %v470, %v605
    %v609 = vunpack.c.l.s4 1983009808
    %v610 = vunpack.c.0.s8 %v609
    %v611 = vlaneseq
    %v612 = vshrl.u32 %v611, 7
    %v613 = vsub.s32 %v610, %v612
    %v614 = vrot.slane %v606, %v613
    %v615 = vcombine.high %v614, %v614
    %v618 = vadd.f32 %v603, %v614
    %v619 = vadd.f32 %v604, %v615
    %v620 = vstv %s182
    %v621 = vmul.f32 %v520, %v620
    %v622 = vmul.f32 %v521, %v620
    %v623 = vadd.f32 %v618, %v621
    %v624 = vadd.f32 %v619, %v622
    %v625 = vstv %s183
    %v626 = vmul.f32 %v529, %v625
    %v627 = vmul.f32 %v530, %v625
    %v628 = vadd.f32 %v623, %v626
    %v629 = vadd.f32 %v624, %v627
    %v630 = vstv %s184
    %v631 = vmul.f32 %v538, %v630
    %v632 = vmul.f32 %v539, %v630
    %v633 = vadd.f32 %v628, %v631
    %v634 = vadd.f32 %v629, %v632
    %635 = vrot.lane.b32.xlu0 %v633, 32
    %v636 = vpop.permute.xlu0 %635
    %637 = vrot.lane.b32.xlu0 %v634, 32
    %v638 = vpop.permute.xlu0 %637
    %vm639 = vcmp.lt.s32.totalorder %v442, 32
    %v640 = vsel %vm639, %v636, %v638
    %v641 = vsel %vm639, %v638, %v636
    %v642 = vsel %vm460, %v641, 0.0
    %v643 = vsel %vm461, %v640, 0.0
    %v644 = vadd.f32 %v590, %v642
    %v645 = vadd.f32 %v591, %v643
    %v646 = vstv %s185
    %v647 = vmul.f32 %v493, %v646
    %v648 = vmul.f32 %v494, %v646
    %v649 = vstv %s186
    %v650 = vmul.f32 %v502, %v649
    %v651 = vmul.f32 %v503, %v649
    %v652 = vadd.f32 %v647, %v650
    %v653 = vadd.f32 %v648, %v651
    %v654 = vstv %s187
    %v655 = vmul.f32 %v511, %v654
    %v656 = vmul.f32 %v512, %v654
    %v657 = vadd.f32 %v652, %v655
    %v658 = vadd.f32 %v653, %v656
    %v659 = vstv %s188
    %v660 = vmul.f32 %v470, %v659
    %v663 = vunpack.c.l.s4 1983009808
    %v664 = vunpack.c.0.s8 %v663
    %v665 = vlaneseq
    %v666 = vshrl.u32 %v665, 7
    %v667 = vsub.s32 %v664, %v666
    %v668 = vrot.slane %v660, %v667
    %v669 = vcombine.high %v668, %v668
    %v672 = vadd.f32 %v657, %v668
    %v673 = vadd.f32 %v658, %v669
    %v674 = vstv %s189
    %v675 = vmul.f32 %v520, %v674
    %v676 = vmul.f32 %v521, %v674
    %v677 = vadd.f32 %v672, %v675
    %v678 = vadd.f32 %v673, %v676
    %v679 = vstv %s190
    %v680 = vmul.f32 %v529, %v679
    %v681 = vmul.f32 %v530, %v679
    %v682 = vadd.f32 %v677, %v680
    %v683 = vadd.f32 %v678, %v681
    %v684 = vstv %s191
    %v685 = vmul.f32 %v538, %v684
    %v686 = vmul.f32 %v539, %v684
    %v687 = vadd.f32 %v682, %v685
    %v688 = vadd.f32 %v683, %v686
    %689 = vrot.lane.b32.xlu0 %v687, 16
    %v690 = vpop.permute.xlu0 %689
    %691 = vrot.lane.b32.xlu0 %v688, 16
    %v692 = vpop.permute.xlu0 %691
    %vm693 = vcmp.lt.s32.totalorder %v442, 16
    %v694 = vsel %vm693, %v690, %v692
    %v695 = vsel %vm693, %v692, %v690
    %v696 = vsel %vm452, %v695, 0.0
    %v697 = vsel %vm453, %v694, 0.0
    %v698 = vadd.f32 %v644, %v696
    %v699 = vadd.f32 %v645, %v697
    %v700 = vstv %s192
    %v701 = vmul.f32 %v493, %v700
    %v702 = vmul.f32 %v494, %v700
    %v703 = vstv %s193
    %v704 = vmul.f32 %v502, %v703
    %v705 = vmul.f32 %v503, %v703
    %v706 = vadd.f32 %v701, %v704
    %v707 = vadd.f32 %v702, %v705
    %v708 = vstv %s194
    %v709 = vmul.f32 %v511, %v708
    %v710 = vmul.f32 %v512, %v708
    %v711 = vadd.f32 %v706, %v709
    %v712 = vadd.f32 %v707, %v710
    %v713 = vstv %s195
    %v714 = vmul.f32 %v470, %v713
    %v717 = vunpack.c.l.s4 1983009808
    %v718 = vunpack.c.0.s8 %v717
    %v719 = vlaneseq
    %v720 = vshrl.u32 %v719, 7
    %v721 = vsub.s32 %v718, %v720
    %v722 = vrot.slane %v714, %v721
    %v723 = vcombine.high %v722, %v722
    %v726 = vadd.f32 %v711, %v722
    %v727 = vadd.f32 %v712, %v723
    %v728 = vstv %s196
    %v729 = vmul.f32 %v520, %v728
    %v730 = vmul.f32 %v521, %v728
    %v731 = vadd.f32 %v726, %v729
    %v732 = vadd.f32 %v727, %v730
    %v733 = vstv %s197
    %v734 = vmul.f32 %v529, %v733
    %v735 = vmul.f32 %v530, %v733
    %v736 = vadd.f32 %v731, %v734
    %v737 = vadd.f32 %v732, %v735
    %v738 = vstv %s198
    %v739 = vmul.f32 %v538, %v738
    %v740 = vmul.f32 %v539, %v738
    %v741 = vadd.f32 %v736, %v739
    %v742 = vadd.f32 %v737, %v740
    %v743 = vadd.f32 %v698, %v741
    %v744 = vadd.f32 %v699, %v742
    %v745 = vstv %s199
    %v746 = vmul.f32 %v493, %v745
    %v747 = vmul.f32 %v494, %v745
    %v748 = vstv %s200
    %v749 = vmul.f32 %v502, %v748
    %v750 = vmul.f32 %v503, %v748
    %v751 = vadd.f32 %v746, %v749
    %v752 = vadd.f32 %v747, %v750
    %v753 = vstv %s201
    %v754 = vmul.f32 %v511, %v753
    %v755 = vmul.f32 %v512, %v753
    %v756 = vadd.f32 %v751, %v754
    %v757 = vadd.f32 %v752, %v755
    %v758 = vstv %s202
    %v759 = vmul.f32 %v470, %v758
    %v762 = vunpack.c.l.s4 1983009808
    %v763 = vunpack.c.0.s8 %v762
    %v764 = vlaneseq
    %v765 = vshrl.u32 %v764, 7
    %v766 = vsub.s32 %v763, %v765
    %v767 = vrot.slane %v759, %v766
    %v768 = vcombine.high %v767, %v767
    %v771 = vadd.f32 %v756, %v767
    %v772 = vadd.f32 %v757, %v768
    %v773 = vstv %s203
    %v774 = vmul.f32 %v520, %v773
    %v775 = vmul.f32 %v521, %v773
    %v776 = vadd.f32 %v771, %v774
    %v777 = vadd.f32 %v772, %v775
    %v778 = vstv %s204
    %v779 = vmul.f32 %v529, %v778
    %v780 = vmul.f32 %v530, %v778
    %v781 = vadd.f32 %v776, %v779
    %v782 = vadd.f32 %v777, %v780
    %v783 = vstv %s205
    %v784 = vmul.f32 %v538, %v783
    %v785 = vmul.f32 %v539, %v783
    %v786 = vadd.f32 %v781, %v784
    %v787 = vadd.f32 %v782, %v785
    %788 = vrot.lane.b32.xlu0 %v786, 112
    %v789 = vpop.permute.xlu0 %788
    %790 = vrot.lane.b32.xlu0 %v787, 112
    %v791 = vpop.permute.xlu0 %790
    %vm792 = vcmp.lt.s32.totalorder %v442, 112
    %v793 = vsel %vm792, %v789, %v791
    %v794 = vsel %vm792, %v791, %v789
    %v795 = vsel %vm450, %v793, 0.0
    %v796 = vsel %vm451, %v794, 0.0
    %v797 = vadd.f32 %v743, %v795
    %v798 = vadd.f32 %v744, %v796
    %v799 = vstv %s206
    %v800 = vmul.f32 %v493, %v799
    %v801 = vmul.f32 %v494, %v799
    %v802 = vstv %s207
    %v803 = vmul.f32 %v502, %v802
    %v804 = vmul.f32 %v503, %v802
    %v805 = vadd.f32 %v800, %v803
    %v806 = vadd.f32 %v801, %v804
    %v807 = vstv %s208
    %v808 = vmul.f32 %v511, %v807
    %v809 = vmul.f32 %v512, %v807
    %v810 = vadd.f32 %v805, %v808
    %v811 = vadd.f32 %v806, %v809
    %v812 = vstv %s209
    %v813 = vmul.f32 %v470, %v812
    %v816 = vunpack.c.l.s4 1983009808
    %v817 = vunpack.c.0.s8 %v816
    %v818 = vlaneseq
    %v819 = vshrl.u32 %v818, 7
    %v820 = vsub.s32 %v817, %v819
    %v821 = vrot.slane %v813, %v820
    %v822 = vcombine.high %v821, %v821
    %v825 = vadd.f32 %v810, %v821
    %v826 = vadd.f32 %v811, %v822
    %v827 = vstv %s210
    %v828 = vmul.f32 %v520, %v827
    %v829 = vmul.f32 %v521, %v827
    %v830 = vadd.f32 %v825, %v828
    %v831 = vadd.f32 %v826, %v829
    %v832 = vstv %s211
    %v833 = vmul.f32 %v529, %v832
    %v834 = vmul.f32 %v530, %v832
    %v835 = vadd.f32 %v830, %v833
    %v836 = vadd.f32 %v831, %v834
    %v837 = vstv %s212
    %v838 = vmul.f32 %v538, %v837
    %v839 = vmul.f32 %v539, %v837
    %v840 = vadd.f32 %v835, %v838
    %v841 = vadd.f32 %v836, %v839
    %842 = vrot.lane.b32.xlu0 %v840, 96
    %v843 = vpop.permute.xlu0 %842
    %844 = vrot.lane.b32.xlu0 %v841, 96
    %v845 = vpop.permute.xlu0 %844
    %vm846 = vcmp.lt.s32.totalorder %v442, 96
    %v847 = vsel %vm846, %v843, %v845
    %v848 = vsel %vm846, %v845, %v843
    %v849 = vsel %vm458, %v847, 0.0
    %v850 = vsel %vm459, %v848, 0.0
    %v851 = vadd.f32 %v797, %v849
    %v852 = vadd.f32 %v798, %v850
    %v853 = vstv %s213
    %v854 = vmul.f32 %v493, %v853
    %v855 = vmul.f32 %v494, %v853
    %v856 = vstv %s214
    %v857 = vmul.f32 %v502, %v856
    %v858 = vmul.f32 %v503, %v856
    %v859 = vadd.f32 %v854, %v857
    %v860 = vadd.f32 %v855, %v858
    %v861 = vstv %s215
    %v862 = vmul.f32 %v511, %v861
    %v863 = vmul.f32 %v512, %v861
    %v864 = vadd.f32 %v859, %v862
    %v865 = vadd.f32 %v860, %v863
    %v866 = vstv %s216
    %v867 = vmul.f32 %v470, %v866
    %v870 = vunpack.c.l.s4 1983009808
    %v871 = vunpack.c.0.s8 %v870
    %v872 = vlaneseq
    %v873 = vshrl.u32 %v872, 7
    %v874 = vsub.s32 %v871, %v873
    %v875 = vrot.slane %v867, %v874
    %v876 = vcombine.high %v875, %v875
    %v879 = vadd.f32 %v864, %v875
    %v880 = vadd.f32 %v865, %v876
    %v881 = vstv %s217
    %v882 = vmul.f32 %v520, %v881
    %v883 = vmul.f32 %v521, %v881
    %v884 = vadd.f32 %v879, %v882
    %v885 = vadd.f32 %v880, %v883
    %v886 = vstv %s218
    %v887 = vmul.f32 %v529, %v886
    %v888 = vmul.f32 %v530, %v886
    %v889 = vadd.f32 %v884, %v887
    %v890 = vadd.f32 %v885, %v888
    %v891 = vstv %s219
    %v892 = vmul.f32 %v538, %v891
    %v893 = vmul.f32 %v539, %v891
    %v894 = vadd.f32 %v889, %v892
    %v895 = vadd.f32 %v890, %v893
    %896 = vrot.lane.b32.xlu0 %v894, 80
    %v897 = vpop.permute.xlu0 %896
    %898 = vrot.lane.b32.xlu0 %v895, 80
    %v899 = vpop.permute.xlu0 %898
    %vm900 = vcmp.lt.s32.totalorder %v442, 80
    %v901 = vsel %vm900, %v897, %v899
    %v902 = vsel %vm900, %v899, %v897
    %v903 = vsel %vm466, %v901, 0.0
    %v904 = vsel %vm467, %v902, 0.0
    %v905 = vadd.f32 %v851, %v903
    %v906 = vadd.f32 %v852, %v904
    %v907 = vstv %s318
    %v908 = vadd.f32 %v905, %v907
    %v909 = vadd.f32 %v906, %v907
    %v912 = vunpack.c.l.s4 1983009808
    %v913 = vunpack.c.0.s8 %v912
    %v914 = vlaneseq
    %v915 = vshrl.u32 %v914, 7
    %v916 = vsub.s32 %v913, %v915
    %v917 = vrot.slane %v472, %v916
    %v918 = vcombine.high %v917, %v917
    %921 = vrot.lane.b32.xlu0 %v917, 3
    %v922 = vpop.permute.xlu0 %921
    %923 = vrot.lane.b32.xlu0 %v918, 3
    %v924 = vpop.permute.xlu0 %923
    %v925 = vsel %vm490, %v922, %v924
    %v926 = vsel %vm490, %v924, %v922
    %v927 = vsel %vm464, %v926, 0.0
    %v928 = vsel %vm465, %v925, 0.0
    %929 = vrot.lane.b32.xlu0 %v917, 2
    %v930 = vpop.permute.xlu0 %929
    %931 = vrot.lane.b32.xlu0 %v918, 2
    %v932 = vpop.permute.xlu0 %931
    %v933 = vsel %vm499, %v930, %v932
    %v934 = vsel %vm499, %v932, %v930
    %v935 = vsel %vm456, %v934, 0.0
    %v936 = vsel %vm457, %v933, 0.0
    %937 = vrot.lane.b32.xlu0 %v917, 1
    %v938 = vpop.permute.xlu0 %937
    %939 = vrot.lane.b32.xlu0 %v918, 1
    %v940 = vpop.permute.xlu0 %939
    %v941 = vsel %vm508, %v938, %v940
    %v942 = vsel %vm508, %v940, %v938
    %v943 = vsel %vm448, %v942, 0.0
    %v944 = vsel %vm449, %v941, 0.0
    %945 = vrot.lane.b32.xlu0 %v917, 127
    %v946 = vpop.permute.xlu0 %945
    %947 = vrot.lane.b32.xlu0 %v918, 127
    %v948 = vpop.permute.xlu0 %947
    %v949 = vsel %vm517, %v946, %v948
    %v950 = vsel %vm517, %v948, %v946
    %v951 = vsel %vm446, %v949, 0.0
    %v952 = vsel %vm447, %v950, 0.0
    %953 = vrot.lane.b32.xlu0 %v917, 126
    %v954 = vpop.permute.xlu0 %953
    %955 = vrot.lane.b32.xlu0 %v918, 126
    %v956 = vpop.permute.xlu0 %955
    %v957 = vsel %vm526, %v954, %v956
    %v958 = vsel %vm526, %v956, %v954
    %v959 = vsel %vm454, %v957, 0.0
    %v960 = vsel %vm455, %v958, 0.0
    %961 = vrot.lane.b32.xlu0 %v917, 125
    %v962 = vpop.permute.xlu0 %961
    %963 = vrot.lane.b32.xlu0 %v918, 125
    %v964 = vpop.permute.xlu0 %963
    %v965 = vsel %vm535, %v962, %v964
    %v966 = vsel %vm535, %v964, %v962
    %v967 = vsel %vm462, %v965, 0.0
    %v968 = vsel %vm463, %v966, 0.0
    %v969 = vstv %s220
    %v970 = vmul.f32 %v927, %v969
    %v971 = vmul.f32 %v928, %v969
    %v972 = vstv %s221
    %v973 = vmul.f32 %v935, %v972
    %v974 = vmul.f32 %v936, %v972
    %v975 = vadd.f32 %v970, %v973
    %v976 = vadd.f32 %v971, %v974
    %v977 = vstv %s222
    %v978 = vmul.f32 %v943, %v977
    %v979 = vmul.f32 %v944, %v977
    %v980 = vadd.f32 %v975, %v978
    %v981 = vadd.f32 %v976, %v979
    %v982 = vstv %s223
    %v983 = vmul.f32 %v472, %v982
    %v986 = vunpack.c.l.s4 1983009808
    %v987 = vunpack.c.0.s8 %v986
    %v988 = vlaneseq
    %v989 = vshrl.u32 %v988, 7
    %v990 = vsub.s32 %v987, %v989
    %v991 = vrot.slane %v983, %v990
    %v992 = vcombine.high %v991, %v991
    %v995 = vadd.f32 %v980, %v991
    %v996 = vadd.f32 %v981, %v992
    %v997 = vstv %s224
    %v998 = vmul.f32 %v951, %v997
    %v999 = vmul.f32 %v952, %v997
    %v1000 = vadd.f32 %v995, %v998
    %v1001 = vadd.f32 %v996, %v999
    %v1002 = vstv %s225
    %v1003 = vmul.f32 %v959, %v1002
    %v1004 = vmul.f32 %v960, %v1002
    %v1005 = vadd.f32 %v1000, %v1003
    %v1006 = vadd.f32 %v1001, %v1004
    %v1007 = vstv %s226
    %v1008 = vmul.f32 %v967, %v1007
    %v1009 = vmul.f32 %v968, %v1007
    %v1010 = vadd.f32 %v1005, %v1008
    %v1011 = vadd.f32 %v1006, %v1009
    %1012 = vrot.lane.b32.xlu0 %v1010, 48
    %v1013 = vpop.permute.xlu0 %1012
    %1014 = vrot.lane.b32.xlu0 %v1011, 48
    %v1015 = vpop.permute.xlu0 %1014
    %v1016 = vsel %vm587, %v1013, %v1015
    %v1017 = vsel %vm587, %v1015, %v1013
    %v1018 = vsel %vm468, %v1017, 0.0
    %v1019 = vsel %vm469, %v1016, 0.0
    %v1020 = vstv %s227
    %v1021 = vmul.f32 %v927, %v1020
    %v1022 = vmul.f32 %v928, %v1020
    %v1023 = vstv %s228
    %v1024 = vmul.f32 %v935, %v1023
    %v1025 = vmul.f32 %v936, %v1023
    %v1026 = vadd.f32 %v1021, %v1024
    %v1027 = vadd.f32 %v1022, %v1025
    %v1028 = vstv %s229
    %v1029 = vmul.f32 %v943, %v1028
    %v1030 = vmul.f32 %v944, %v1028
    %v1031 = vadd.f32 %v1026, %v1029
    %v1032 = vadd.f32 %v1027, %v1030
    %v1033 = vstv %s230
    %v1034 = vmul.f32 %v472, %v1033
    %v1037 = vunpack.c.l.s4 1983009808
    %v1038 = vunpack.c.0.s8 %v1037
    %v1039 = vlaneseq
    %v1040 = vshrl.u32 %v1039, 7
    %v1041 = vsub.s32 %v1038, %v1040
    %v1042 = vrot.slane %v1034, %v1041
    %v1043 = vcombine.high %v1042, %v1042
    %v1046 = vadd.f32 %v1031, %v1042
    %v1047 = vadd.f32 %v1032, %v1043
    %v1048 = vstv %s231
    %v1049 = vmul.f32 %v951, %v1048
    %v1050 = vmul.f32 %v952, %v1048
    %v1051 = vadd.f32 %v1046, %v1049
    %v1052 = vadd.f32 %v1047, %v1050
    %v1053 = vstv %s232
    %v1054 = vmul.f32 %v959, %v1053
    %v1055 = vmul.f32 %v960, %v1053
    %v1056 = vadd.f32 %v1051, %v1054
    %v1057 = vadd.f32 %v1052, %v1055
    %v1058 = vstv %s233
    %v1059 = vmul.f32 %v967, %v1058
    %v1060 = vmul.f32 %v968, %v1058
    %v1061 = vadd.f32 %v1056, %v1059
    %v1062 = vadd.f32 %v1057, %v1060
    %1063 = vrot.lane.b32.xlu0 %v1061, 32
    %v1064 = vpop.permute.xlu0 %1063
    %1065 = vrot.lane.b32.xlu0 %v1062, 32
    %v1066 = vpop.permute.xlu0 %1065
    %v1067 = vsel %vm639, %v1064, %v1066
    %v1068 = vsel %vm639, %v1066, %v1064
    %v1069 = vsel %vm460, %v1068, 0.0
    %v1070 = vsel %vm461, %v1067, 0.0
    %v1071 = vadd.f32 %v1018, %v1069
    %v1072 = vadd.f32 %v1019, %v1070
    %v1073 = vstv %s234
    %v1074 = vmul.f32 %v927, %v1073
    %v1075 = vmul.f32 %v928, %v1073
    %v1076 = vstv %s235
    %v1077 = vmul.f32 %v935, %v1076
    %v1078 = vmul.f32 %v936, %v1076
    %v1079 = vadd.f32 %v1074, %v1077
    %v1080 = vadd.f32 %v1075, %v1078
    %v1081 = vstv %s236
    %v1082 = vmul.f32 %v943, %v1081
    %v1083 = vmul.f32 %v944, %v1081
    %v1084 = vadd.f32 %v1079, %v1082
    %v1085 = vadd.f32 %v1080, %v1083
    %v1086 = vstv %s237
    %v1087 = vmul.f32 %v472, %v1086
    %v1090 = vunpack.c.l.s4 1983009808
    %v1091 = vunpack.c.0.s8 %v1090
    %v1092 = vlaneseq
    %v1093 = vshrl.u32 %v1092, 7
    %v1094 = vsub.s32 %v1091, %v1093
    %v1095 = vrot.slane %v1087, %v1094
    %v1096 = vcombine.high %v1095, %v1095
    %v1099 = vadd.f32 %v1084, %v1095
    %v1100 = vadd.f32 %v1085, %v1096
    %v1101 = vstv %s238
    %v1102 = vmul.f32 %v951, %v1101
    %v1103 = vmul.f32 %v952, %v1101
    %v1104 = vadd.f32 %v1099, %v1102
    %v1105 = vadd.f32 %v1100, %v1103
    %v1106 = vstv %s239
    %v1107 = vmul.f32 %v959, %v1106
    %v1108 = vmul.f32 %v960, %v1106
    %v1109 = vadd.f32 %v1104, %v1107
    %v1110 = vadd.f32 %v1105, %v1108
    %v1111 = vstv %s240
    %v1112 = vmul.f32 %v967, %v1111
    %v1113 = vmul.f32 %v968, %v1111
    %v1114 = vadd.f32 %v1109, %v1112
    %v1115 = vadd.f32 %v1110, %v1113
    %1116 = vrot.lane.b32.xlu0 %v1114, 16
    %v1117 = vpop.permute.xlu0 %1116
    %1118 = vrot.lane.b32.xlu0 %v1115, 16
    %v1119 = vpop.permute.xlu0 %1118
    %v1120 = vsel %vm693, %v1117, %v1119
    %v1121 = vsel %vm693, %v1119, %v1117
    %v1122 = vsel %vm452, %v1121, 0.0
    %v1123 = vsel %vm453, %v1120, 0.0
    %v1124 = vadd.f32 %v1071, %v1122
    %v1125 = vadd.f32 %v1072, %v1123
    %v1126 = vstv %s241
    %v1127 = vmul.f32 %v927, %v1126
    %v1128 = vmul.f32 %v928, %v1126
    %v1129 = vstv %s242
    %v1130 = vmul.f32 %v935, %v1129
    %v1131 = vmul.f32 %v936, %v1129
    %v1132 = vadd.f32 %v1127, %v1130
    %v1133 = vadd.f32 %v1128, %v1131
    %v1134 = vstv %s243
    %v1135 = vmul.f32 %v943, %v1134
    %v1136 = vmul.f32 %v944, %v1134
    %v1137 = vadd.f32 %v1132, %v1135
    %v1138 = vadd.f32 %v1133, %v1136
    %v1139 = vstv %s244
    %v1140 = vmul.f32 %v472, %v1139
    %v1143 = vunpack.c.l.s4 1983009808
    %v1144 = vunpack.c.0.s8 %v1143
    %v1145 = vlaneseq
    %v1146 = vshrl.u32 %v1145, 7
    %v1147 = vsub.s32 %v1144, %v1146
    %v1148 = vrot.slane %v1140, %v1147
    %v1149 = vcombine.high %v1148, %v1148
    %v1152 = vadd.f32 %v1137, %v1148
    %v1153 = vadd.f32 %v1138, %v1149
    %v1154 = vstv %s245
    %v1155 = vmul.f32 %v951, %v1154
    %v1156 = vmul.f32 %v952, %v1154
    %v1157 = vadd.f32 %v1152, %v1155
    %v1158 = vadd.f32 %v1153, %v1156
    %v1159 = vstv %s246
    %v1160 = vmul.f32 %v959, %v1159
    %v1161 = vmul.f32 %v960, %v1159
    %v1162 = vadd.f32 %v1157, %v1160
    %v1163 = vadd.f32 %v1158, %v1161
    %v1164 = vstv %s247
    %v1165 = vmul.f32 %v967, %v1164
    %v1166 = vmul.f32 %v968, %v1164
    %v1167 = vadd.f32 %v1162, %v1165
    %v1168 = vadd.f32 %v1163, %v1166
    %v1169 = vadd.f32 %v1124, %v1167
    %v1170 = vadd.f32 %v1125, %v1168
    %v1171 = vstv %s248
    %v1172 = vmul.f32 %v927, %v1171
    %v1173 = vmul.f32 %v928, %v1171
    %v1174 = vstv %s249
    %v1175 = vmul.f32 %v935, %v1174
    %v1176 = vmul.f32 %v936, %v1174
    %v1177 = vadd.f32 %v1172, %v1175
    %v1178 = vadd.f32 %v1173, %v1176
    %v1179 = vstv %s250
    %v1180 = vmul.f32 %v943, %v1179
    %v1181 = vmul.f32 %v944, %v1179
    %v1182 = vadd.f32 %v1177, %v1180
    %v1183 = vadd.f32 %v1178, %v1181
    %v1184 = vstv %s251
    %v1185 = vmul.f32 %v472, %v1184
    %v1188 = vunpack.c.l.s4 1983009808
    %v1189 = vunpack.c.0.s8 %v1188
    %v1190 = vlaneseq
    %v1191 = vshrl.u32 %v1190, 7
    %v1192 = vsub.s32 %v1189, %v1191
    %v1193 = vrot.slane %v1185, %v1192
    %v1194 = vcombine.high %v1193, %v1193
    %v1197 = vadd.f32 %v1182, %v1193
    %v1198 = vadd.f32 %v1183, %v1194
    %v1199 = vstv %s252
    %v1200 = vmul.f32 %v951, %v1199
    %v1201 = vmul.f32 %v952, %v1199
    %v1202 = vadd.f32 %v1197, %v1200
    %v1203 = vadd.f32 %v1198, %v1201
    %v1204 = vstv %s253
    %v1205 = vmul.f32 %v959, %v1204
    %v1206 = vmul.f32 %v960, %v1204
    %v1207 = vadd.f32 %v1202, %v1205
    %v1208 = vadd.f32 %v1203, %v1206
    %v1209 = vstv %s254
    %v1210 = vmul.f32 %v967, %v1209
    %v1211 = vmul.f32 %v968, %v1209
    %v1212 = vadd.f32 %v1207, %v1210
    %v1213 = vadd.f32 %v1208, %v1211
    %1214 = vrot.lane.b32.xlu0 %v1212, 112
    %v1215 = vpop.permute.xlu0 %1214
    %1216 = vrot.lane.b32.xlu0 %v1213, 112
    %v1217 = vpop.permute.xlu0 %1216
    %v1218 = vsel %vm792, %v1215, %v1217
    %v1219 = vsel %vm792, %v1217, %v1215
    %v1220 = vsel %vm450, %v1218, 0.0
    %v1221 = vsel %vm451, %v1219, 0.0
    %v1222 = vadd.f32 %v1169, %v1220
    %v1223 = vadd.f32 %v1170, %v1221
    %v1224 = vstv %s255
    %v1225 = vmul.f32 %v927, %v1224
    %v1226 = vmul.f32 %v928, %v1224
    %v1227 = vstv %s256
    %v1228 = vmul.f32 %v935, %v1227
    %v1229 = vmul.f32 %v936, %v1227
    %v1230 = vadd.f32 %v1225, %v1228
    %v1231 = vadd.f32 %v1226, %v1229
    %v1232 = vstv %s257
    %v1233 = vmul.f32 %v943, %v1232
    %v1234 = vmul.f32 %v944, %v1232
    %v1235 = vadd.f32 %v1230, %v1233
    %v1236 = vadd.f32 %v1231, %v1234
    %v1237 = vstv %s258
    %v1238 = vmul.f32 %v472, %v1237
    %v1241 = vunpack.c.l.s4 1983009808
    %v1242 = vunpack.c.0.s8 %v1241
    %v1243 = vlaneseq
    %v1244 = vshrl.u32 %v1243, 7
    %v1245 = vsub.s32 %v1242, %v1244
    %v1246 = vrot.slane %v1238, %v1245
    %v1247 = vcombine.high %v1246, %v1246
    %v1250 = vadd.f32 %v1235, %v1246
    %v1251 = vadd.f32 %v1236, %v1247
    %v1252 = vstv %s259
    %v1253 = vmul.f32 %v951, %v1252
    %v1254 = vmul.f32 %v952, %v1252
    %v1255 = vadd.f32 %v1250, %v1253
    %v1256 = vadd.f32 %v1251, %v1254
    %v1257 = vstv %s260
    %v1258 = vmul.f32 %v959, %v1257
    %v1259 = vmul.f32 %v960, %v1257
    %v1260 = vadd.f32 %v1255, %v1258
    %v1261 = vadd.f32 %v1256, %v1259
    %v1262 = vstv %s261
    %v1263 = vmul.f32 %v967, %v1262
    %v1264 = vmul.f32 %v968, %v1262
    %v1265 = vadd.f32 %v1260, %v1263
    %v1266 = vadd.f32 %v1261, %v1264
    %1267 = vrot.lane.b32.xlu0 %v1265, 96
    %v1268 = vpop.permute.xlu0 %1267
    %1269 = vrot.lane.b32.xlu0 %v1266, 96
    %v1270 = vpop.permute.xlu0 %1269
    %v1271 = vsel %vm846, %v1268, %v1270
    %v1272 = vsel %vm846, %v1270, %v1268
    %v1273 = vsel %vm458, %v1271, 0.0
    %v1274 = vsel %vm459, %v1272, 0.0
    %v1275 = vadd.f32 %v1222, %v1273
    %v1276 = vadd.f32 %v1223, %v1274
    %v1277 = vstv %s262
    %v1278 = vmul.f32 %v927, %v1277
    %v1279 = vmul.f32 %v928, %v1277
    %v1280 = vstv %s263
    %v1281 = vmul.f32 %v935, %v1280
    %v1282 = vmul.f32 %v936, %v1280
    %v1283 = vadd.f32 %v1278, %v1281
    %v1284 = vadd.f32 %v1279, %v1282
    %v1285 = vstv %s264
    %v1286 = vmul.f32 %v943, %v1285
    %v1287 = vmul.f32 %v944, %v1285
    %v1288 = vadd.f32 %v1283, %v1286
    %v1289 = vadd.f32 %v1284, %v1287
    %v1290 = vstv %s265
    %v1291 = vmul.f32 %v472, %v1290
    %v1294 = vunpack.c.l.s4 1983009808
    %v1295 = vunpack.c.0.s8 %v1294
    %v1296 = vlaneseq
    %v1297 = vshrl.u32 %v1296, 7
    %v1298 = vsub.s32 %v1295, %v1297
    %v1299 = vrot.slane %v1291, %v1298
    %v1300 = vcombine.high %v1299, %v1299
    %v1303 = vadd.f32 %v1288, %v1299
    %v1304 = vadd.f32 %v1289, %v1300
    %v1305 = vstv %s266
    %v1306 = vmul.f32 %v951, %v1305
    %v1307 = vmul.f32 %v952, %v1305
    %v1308 = vadd.f32 %v1303, %v1306
    %v1309 = vadd.f32 %v1304, %v1307
    %v1310 = vstv %s267
    %v1311 = vmul.f32 %v959, %v1310
    %v1312 = vmul.f32 %v960, %v1310
    %v1313 = vadd.f32 %v1308, %v1311
    %v1314 = vadd.f32 %v1309, %v1312
    %v1315 = vstv %s268
    %v1316 = vmul.f32 %v967, %v1315
    %v1317 = vmul.f32 %v968, %v1315
    %v1318 = vadd.f32 %v1313, %v1316
    %v1319 = vadd.f32 %v1314, %v1317
    %1320 = vrot.lane.b32.xlu0 %v1318, 80
    %v1321 = vpop.permute.xlu0 %1320
    %1322 = vrot.lane.b32.xlu0 %v1319, 80
    %v1323 = vpop.permute.xlu0 %1322
    %v1324 = vsel %vm900, %v1321, %v1323
    %v1325 = vsel %vm900, %v1323, %v1321
    %v1326 = vsel %vm466, %v1324, 0.0
    %v1327 = vsel %vm467, %v1325, 0.0
    %v1328 = vadd.f32 %v1275, %v1326
    %v1329 = vadd.f32 %v1276, %v1327
    %v1330 = vstv %s319
    %v1331 = vadd.f32 %v1328, %v1330
    %v1332 = vadd.f32 %v1329, %v1330
    %v1335 = vunpack.c.l.s4 1983009808
    %v1336 = vunpack.c.0.s8 %v1335
    %v1337 = vlaneseq
    %v1338 = vshrl.u32 %v1337, 7
    %v1339 = vsub.s32 %v1336, %v1338
    %v1340 = vrot.slane %v474, %v1339
    %v1341 = vcombine.high %v1340, %v1340
    %1344 = vrot.lane.b32.xlu0 %v1340, 3
    %v1345 = vpop.permute.xlu0 %1344
    %1346 = vrot.lane.b32.xlu0 %v1341, 3
    %v1347 = vpop.permute.xlu0 %1346
    %v1348 = vsel %vm490, %v1345, %v1347
    %v1349 = vsel %vm490, %v1347, %v1345
    %v1350 = vsel %vm464, %v1349, 0.0
    %v1351 = vsel %vm465, %v1348, 0.0
    %1352 = vrot.lane.b32.xlu0 %v1340, 2
    %v1353 = vpop.permute.xlu0 %1352
    %1354 = vrot.lane.b32.xlu0 %v1341, 2
    %v1355 = vpop.permute.xlu0 %1354
    %v1356 = vsel %vm499, %v1353, %v1355
    %v1357 = vsel %vm499, %v1355, %v1353
    %v1358 = vsel %vm456, %v1357, 0.0
    %v1359 = vsel %vm457, %v1356, 0.0
    %1360 = vrot.lane.b32.xlu0 %v1340, 1
    %v1361 = vpop.permute.xlu0 %1360
    %1362 = vrot.lane.b32.xlu0 %v1341, 1
    %v1363 = vpop.permute.xlu0 %1362
    %v1364 = vsel %vm508, %v1361, %v1363
    %v1365 = vsel %vm508, %v1363, %v1361
    %v1366 = vsel %vm448, %v1365, 0.0
    %v1367 = vsel %vm449, %v1364, 0.0
    %1368 = vrot.lane.b32.xlu0 %v1340, 127
    %v1369 = vpop.permute.xlu0 %1368
    %1370 = vrot.lane.b32.xlu0 %v1341, 127
    %v1371 = vpop.permute.xlu0 %1370
    %v1372 = vsel %vm517, %v1369, %v1371
    %v1373 = vsel %vm517, %v1371, %v1369
    %v1374 = vsel %vm446, %v1372, 0.0
    %v1375 = vsel %vm447, %v1373, 0.0
    %1376 = vrot.lane.b32.xlu0 %v1340, 126
    %v1377 = vpop.permute.xlu0 %1376
    %1378 = vrot.lane.b32.xlu0 %v1341, 126
    %v1379 = vpop.permute.xlu0 %1378
    %v1380 = vsel %vm526, %v1377, %v1379
    %v1381 = vsel %vm526, %v1379, %v1377
    %v1382 = vsel %vm454, %v1380, 0.0
    %v1383 = vsel %vm455, %v1381, 0.0
    %1384 = vrot.lane.b32.xlu0 %v1340, 125
    %v1385 = vpop.permute.xlu0 %1384
    %1386 = vrot.lane.b32.xlu0 %v1341, 125
    %v1387 = vpop.permute.xlu0 %1386
    %v1388 = vsel %vm535, %v1385, %v1387
    %v1389 = vsel %vm535, %v1387, %v1385
    %v1390 = vsel %vm462, %v1388, 0.0
    %v1391 = vsel %vm463, %v1389, 0.0
    %v1392 = vstv %s269
    %v1393 = vmul.f32 %v1350, %v1392
    %v1394 = vmul.f32 %v1351, %v1392
    %v1395 = vstv %s270
    %v1396 = vmul.f32 %v1358, %v1395
    %v1397 = vmul.f32 %v1359, %v1395
    %v1398 = vadd.f32 %v1393, %v1396
    %v1399 = vadd.f32 %v1394, %v1397
    %v1400 = vstv %s271
    %v1401 = vmul.f32 %v1366, %v1400
    %v1402 = vmul.f32 %v1367, %v1400
    %v1403 = vadd.f32 %v1398, %v1401
    %v1404 = vadd.f32 %v1399, %v1402
    %v1405 = vstv %s272
    %v1406 = vmul.f32 %v474, %v1405
    %v1409 = vunpack.c.l.s4 1983009808
    %v1410 = vunpack.c.0.s8 %v1409
    %v1411 = vlaneseq
    %v1412 = vshrl.u32 %v1411, 7
    %v1413 = vsub.s32 %v1410, %v1412
    %v1414 = vrot.slane %v1406, %v1413
    %v1415 = vcombine.high %v1414, %v1414
    %v1418 = vadd.f32 %v1403, %v1414
    %v1419 = vadd.f32 %v1404, %v1415
    %v1420 = vstv %s273
    %v1421 = vmul.f32 %v1374, %v1420
    %v1422 = vmul.f32 %v1375, %v1420
    %v1423 = vadd.f32 %v1418, %v1421
    %v1424 = vadd.f32 %v1419, %v1422
    %v1425 = vstv %s274
    %v1426 = vmul.f32 %v1382, %v1425
    %v1427 = vmul.f32 %v1383, %v1425
    %v1428 = vadd.f32 %v1423, %v1426
    %v1429 = vadd.f32 %v1424, %v1427
    %v1430 = vstv %s275
    %v1431 = vmul.f32 %v1390, %v1430
    %v1432 = vmul.f32 %v1391, %v1430
    %v1433 = vadd.f32 %v1428, %v1431
    %v1434 = vadd.f32 %v1429, %v1432
    %1435 = vrot.lane.b32.xlu0 %v1433, 48
    %v1436 = vpop.permute.xlu0 %1435
    %1437 = vrot.lane.b32.xlu0 %v1434, 48
    %v1438 = vpop.permute.xlu0 %1437
    %v1439 = vsel %vm587, %v1436, %v1438
    %v1440 = vsel %vm587, %v1438, %v1436
    %v1441 = vsel %vm468, %v1440, 0.0
    %v1442 = vsel %vm469, %v1439, 0.0
    %v1443 = vstv %s276
    %v1444 = vmul.f32 %v1350, %v1443
    %v1445 = vmul.f32 %v1351, %v1443
    %v1446 = vstv %s277
    %v1447 = vmul.f32 %v1358, %v1446
    %v1448 = vmul.f32 %v1359, %v1446
    %v1449 = vadd.f32 %v1444, %v1447
    %v1450 = vadd.f32 %v1445, %v1448
    %v1451 = vstv %s278
    %v1452 = vmul.f32 %v1366, %v1451
    %v1453 = vmul.f32 %v1367, %v1451
    %v1454 = vadd.f32 %v1449, %v1452
    %v1455 = vadd.f32 %v1450, %v1453
    %v1456 = vstv %s279
    %v1457 = vmul.f32 %v474, %v1456
    %v1460 = vunpack.c.l.s4 1983009808
    %v1461 = vunpack.c.0.s8 %v1460
    %v1462 = vlaneseq
    %v1463 = vshrl.u32 %v1462, 7
    %v1464 = vsub.s32 %v1461, %v1463
    %v1465 = vrot.slane %v1457, %v1464
    %v1466 = vcombine.high %v1465, %v1465
    %v1469 = vadd.f32 %v1454, %v1465
    %v1470 = vadd.f32 %v1455, %v1466
    %v1471 = vstv %s280
    %v1472 = vmul.f32 %v1374, %v1471
    %v1473 = vmul.f32 %v1375, %v1471
    %v1474 = vadd.f32 %v1469, %v1472
    %v1475 = vadd.f32 %v1470, %v1473
    %v1476 = vstv %s281
    %v1477 = vmul.f32 %v1382, %v1476
    %v1478 = vmul.f32 %v1383, %v1476
    %v1479 = vadd.f32 %v1474, %v1477
    %v1480 = vadd.f32 %v1475, %v1478
    %v1481 = vstv %s282
    %v1482 = vmul.f32 %v1390, %v1481
    %v1483 = vmul.f32 %v1391, %v1481
    %v1484 = vadd.f32 %v1479, %v1482
    %v1485 = vadd.f32 %v1480, %v1483
    %1486 = vrot.lane.b32.xlu0 %v1484, 32
    %v1487 = vpop.permute.xlu0 %1486
    %1488 = vrot.lane.b32.xlu0 %v1485, 32
    %v1489 = vpop.permute.xlu0 %1488
    %v1490 = vsel %vm639, %v1487, %v1489
    %v1491 = vsel %vm639, %v1489, %v1487
    %v1492 = vsel %vm460, %v1491, 0.0
    %v1493 = vsel %vm461, %v1490, 0.0
    %v1494 = vadd.f32 %v1441, %v1492
    %v1495 = vadd.f32 %v1442, %v1493
    %v1496 = vstv %s283
    %v1497 = vmul.f32 %v1350, %v1496
    %v1498 = vmul.f32 %v1351, %v1496
    %v1499 = vstv %s284
    %v1500 = vmul.f32 %v1358, %v1499
    %v1501 = vmul.f32 %v1359, %v1499
    %v1502 = vadd.f32 %v1497, %v1500
    %v1503 = vadd.f32 %v1498, %v1501
    %v1504 = vstv %s285
    %v1505 = vmul.f32 %v1366, %v1504
    %v1506 = vmul.f32 %v1367, %v1504
    %v1507 = vadd.f32 %v1502, %v1505
    %v1508 = vadd.f32 %v1503, %v1506
    %v1509 = vstv %s286
    %v1510 = vmul.f32 %v474, %v1509
    %v1513 = vunpack.c.l.s4 1983009808
    %v1514 = vunpack.c.0.s8 %v1513
    %v1515 = vlaneseq
    %v1516 = vshrl.u32 %v1515, 7
    %v1517 = vsub.s32 %v1514, %v1516
    %v1518 = vrot.slane %v1510, %v1517
    %v1519 = vcombine.high %v1518, %v1518
    %v1522 = vadd.f32 %v1507, %v1518
    %v1523 = vadd.f32 %v1508, %v1519
    %v1524 = vstv %s287
    %v1525 = vmul.f32 %v1374, %v1524
    %v1526 = vmul.f32 %v1375, %v1524
    %v1527 = vadd.f32 %v1522, %v1525
    %v1528 = vadd.f32 %v1523, %v1526
    %v1529 = vstv %s288
    %v1530 = vmul.f32 %v1382, %v1529
    %v1531 = vmul.f32 %v1383, %v1529
    %v1532 = vadd.f32 %v1527, %v1530
    %v1533 = vadd.f32 %v1528, %v1531
    %v1534 = vstv %s289
    %v1535 = vmul.f32 %v1390, %v1534
    %v1536 = vmul.f32 %v1391, %v1534
    %v1537 = vadd.f32 %v1532, %v1535
    %v1538 = vadd.f32 %v1533, %v1536
    %1539 = vrot.lane.b32.xlu0 %v1537, 16
    %v1540 = vpop.permute.xlu0 %1539
    %1541 = vrot.lane.b32.xlu0 %v1538, 16
    %v1542 = vpop.permute.xlu0 %1541
    %v1543 = vsel %vm693, %v1540, %v1542
    %v1544 = vsel %vm693, %v1542, %v1540
    %v1545 = vsel %vm452, %v1544, 0.0
    %v1546 = vsel %vm453, %v1543, 0.0
    %v1547 = vadd.f32 %v1494, %v1545
    %v1548 = vadd.f32 %v1495, %v1546
    %v1549 = vstv %s290
    %v1550 = vmul.f32 %v1350, %v1549
    %v1551 = vmul.f32 %v1351, %v1549
    %v1552 = vstv %s291
    %v1553 = vmul.f32 %v1358, %v1552
    %v1554 = vmul.f32 %v1359, %v1552
    %v1555 = vadd.f32 %v1550, %v1553
    %v1556 = vadd.f32 %v1551, %v1554
    %v1557 = vstv %s292
    %v1558 = vmul.f32 %v1366, %v1557
    %v1559 = vmul.f32 %v1367, %v1557
    %v1560 = vadd.f32 %v1555, %v1558
    %v1561 = vadd.f32 %v1556, %v1559
    %v1562 = vstv %s293
    %v1563 = vmul.f32 %v474, %v1562
    %v1566 = vunpack.c.l.s4 1983009808
    %v1567 = vunpack.c.0.s8 %v1566
    %v1568 = vlaneseq
    %v1569 = vshrl.u32 %v1568, 7
    %v1570 = vsub.s32 %v1567, %v1569
    %v1571 = vrot.slane %v1563, %v1570
    %v1572 = vcombine.high %v1571, %v1571
    %v1575 = vadd.f32 %v1560, %v1571
    %v1576 = vadd.f32 %v1561, %v1572
    %v1577 = vstv %s294
    %v1578 = vmul.f32 %v1374, %v1577
    %v1579 = vmul.f32 %v1375, %v1577
    %v1580 = vadd.f32 %v1575, %v1578
    %v1581 = vadd.f32 %v1576, %v1579
    %v1582 = vstv %s295
    %v1583 = vmul.f32 %v1382, %v1582
    %v1584 = vmul.f32 %v1383, %v1582
    %v1585 = vadd.f32 %v1580, %v1583
    %v1586 = vadd.f32 %v1581, %v1584
    %v1587 = vstv %s296
    %v1588 = vmul.f32 %v1390, %v1587
    %v1589 = vmul.f32 %v1391, %v1587
    %v1590 = vadd.f32 %v1585, %v1588
    %v1591 = vadd.f32 %v1586, %v1589
    %v1592 = vadd.f32 %v1547, %v1590
    %v1593 = vadd.f32 %v1548, %v1591
    %v1594 = vstv %s297
    %v1595 = vmul.f32 %v1350, %v1594
    %v1596 = vmul.f32 %v1351, %v1594
    %v1597 = vstv %s298
    %v1598 = vmul.f32 %v1358, %v1597
    %v1599 = vmul.f32 %v1359, %v1597
    %v1600 = vadd.f32 %v1595, %v1598
    %v1601 = vadd.f32 %v1596, %v1599
    %v1602 = vstv %s299
    %v1603 = vmul.f32 %v1366, %v1602
    %v1604 = vmul.f32 %v1367, %v1602
    %v1605 = vadd.f32 %v1600, %v1603
    %v1606 = vadd.f32 %v1601, %v1604
    %v1607 = vstv %s300
    %v1608 = vmul.f32 %v474, %v1607
    %v1611 = vunpack.c.l.s4 1983009808
    %v1612 = vunpack.c.0.s8 %v1611
    %v1613 = vlaneseq
    %v1614 = vshrl.u32 %v1613, 7
    %v1615 = vsub.s32 %v1612, %v1614
    %v1616 = vrot.slane %v1608, %v1615
    %v1617 = vcombine.high %v1616, %v1616
    %v1620 = vadd.f32 %v1605, %v1616
    %v1621 = vadd.f32 %v1606, %v1617
    %v1622 = vstv %s301
    %v1623 = vmul.f32 %v1374, %v1622
    %v1624 = vmul.f32 %v1375, %v1622
    %v1625 = vadd.f32 %v1620, %v1623
    %v1626 = vadd.f32 %v1621, %v1624
    %v1627 = vstv %s302
    %v1628 = vmul.f32 %v1382, %v1627
    %v1629 = vmul.f32 %v1383, %v1627
    %v1630 = vadd.f32 %v1625, %v1628
    %v1631 = vadd.f32 %v1626, %v1629
    %v1632 = vstv %s303
    %v1633 = vmul.f32 %v1390, %v1632
    %v1634 = vmul.f32 %v1391, %v1632
    %v1635 = vadd.f32 %v1630, %v1633
    %v1636 = vadd.f32 %v1631, %v1634
    %1637 = vrot.lane.b32.xlu0 %v1635, 112
    %v1638 = vpop.permute.xlu0 %1637
    %1639 = vrot.lane.b32.xlu0 %v1636, 112
    %v1640 = vpop.permute.xlu0 %1639
    %v1641 = vsel %vm792, %v1638, %v1640
    %v1642 = vsel %vm792, %v1640, %v1638
    %v1643 = vsel %vm450, %v1641, 0.0
    %v1644 = vsel %vm451, %v1642, 0.0
    %v1645 = vadd.f32 %v1592, %v1643
    %v1646 = vadd.f32 %v1593, %v1644
    %v1647 = vstv %s304
    %v1648 = vmul.f32 %v1350, %v1647
    %v1649 = vmul.f32 %v1351, %v1647
    %v1650 = vstv %s305
    %v1651 = vmul.f32 %v1358, %v1650
    %v1652 = vmul.f32 %v1359, %v1650
    %v1653 = vadd.f32 %v1648, %v1651
    %v1654 = vadd.f32 %v1649, %v1652
    %v1655 = vstv %s306
    %v1656 = vmul.f32 %v1366, %v1655
    %v1657 = vmul.f32 %v1367, %v1655
    %v1658 = vadd.f32 %v1653, %v1656
    %v1659 = vadd.f32 %v1654, %v1657
    %v1660 = vstv %s307
    %v1661 = vmul.f32 %v474, %v1660
    %v1664 = vunpack.c.l.s4 1983009808
    %v1665 = vunpack.c.0.s8 %v1664
    %v1666 = vlaneseq
    %v1667 = vshrl.u32 %v1666, 7
    %v1668 = vsub.s32 %v1665, %v1667
    %v1669 = vrot.slane %v1661, %v1668
    %v1670 = vcombine.high %v1669, %v1669
    %v1673 = vadd.f32 %v1658, %v1669
    %v1674 = vadd.f32 %v1659, %v1670
    %v1675 = vstv %s308
    %v1676 = vmul.f32 %v1374, %v1675
    %v1677 = vmul.f32 %v1375, %v1675
    %v1678 = vadd.f32 %v1673, %v1676
    %v1679 = vadd.f32 %v1674, %v1677
    %v1680 = vstv %s309
    %v1681 = vmul.f32 %v1382, %v1680
    %v1682 = vmul.f32 %v1383, %v1680
    %v1683 = vadd.f32 %v1678, %v1681
    %v1684 = vadd.f32 %v1679, %v1682
    %v1685 = vstv %s310
    %v1686 = vmul.f32 %v1390, %v1685
    %v1687 = vmul.f32 %v1391, %v1685
    %v1688 = vadd.f32 %v1683, %v1686
    %v1689 = vadd.f32 %v1684, %v1687
    %1690 = vrot.lane.b32.xlu0 %v1688, 96
    %v1691 = vpop.permute.xlu0 %1690
    %1692 = vrot.lane.b32.xlu0 %v1689, 96
    %v1693 = vpop.permute.xlu0 %1692
    %v1694 = vsel %vm846, %v1691, %v1693
    %v1695 = vsel %vm846, %v1693, %v1691
    %v1696 = vsel %vm458, %v1694, 0.0
    %v1697 = vsel %vm459, %v1695, 0.0
    %v1698 = vadd.f32 %v1645, %v1696
    %v1699 = vadd.f32 %v1646, %v1697
    %v1700 = vstv %s311
    %v1701 = vmul.f32 %v1350, %v1700
    %v1702 = vmul.f32 %v1351, %v1700
    %v1703 = vstv %s312
    %v1704 = vmul.f32 %v1358, %v1703
    %v1705 = vmul.f32 %v1359, %v1703
    %v1706 = vadd.f32 %v1701, %v1704
    %v1707 = vadd.f32 %v1702, %v1705
    %v1708 = vstv %s313
    %v1709 = vmul.f32 %v1366, %v1708
    %v1710 = vmul.f32 %v1367, %v1708
    %v1711 = vadd.f32 %v1706, %v1709
    %v1712 = vadd.f32 %v1707, %v1710
    %v1713 = vstv %s314
    %v1714 = vmul.f32 %v474, %v1713
    %v1717 = vunpack.c.l.s4 1983009808
    %v1718 = vunpack.c.0.s8 %v1717
    %v1719 = vlaneseq
    %v1720 = vshrl.u32 %v1719, 7
    %v1721 = vsub.s32 %v1718, %v1720
    %v1722 = vrot.slane %v1714, %v1721
    %v1723 = vcombine.high %v1722, %v1722
    %v1726 = vadd.f32 %v1711, %v1722
    %v1727 = vadd.f32 %v1712, %v1723
    %v1728 = vstv %s315
    %v1729 = vmul.f32 %v1374, %v1728
    %v1730 = vmul.f32 %v1375, %v1728
    %v1731 = vadd.f32 %v1726, %v1729
    %v1732 = vadd.f32 %v1727, %v1730
    %v1733 = vstv %s316
    %v1734 = vmul.f32 %v1382, %v1733
    %v1735 = vmul.f32 %v1383, %v1733
    %v1736 = vadd.f32 %v1731, %v1734
    %v1737 = vadd.f32 %v1732, %v1735
    %v1738 = vstv %s317
    %v1739 = vmul.f32 %v1390, %v1738
    %v1740 = vmul.f32 %v1391, %v1738
    %v1741 = vadd.f32 %v1736, %v1739
    %v1742 = vadd.f32 %v1737, %v1740
    %1743 = vrot.lane.b32.xlu0 %v1741, 80
    %v1744 = vpop.permute.xlu0 %1743
    %1745 = vrot.lane.b32.xlu0 %v1742, 80
    %v1746 = vpop.permute.xlu0 %1745
    %v1747 = vsel %vm900, %v1744, %v1746
    %v1748 = vsel %vm900, %v1746, %v1744
    %v1749 = vsel %vm466, %v1747, 0.0
    %v1750 = vsel %vm467, %v1748, 0.0
    %v1751 = vadd.f32 %v1698, %v1749
    %v1752 = vadd.f32 %v1699, %v1750
    %v1753 = vstv %s320
    %v1754 = vadd.f32 %v1751, %v1753
    %v1755 = vadd.f32 %v1752, %v1753
    %v1756 = vadd.f32 %v908, %v1331
    %v1757 = vadd.f32 %v909, %v1332
    %v1758 = vadd.f32 %v1756, %v1754
    %v1759 = vadd.f32 %v1757, %v1755
    %v1760 = vmul.f32 %v1758, 0.33333334
    %v1761 = vmul.f32 %v1759, 0.33333334
    %v1762 = vsub.f32 %v908, %v1760
    %v1763 = vsub.f32 %v909, %v1761
    %v1764 = vsub.f32 %v1331, %v1760
    %v1765 = vsub.f32 %v1332, %v1761
    %v1766 = vsub.f32 %v1754, %v1760
    %v1767 = vsub.f32 %v1755, %v1761
    %v1768 = vmul.f32 %v1762, %v1762
    %v1769 = vmul.f32 %v1763, %v1763
    %v1770 = vmul.f32 %v1764, %v1764
    %v1771 = vmul.f32 %v1765, %v1765
    %v1772 = vadd.f32 %v1768, %v1770
    %v1773 = vadd.f32 %v1769, %v1771
    %v1774 = vmul.f32 %v1766, %v1766
    %v1775 = vmul.f32 %v1767, %v1767
    %v1776 = vadd.f32 %v1772, %v1774
    %v1777 = vadd.f32 %v1773, %v1775
    %v1778 = vmul.f32 %v1776, 0.33333334
    %v1779 = vmul.f32 %v1777, 0.33333334
    %v1780 = vadd.f32 %v1778, 1e-06
    %v1781 = vadd.f32 %v1779, 1e-06
    %v1782 = vrsqrt.pop %v1780
    %v1783 = vrsqrt.pop %v1781
    %v1784 = vmul.f32 %v1762, %v1782
    %v1785 = vmul.f32 %v1763, %v1783
    %v1786 = vstv %s321
    %v1787 = vmul.f32 %v1784, %v1786
    %v1788 = vmul.f32 %v1785, %v1786
    %v1789 = vstv %s324
    %v1790 = vadd.f32 %v1787, %v1789
    %v1791 = vadd.f32 %v1788, %v1789
    %v1792 = vmul.f32 %v1764, %v1782
    %v1793 = vmul.f32 %v1765, %v1783
    %v1794 = vstv %s322
    %v1795 = vmul.f32 %v1792, %v1794
    %v1796 = vmul.f32 %v1793, %v1794
    %v1797 = vstv %s325
    %v1798 = vadd.f32 %v1795, %v1797
    %v1799 = vadd.f32 %v1796, %v1797
    %v1800 = vmul.f32 %v1766, %v1782
    %v1801 = vmul.f32 %v1767, %v1783
    %v1802 = vstv %s323
    %v1803 = vmul.f32 %v1800, %v1802
    %v1804 = vmul.f32 %v1801, %v1802
    %v1805 = vstv %s326
    %v1806 = vadd.f32 %v1803, %v1805
    %v1807 = vadd.f32 %v1804, %v1805
    %v1808 = vstv %s327
    %v1809 = vmul.f32 %v1790, %v1808
    %v1810 = vmul.f32 %v1791, %v1808
    %v1811 = vstv %s339
    %v1812 = vmul.f32 %v1798, %v1811
    %v1813 = vmul.f32 %v1799, %v1811
    %v1814 = vadd.f32 %v1809, %v1812
    %v1815 = vadd.f32 %v1810, %v1813
    %v1816 = vstv %s351
    %v1817 = vmul.f32 %v1806, %v1816
    %v1818 = vmul.f32 %v1807, %v1816
    %v1819 = vadd.f32 %v1814, %v1817
    %v1820 = vadd.f32 %v1815, %v1818
    %v1821 = vstv %s363
    %v1822 = vadd.f32 %v1819, %v1821
    %v1823 = vadd.f32 %v1820, %v1821
    %v1824 = vmul.f32 %v1822, 0.5
    %v1825 = vmul.f32 %v1823, 0.5
    %v1826 = vmul.f32 %v1822, 0.70710677
    %v1827 = vmul.f32 %v1823, 0.70710677
    %vm1828 = vcmp.ge.f32.partialorder %v1826, 0.0
    %vm1829 = vcmp.ge.f32.partialorder %v1827, 0.0
    %v1830 = vsel %vm1828, 1.0, -1.0
    %v1831 = vsel %vm1829, 1.0, -1.0
    %v1832 = vand.u32 2147483647, %v1826
    %v1833 = vand.u32 2147483647, %v1827
    %v1834 = vmul.f32 %v1832, 0.3275911
    %v1835 = vmul.f32 %v1833, 0.3275911
    %v1836 = vadd.f32 %v1834, 1.0
    %v1837 = vadd.f32 %v1835, 1.0
    %v1838 = vrcp.pop %v1836
    %v1839 = vrcp.pop %v1837
    %v1840 = vmul.f32 %v1838, 1.0614054
    %v1841 = vmul.f32 %v1839, 1.0614054
    %v1842 = vadd.f32 %v1840, -1.4531521
    %v1843 = vadd.f32 %v1841, -1.4531521
    %v1844 = vmul.f32 %v1842, %v1838
    %v1845 = vmul.f32 %v1843, %v1839
    %v1846 = vadd.f32 %v1844, 1.4214138
    %v1847 = vadd.f32 %v1845, 1.4214138
    %v1848 = vmul.f32 %v1846, %v1838
    %v1849 = vmul.f32 %v1847, %v1839
    %v1850 = vadd.f32 %v1848, -0.28449672
    %v1851 = vadd.f32 %v1849, -0.28449672
    %v1852 = vmul.f32 %v1850, %v1838
    %v1853 = vmul.f32 %v1851, %v1839
    %v1854 = vadd.f32 %v1852, 0.2548296
    %v1855 = vadd.f32 %v1853, 0.2548296
    %v1856 = vmul.f32 %v1854, %v1838
    %v1857 = vmul.f32 %v1855, %v1839
    %v1858 = vsub.f32 0.0, %v1832
    %v1859 = vsub.f32 0.0, %v1833
    %v1860 = vmul.f32 %v1858, %v1832
    %v1861 = vmul.f32 %v1859, %v1833
    %v1862 = vmul.f32 %v1860, 1.442695
    %v1863 = vpow.pop %v1862
    %v1864 = vmul.f32 %v1861, 1.442695
    %v1865 = vpow.pop %v1864
    %v1866 = vmul.f32 %v1856, %v1863
    %v1867 = vmul.f32 %v1857, %v1865
    %v1868 = vsub.f32 1.0, %v1866
    %v1869 = vsub.f32 1.0, %v1867
    %v1870 = vmul.f32 %v1830, %v1868
    %v1871 = vmul.f32 %v1831, %v1869
    %v1872 = vadd.f32 %v1870, 1.0
    %v1873 = vadd.f32 %v1871, 1.0
    %v1874 = vmul.f32 %v1824, %v1872
    %v1875 = vmul.f32 %v1825, %v1873
    %v1876 = vstv %s375
    %v1877 = vmul.f32 %v1874, %v1876
    %v1878 = vmul.f32 %v1875, %v1876
    %v1879 = vstv %s376
    %v1880 = vmul.f32 %v1874, %v1879
    %v1881 = vmul.f32 %v1875, %v1879
    %v1882 = vstv %s377
    %v1883 = vmul.f32 %v1874, %v1882
    %v1884 = vmul.f32 %v1875, %v1882
    %v1885 = vstv %s328
    %v1886 = vmul.f32 %v1790, %v1885
    %v1887 = vmul.f32 %v1791, %v1885
    %v1888 = vstv %s340
    %v1889 = vmul.f32 %v1798, %v1888
    %v1890 = vmul.f32 %v1799, %v1888
    %v1891 = vadd.f32 %v1886, %v1889
    %v1892 = vadd.f32 %v1887, %v1890
    %v1893 = vstv %s352
    %v1894 = vmul.f32 %v1806, %v1893
    %v1895 = vmul.f32 %v1807, %v1893
    %v1896 = vadd.f32 %v1891, %v1894
    %v1897 = vadd.f32 %v1892, %v1895
    %v1898 = vstv %s364
    %v1899 = vadd.f32 %v1896, %v1898
    %v1900 = vadd.f32 %v1897, %v1898
    %v1901 = vmul.f32 %v1899, 0.5
    %v1902 = vmul.f32 %v1900, 0.5
    %v1903 = vmul.f32 %v1899, 0.70710677
    %v1904 = vmul.f32 %v1900, 0.70710677
    %vm1905 = vcmp.ge.f32.partialorder %v1903, 0.0
    %vm1906 = vcmp.ge.f32.partialorder %v1904, 0.0
    %v1907 = vsel %vm1905, 1.0, -1.0
    %v1908 = vsel %vm1906, 1.0, -1.0
    %v1909 = vand.u32 2147483647, %v1903
    %v1910 = vand.u32 2147483647, %v1904
    %v1911 = vmul.f32 %v1909, 0.3275911
    %v1912 = vmul.f32 %v1910, 0.3275911
    %v1913 = vadd.f32 %v1911, 1.0
    %v1914 = vadd.f32 %v1912, 1.0
    %v1915 = vrcp.pop %v1913
    %v1916 = vrcp.pop %v1914
    %v1917 = vmul.f32 %v1915, 1.0614054
    %v1918 = vmul.f32 %v1916, 1.0614054
    %v1919 = vadd.f32 %v1917, -1.4531521
    %v1920 = vadd.f32 %v1918, -1.4531521
    %v1921 = vmul.f32 %v1919, %v1915
    %v1922 = vmul.f32 %v1920, %v1916
    %v1923 = vadd.f32 %v1921, 1.4214138
    %v1924 = vadd.f32 %v1922, 1.4214138
    %v1925 = vmul.f32 %v1923, %v1915
    %v1926 = vmul.f32 %v1924, %v1916
    %v1927 = vadd.f32 %v1925, -0.28449672
    %v1928 = vadd.f32 %v1926, -0.28449672
    %v1929 = vmul.f32 %v1927, %v1915
    %v1930 = vmul.f32 %v1928, %v1916
    %v1931 = vadd.f32 %v1929, 0.2548296
    %v1932 = vadd.f32 %v1930, 0.2548296
    %v1933 = vmul.f32 %v1931, %v1915
    %v1934 = vmul.f32 %v1932, %v1916
    %v1935 = vsub.f32 0.0, %v1909
    %v1936 = vsub.f32 0.0, %v1910
    %v1937 = vmul.f32 %v1935, %v1909
    %v1938 = vmul.f32 %v1936, %v1910
    %v1939 = vmul.f32 %v1937, 1.442695
    %v1940 = vpow.pop %v1939
    %v1941 = vmul.f32 %v1938, 1.442695
    %v1942 = vpow.pop %v1941
    %v1943 = vmul.f32 %v1933, %v1940
    %v1944 = vmul.f32 %v1934, %v1942
    %v1945 = vsub.f32 1.0, %v1943
    %v1946 = vsub.f32 1.0, %v1944
    %v1947 = vmul.f32 %v1907, %v1945
    %v1948 = vmul.f32 %v1908, %v1946
    %v1949 = vadd.f32 %v1947, 1.0
    %v1950 = vadd.f32 %v1948, 1.0
    %v1951 = vmul.f32 %v1901, %v1949
    %v1952 = vmul.f32 %v1902, %v1950
    %v1953 = vstv %s378
    %v1954 = vmul.f32 %v1951, %v1953
    %v1955 = vmul.f32 %v1952, %v1953
    %v1956 = vadd.f32 %v1877, %v1954
    %v1957 = vadd.f32 %v1878, %v1955
    %v1958 = vstv %s379
    %v1959 = vmul.f32 %v1951, %v1958
    %v1960 = vmul.f32 %v1952, %v1958
    %v1961 = vadd.f32 %v1880, %v1959
    %v1962 = vadd.f32 %v1881, %v1960
    %v1963 = vstv %s380
    %v1964 = vmul.f32 %v1951, %v1963
    %v1965 = vmul.f32 %v1952, %v1963
    %v1966 = vadd.f32 %v1883, %v1964
    %v1967 = vadd.f32 %v1884, %v1965
    %v1968 = vstv %s329
    %v1969 = vmul.f32 %v1790, %v1968
    %v1970 = vmul.f32 %v1791, %v1968
    %v1971 = vstv %s341
    %v1972 = vmul.f32 %v1798, %v1971
    %v1973 = vmul.f32 %v1799, %v1971
    %v1974 = vadd.f32 %v1969, %v1972
    %v1975 = vadd.f32 %v1970, %v1973
    %v1976 = vstv %s353
    %v1977 = vmul.f32 %v1806, %v1976
    %v1978 = vmul.f32 %v1807, %v1976
    %v1979 = vadd.f32 %v1974, %v1977
    %v1980 = vadd.f32 %v1975, %v1978
    %v1981 = vstv %s365
    %v1982 = vadd.f32 %v1979, %v1981
    %v1983 = vadd.f32 %v1980, %v1981
    %v1984 = vmul.f32 %v1982, 0.5
    %v1985 = vmul.f32 %v1983, 0.5
    %v1986 = vmul.f32 %v1982, 0.70710677
    %v1987 = vmul.f32 %v1983, 0.70710677
    %vm1988 = vcmp.ge.f32.partialorder %v1986, 0.0
    %vm1989 = vcmp.ge.f32.partialorder %v1987, 0.0
    %v1990 = vsel %vm1988, 1.0, -1.0
    %v1991 = vsel %vm1989, 1.0, -1.0
    %v1992 = vand.u32 2147483647, %v1986
    %v1993 = vand.u32 2147483647, %v1987
    %v1994 = vmul.f32 %v1992, 0.3275911
    %v1995 = vmul.f32 %v1993, 0.3275911
    %v1996 = vadd.f32 %v1994, 1.0
    %v1997 = vadd.f32 %v1995, 1.0
    %v1998 = vrcp.pop %v1996
    %v1999 = vrcp.pop %v1997
    %v2000 = vmul.f32 %v1998, 1.0614054
    %v2001 = vmul.f32 %v1999, 1.0614054
    %v2002 = vadd.f32 %v2000, -1.4531521
    %v2003 = vadd.f32 %v2001, -1.4531521
    %v2004 = vmul.f32 %v2002, %v1998
    %v2005 = vmul.f32 %v2003, %v1999
    %v2006 = vadd.f32 %v2004, 1.4214138
    %v2007 = vadd.f32 %v2005, 1.4214138
    %v2008 = vmul.f32 %v2006, %v1998
    %v2009 = vmul.f32 %v2007, %v1999
    %v2010 = vadd.f32 %v2008, -0.28449672
    %v2011 = vadd.f32 %v2009, -0.28449672
    %v2012 = vmul.f32 %v2010, %v1998
    %v2013 = vmul.f32 %v2011, %v1999
    %v2014 = vadd.f32 %v2012, 0.2548296
    %v2015 = vadd.f32 %v2013, 0.2548296
    %v2016 = vmul.f32 %v2014, %v1998
    %v2017 = vmul.f32 %v2015, %v1999
    %v2018 = vsub.f32 0.0, %v1992
    %v2019 = vsub.f32 0.0, %v1993
    %v2020 = vmul.f32 %v2018, %v1992
    %v2021 = vmul.f32 %v2019, %v1993
    %v2022 = vmul.f32 %v2020, 1.442695
    %v2023 = vpow.pop %v2022
    %v2024 = vmul.f32 %v2021, 1.442695
    %v2025 = vpow.pop %v2024
    %v2026 = vmul.f32 %v2016, %v2023
    %v2027 = vmul.f32 %v2017, %v2025
    %v2028 = vsub.f32 1.0, %v2026
    %v2029 = vsub.f32 1.0, %v2027
    %v2030 = vmul.f32 %v1990, %v2028
    %v2031 = vmul.f32 %v1991, %v2029
    %v2032 = vadd.f32 %v2030, 1.0
    %v2033 = vadd.f32 %v2031, 1.0
    %v2034 = vmul.f32 %v1984, %v2032
    %v2035 = vmul.f32 %v1985, %v2033
    %v2036 = vstv %s381
    %v2037 = vmul.f32 %v2034, %v2036
    %v2038 = vmul.f32 %v2035, %v2036
    %v2039 = vadd.f32 %v1956, %v2037
    %v2040 = vadd.f32 %v1957, %v2038
    %v2041 = vstv %s382
    %v2042 = vmul.f32 %v2034, %v2041
    %v2043 = vmul.f32 %v2035, %v2041
    %v2044 = vadd.f32 %v1961, %v2042
    %v2045 = vadd.f32 %v1962, %v2043
    %v2046 = vstv %s383
    %v2047 = vmul.f32 %v2034, %v2046
    %v2048 = vmul.f32 %v2035, %v2046
    %v2049 = vadd.f32 %v1966, %v2047
    %v2050 = vadd.f32 %v1967, %v2048
    %v2051 = vstv %s330
    %v2052 = vmul.f32 %v1790, %v2051
    %v2053 = vmul.f32 %v1791, %v2051
    %v2054 = vstv %s342
    %v2055 = vmul.f32 %v1798, %v2054
    %v2056 = vmul.f32 %v1799, %v2054
    %v2057 = vadd.f32 %v2052, %v2055
    %v2058 = vadd.f32 %v2053, %v2056
    %v2059 = vstv %s354
    %v2060 = vmul.f32 %v1806, %v2059
    %v2061 = vmul.f32 %v1807, %v2059
    %v2062 = vadd.f32 %v2057, %v2060
    %v2063 = vadd.f32 %v2058, %v2061
    %v2064 = vstv %s366
    %v2065 = vadd.f32 %v2062, %v2064
    %v2066 = vadd.f32 %v2063, %v2064
    %v2067 = vmul.f32 %v2065, 0.5
    %v2068 = vmul.f32 %v2066, 0.5
    %v2069 = vmul.f32 %v2065, 0.70710677
    %v2070 = vmul.f32 %v2066, 0.70710677
    %vm2071 = vcmp.ge.f32.partialorder %v2069, 0.0
    %vm2072 = vcmp.ge.f32.partialorder %v2070, 0.0
    %v2073 = vsel %vm2071, 1.0, -1.0
    %v2074 = vsel %vm2072, 1.0, -1.0
    %v2075 = vand.u32 2147483647, %v2069
    %v2076 = vand.u32 2147483647, %v2070
    %v2077 = vmul.f32 %v2075, 0.3275911
    %v2078 = vmul.f32 %v2076, 0.3275911
    %v2079 = vadd.f32 %v2077, 1.0
    %v2080 = vadd.f32 %v2078, 1.0
    %v2081 = vrcp.pop %v2079
    %v2082 = vrcp.pop %v2080
    %v2083 = vmul.f32 %v2081, 1.0614054
    %v2084 = vmul.f32 %v2082, 1.0614054
    %v2085 = vadd.f32 %v2083, -1.4531521
    %v2086 = vadd.f32 %v2084, -1.4531521
    %v2087 = vmul.f32 %v2085, %v2081
    %v2088 = vmul.f32 %v2086, %v2082
    %v2089 = vadd.f32 %v2087, 1.4214138
    %v2090 = vadd.f32 %v2088, 1.4214138
    %v2091 = vmul.f32 %v2089, %v2081
    %v2092 = vmul.f32 %v2090, %v2082
    %v2093 = vadd.f32 %v2091, -0.28449672
    %v2094 = vadd.f32 %v2092, -0.28449672
    %v2095 = vmul.f32 %v2093, %v2081
    %v2096 = vmul.f32 %v2094, %v2082
    %v2097 = vadd.f32 %v2095, 0.2548296
    %v2098 = vadd.f32 %v2096, 0.2548296
    %v2099 = vmul.f32 %v2097, %v2081
    %v2100 = vmul.f32 %v2098, %v2082
    %v2101 = vsub.f32 0.0, %v2075
    %v2102 = vsub.f32 0.0, %v2076
    %v2103 = vmul.f32 %v2101, %v2075
    %v2104 = vmul.f32 %v2102, %v2076
    %v2105 = vmul.f32 %v2103, 1.442695
    %v2106 = vpow.pop %v2105
    %v2107 = vmul.f32 %v2104, 1.442695
    %v2108 = vpow.pop %v2107
    %v2109 = vmul.f32 %v2099, %v2106
    %v2110 = vmul.f32 %v2100, %v2108
    %v2111 = vsub.f32 1.0, %v2109
    %v2112 = vsub.f32 1.0, %v2110
    %v2113 = vmul.f32 %v2073, %v2111
    %v2114 = vmul.f32 %v2074, %v2112
    %v2115 = vadd.f32 %v2113, 1.0
    %v2116 = vadd.f32 %v2114, 1.0
    %v2117 = vmul.f32 %v2067, %v2115
    %v2118 = vmul.f32 %v2068, %v2116
    %v2119 = vstv %s384
    %v2120 = vmul.f32 %v2117, %v2119
    %v2121 = vmul.f32 %v2118, %v2119
    %v2122 = vadd.f32 %v2039, %v2120
    %v2123 = vadd.f32 %v2040, %v2121
    %v2124 = vstv %s385
    %v2125 = vmul.f32 %v2117, %v2124
    %v2126 = vmul.f32 %v2118, %v2124
    %v2127 = vadd.f32 %v2044, %v2125
    %v2128 = vadd.f32 %v2045, %v2126
    %v2129 = vstv %s386
    %v2130 = vmul.f32 %v2117, %v2129
    %v2131 = vmul.f32 %v2118, %v2129
    %v2132 = vadd.f32 %v2049, %v2130
    %v2133 = vadd.f32 %v2050, %v2131
    %v2134 = vstv %s331
    %v2135 = vmul.f32 %v1790, %v2134
    %v2136 = vmul.f32 %v1791, %v2134
    %v2137 = vstv %s343
    %v2138 = vmul.f32 %v1798, %v2137
    %v2139 = vmul.f32 %v1799, %v2137
    %v2140 = vadd.f32 %v2135, %v2138
    %v2141 = vadd.f32 %v2136, %v2139
    %v2142 = vstv %s355
    %v2143 = vmul.f32 %v1806, %v2142
    %v2144 = vmul.f32 %v1807, %v2142
    %v2145 = vadd.f32 %v2140, %v2143
    %v2146 = vadd.f32 %v2141, %v2144
    %v2147 = vstv %s367
    %v2148 = vadd.f32 %v2145, %v2147
    %v2149 = vadd.f32 %v2146, %v2147
    %v2150 = vmul.f32 %v2148, 0.5
    %v2151 = vmul.f32 %v2149, 0.5
    %v2152 = vmul.f32 %v2148, 0.70710677
    %v2153 = vmul.f32 %v2149, 0.70710677
    %vm2154 = vcmp.ge.f32.partialorder %v2152, 0.0
    %vm2155 = vcmp.ge.f32.partialorder %v2153, 0.0
    %v2156 = vsel %vm2154, 1.0, -1.0
    %v2157 = vsel %vm2155, 1.0, -1.0
    %v2158 = vand.u32 2147483647, %v2152
    %v2159 = vand.u32 2147483647, %v2153
    %v2160 = vmul.f32 %v2158, 0.3275911
    %v2161 = vmul.f32 %v2159, 0.3275911
    %v2162 = vadd.f32 %v2160, 1.0
    %v2163 = vadd.f32 %v2161, 1.0
    %v2164 = vrcp.pop %v2162
    %v2165 = vrcp.pop %v2163
    %v2166 = vmul.f32 %v2164, 1.0614054
    %v2167 = vmul.f32 %v2165, 1.0614054
    %v2168 = vadd.f32 %v2166, -1.4531521
    %v2169 = vadd.f32 %v2167, -1.4531521
    %v2170 = vmul.f32 %v2168, %v2164
    %v2171 = vmul.f32 %v2169, %v2165
    %v2172 = vadd.f32 %v2170, 1.4214138
    %v2173 = vadd.f32 %v2171, 1.4214138
    %v2174 = vmul.f32 %v2172, %v2164
    %v2175 = vmul.f32 %v2173, %v2165
    %v2176 = vadd.f32 %v2174, -0.28449672
    %v2177 = vadd.f32 %v2175, -0.28449672
    %v2178 = vmul.f32 %v2176, %v2164
    %v2179 = vmul.f32 %v2177, %v2165
    %v2180 = vadd.f32 %v2178, 0.2548296
    %v2181 = vadd.f32 %v2179, 0.2548296
    %v2182 = vmul.f32 %v2180, %v2164
    %v2183 = vmul.f32 %v2181, %v2165
    %v2184 = vsub.f32 0.0, %v2158
    %v2185 = vsub.f32 0.0, %v2159
    %v2186 = vmul.f32 %v2184, %v2158
    %v2187 = vmul.f32 %v2185, %v2159
    %v2188 = vmul.f32 %v2186, 1.442695
    %v2189 = vpow.pop %v2188
    %v2190 = vmul.f32 %v2187, 1.442695
    %v2191 = vpow.pop %v2190
    %v2192 = vmul.f32 %v2182, %v2189
    %v2193 = vmul.f32 %v2183, %v2191
    %v2194 = vsub.f32 1.0, %v2192
    %v2195 = vsub.f32 1.0, %v2193
    %v2196 = vmul.f32 %v2156, %v2194
    %v2197 = vmul.f32 %v2157, %v2195
    %v2198 = vadd.f32 %v2196, 1.0
    %v2199 = vadd.f32 %v2197, 1.0
    %v2200 = vmul.f32 %v2150, %v2198
    %v2201 = vmul.f32 %v2151, %v2199
    %v2202 = vstv %s387
    %v2203 = vmul.f32 %v2200, %v2202
    %v2204 = vmul.f32 %v2201, %v2202
    %v2205 = vadd.f32 %v2122, %v2203
    %v2206 = vadd.f32 %v2123, %v2204
    %v2207 = vstv %s388
    %v2208 = vmul.f32 %v2200, %v2207
    %v2209 = vmul.f32 %v2201, %v2207
    %v2210 = vadd.f32 %v2127, %v2208
    %v2211 = vadd.f32 %v2128, %v2209
    %v2212 = vstv %s389
    %v2213 = vmul.f32 %v2200, %v2212
    %v2214 = vmul.f32 %v2201, %v2212
    %v2215 = vadd.f32 %v2132, %v2213
    %v2216 = vadd.f32 %v2133, %v2214
    %v2217 = vstv %s332
    %v2218 = vmul.f32 %v1790, %v2217
    %v2219 = vmul.f32 %v1791, %v2217
    %v2220 = vstv %s344
    %v2221 = vmul.f32 %v1798, %v2220
    %v2222 = vmul.f32 %v1799, %v2220
    %v2223 = vadd.f32 %v2218, %v2221
    %v2224 = vadd.f32 %v2219, %v2222
    %v2225 = vstv %s356
    %v2226 = vmul.f32 %v1806, %v2225
    %v2227 = vmul.f32 %v1807, %v2225
    %v2228 = vadd.f32 %v2223, %v2226
    %v2229 = vadd.f32 %v2224, %v2227
    %v2230 = vstv %s368
    %v2231 = vadd.f32 %v2228, %v2230
    %v2232 = vadd.f32 %v2229, %v2230
    %v2233 = vmul.f32 %v2231, 0.5
    %v2234 = vmul.f32 %v2232, 0.5
    %v2235 = vmul.f32 %v2231, 0.70710677
    %v2236 = vmul.f32 %v2232, 0.70710677
    %vm2237 = vcmp.ge.f32.partialorder %v2235, 0.0
    %vm2238 = vcmp.ge.f32.partialorder %v2236, 0.0
    %v2239 = vsel %vm2237, 1.0, -1.0
    %v2240 = vsel %vm2238, 1.0, -1.0
    %v2241 = vand.u32 2147483647, %v2235
    %v2242 = vand.u32 2147483647, %v2236
    %v2243 = vmul.f32 %v2241, 0.3275911
    %v2244 = vmul.f32 %v2242, 0.3275911
    %v2245 = vadd.f32 %v2243, 1.0
    %v2246 = vadd.f32 %v2244, 1.0
    %v2247 = vrcp.pop %v2245
    %v2248 = vrcp.pop %v2246
    %v2249 = vmul.f32 %v2247, 1.0614054
    %v2250 = vmul.f32 %v2248, 1.0614054
    %v2251 = vadd.f32 %v2249, -1.4531521
    %v2252 = vadd.f32 %v2250, -1.4531521
    %v2253 = vmul.f32 %v2251, %v2247
    %v2254 = vmul.f32 %v2252, %v2248
    %v2255 = vadd.f32 %v2253, 1.4214138
    %v2256 = vadd.f32 %v2254, 1.4214138
    %v2257 = vmul.f32 %v2255, %v2247
    %v2258 = vmul.f32 %v2256, %v2248
    %v2259 = vadd.f32 %v2257, -0.28449672
    %v2260 = vadd.f32 %v2258, -0.28449672
    %v2261 = vmul.f32 %v2259, %v2247
    %v2262 = vmul.f32 %v2260, %v2248
    %v2263 = vadd.f32 %v2261, 0.2548296
    %v2264 = vadd.f32 %v2262, 0.2548296
    %v2265 = vmul.f32 %v2263, %v2247
    %v2266 = vmul.f32 %v2264, %v2248
    %v2267 = vsub.f32 0.0, %v2241
    %v2268 = vsub.f32 0.0, %v2242
    %v2269 = vmul.f32 %v2267, %v2241
    %v2270 = vmul.f32 %v2268, %v2242
    %v2271 = vmul.f32 %v2269, 1.442695
    %v2272 = vpow.pop %v2271
    %v2273 = vmul.f32 %v2270, 1.442695
    %v2274 = vpow.pop %v2273
    %v2275 = vmul.f32 %v2265, %v2272
    %v2276 = vmul.f32 %v2266, %v2274
    %v2277 = vsub.f32 1.0, %v2275
    %v2278 = vsub.f32 1.0, %v2276
    %v2279 = vmul.f32 %v2239, %v2277
    %v2280 = vmul.f32 %v2240, %v2278
    %v2281 = vadd.f32 %v2279, 1.0
    %v2282 = vadd.f32 %v2280, 1.0
    %v2283 = vmul.f32 %v2233, %v2281
    %v2284 = vmul.f32 %v2234, %v2282
    %v2285 = vstv %s390
    %v2286 = vmul.f32 %v2283, %v2285
    %v2287 = vmul.f32 %v2284, %v2285
    %v2288 = vadd.f32 %v2205, %v2286
    %v2289 = vadd.f32 %v2206, %v2287
    %v2290 = vstv %s391
    %v2291 = vmul.f32 %v2283, %v2290
    %v2292 = vmul.f32 %v2284, %v2290
    %v2293 = vadd.f32 %v2210, %v2291
    %v2294 = vadd.f32 %v2211, %v2292
    %v2295 = vstv %s392
    %v2296 = vmul.f32 %v2283, %v2295
    %v2297 = vmul.f32 %v2284, %v2295
    %v2298 = vadd.f32 %v2215, %v2296
    %v2299 = vadd.f32 %v2216, %v2297
    %v2300 = vstv %s333
    %v2301 = vmul.f32 %v1790, %v2300
    %v2302 = vmul.f32 %v1791, %v2300
    %v2303 = vstv %s345
    %v2304 = vmul.f32 %v1798, %v2303
    %v2305 = vmul.f32 %v1799, %v2303
    %v2306 = vadd.f32 %v2301, %v2304
    %v2307 = vadd.f32 %v2302, %v2305
    %v2308 = vstv %s357
    %v2309 = vmul.f32 %v1806, %v2308
    %v2310 = vmul.f32 %v1807, %v2308
    %v2311 = vadd.f32 %v2306, %v2309
    %v2312 = vadd.f32 %v2307, %v2310
    %v2313 = vstv %s369
    %v2314 = vadd.f32 %v2311, %v2313
    %v2315 = vadd.f32 %v2312, %v2313
    %v2316 = vmul.f32 %v2314, 0.5
    %v2317 = vmul.f32 %v2315, 0.5
    %v2318 = vmul.f32 %v2314, 0.70710677
    %v2319 = vmul.f32 %v2315, 0.70710677
    %vm2320 = vcmp.ge.f32.partialorder %v2318, 0.0
    %vm2321 = vcmp.ge.f32.partialorder %v2319, 0.0
    %v2322 = vsel %vm2320, 1.0, -1.0
    %v2323 = vsel %vm2321, 1.0, -1.0
    %v2324 = vand.u32 2147483647, %v2318
    %v2325 = vand.u32 2147483647, %v2319
    %v2326 = vmul.f32 %v2324, 0.3275911
    %v2327 = vmul.f32 %v2325, 0.3275911
    %v2328 = vadd.f32 %v2326, 1.0
    %v2329 = vadd.f32 %v2327, 1.0
    %v2330 = vrcp.pop %v2328
    %v2331 = vrcp.pop %v2329
    %v2332 = vmul.f32 %v2330, 1.0614054
    %v2333 = vmul.f32 %v2331, 1.0614054
    %v2334 = vadd.f32 %v2332, -1.4531521
    %v2335 = vadd.f32 %v2333, -1.4531521
    %v2336 = vmul.f32 %v2334, %v2330
    %v2337 = vmul.f32 %v2335, %v2331
    %v2338 = vadd.f32 %v2336, 1.4214138
    %v2339 = vadd.f32 %v2337, 1.4214138
    %v2340 = vmul.f32 %v2338, %v2330
    %v2341 = vmul.f32 %v2339, %v2331
    %v2342 = vadd.f32 %v2340, -0.28449672
    %v2343 = vadd.f32 %v2341, -0.28449672
    %v2344 = vmul.f32 %v2342, %v2330
    %v2345 = vmul.f32 %v2343, %v2331
    %v2346 = vadd.f32 %v2344, 0.2548296
    %v2347 = vadd.f32 %v2345, 0.2548296
    %v2348 = vmul.f32 %v2346, %v2330
    %v2349 = vmul.f32 %v2347, %v2331
    %v2350 = vsub.f32 0.0, %v2324
    %v2351 = vsub.f32 0.0, %v2325
    %v2352 = vmul.f32 %v2350, %v2324
    %v2353 = vmul.f32 %v2351, %v2325
    %v2354 = vmul.f32 %v2352, 1.442695
    %v2355 = vpow.pop %v2354
    %v2356 = vmul.f32 %v2353, 1.442695
    %v2357 = vpow.pop %v2356
    %v2358 = vmul.f32 %v2348, %v2355
    %v2359 = vmul.f32 %v2349, %v2357
    %v2360 = vsub.f32 1.0, %v2358
    %v2361 = vsub.f32 1.0, %v2359
    %v2362 = vmul.f32 %v2322, %v2360
    %v2363 = vmul.f32 %v2323, %v2361
    %v2364 = vadd.f32 %v2362, 1.0
    %v2365 = vadd.f32 %v2363, 1.0
    %v2366 = vmul.f32 %v2316, %v2364
    %v2367 = vmul.f32 %v2317, %v2365
    %v2368 = vstv %s393
    %v2369 = vmul.f32 %v2366, %v2368
    %v2370 = vmul.f32 %v2367, %v2368
    %v2371 = vadd.f32 %v2288, %v2369
    %v2372 = vadd.f32 %v2289, %v2370
    %v2373 = vstv %s394
    %v2374 = vmul.f32 %v2366, %v2373
    %v2375 = vmul.f32 %v2367, %v2373
    %v2376 = vadd.f32 %v2293, %v2374
    %v2377 = vadd.f32 %v2294, %v2375
    %v2378 = vstv %s395
    %v2379 = vmul.f32 %v2366, %v2378
    %v2380 = vmul.f32 %v2367, %v2378
    %v2381 = vadd.f32 %v2298, %v2379
    %v2382 = vadd.f32 %v2299, %v2380
    %v2383 = vstv %s334
    %v2384 = vmul.f32 %v1790, %v2383
    %v2385 = vmul.f32 %v1791, %v2383
    %v2386 = vstv %s346
    %v2387 = vmul.f32 %v1798, %v2386
    %v2388 = vmul.f32 %v1799, %v2386
    %v2389 = vadd.f32 %v2384, %v2387
    %v2390 = vadd.f32 %v2385, %v2388
    %v2391 = vstv %s358
    %v2392 = vmul.f32 %v1806, %v2391
    %v2393 = vmul.f32 %v1807, %v2391
    %v2394 = vadd.f32 %v2389, %v2392
    %v2395 = vadd.f32 %v2390, %v2393
    %v2396 = vstv %s370
    %v2397 = vadd.f32 %v2394, %v2396
    %v2398 = vadd.f32 %v2395, %v2396
    %v2399 = vmul.f32 %v2397, 0.5
    %v2400 = vmul.f32 %v2398, 0.5
    %v2401 = vmul.f32 %v2397, 0.70710677
    %v2402 = vmul.f32 %v2398, 0.70710677
    %vm2403 = vcmp.ge.f32.partialorder %v2401, 0.0
    %vm2404 = vcmp.ge.f32.partialorder %v2402, 0.0
    %v2405 = vsel %vm2403, 1.0, -1.0
    %v2406 = vsel %vm2404, 1.0, -1.0
    %v2407 = vand.u32 2147483647, %v2401
    %v2408 = vand.u32 2147483647, %v2402
    %v2409 = vmul.f32 %v2407, 0.3275911
    %v2410 = vmul.f32 %v2408, 0.3275911
    %v2411 = vadd.f32 %v2409, 1.0
    %v2412 = vadd.f32 %v2410, 1.0
    %v2413 = vrcp.pop %v2411
    %v2414 = vrcp.pop %v2412
    %v2415 = vmul.f32 %v2413, 1.0614054
    %v2416 = vmul.f32 %v2414, 1.0614054
    %v2417 = vadd.f32 %v2415, -1.4531521
    %v2418 = vadd.f32 %v2416, -1.4531521
    %v2419 = vmul.f32 %v2417, %v2413
    %v2420 = vmul.f32 %v2418, %v2414
    %v2421 = vadd.f32 %v2419, 1.4214138
    %v2422 = vadd.f32 %v2420, 1.4214138
    %v2423 = vmul.f32 %v2421, %v2413
    %v2424 = vmul.f32 %v2422, %v2414
    %v2425 = vadd.f32 %v2423, -0.28449672
    %v2426 = vadd.f32 %v2424, -0.28449672
    %v2427 = vmul.f32 %v2425, %v2413
    %v2428 = vmul.f32 %v2426, %v2414
    %v2429 = vadd.f32 %v2427, 0.2548296
    %v2430 = vadd.f32 %v2428, 0.2548296
    %v2431 = vmul.f32 %v2429, %v2413
    %v2432 = vmul.f32 %v2430, %v2414
    %v2433 = vsub.f32 0.0, %v2407
    %v2434 = vsub.f32 0.0, %v2408
    %v2435 = vmul.f32 %v2433, %v2407
    %v2436 = vmul.f32 %v2434, %v2408
    %v2437 = vmul.f32 %v2435, 1.442695
    %v2438 = vpow.pop %v2437
    %v2439 = vmul.f32 %v2436, 1.442695
    %v2440 = vpow.pop %v2439
    %v2441 = vmul.f32 %v2431, %v2438
    %v2442 = vmul.f32 %v2432, %v2440
    %v2443 = vsub.f32 1.0, %v2441
    %v2444 = vsub.f32 1.0, %v2442
    %v2445 = vmul.f32 %v2405, %v2443
    %v2446 = vmul.f32 %v2406, %v2444
    %v2447 = vadd.f32 %v2445, 1.0
    %v2448 = vadd.f32 %v2446, 1.0
    %v2449 = vmul.f32 %v2399, %v2447
    %v2450 = vmul.f32 %v2400, %v2448
    %v2451 = vstv %s396
    %v2452 = vmul.f32 %v2449, %v2451
    %v2453 = vmul.f32 %v2450, %v2451
    %v2454 = vadd.f32 %v2371, %v2452
    %v2455 = vadd.f32 %v2372, %v2453
    %v2456 = vstv %s397
    %v2457 = vmul.f32 %v2449, %v2456
    %v2458 = vmul.f32 %v2450, %v2456
    %v2459 = vadd.f32 %v2376, %v2457
    %v2460 = vadd.f32 %v2377, %v2458
    %v2461 = vstv %s398
    %v2462 = vmul.f32 %v2449, %v2461
    %v2463 = vmul.f32 %v2450, %v2461
    %v2464 = vadd.f32 %v2381, %v2462
    %v2465 = vadd.f32 %v2382, %v2463
    %v2466 = vstv %s335
    %v2467 = vmul.f32 %v1790, %v2466
    %v2468 = vmul.f32 %v1791, %v2466
    %v2469 = vstv %s347
    %v2470 = vmul.f32 %v1798, %v2469
    %v2471 = vmul.f32 %v1799, %v2469
    %v2472 = vadd.f32 %v2467, %v2470
    %v2473 = vadd.f32 %v2468, %v2471
    %v2474 = vstv %s359
    %v2475 = vmul.f32 %v1806, %v2474
    %v2476 = vmul.f32 %v1807, %v2474
    %v2477 = vadd.f32 %v2472, %v2475
    %v2478 = vadd.f32 %v2473, %v2476
    %v2479 = vstv %s371
    %v2480 = vadd.f32 %v2477, %v2479
    %v2481 = vadd.f32 %v2478, %v2479
    %v2482 = vmul.f32 %v2480, 0.5
    %v2483 = vmul.f32 %v2481, 0.5
    %v2484 = vmul.f32 %v2480, 0.70710677
    %v2485 = vmul.f32 %v2481, 0.70710677
    %vm2486 = vcmp.ge.f32.partialorder %v2484, 0.0
    %vm2487 = vcmp.ge.f32.partialorder %v2485, 0.0
    %v2488 = vsel %vm2486, 1.0, -1.0
    %v2489 = vsel %vm2487, 1.0, -1.0
    %v2490 = vand.u32 2147483647, %v2484
    %v2491 = vand.u32 2147483647, %v2485
    %v2492 = vmul.f32 %v2490, 0.3275911
    %v2493 = vmul.f32 %v2491, 0.3275911
    %v2494 = vadd.f32 %v2492, 1.0
    %v2495 = vadd.f32 %v2493, 1.0
    %v2496 = vrcp.pop %v2494
    %v2497 = vrcp.pop %v2495
    %v2498 = vmul.f32 %v2496, 1.0614054
    %v2499 = vmul.f32 %v2497, 1.0614054
    %v2500 = vadd.f32 %v2498, -1.4531521
    %v2501 = vadd.f32 %v2499, -1.4531521
    %v2502 = vmul.f32 %v2500, %v2496
    %v2503 = vmul.f32 %v2501, %v2497
    %v2504 = vadd.f32 %v2502, 1.4214138
    %v2505 = vadd.f32 %v2503, 1.4214138
    %v2506 = vmul.f32 %v2504, %v2496
    %v2507 = vmul.f32 %v2505, %v2497
    %v2508 = vadd.f32 %v2506, -0.28449672
    %v2509 = vadd.f32 %v2507, -0.28449672
    %v2510 = vmul.f32 %v2508, %v2496
    %v2511 = vmul.f32 %v2509, %v2497
    %v2512 = vadd.f32 %v2510, 0.2548296
    %v2513 = vadd.f32 %v2511, 0.2548296
    %v2514 = vmul.f32 %v2512, %v2496
    %v2515 = vmul.f32 %v2513, %v2497
    %v2516 = vsub.f32 0.0, %v2490
    %v2517 = vsub.f32 0.0, %v2491
    %v2518 = vmul.f32 %v2516, %v2490
    %v2519 = vmul.f32 %v2517, %v2491
    %v2520 = vmul.f32 %v2518, 1.442695
    %v2521 = vpow.pop %v2520
    %v2522 = vmul.f32 %v2519, 1.442695
    %v2523 = vpow.pop %v2522
    %v2524 = vmul.f32 %v2514, %v2521
    %v2525 = vmul.f32 %v2515, %v2523
    %v2526 = vsub.f32 1.0, %v2524
    %v2527 = vsub.f32 1.0, %v2525
    %v2528 = vmul.f32 %v2488, %v2526
    %v2529 = vmul.f32 %v2489, %v2527
    %v2530 = vadd.f32 %v2528, 1.0
    %v2531 = vadd.f32 %v2529, 1.0
    %v2532 = vmul.f32 %v2482, %v2530
    %v2533 = vmul.f32 %v2483, %v2531
    %v2534 = vstv %s399
    %v2535 = vmul.f32 %v2532, %v2534
    %v2536 = vmul.f32 %v2533, %v2534
    %v2537 = vadd.f32 %v2454, %v2535
    %v2538 = vadd.f32 %v2455, %v2536
    %v2539 = vstv %s400
    %v2540 = vmul.f32 %v2532, %v2539
    %v2541 = vmul.f32 %v2533, %v2539
    %v2542 = vadd.f32 %v2459, %v2540
    %v2543 = vadd.f32 %v2460, %v2541
    %v2544 = vstv %s401
    %v2545 = vmul.f32 %v2532, %v2544
    %v2546 = vmul.f32 %v2533, %v2544
    %v2547 = vadd.f32 %v2464, %v2545
    %v2548 = vadd.f32 %v2465, %v2546
    %v2549 = vstv %s336
    %v2550 = vmul.f32 %v1790, %v2549
    %v2551 = vmul.f32 %v1791, %v2549
    %v2552 = vstv %s348
    %v2553 = vmul.f32 %v1798, %v2552
    %v2554 = vmul.f32 %v1799, %v2552
    %v2555 = vadd.f32 %v2550, %v2553
    %v2556 = vadd.f32 %v2551, %v2554
    %v2557 = vstv %s360
    %v2558 = vmul.f32 %v1806, %v2557
    %v2559 = vmul.f32 %v1807, %v2557
    %v2560 = vadd.f32 %v2555, %v2558
    %v2561 = vadd.f32 %v2556, %v2559
    %v2562 = vstv %s372
    %v2563 = vadd.f32 %v2560, %v2562
    %v2564 = vadd.f32 %v2561, %v2562
    %v2565 = vmul.f32 %v2563, 0.5
    %v2566 = vmul.f32 %v2564, 0.5
    %v2567 = vmul.f32 %v2563, 0.70710677
    %v2568 = vmul.f32 %v2564, 0.70710677
    %vm2569 = vcmp.ge.f32.partialorder %v2567, 0.0
    %vm2570 = vcmp.ge.f32.partialorder %v2568, 0.0
    %v2571 = vsel %vm2569, 1.0, -1.0
    %v2572 = vsel %vm2570, 1.0, -1.0
    %v2573 = vand.u32 2147483647, %v2567
    %v2574 = vand.u32 2147483647, %v2568
    %v2575 = vmul.f32 %v2573, 0.3275911
    %v2576 = vmul.f32 %v2574, 0.3275911
    %v2577 = vadd.f32 %v2575, 1.0
    %v2578 = vadd.f32 %v2576, 1.0
    %v2579 = vrcp.pop %v2577
    %v2580 = vrcp.pop %v2578
    %v2581 = vmul.f32 %v2579, 1.0614054
    %v2582 = vmul.f32 %v2580, 1.0614054
    %v2583 = vadd.f32 %v2581, -1.4531521
    %v2584 = vadd.f32 %v2582, -1.4531521
    %v2585 = vmul.f32 %v2583, %v2579
    %v2586 = vmul.f32 %v2584, %v2580
    %v2587 = vadd.f32 %v2585, 1.4214138
    %v2588 = vadd.f32 %v2586, 1.4214138
    %v2589 = vmul.f32 %v2587, %v2579
    %v2590 = vmul.f32 %v2588, %v2580
    %v2591 = vadd.f32 %v2589, -0.28449672
    %v2592 = vadd.f32 %v2590, -0.28449672
    %v2593 = vmul.f32 %v2591, %v2579
    %v2594 = vmul.f32 %v2592, %v2580
    %v2595 = vadd.f32 %v2593, 0.2548296
    %v2596 = vadd.f32 %v2594, 0.2548296
    %v2597 = vmul.f32 %v2595, %v2579
    %v2598 = vmul.f32 %v2596, %v2580
    %v2599 = vsub.f32 0.0, %v2573
    %v2600 = vsub.f32 0.0, %v2574
    %v2601 = vmul.f32 %v2599, %v2573
    %v2602 = vmul.f32 %v2600, %v2574
    %v2603 = vmul.f32 %v2601, 1.442695
    %v2604 = vpow.pop %v2603
    %v2605 = vmul.f32 %v2602, 1.442695
    %v2606 = vpow.pop %v2605
    %v2607 = vmul.f32 %v2597, %v2604
    %v2608 = vmul.f32 %v2598, %v2606
    %v2609 = vsub.f32 1.0, %v2607
    %v2610 = vsub.f32 1.0, %v2608
    %v2611 = vmul.f32 %v2571, %v2609
    %v2612 = vmul.f32 %v2572, %v2610
    %v2613 = vadd.f32 %v2611, 1.0
    %v2614 = vadd.f32 %v2612, 1.0
    %v2615 = vmul.f32 %v2565, %v2613
    %v2616 = vmul.f32 %v2566, %v2614
    %v2617 = vstv %s402
    %v2618 = vmul.f32 %v2615, %v2617
    %v2619 = vmul.f32 %v2616, %v2617
    %v2620 = vadd.f32 %v2537, %v2618
    %v2621 = vadd.f32 %v2538, %v2619
    %v2622 = vstv %s403
    %v2623 = vmul.f32 %v2615, %v2622
    %v2624 = vmul.f32 %v2616, %v2622
    %v2625 = vadd.f32 %v2542, %v2623
    %v2626 = vadd.f32 %v2543, %v2624
    %v2627 = vstv %s404
    %v2628 = vmul.f32 %v2615, %v2627
    %v2629 = vmul.f32 %v2616, %v2627
    %v2630 = vadd.f32 %v2547, %v2628
    %v2631 = vadd.f32 %v2548, %v2629
    %v2632 = vstv %s337
    %v2633 = vmul.f32 %v1790, %v2632
    %v2634 = vmul.f32 %v1791, %v2632
    %v2635 = vstv %s349
    %v2636 = vmul.f32 %v1798, %v2635
    %v2637 = vmul.f32 %v1799, %v2635
    %v2638 = vadd.f32 %v2633, %v2636
    %v2639 = vadd.f32 %v2634, %v2637
    %v2640 = vstv %s361
    %v2641 = vmul.f32 %v1806, %v2640
    %v2642 = vmul.f32 %v1807, %v2640
    %v2643 = vadd.f32 %v2638, %v2641
    %v2644 = vadd.f32 %v2639, %v2642
    %v2645 = vstv %s373
    %v2646 = vadd.f32 %v2643, %v2645
    %v2647 = vadd.f32 %v2644, %v2645
    %v2648 = vmul.f32 %v2646, 0.5
    %v2649 = vmul.f32 %v2647, 0.5
    %v2650 = vmul.f32 %v2646, 0.70710677
    %v2651 = vmul.f32 %v2647, 0.70710677
    %vm2652 = vcmp.ge.f32.partialorder %v2650, 0.0
    %vm2653 = vcmp.ge.f32.partialorder %v2651, 0.0
    %v2654 = vsel %vm2652, 1.0, -1.0
    %v2655 = vsel %vm2653, 1.0, -1.0
    %v2656 = vand.u32 2147483647, %v2650
    %v2657 = vand.u32 2147483647, %v2651
    %v2658 = vmul.f32 %v2656, 0.3275911
    %v2659 = vmul.f32 %v2657, 0.3275911
    %v2660 = vadd.f32 %v2658, 1.0
    %v2661 = vadd.f32 %v2659, 1.0
    %v2662 = vrcp.pop %v2660
    %v2663 = vrcp.pop %v2661
    %v2664 = vmul.f32 %v2662, 1.0614054
    %v2665 = vmul.f32 %v2663, 1.0614054
    %v2666 = vadd.f32 %v2664, -1.4531521
    %v2667 = vadd.f32 %v2665, -1.4531521
    %v2668 = vmul.f32 %v2666, %v2662
    %v2669 = vmul.f32 %v2667, %v2663
    %v2670 = vadd.f32 %v2668, 1.4214138
    %v2671 = vadd.f32 %v2669, 1.4214138
    %v2672 = vmul.f32 %v2670, %v2662
    %v2673 = vmul.f32 %v2671, %v2663
    %v2674 = vadd.f32 %v2672, -0.28449672
    %v2675 = vadd.f32 %v2673, -0.28449672
    %v2676 = vmul.f32 %v2674, %v2662
    %v2677 = vmul.f32 %v2675, %v2663
    %v2678 = vadd.f32 %v2676, 0.2548296
    %v2679 = vadd.f32 %v2677, 0.2548296
    %v2680 = vmul.f32 %v2678, %v2662
    %v2681 = vmul.f32 %v2679, %v2663
    %v2682 = vsub.f32 0.0, %v2656
    %v2683 = vsub.f32 0.0, %v2657
    %v2684 = vmul.f32 %v2682, %v2656
    %v2685 = vmul.f32 %v2683, %v2657
    %v2686 = vmul.f32 %v2684, 1.442695
    %v2687 = vpow.pop %v2686
    %v2688 = vmul.f32 %v2685, 1.442695
    %v2689 = vpow.pop %v2688
    %v2690 = vmul.f32 %v2680, %v2687
    %v2691 = vmul.f32 %v2681, %v2689
    %v2692 = vsub.f32 1.0, %v2690
    %v2693 = vsub.f32 1.0, %v2691
    %v2694 = vmul.f32 %v2654, %v2692
    %v2695 = vmul.f32 %v2655, %v2693
    %v2696 = vadd.f32 %v2694, 1.0
    %v2697 = vadd.f32 %v2695, 1.0
    %v2698 = vmul.f32 %v2648, %v2696
    %v2699 = vmul.f32 %v2649, %v2697
    %v2700 = vstv %s405
    %v2701 = vmul.f32 %v2698, %v2700
    %v2702 = vmul.f32 %v2699, %v2700
    %v2703 = vadd.f32 %v2620, %v2701
    %v2704 = vadd.f32 %v2621, %v2702
    %v2705 = vstv %s406
    %v2706 = vmul.f32 %v2698, %v2705
    %v2707 = vmul.f32 %v2699, %v2705
    %v2708 = vadd.f32 %v2625, %v2706
    %v2709 = vadd.f32 %v2626, %v2707
    %v2710 = vstv %s407
    %v2711 = vmul.f32 %v2698, %v2710
    %v2712 = vmul.f32 %v2699, %v2710
    %v2713 = vadd.f32 %v2630, %v2711
    %v2714 = vadd.f32 %v2631, %v2712
    %v2715 = vstv %s338
    %v2716 = vmul.f32 %v1790, %v2715
    %v2717 = vmul.f32 %v1791, %v2715
    %v2718 = vstv %s350
    %v2719 = vmul.f32 %v1798, %v2718
    %v2720 = vmul.f32 %v1799, %v2718
    %v2721 = vadd.f32 %v2716, %v2719
    %v2722 = vadd.f32 %v2717, %v2720
    %v2723 = vstv %s362
    %v2724 = vmul.f32 %v1806, %v2723
    %v2725 = vmul.f32 %v1807, %v2723
    %v2726 = vadd.f32 %v2721, %v2724
    %v2727 = vadd.f32 %v2722, %v2725
    %v2728 = vstv %s374
    %v2729 = vadd.f32 %v2726, %v2728
    %v2730 = vadd.f32 %v2727, %v2728
    %v2731 = vmul.f32 %v2729, 0.5
    %v2732 = vmul.f32 %v2730, 0.5
    %v2733 = vmul.f32 %v2729, 0.70710677
    %v2734 = vmul.f32 %v2730, 0.70710677
    %vm2735 = vcmp.ge.f32.partialorder %v2733, 0.0
    %vm2736 = vcmp.ge.f32.partialorder %v2734, 0.0
    %v2737 = vsel %vm2735, 1.0, -1.0
    %v2738 = vsel %vm2736, 1.0, -1.0
    %v2739 = vand.u32 2147483647, %v2733
    %v2740 = vand.u32 2147483647, %v2734
    %v2741 = vmul.f32 %v2739, 0.3275911
    %v2742 = vmul.f32 %v2740, 0.3275911
    %v2743 = vadd.f32 %v2741, 1.0
    %v2744 = vadd.f32 %v2742, 1.0
    %v2745 = vrcp.pop %v2743
    %v2746 = vrcp.pop %v2744
    %v2747 = vmul.f32 %v2745, 1.0614054
    %v2748 = vmul.f32 %v2746, 1.0614054
    %v2749 = vadd.f32 %v2747, -1.4531521
    %v2750 = vadd.f32 %v2748, -1.4531521
    %v2751 = vmul.f32 %v2749, %v2745
    %v2752 = vmul.f32 %v2750, %v2746
    %v2753 = vadd.f32 %v2751, 1.4214138
    %v2754 = vadd.f32 %v2752, 1.4214138
    %v2755 = vmul.f32 %v2753, %v2745
    %v2756 = vmul.f32 %v2754, %v2746
    %v2757 = vadd.f32 %v2755, -0.28449672
    %v2758 = vadd.f32 %v2756, -0.28449672
    %v2759 = vmul.f32 %v2757, %v2745
    %v2760 = vmul.f32 %v2758, %v2746
    %v2761 = vadd.f32 %v2759, 0.2548296
    %v2762 = vadd.f32 %v2760, 0.2548296
    %v2763 = vmul.f32 %v2761, %v2745
    %v2764 = vmul.f32 %v2762, %v2746
    %v2765 = vsub.f32 0.0, %v2739
    %v2766 = vsub.f32 0.0, %v2740
    %v2767 = vmul.f32 %v2765, %v2739
    %v2768 = vmul.f32 %v2766, %v2740
    %v2769 = vmul.f32 %v2767, 1.442695
    %v2770 = vpow.pop %v2769
    %v2771 = vmul.f32 %v2768, 1.442695
    %v2772 = vpow.pop %v2771
    %v2773 = vmul.f32 %v2763, %v2770
    %v2774 = vmul.f32 %v2764, %v2772
    %v2775 = vsub.f32 1.0, %v2773
    %v2776 = vsub.f32 1.0, %v2774
    %v2777 = vmul.f32 %v2737, %v2775
    %v2778 = vmul.f32 %v2738, %v2776
    %v2779 = vadd.f32 %v2777, 1.0
    %v2780 = vadd.f32 %v2778, 1.0
    %v2781 = vmul.f32 %v2731, %v2779
    %v2782 = vmul.f32 %v2732, %v2780
    %v2783 = vstv %s408
    %v2784 = vmul.f32 %v2781, %v2783
    %v2785 = vmul.f32 %v2782, %v2783
    %v2786 = vadd.f32 %v2703, %v2784
    %v2787 = vadd.f32 %v2704, %v2785
    %v2788 = vstv %s409
    %v2789 = vmul.f32 %v2781, %v2788
    %v2790 = vmul.f32 %v2782, %v2788
    %v2791 = vadd.f32 %v2708, %v2789
    %v2792 = vadd.f32 %v2709, %v2790
    %v2793 = vstv %s410
    %v2794 = vmul.f32 %v2781, %v2793
    %v2795 = vmul.f32 %v2782, %v2793
    %v2796 = vadd.f32 %v2713, %v2794
    %v2797 = vadd.f32 %v2714, %v2795
    %v2798 = vstv %s411
    %v2799 = vadd.f32 %v2786, %v2798
    %v2800 = vadd.f32 %v2787, %v2798
    %v2801 = vstv %s414
    %v2802 = vmul.f32 %v2799, %v2801
    %v2803 = vmul.f32 %v2800, %v2801
    %v2806 = vcombine.low %v2802, %v2803
    %v2808 = vunpack.c.l.s4 1983009808
    %v2809 = vunpack.c.0.s8 %v2808
    %v2810 = vlaneseq
    %v2811 = vshrl.u32 %v2810, 7
    %v2812 = vsub.s32 %v2809, %v2811
    %v2813 = vrot.slane %v2806, %v2812
    %v2815 = vadd.f32 %v470, %v2813
    %v2816 = vstv %s412
    %v2817 = vadd.f32 %v2791, %v2816
    %v2818 = vadd.f32 %v2792, %v2816
    %v2819 = vstv %s415
    %v2820 = vmul.f32 %v2817, %v2819
    %v2821 = vmul.f32 %v2818, %v2819
    %v2824 = vcombine.low %v2820, %v2821
    %v2826 = vunpack.c.l.s4 1983009808
    %v2827 = vunpack.c.0.s8 %v2826
    %v2828 = vlaneseq
    %v2829 = vshrl.u32 %v2828, 7
    %v2830 = vsub.s32 %v2827, %v2829
    %v2831 = vrot.slane %v2824, %v2830
    %v2833 = vadd.f32 %v472, %v2831
    %v2834 = vstv %s413
    %v2835 = vadd.f32 %v2796, %v2834
    %v2836 = vadd.f32 %v2797, %v2834
    %v2837 = vstv %s416
    %v2838 = vmul.f32 %v2835, %v2837
    %v2839 = vmul.f32 %v2836, %v2837
    %v2842 = vcombine.low %v2838, %v2839
    %v2844 = vunpack.c.l.s4 1983009808
    %v2845 = vunpack.c.0.s8 %v2844
    %v2846 = vlaneseq
    %v2847 = vshrl.u32 %v2846, 7
    %v2848 = vsub.s32 %v2845, %v2847
    %v2849 = vrot.slane %v2842, %v2848
    %v2851 = vadd.f32 %v474, %v2849
    %v2854 = vunpack.c.l.s4 1983009808
    %v2855 = vunpack.c.0.s8 %v2854
    %v2856 = vlaneseq
    %v2857 = vshrl.u32 %v2856, 7
    %v2858 = vsub.s32 %v2855, %v2857
    %v2859 = vrot.slane %v2815, %v2858
    %v2860 = vcombine.high %v2859, %v2859
    %vm2863 = vcmask 1041408
    %v2864 = vsel %vm2863, %v2859, 0.0
    %v2865 = vsel %vm2863, %v2860, 0.0
    %v2866 = vadd.f32 %v2864, %v2865
    %2867 = vadd.xlane.f32.xlu0 %v2866
    %v2868 = vpop.xlane.xlu0 %2867
    %v2869 = vmul.f32 %v2868, 0.00390625
    %v2872 = vunpack.c.l.s4 1983009808
    %v2873 = vunpack.c.0.s8 %v2872
    %v2874 = vlaneseq
    %v2875 = vshrl.u32 %v2874, 7
    %v2876 = vsub.s32 %v2873, %v2875
    %v2877 = vrot.slane %v2833, %v2876
    %v2878 = vcombine.high %v2877, %v2877
    %v2881 = vsel %vm2863, %v2877, 0.0
    %v2882 = vsel %vm2863, %v2878, 0.0
    %v2883 = vadd.f32 %v2881, %v2882
    %2884 = vadd.xlane.f32.xlu0 %v2883
    %v2885 = vpop.xlane.xlu0 %2884
    %v2886 = vmul.f32 %v2885, 0.00390625
    %v2889 = vunpack.c.l.s4 1983009808
    %v2890 = vunpack.c.0.s8 %v2889
    %v2891 = vlaneseq
    %v2892 = vshrl.u32 %v2891, 7
    %v2893 = vsub.s32 %v2890, %v2892
    %v2894 = vrot.slane %v2851, %v2893
    %v2895 = vcombine.high %v2894, %v2894
    %v2898 = vsel %vm2863, %v2894, 0.0
    %v2899 = vsel %vm2863, %v2895, 0.0
    %v2900 = vadd.f32 %v2898, %v2899
    %2901 = vadd.xlane.f32.xlu0 %v2900
    %v2902 = vpop.xlane.xlu0 %2901
    %v2903 = vmul.f32 %v2902, 0.00390625
    %v2904 = vstv %s417
    %v2905 = vmul.f32 %v2869, %v2904
    %v2906 = vstv %s423
    %v2907 = vmul.f32 %v2886, %v2906
    %v2908 = vadd.f32 %v2905, %v2907
    %v2909 = vstv %s429
    %v2910 = vmul.f32 %v2903, %v2909
    %v2911 = vadd.f32 %v2908, %v2910
    %v2912 = vstv %s435
    %v2913 = vadd.f32 %v2911, %v2912
    %v2914 = vstv %s418
    %v2915 = vmul.f32 %v2869, %v2914
    %v2916 = vstv %s424
    %v2917 = vmul.f32 %v2886, %v2916
    %v2918 = vadd.f32 %v2915, %v2917
    %v2919 = vstv %s430
    %v2920 = vmul.f32 %v2903, %v2919
    %v2921 = vadd.f32 %v2918, %v2920
    %v2922 = vstv %s436
    %v2923 = vadd.f32 %v2921, %v2922
    %v2924 = vstv %s419
    %v2925 = vmul.f32 %v2869, %v2924
    %v2926 = vstv %s425
    %v2927 = vmul.f32 %v2886, %v2926
    %v2928 = vadd.f32 %v2925, %v2927
    %v2929 = vstv %s431
    %v2930 = vmul.f32 %v2903, %v2929
    %v2931 = vadd.f32 %v2928, %v2930
    %v2932 = vstv %s437
    %v2933 = vadd.f32 %v2931, %v2932
    %v2934 = vstv %s420
    %v2935 = vmul.f32 %v2869, %v2934
    %v2936 = vstv %s426
    %v2937 = vmul.f32 %v2886, %v2936
    %v2938 = vadd.f32 %v2935, %v2937
    %v2939 = vstv %s432
    %v2940 = vmul.f32 %v2903, %v2939
    %v2941 = vadd.f32 %v2938, %v2940
    %v2942 = vstv %s438
    %v2943 = vadd.f32 %v2941, %v2942
    %v2944 = vstv %s421
    %v2945 = vmul.f32 %v2869, %v2944
    %v2946 = vstv %s427
    %v2947 = vmul.f32 %v2886, %v2946
    %v2948 = vadd.f32 %v2945, %v2947
    %v2949 = vstv %s433
    %v2950 = vmul.f32 %v2903, %v2949
    %v2951 = vadd.f32 %v2948, %v2950
    %v2952 = vstv %s439
    %v2953 = vadd.f32 %v2951, %v2952
    %v2954 = vstv %s422
    %v2955 = vmul.f32 %v2869, %v2954
    %v2956 = vstv %s428
    %v2957 = vmul.f32 %v2886, %v2956
    %v2958 = vadd.f32 %v2955, %v2957
    %v2959 = vstv %s434
    %v2960 = vmul.f32 %v2903, %v2959
    %v2961 = vadd.f32 %v2958, %v2960
    %v2962 = vstv %s440
    %v2963 = vadd.f32 %v2961, %v2962
    %vm2964 = vcmp.gt.f32.partialorder %v2943, 20.0
    %v2965 = vmin.f32 %v2943, 20.0
    %v2966 = vmul.f32 %v2965, 1.442695
    %v2967 = vpow.pop %v2966
    %v2968 = vadd.f32 %v2967, 1.0
    %v2969 = vlog2.pop %v2968
    %v2970 = vmul.f32 %v2969, 0.6931472
    %v2971 = vsel %vm2964, %v2943, %v2970
    %v2972 = vmax.f32 %v2971, 1e-06
    %v2973 = vrcp.pop %v2972
    %v2974 = vmul.f32 1.0, %v2973
    %v2977 = vunpack.c.l.s4 269488144
    %v2978 = vunpack.c.0.s8 %v2977
    %v2979 = vlaneseq
    %v2980 = vshrl.u32 %v2979, 7
    %v2981 = vsub.s32 %v2978, %v2980
    %v2982 = vrot.slane %v2913, %v2981
    %v2984 = vsub.f32 %v470, %v2982
    %v2987 = vunpack.c.l.s4 269488144
    %v2988 = vunpack.c.0.s8 %v2987
    %v2989 = vlaneseq
    %v2990 = vshrl.u32 %v2989, 7
    %v2991 = vsub.s32 %v2988, %v2990
    %v2992 = vrot.slane %v2974, %v2991
    %v2994 = vmul.f32 %v2984, %v2992
    %vm2995 = vcmp.gt.f32.partialorder %v2953, 20.0
    %v2996 = vmin.f32 %v2953, 20.0
    %v2997 = vmul.f32 %v2996, 1.442695
    %v2998 = vpow.pop %v2997
    %v2999 = vadd.f32 %v2998, 1.0
    %v3000 = vlog2.pop %v2999
    %v3001 = vmul.f32 %v3000, 0.6931472
    %v3002 = vsel %vm2995, %v2953, %v3001
    %v3003 = vmax.f32 %v3002, 1e-06
    %v3004 = vrcp.pop %v3003
    %v3005 = vmul.f32 1.0, %v3004
    %v3008 = vunpack.c.l.s4 269488144
    %v3009 = vunpack.c.0.s8 %v3008
    %v3010 = vlaneseq
    %v3011 = vshrl.u32 %v3010, 7
    %v3012 = vsub.s32 %v3009, %v3011
    %v3013 = vrot.slane %v2923, %v3012
    %v3015 = vsub.f32 %v472, %v3013
    %v3018 = vunpack.c.l.s4 269488144
    %v3019 = vunpack.c.0.s8 %v3018
    %v3020 = vlaneseq
    %v3021 = vshrl.u32 %v3020, 7
    %v3022 = vsub.s32 %v3019, %v3021
    %v3023 = vrot.slane %v3005, %v3022
    %v3025 = vmul.f32 %v3015, %v3023
    %vm3026 = vcmp.gt.f32.partialorder %v2963, 20.0
    %v3027 = vmin.f32 %v2963, 20.0
    %v3028 = vmul.f32 %v3027, 1.442695
    %v3029 = vpow.pop %v3028
    %v3030 = vadd.f32 %v3029, 1.0
    %v3031 = vlog2.pop %v3030
    %v3032 = vmul.f32 %v3031, 0.6931472
    %v3033 = vsel %vm3026, %v2963, %v3032
    %v3034 = vmax.f32 %v3033, 1e-06
    %v3035 = vrcp.pop %v3034
    %v3036 = vmul.f32 1.0, %v3035
    %v3039 = vunpack.c.l.s4 269488144
    %v3040 = vunpack.c.0.s8 %v3039
    %v3041 = vlaneseq
    %v3042 = vshrl.u32 %v3041, 7
    %v3043 = vsub.s32 %v3040, %v3042
    %v3044 = vrot.slane %v2933, %v3043
    %v3046 = vsub.f32 %v474, %v3044
    %v3049 = vunpack.c.l.s4 269488144
    %v3050 = vunpack.c.0.s8 %v3049
    %v3051 = vlaneseq
    %v3052 = vshrl.u32 %v3051, 7
    %v3053 = vsub.s32 %v3050, %v3052
    %v3054 = vrot.slane %v3036, %v3053
    %v3056 = vmul.f32 %v3046, %v3054
    %v3059 = vunpack.c.l.s4 1983009808
    %v3060 = vunpack.c.0.s8 %v3059
    %v3061 = vlaneseq
    %v3062 = vshrl.u32 %v3061, 7
    %v3063 = vsub.s32 %v3060, %v3062
    %v3064 = vrot.slane %v2994, %v3063
    %v3065 = vcombine.high %v3064, %v3064
    %3068 = vrot.lane.b32.xlu0 %v3064, 3
    %v3069 = vpop.permute.xlu0 %3068
    %3070 = vrot.lane.b32.xlu0 %v3065, 3
    %v3071 = vpop.permute.xlu0 %3070
    %v3072 = vsel %vm490, %v3069, %v3071
    %v3073 = vsel %vm490, %v3071, %v3069
    %v3074 = vsel %vm464, %v3073, 0.0
    %v3075 = vsel %vm465, %v3072, 0.0
    %3076 = vrot.lane.b32.xlu0 %v3064, 2
    %v3077 = vpop.permute.xlu0 %3076
    %3078 = vrot.lane.b32.xlu0 %v3065, 2
    %v3079 = vpop.permute.xlu0 %3078
    %v3080 = vsel %vm499, %v3077, %v3079
    %v3081 = vsel %vm499, %v3079, %v3077
    %v3082 = vsel %vm456, %v3081, 0.0
    %v3083 = vsel %vm457, %v3080, 0.0
    %3084 = vrot.lane.b32.xlu0 %v3064, 1
    %v3085 = vpop.permute.xlu0 %3084
    %3086 = vrot.lane.b32.xlu0 %v3065, 1
    %v3087 = vpop.permute.xlu0 %3086
    %v3088 = vsel %vm508, %v3085, %v3087
    %v3089 = vsel %vm508, %v3087, %v3085
    %v3090 = vsel %vm448, %v3089, 0.0
    %v3091 = vsel %vm449, %v3088, 0.0
    %3092 = vrot.lane.b32.xlu0 %v3064, 127
    %v3093 = vpop.permute.xlu0 %3092
    %3094 = vrot.lane.b32.xlu0 %v3065, 127
    %v3095 = vpop.permute.xlu0 %3094
    %v3096 = vsel %vm517, %v3093, %v3095
    %v3097 = vsel %vm517, %v3095, %v3093
    %v3098 = vsel %vm446, %v3096, 0.0
    %v3099 = vsel %vm447, %v3097, 0.0
    %3100 = vrot.lane.b32.xlu0 %v3064, 126
    %v3101 = vpop.permute.xlu0 %3100
    %3102 = vrot.lane.b32.xlu0 %v3065, 126
    %v3103 = vpop.permute.xlu0 %3102
    %v3104 = vsel %vm526, %v3101, %v3103
    %v3105 = vsel %vm526, %v3103, %v3101
    %v3106 = vsel %vm454, %v3104, 0.0
    %v3107 = vsel %vm455, %v3105, 0.0
    %3108 = vrot.lane.b32.xlu0 %v3064, 125
    %v3109 = vpop.permute.xlu0 %3108
    %3110 = vrot.lane.b32.xlu0 %v3065, 125
    %v3111 = vpop.permute.xlu0 %3110
    %v3112 = vsel %vm535, %v3109, %v3111
    %v3113 = vsel %vm535, %v3111, %v3109
    %v3114 = vsel %vm462, %v3112, 0.0
    %v3115 = vsel %vm463, %v3113, 0.0
    %v3116 = vmul.f32 %v3074, %v540
    %v3117 = vmul.f32 %v3075, %v540
    %v3118 = vmul.f32 %v3082, %v543
    %v3119 = vmul.f32 %v3083, %v543
    %v3120 = vadd.f32 %v3116, %v3118
    %v3121 = vadd.f32 %v3117, %v3119
    %v3122 = vmul.f32 %v3090, %v548
    %v3123 = vmul.f32 %v3091, %v548
    %v3124 = vadd.f32 %v3120, %v3122
    %v3125 = vadd.f32 %v3121, %v3123
    %v3126 = vmul.f32 %v2994, %v553
    %v3129 = vunpack.c.l.s4 1983009808
    %v3130 = vunpack.c.0.s8 %v3129
    %v3131 = vlaneseq
    %v3132 = vshrl.u32 %v3131, 7
    %v3133 = vsub.s32 %v3130, %v3132
    %v3134 = vrot.slane %v3126, %v3133
    %v3135 = vcombine.high %v3134, %v3134
    %v3138 = vadd.f32 %v3124, %v3134
    %v3139 = vadd.f32 %v3125, %v3135
    %v3140 = vmul.f32 %v3098, %v568
    %v3141 = vmul.f32 %v3099, %v568
    %v3142 = vadd.f32 %v3138, %v3140
    %v3143 = vadd.f32 %v3139, %v3141
    %v3144 = vmul.f32 %v3106, %v573
    %v3145 = vmul.f32 %v3107, %v573
    %v3146 = vadd.f32 %v3142, %v3144
    %v3147 = vadd.f32 %v3143, %v3145
    %v3148 = vmul.f32 %v3114, %v578
    %v3149 = vmul.f32 %v3115, %v578
    %v3150 = vadd.f32 %v3146, %v3148
    %v3151 = vadd.f32 %v3147, %v3149
    %3152 = vrot.lane.b32.xlu0 %v3150, 48
    %v3153 = vpop.permute.xlu0 %3152
    %3154 = vrot.lane.b32.xlu0 %v3151, 48
    %v3155 = vpop.permute.xlu0 %3154
    %v3156 = vsel %vm587, %v3153, %v3155
    %v3157 = vsel %vm587, %v3155, %v3153
    %v3158 = vsel %vm468, %v3157, 0.0
    %v3159 = vsel %vm469, %v3156, 0.0
    %v3160 = vmul.f32 %v3074, %v592
    %v3161 = vmul.f32 %v3075, %v592
    %v3162 = vmul.f32 %v3082, %v595
    %v3163 = vmul.f32 %v3083, %v595
    %v3164 = vadd.f32 %v3160, %v3162
    %v3165 = vadd.f32 %v3161, %v3163
    %v3166 = vmul.f32 %v3090, %v600
    %v3167 = vmul.f32 %v3091, %v600
    %v3168 = vadd.f32 %v3164, %v3166
    %v3169 = vadd.f32 %v3165, %v3167
    %v3170 = vmul.f32 %v2994, %v605
    %v3173 = vunpack.c.l.s4 1983009808
    %v3174 = vunpack.c.0.s8 %v3173
    %v3175 = vlaneseq
    %v3176 = vshrl.u32 %v3175, 7
    %v3177 = vsub.s32 %v3174, %v3176
    %v3178 = vrot.slane %v3170, %v3177
    %v3179 = vcombine.high %v3178, %v3178
    %v3182 = vadd.f32 %v3168, %v3178
    %v3183 = vadd.f32 %v3169, %v3179
    %v3184 = vmul.f32 %v3098, %v620
    %v3185 = vmul.f32 %v3099, %v620
    %v3186 = vadd.f32 %v3182, %v3184
    %v3187 = vadd.f32 %v3183, %v3185
    %v3188 = vmul.f32 %v3106, %v625
    %v3189 = vmul.f32 %v3107, %v625
    %v3190 = vadd.f32 %v3186, %v3188
    %v3191 = vadd.f32 %v3187, %v3189
    %v3192 = vmul.f32 %v3114, %v630
    %v3193 = vmul.f32 %v3115, %v630
    %v3194 = vadd.f32 %v3190, %v3192
    %v3195 = vadd.f32 %v3191, %v3193
    %3196 = vrot.lane.b32.xlu0 %v3194, 32
    %v3197 = vpop.permute.xlu0 %3196
    %3198 = vrot.lane.b32.xlu0 %v3195, 32
    %v3199 = vpop.permute.xlu0 %3198
    %v3200 = vsel %vm639, %v3197, %v3199
    %v3201 = vsel %vm639, %v3199, %v3197
    %v3202 = vsel %vm460, %v3201, 0.0
    %v3203 = vsel %vm461, %v3200, 0.0
    %v3204 = vadd.f32 %v3158, %v3202
    %v3205 = vadd.f32 %v3159, %v3203
    %v3206 = vmul.f32 %v3074, %v646
    %v3207 = vmul.f32 %v3075, %v646
    %v3208 = vmul.f32 %v3082, %v649
    %v3209 = vmul.f32 %v3083, %v649
    %v3210 = vadd.f32 %v3206, %v3208
    %v3211 = vadd.f32 %v3207, %v3209
    %v3212 = vmul.f32 %v3090, %v654
    %v3213 = vmul.f32 %v3091, %v654
    %v3214 = vadd.f32 %v3210, %v3212
    %v3215 = vadd.f32 %v3211, %v3213
    %v3216 = vmul.f32 %v2994, %v659
    %v3219 = vunpack.c.l.s4 1983009808
    %v3220 = vunpack.c.0.s8 %v3219
    %v3221 = vlaneseq
    %v3222 = vshrl.u32 %v3221, 7
    %v3223 = vsub.s32 %v3220, %v3222
    %v3224 = vrot.slane %v3216, %v3223
    %v3225 = vcombine.high %v3224, %v3224
    %v3228 = vadd.f32 %v3214, %v3224
    %v3229 = vadd.f32 %v3215, %v3225
    %v3230 = vmul.f32 %v3098, %v674
    %v3231 = vmul.f32 %v3099, %v674
    %v3232 = vadd.f32 %v3228, %v3230
    %v3233 = vadd.f32 %v3229, %v3231
    %v3234 = vmul.f32 %v3106, %v679
    %v3235 = vmul.f32 %v3107, %v679
    %v3236 = vadd.f32 %v3232, %v3234
    %v3237 = vadd.f32 %v3233, %v3235
    %v3238 = vmul.f32 %v3114, %v684
    %v3239 = vmul.f32 %v3115, %v684
    %v3240 = vadd.f32 %v3236, %v3238
    %v3241 = vadd.f32 %v3237, %v3239
    %3242 = vrot.lane.b32.xlu0 %v3240, 16
    %v3243 = vpop.permute.xlu0 %3242
    %3244 = vrot.lane.b32.xlu0 %v3241, 16
    %v3245 = vpop.permute.xlu0 %3244
    %v3246 = vsel %vm693, %v3243, %v3245
    %v3247 = vsel %vm693, %v3245, %v3243
    %v3248 = vsel %vm452, %v3247, 0.0
    %v3249 = vsel %vm453, %v3246, 0.0
    %v3250 = vadd.f32 %v3204, %v3248
    %v3251 = vadd.f32 %v3205, %v3249
    %v3252 = vmul.f32 %v3074, %v700
    %v3253 = vmul.f32 %v3075, %v700
    %v3254 = vmul.f32 %v3082, %v703
    %v3255 = vmul.f32 %v3083, %v703
    %v3256 = vadd.f32 %v3252, %v3254
    %v3257 = vadd.f32 %v3253, %v3255
    %v3258 = vmul.f32 %v3090, %v708
    %v3259 = vmul.f32 %v3091, %v708
    %v3260 = vadd.f32 %v3256, %v3258
    %v3261 = vadd.f32 %v3257, %v3259
    %v3262 = vmul.f32 %v2994, %v713
    %v3265 = vunpack.c.l.s4 1983009808
    %v3266 = vunpack.c.0.s8 %v3265
    %v3267 = vlaneseq
    %v3268 = vshrl.u32 %v3267, 7
    %v3269 = vsub.s32 %v3266, %v3268
    %v3270 = vrot.slane %v3262, %v3269
    %v3271 = vcombine.high %v3270, %v3270
    %v3274 = vadd.f32 %v3260, %v3270
    %v3275 = vadd.f32 %v3261, %v3271
    %v3276 = vmul.f32 %v3098, %v728
    %v3277 = vmul.f32 %v3099, %v728
    %v3278 = vadd.f32 %v3274, %v3276
    %v3279 = vadd.f32 %v3275, %v3277
    %v3280 = vmul.f32 %v3106, %v733
    %v3281 = vmul.f32 %v3107, %v733
    %v3282 = vadd.f32 %v3278, %v3280
    %v3283 = vadd.f32 %v3279, %v3281
    %v3284 = vmul.f32 %v3114, %v738
    %v3285 = vmul.f32 %v3115, %v738
    %v3286 = vadd.f32 %v3282, %v3284
    %v3287 = vadd.f32 %v3283, %v3285
    %v3288 = vadd.f32 %v3250, %v3286
    %v3289 = vadd.f32 %v3251, %v3287
    %v3290 = vmul.f32 %v3074, %v745
    %v3291 = vmul.f32 %v3075, %v745
    %v3292 = vmul.f32 %v3082, %v748
    %v3293 = vmul.f32 %v3083, %v748
    %v3294 = vadd.f32 %v3290, %v3292
    %v3295 = vadd.f32 %v3291, %v3293
    %v3296 = vmul.f32 %v3090, %v753
    %v3297 = vmul.f32 %v3091, %v753
    %v3298 = vadd.f32 %v3294, %v3296
    %v3299 = vadd.f32 %v3295, %v3297
    %v3300 = vmul.f32 %v2994, %v758
    %v3303 = vunpack.c.l.s4 1983009808
    %v3304 = vunpack.c.0.s8 %v3303
    %v3305 = vlaneseq
    %v3306 = vshrl.u32 %v3305, 7
    %v3307 = vsub.s32 %v3304, %v3306
    %v3308 = vrot.slane %v3300, %v3307
    %v3309 = vcombine.high %v3308, %v3308
    %v3312 = vadd.f32 %v3298, %v3308
    %v3313 = vadd.f32 %v3299, %v3309
    %v3314 = vmul.f32 %v3098, %v773
    %v3315 = vmul.f32 %v3099, %v773
    %v3316 = vadd.f32 %v3312, %v3314
    %v3317 = vadd.f32 %v3313, %v3315
    %v3318 = vmul.f32 %v3106, %v778
    %v3319 = vmul.f32 %v3107, %v778
    %v3320 = vadd.f32 %v3316, %v3318
    %v3321 = vadd.f32 %v3317, %v3319
    %v3322 = vmul.f32 %v3114, %v783
    %v3323 = vmul.f32 %v3115, %v783
    %v3324 = vadd.f32 %v3320, %v3322
    %v3325 = vadd.f32 %v3321, %v3323
    %3326 = vrot.lane.b32.xlu0 %v3324, 112
    %v3327 = vpop.permute.xlu0 %3326
    %3328 = vrot.lane.b32.xlu0 %v3325, 112
    %v3329 = vpop.permute.xlu0 %3328
    %v3330 = vsel %vm792, %v3327, %v3329
    %v3331 = vsel %vm792, %v3329, %v3327
    %v3332 = vsel %vm450, %v3330, 0.0
    %v3333 = vsel %vm451, %v3331, 0.0
    %v3334 = vadd.f32 %v3288, %v3332
    %v3335 = vadd.f32 %v3289, %v3333
    %v3336 = vmul.f32 %v3074, %v799
    %v3337 = vmul.f32 %v3075, %v799
    %v3338 = vmul.f32 %v3082, %v802
    %v3339 = vmul.f32 %v3083, %v802
    %v3340 = vadd.f32 %v3336, %v3338
    %v3341 = vadd.f32 %v3337, %v3339
    %v3342 = vmul.f32 %v3090, %v807
    %v3343 = vmul.f32 %v3091, %v807
    %v3344 = vadd.f32 %v3340, %v3342
    %v3345 = vadd.f32 %v3341, %v3343
    %v3346 = vmul.f32 %v2994, %v812
    %v3349 = vunpack.c.l.s4 1983009808
    %v3350 = vunpack.c.0.s8 %v3349
    %v3351 = vlaneseq
    %v3352 = vshrl.u32 %v3351, 7
    %v3353 = vsub.s32 %v3350, %v3352
    %v3354 = vrot.slane %v3346, %v3353
    %v3355 = vcombine.high %v3354, %v3354
    %v3358 = vadd.f32 %v3344, %v3354
    %v3359 = vadd.f32 %v3345, %v3355
    %v3360 = vmul.f32 %v3098, %v827
    %v3361 = vmul.f32 %v3099, %v827
    %v3362 = vadd.f32 %v3358, %v3360
    %v3363 = vadd.f32 %v3359, %v3361
    %v3364 = vmul.f32 %v3106, %v832
    %v3365 = vmul.f32 %v3107, %v832
    %v3366 = vadd.f32 %v3362, %v3364
    %v3367 = vadd.f32 %v3363, %v3365
    %v3368 = vmul.f32 %v3114, %v837
    %v3369 = vmul.f32 %v3115, %v837
    %v3370 = vadd.f32 %v3366, %v3368
    %v3371 = vadd.f32 %v3367, %v3369
    %3372 = vrot.lane.b32.xlu0 %v3370, 96
    %v3373 = vpop.permute.xlu0 %3372
    %3374 = vrot.lane.b32.xlu0 %v3371, 96
    %v3375 = vpop.permute.xlu0 %3374
    %v3376 = vsel %vm846, %v3373, %v3375
    %v3377 = vsel %vm846, %v3375, %v3373
    %v3378 = vsel %vm458, %v3376, 0.0
    %v3379 = vsel %vm459, %v3377, 0.0
    %v3380 = vadd.f32 %v3334, %v3378
    %v3381 = vadd.f32 %v3335, %v3379
    %v3382 = vmul.f32 %v3074, %v853
    %v3383 = vmul.f32 %v3075, %v853
    %v3384 = vmul.f32 %v3082, %v856
    %v3385 = vmul.f32 %v3083, %v856
    %v3386 = vadd.f32 %v3382, %v3384
    %v3387 = vadd.f32 %v3383, %v3385
    %v3388 = vmul.f32 %v3090, %v861
    %v3389 = vmul.f32 %v3091, %v861
    %v3390 = vadd.f32 %v3386, %v3388
    %v3391 = vadd.f32 %v3387, %v3389
    %v3392 = vmul.f32 %v2994, %v866
    %v3395 = vunpack.c.l.s4 1983009808
    %v3396 = vunpack.c.0.s8 %v3395
    %v3397 = vlaneseq
    %v3398 = vshrl.u32 %v3397, 7
    %v3399 = vsub.s32 %v3396, %v3398
    %v3400 = vrot.slane %v3392, %v3399
    %v3401 = vcombine.high %v3400, %v3400
    %v3404 = vadd.f32 %v3390, %v3400
    %v3405 = vadd.f32 %v3391, %v3401
    %v3406 = vmul.f32 %v3098, %v881
    %v3407 = vmul.f32 %v3099, %v881
    %v3408 = vadd.f32 %v3404, %v3406
    %v3409 = vadd.f32 %v3405, %v3407
    %v3410 = vmul.f32 %v3106, %v886
    %v3411 = vmul.f32 %v3107, %v886
    %v3412 = vadd.f32 %v3408, %v3410
    %v3413 = vadd.f32 %v3409, %v3411
    %v3414 = vmul.f32 %v3114, %v891
    %v3415 = vmul.f32 %v3115, %v891
    %v3416 = vadd.f32 %v3412, %v3414
    %v3417 = vadd.f32 %v3413, %v3415
    %3418 = vrot.lane.b32.xlu0 %v3416, 80
    %v3419 = vpop.permute.xlu0 %3418
    %3420 = vrot.lane.b32.xlu0 %v3417, 80
    %v3421 = vpop.permute.xlu0 %3420
    %v3422 = vsel %vm900, %v3419, %v3421
    %v3423 = vsel %vm900, %v3421, %v3419
    %v3424 = vsel %vm466, %v3422, 0.0
    %v3425 = vsel %vm467, %v3423, 0.0
    %v3426 = vadd.f32 %v3380, %v3424
    %v3427 = vadd.f32 %v3381, %v3425
    %v3428 = vadd.f32 %v3426, %v907
    %v3429 = vadd.f32 %v3427, %v907
    %v3432 = vunpack.c.l.s4 1983009808
    %v3433 = vunpack.c.0.s8 %v3432
    %v3434 = vlaneseq
    %v3435 = vshrl.u32 %v3434, 7
    %v3436 = vsub.s32 %v3433, %v3435
    %v3437 = vrot.slane %v3025, %v3436
    %v3438 = vcombine.high %v3437, %v3437
    %3441 = vrot.lane.b32.xlu0 %v3437, 3
    %v3442 = vpop.permute.xlu0 %3441
    %3443 = vrot.lane.b32.xlu0 %v3438, 3
    %v3444 = vpop.permute.xlu0 %3443
    %v3445 = vsel %vm490, %v3442, %v3444
    %v3446 = vsel %vm490, %v3444, %v3442
    %v3447 = vsel %vm464, %v3446, 0.0
    %v3448 = vsel %vm465, %v3445, 0.0
    %3449 = vrot.lane.b32.xlu0 %v3437, 2
    %v3450 = vpop.permute.xlu0 %3449
    %3451 = vrot.lane.b32.xlu0 %v3438, 2
    %v3452 = vpop.permute.xlu0 %3451
    %v3453 = vsel %vm499, %v3450, %v3452
    %v3454 = vsel %vm499, %v3452, %v3450
    %v3455 = vsel %vm456, %v3454, 0.0
    %v3456 = vsel %vm457, %v3453, 0.0
    %3457 = vrot.lane.b32.xlu0 %v3437, 1
    %v3458 = vpop.permute.xlu0 %3457
    %3459 = vrot.lane.b32.xlu0 %v3438, 1
    %v3460 = vpop.permute.xlu0 %3459
    %v3461 = vsel %vm508, %v3458, %v3460
    %v3462 = vsel %vm508, %v3460, %v3458
    %v3463 = vsel %vm448, %v3462, 0.0
    %v3464 = vsel %vm449, %v3461, 0.0
    %3465 = vrot.lane.b32.xlu0 %v3437, 127
    %v3466 = vpop.permute.xlu0 %3465
    %3467 = vrot.lane.b32.xlu0 %v3438, 127
    %v3468 = vpop.permute.xlu0 %3467
    %v3469 = vsel %vm517, %v3466, %v3468
    %v3470 = vsel %vm517, %v3468, %v3466
    %v3471 = vsel %vm446, %v3469, 0.0
    %v3472 = vsel %vm447, %v3470, 0.0
    %3473 = vrot.lane.b32.xlu0 %v3437, 126
    %v3474 = vpop.permute.xlu0 %3473
    %3475 = vrot.lane.b32.xlu0 %v3438, 126
    %v3476 = vpop.permute.xlu0 %3475
    %v3477 = vsel %vm526, %v3474, %v3476
    %v3478 = vsel %vm526, %v3476, %v3474
    %v3479 = vsel %vm454, %v3477, 0.0
    %v3480 = vsel %vm455, %v3478, 0.0
    %3481 = vrot.lane.b32.xlu0 %v3437, 125
    %v3482 = vpop.permute.xlu0 %3481
    %3483 = vrot.lane.b32.xlu0 %v3438, 125
    %v3484 = vpop.permute.xlu0 %3483
    %v3485 = vsel %vm535, %v3482, %v3484
    %v3486 = vsel %vm535, %v3484, %v3482
    %v3487 = vsel %vm462, %v3485, 0.0
    %v3488 = vsel %vm463, %v3486, 0.0
    %v3489 = vmul.f32 %v3447, %v969
    %v3490 = vmul.f32 %v3448, %v969
    %v3491 = vmul.f32 %v3455, %v972
    %v3492 = vmul.f32 %v3456, %v972
    %v3493 = vadd.f32 %v3489, %v3491
    %v3494 = vadd.f32 %v3490, %v3492
    %v3495 = vmul.f32 %v3463, %v977
    %v3496 = vmul.f32 %v3464, %v977
    %v3497 = vadd.f32 %v3493, %v3495
    %v3498 = vadd.f32 %v3494, %v3496
    %v3499 = vmul.f32 %v3025, %v982
    %v3502 = vunpack.c.l.s4 1983009808
    %v3503 = vunpack.c.0.s8 %v3502
    %v3504 = vlaneseq
    %v3505 = vshrl.u32 %v3504, 7
    %v3506 = vsub.s32 %v3503, %v3505
    %v3507 = vrot.slane %v3499, %v3506
    %v3508 = vcombine.high %v3507, %v3507
    %v3511 = vadd.f32 %v3497, %v3507
    %v3512 = vadd.f32 %v3498, %v3508
    %v3513 = vmul.f32 %v3471, %v997
    %v3514 = vmul.f32 %v3472, %v997
    %v3515 = vadd.f32 %v3511, %v3513
    %v3516 = vadd.f32 %v3512, %v3514
    %v3517 = vmul.f32 %v3479, %v1002
    %v3518 = vmul.f32 %v3480, %v1002
    %v3519 = vadd.f32 %v3515, %v3517
    %v3520 = vadd.f32 %v3516, %v3518
    %v3521 = vmul.f32 %v3487, %v1007
    %v3522 = vmul.f32 %v3488, %v1007
    %v3523 = vadd.f32 %v3519, %v3521
    %v3524 = vadd.f32 %v3520, %v3522
    %3525 = vrot.lane.b32.xlu0 %v3523, 48
    %v3526 = vpop.permute.xlu0 %3525
    %3527 = vrot.lane.b32.xlu0 %v3524, 48
    %v3528 = vpop.permute.xlu0 %3527
    %v3529 = vsel %vm587, %v3526, %v3528
    %v3530 = vsel %vm587, %v3528, %v3526
    %v3531 = vsel %vm468, %v3530, 0.0
    %v3532 = vsel %vm469, %v3529, 0.0
    %v3533 = vmul.f32 %v3447, %v1020
    %v3534 = vmul.f32 %v3448, %v1020
    %v3535 = vmul.f32 %v3455, %v1023
    %v3536 = vmul.f32 %v3456, %v1023
    %v3537 = vadd.f32 %v3533, %v3535
    %v3538 = vadd.f32 %v3534, %v3536
    %v3539 = vmul.f32 %v3463, %v1028
    %v3540 = vmul.f32 %v3464, %v1028
    %v3541 = vadd.f32 %v3537, %v3539
    %v3542 = vadd.f32 %v3538, %v3540
    %v3543 = vmul.f32 %v3025, %v1033
    %v3546 = vunpack.c.l.s4 1983009808
    %v3547 = vunpack.c.0.s8 %v3546
    %v3548 = vlaneseq
    %v3549 = vshrl.u32 %v3548, 7
    %v3550 = vsub.s32 %v3547, %v3549
    %v3551 = vrot.slane %v3543, %v3550
    %v3552 = vcombine.high %v3551, %v3551
    %v3555 = vadd.f32 %v3541, %v3551
    %v3556 = vadd.f32 %v3542, %v3552
    %v3557 = vmul.f32 %v3471, %v1048
    %v3558 = vmul.f32 %v3472, %v1048
    %v3559 = vadd.f32 %v3555, %v3557
    %v3560 = vadd.f32 %v3556, %v3558
    %v3561 = vmul.f32 %v3479, %v1053
    %v3562 = vmul.f32 %v3480, %v1053
    %v3563 = vadd.f32 %v3559, %v3561
    %v3564 = vadd.f32 %v3560, %v3562
    %v3565 = vmul.f32 %v3487, %v1058
    %v3566 = vmul.f32 %v3488, %v1058
    %v3567 = vadd.f32 %v3563, %v3565
    %v3568 = vadd.f32 %v3564, %v3566
    %3569 = vrot.lane.b32.xlu0 %v3567, 32
    %v3570 = vpop.permute.xlu0 %3569
    %3571 = vrot.lane.b32.xlu0 %v3568, 32
    %v3572 = vpop.permute.xlu0 %3571
    %v3573 = vsel %vm639, %v3570, %v3572
    %v3574 = vsel %vm639, %v3572, %v3570
    %v3575 = vsel %vm460, %v3574, 0.0
    %v3576 = vsel %vm461, %v3573, 0.0
    %v3577 = vadd.f32 %v3531, %v3575
    %v3578 = vadd.f32 %v3532, %v3576
    %v3579 = vmul.f32 %v3447, %v1073
    %v3580 = vmul.f32 %v3448, %v1073
    %v3581 = vmul.f32 %v3455, %v1076
    %v3582 = vmul.f32 %v3456, %v1076
    %v3583 = vadd.f32 %v3579, %v3581
    %v3584 = vadd.f32 %v3580, %v3582
    %v3585 = vmul.f32 %v3463, %v1081
    %v3586 = vmul.f32 %v3464, %v1081
    %v3587 = vadd.f32 %v3583, %v3585
    %v3588 = vadd.f32 %v3584, %v3586
    %v3589 = vmul.f32 %v3025, %v1086
    %v3592 = vunpack.c.l.s4 1983009808
    %v3593 = vunpack.c.0.s8 %v3592
    %v3594 = vlaneseq
    %v3595 = vshrl.u32 %v3594, 7
    %v3596 = vsub.s32 %v3593, %v3595
    %v3597 = vrot.slane %v3589, %v3596
    %v3598 = vcombine.high %v3597, %v3597
    %v3601 = vadd.f32 %v3587, %v3597
    %v3602 = vadd.f32 %v3588, %v3598
    %v3603 = vmul.f32 %v3471, %v1101
    %v3604 = vmul.f32 %v3472, %v1101
    %v3605 = vadd.f32 %v3601, %v3603
    %v3606 = vadd.f32 %v3602, %v3604
    %v3607 = vmul.f32 %v3479, %v1106
    %v3608 = vmul.f32 %v3480, %v1106
    %v3609 = vadd.f32 %v3605, %v3607
    %v3610 = vadd.f32 %v3606, %v3608
    %v3611 = vmul.f32 %v3487, %v1111
    %v3612 = vmul.f32 %v3488, %v1111
    %v3613 = vadd.f32 %v3609, %v3611
    %v3614 = vadd.f32 %v3610, %v3612
    %3615 = vrot.lane.b32.xlu0 %v3613, 16
    %v3616 = vpop.permute.xlu0 %3615
    %3617 = vrot.lane.b32.xlu0 %v3614, 16
    %v3618 = vpop.permute.xlu0 %3617
    %v3619 = vsel %vm693, %v3616, %v3618
    %v3620 = vsel %vm693, %v3618, %v3616
    %v3621 = vsel %vm452, %v3620, 0.0
    %v3622 = vsel %vm453, %v3619, 0.0
    %v3623 = vadd.f32 %v3577, %v3621
    %v3624 = vadd.f32 %v3578, %v3622
    %v3625 = vmul.f32 %v3447, %v1126
    %v3626 = vmul.f32 %v3448, %v1126
    %v3627 = vmul.f32 %v3455, %v1129
    %v3628 = vmul.f32 %v3456, %v1129
    %v3629 = vadd.f32 %v3625, %v3627
    %v3630 = vadd.f32 %v3626, %v3628
    %v3631 = vmul.f32 %v3463, %v1134
    %v3632 = vmul.f32 %v3464, %v1134
    %v3633 = vadd.f32 %v3629, %v3631
    %v3634 = vadd.f32 %v3630, %v3632
    %v3635 = vmul.f32 %v3025, %v1139
    %v3638 = vunpack.c.l.s4 1983009808
    %v3639 = vunpack.c.0.s8 %v3638
    %v3640 = vlaneseq
    %v3641 = vshrl.u32 %v3640, 7
    %v3642 = vsub.s32 %v3639, %v3641
    %v3643 = vrot.slane %v3635, %v3642
    %v3644 = vcombine.high %v3643, %v3643
    %v3647 = vadd.f32 %v3633, %v3643
    %v3648 = vadd.f32 %v3634, %v3644
    %v3649 = vmul.f32 %v3471, %v1154
    %v3650 = vmul.f32 %v3472, %v1154
    %v3651 = vadd.f32 %v3647, %v3649
    %v3652 = vadd.f32 %v3648, %v3650
    %v3653 = vmul.f32 %v3479, %v1159
    %v3654 = vmul.f32 %v3480, %v1159
    %v3655 = vadd.f32 %v3651, %v3653
    %v3656 = vadd.f32 %v3652, %v3654
    %v3657 = vmul.f32 %v3487, %v1164
    %v3658 = vmul.f32 %v3488, %v1164
    %v3659 = vadd.f32 %v3655, %v3657
    %v3660 = vadd.f32 %v3656, %v3658
    %v3661 = vadd.f32 %v3623, %v3659
    %v3662 = vadd.f32 %v3624, %v3660
    %v3663 = vmul.f32 %v3447, %v1171
    %v3664 = vmul.f32 %v3448, %v1171
    %v3665 = vmul.f32 %v3455, %v1174
    %v3666 = vmul.f32 %v3456, %v1174
    %v3667 = vadd.f32 %v3663, %v3665
    %v3668 = vadd.f32 %v3664, %v3666
    %v3669 = vmul.f32 %v3463, %v1179
    %v3670 = vmul.f32 %v3464, %v1179
    %v3671 = vadd.f32 %v3667, %v3669
    %v3672 = vadd.f32 %v3668, %v3670
    %v3673 = vmul.f32 %v3025, %v1184
    %v3676 = vunpack.c.l.s4 1983009808
    %v3677 = vunpack.c.0.s8 %v3676
    %v3678 = vlaneseq
    %v3679 = vshrl.u32 %v3678, 7
    %v3680 = vsub.s32 %v3677, %v3679
    %v3681 = vrot.slane %v3673, %v3680
    %v3682 = vcombine.high %v3681, %v3681
    %v3685 = vadd.f32 %v3671, %v3681
    %v3686 = vadd.f32 %v3672, %v3682
    %v3687 = vmul.f32 %v3471, %v1199
    %v3688 = vmul.f32 %v3472, %v1199
    %v3689 = vadd.f32 %v3685, %v3687
    %v3690 = vadd.f32 %v3686, %v3688
    %v3691 = vmul.f32 %v3479, %v1204
    %v3692 = vmul.f32 %v3480, %v1204
    %v3693 = vadd.f32 %v3689, %v3691
    %v3694 = vadd.f32 %v3690, %v3692
    %v3695 = vmul.f32 %v3487, %v1209
    %v3696 = vmul.f32 %v3488, %v1209
    %v3697 = vadd.f32 %v3693, %v3695
    %v3698 = vadd.f32 %v3694, %v3696
    %3699 = vrot.lane.b32.xlu0 %v3697, 112
    %v3700 = vpop.permute.xlu0 %3699
    %3701 = vrot.lane.b32.xlu0 %v3698, 112
    %v3702 = vpop.permute.xlu0 %3701
    %v3703 = vsel %vm792, %v3700, %v3702
    %v3704 = vsel %vm792, %v3702, %v3700
    %v3705 = vsel %vm450, %v3703, 0.0
    %v3706 = vsel %vm451, %v3704, 0.0
    %v3707 = vadd.f32 %v3661, %v3705
    %v3708 = vadd.f32 %v3662, %v3706
    %v3709 = vmul.f32 %v3447, %v1224
    %v3710 = vmul.f32 %v3448, %v1224
    %v3711 = vmul.f32 %v3455, %v1227
    %v3712 = vmul.f32 %v3456, %v1227
    %v3713 = vadd.f32 %v3709, %v3711
    %v3714 = vadd.f32 %v3710, %v3712
    %v3715 = vmul.f32 %v3463, %v1232
    %v3716 = vmul.f32 %v3464, %v1232
    %v3717 = vadd.f32 %v3713, %v3715
    %v3718 = vadd.f32 %v3714, %v3716
    %v3719 = vmul.f32 %v3025, %v1237
    %v3722 = vunpack.c.l.s4 1983009808
    %v3723 = vunpack.c.0.s8 %v3722
    %v3724 = vlaneseq
    %v3725 = vshrl.u32 %v3724, 7
    %v3726 = vsub.s32 %v3723, %v3725
    %v3727 = vrot.slane %v3719, %v3726
    %v3728 = vcombine.high %v3727, %v3727
    %v3731 = vadd.f32 %v3717, %v3727
    %v3732 = vadd.f32 %v3718, %v3728
    %v3733 = vmul.f32 %v3471, %v1252
    %v3734 = vmul.f32 %v3472, %v1252
    %v3735 = vadd.f32 %v3731, %v3733
    %v3736 = vadd.f32 %v3732, %v3734
    %v3737 = vmul.f32 %v3479, %v1257
    %v3738 = vmul.f32 %v3480, %v1257
    %v3739 = vadd.f32 %v3735, %v3737
    %v3740 = vadd.f32 %v3736, %v3738
    %v3741 = vmul.f32 %v3487, %v1262
    %v3742 = vmul.f32 %v3488, %v1262
    %v3743 = vadd.f32 %v3739, %v3741
    %v3744 = vadd.f32 %v3740, %v3742
    %3745 = vrot.lane.b32.xlu0 %v3743, 96
    %v3746 = vpop.permute.xlu0 %3745
    %3747 = vrot.lane.b32.xlu0 %v3744, 96
    %v3748 = vpop.permute.xlu0 %3747
    %v3749 = vsel %vm846, %v3746, %v3748
    %v3750 = vsel %vm846, %v3748, %v3746
    %v3751 = vsel %vm458, %v3749, 0.0
    %v3752 = vsel %vm459, %v3750, 0.0
    %v3753 = vadd.f32 %v3707, %v3751
    %v3754 = vadd.f32 %v3708, %v3752
    %v3755 = vmul.f32 %v3447, %v1277
    %v3756 = vmul.f32 %v3448, %v1277
    %v3757 = vmul.f32 %v3455, %v1280
    %v3758 = vmul.f32 %v3456, %v1280
    %v3759 = vadd.f32 %v3755, %v3757
    %v3760 = vadd.f32 %v3756, %v3758
    %v3761 = vmul.f32 %v3463, %v1285
    %v3762 = vmul.f32 %v3464, %v1285
    %v3763 = vadd.f32 %v3759, %v3761
    %v3764 = vadd.f32 %v3760, %v3762
    %v3765 = vmul.f32 %v3025, %v1290
    %v3768 = vunpack.c.l.s4 1983009808
    %v3769 = vunpack.c.0.s8 %v3768
    %v3770 = vlaneseq
    %v3771 = vshrl.u32 %v3770, 7
    %v3772 = vsub.s32 %v3769, %v3771
    %v3773 = vrot.slane %v3765, %v3772
    %v3774 = vcombine.high %v3773, %v3773
    %v3777 = vadd.f32 %v3763, %v3773
    %v3778 = vadd.f32 %v3764, %v3774
    %v3779 = vmul.f32 %v3471, %v1305
    %v3780 = vmul.f32 %v3472, %v1305
    %v3781 = vadd.f32 %v3777, %v3779
    %v3782 = vadd.f32 %v3778, %v3780
    %v3783 = vmul.f32 %v3479, %v1310
    %v3784 = vmul.f32 %v3480, %v1310
    %v3785 = vadd.f32 %v3781, %v3783
    %v3786 = vadd.f32 %v3782, %v3784
    %v3787 = vmul.f32 %v3487, %v1315
    %v3788 = vmul.f32 %v3488, %v1315
    %v3789 = vadd.f32 %v3785, %v3787
    %v3790 = vadd.f32 %v3786, %v3788
    %3791 = vrot.lane.b32.xlu0 %v3789, 80
    %v3792 = vpop.permute.xlu0 %3791
    %3793 = vrot.lane.b32.xlu0 %v3790, 80
    %v3794 = vpop.permute.xlu0 %3793
    %v3795 = vsel %vm900, %v3792, %v3794
    %v3796 = vsel %vm900, %v3794, %v3792
    %v3797 = vsel %vm466, %v3795, 0.0
    %v3798 = vsel %vm467, %v3796, 0.0
    %v3799 = vadd.f32 %v3753, %v3797
    %v3800 = vadd.f32 %v3754, %v3798
    %v3801 = vadd.f32 %v3799, %v1330
    %v3802 = vadd.f32 %v3800, %v1330
    %v3805 = vunpack.c.l.s4 1983009808
    %v3806 = vunpack.c.0.s8 %v3805
    %v3807 = vlaneseq
    %v3808 = vshrl.u32 %v3807, 7
    %v3809 = vsub.s32 %v3806, %v3808
    %v3810 = vrot.slane %v3056, %v3809
    %v3811 = vcombine.high %v3810, %v3810
    %3814 = vrot.lane.b32.xlu0 %v3810, 3
    %v3815 = vpop.permute.xlu0 %3814
    %3816 = vrot.lane.b32.xlu0 %v3811, 3
    %v3817 = vpop.permute.xlu0 %3816
    %v3818 = vsel %vm490, %v3815, %v3817
    %v3819 = vsel %vm490, %v3817, %v3815
    %v3820 = vsel %vm464, %v3819, 0.0
    %v3821 = vsel %vm465, %v3818, 0.0
    %3822 = vrot.lane.b32.xlu0 %v3810, 2
    %v3823 = vpop.permute.xlu0 %3822
    %3824 = vrot.lane.b32.xlu0 %v3811, 2
    %v3825 = vpop.permute.xlu0 %3824
    %v3826 = vsel %vm499, %v3823, %v3825
    %v3827 = vsel %vm499, %v3825, %v3823
    %v3828 = vsel %vm456, %v3827, 0.0
    %v3829 = vsel %vm457, %v3826, 0.0
    %3830 = vrot.lane.b32.xlu0 %v3810, 1
    %v3831 = vpop.permute.xlu0 %3830
    %3832 = vrot.lane.b32.xlu0 %v3811, 1
    %v3833 = vpop.permute.xlu0 %3832
    %v3834 = vsel %vm508, %v3831, %v3833
    %v3835 = vsel %vm508, %v3833, %v3831
    %v3836 = vsel %vm448, %v3835, 0.0
    %v3837 = vsel %vm449, %v3834, 0.0
    %3838 = vrot.lane.b32.xlu0 %v3810, 127
    %v3839 = vpop.permute.xlu0 %3838
    %3840 = vrot.lane.b32.xlu0 %v3811, 127
    %v3841 = vpop.permute.xlu0 %3840
    %v3842 = vsel %vm517, %v3839, %v3841
    %v3843 = vsel %vm517, %v3841, %v3839
    %v3844 = vsel %vm446, %v3842, 0.0
    %v3845 = vsel %vm447, %v3843, 0.0
    %3846 = vrot.lane.b32.xlu0 %v3810, 126
    %v3847 = vpop.permute.xlu0 %3846
    %3848 = vrot.lane.b32.xlu0 %v3811, 126
    %v3849 = vpop.permute.xlu0 %3848
    %v3850 = vsel %vm526, %v3847, %v3849
    %v3851 = vsel %vm526, %v3849, %v3847
    %v3852 = vsel %vm454, %v3850, 0.0
    %v3853 = vsel %vm455, %v3851, 0.0
    %3854 = vrot.lane.b32.xlu0 %v3810, 125
    %v3855 = vpop.permute.xlu0 %3854
    %3856 = vrot.lane.b32.xlu0 %v3811, 125
    %v3857 = vpop.permute.xlu0 %3856
    %v3858 = vsel %vm535, %v3855, %v3857
    %v3859 = vsel %vm535, %v3857, %v3855
    %v3860 = vsel %vm462, %v3858, 0.0
    %v3861 = vsel %vm463, %v3859, 0.0
    %v3862 = vmul.f32 %v3820, %v1392
    %v3863 = vmul.f32 %v3821, %v1392
    %v3864 = vmul.f32 %v3828, %v1395
    %v3865 = vmul.f32 %v3829, %v1395
    %v3866 = vadd.f32 %v3862, %v3864
    %v3867 = vadd.f32 %v3863, %v3865
    %v3868 = vmul.f32 %v3836, %v1400
    %v3869 = vmul.f32 %v3837, %v1400
    %v3870 = vadd.f32 %v3866, %v3868
    %v3871 = vadd.f32 %v3867, %v3869
    %v3872 = vmul.f32 %v3056, %v1405
    %v3875 = vunpack.c.l.s4 1983009808
    %v3876 = vunpack.c.0.s8 %v3875
    %v3877 = vlaneseq
    %v3878 = vshrl.u32 %v3877, 7
    %v3879 = vsub.s32 %v3876, %v3878
    %v3880 = vrot.slane %v3872, %v3879
    %v3881 = vcombine.high %v3880, %v3880
    %v3884 = vadd.f32 %v3870, %v3880
    %v3885 = vadd.f32 %v3871, %v3881
    %v3886 = vmul.f32 %v3844, %v1420
    %v3887 = vmul.f32 %v3845, %v1420
    %v3888 = vadd.f32 %v3884, %v3886
    %v3889 = vadd.f32 %v3885, %v3887
    %v3890 = vmul.f32 %v3852, %v1425
    %v3891 = vmul.f32 %v3853, %v1425
    %v3892 = vadd.f32 %v3888, %v3890
    %v3893 = vadd.f32 %v3889, %v3891
    %v3894 = vmul.f32 %v3860, %v1430
    %v3895 = vmul.f32 %v3861, %v1430
    %v3896 = vadd.f32 %v3892, %v3894
    %v3897 = vadd.f32 %v3893, %v3895
    %3898 = vrot.lane.b32.xlu0 %v3896, 48
    %v3899 = vpop.permute.xlu0 %3898
    %3900 = vrot.lane.b32.xlu0 %v3897, 48
    %v3901 = vpop.permute.xlu0 %3900
    %v3902 = vsel %vm587, %v3899, %v3901
    %v3903 = vsel %vm587, %v3901, %v3899
    %v3904 = vsel %vm468, %v3903, 0.0
    %v3905 = vsel %vm469, %v3902, 0.0
    %v3906 = vmul.f32 %v3820, %v1443
    %v3907 = vmul.f32 %v3821, %v1443
    %v3908 = vmul.f32 %v3828, %v1446
    %v3909 = vmul.f32 %v3829, %v1446
    %v3910 = vadd.f32 %v3906, %v3908
    %v3911 = vadd.f32 %v3907, %v3909
    %v3912 = vmul.f32 %v3836, %v1451
    %v3913 = vmul.f32 %v3837, %v1451
    %v3914 = vadd.f32 %v3910, %v3912
    %v3915 = vadd.f32 %v3911, %v3913
    %v3916 = vmul.f32 %v3056, %v1456
    %v3919 = vunpack.c.l.s4 1983009808
    %v3920 = vunpack.c.0.s8 %v3919
    %v3921 = vlaneseq
    %v3922 = vshrl.u32 %v3921, 7
    %v3923 = vsub.s32 %v3920, %v3922
    %v3924 = vrot.slane %v3916, %v3923
    %v3925 = vcombine.high %v3924, %v3924
    %v3928 = vadd.f32 %v3914, %v3924
    %v3929 = vadd.f32 %v3915, %v3925
    %v3930 = vmul.f32 %v3844, %v1471
    %v3931 = vmul.f32 %v3845, %v1471
    %v3932 = vadd.f32 %v3928, %v3930
    %v3933 = vadd.f32 %v3929, %v3931
    %v3934 = vmul.f32 %v3852, %v1476
    %v3935 = vmul.f32 %v3853, %v1476
    %v3936 = vadd.f32 %v3932, %v3934
    %v3937 = vadd.f32 %v3933, %v3935
    %v3938 = vmul.f32 %v3860, %v1481
    %v3939 = vmul.f32 %v3861, %v1481
    %v3940 = vadd.f32 %v3936, %v3938
    %v3941 = vadd.f32 %v3937, %v3939
    %3942 = vrot.lane.b32.xlu0 %v3940, 32
    %v3943 = vpop.permute.xlu0 %3942
    %3944 = vrot.lane.b32.xlu0 %v3941, 32
    %v3945 = vpop.permute.xlu0 %3944
    %v3946 = vsel %vm639, %v3943, %v3945
    %v3947 = vsel %vm639, %v3945, %v3943
    %v3948 = vsel %vm460, %v3947, 0.0
    %v3949 = vsel %vm461, %v3946, 0.0
    %v3950 = vadd.f32 %v3904, %v3948
    %v3951 = vadd.f32 %v3905, %v3949
    %v3952 = vmul.f32 %v3820, %v1496
    %v3953 = vmul.f32 %v3821, %v1496
    %v3954 = vmul.f32 %v3828, %v1499
    %v3955 = vmul.f32 %v3829, %v1499
    %v3956 = vadd.f32 %v3952, %v3954
    %v3957 = vadd.f32 %v3953, %v3955
    %v3958 = vmul.f32 %v3836, %v1504
    %v3959 = vmul.f32 %v3837, %v1504
    %v3960 = vadd.f32 %v3956, %v3958
    %v3961 = vadd.f32 %v3957, %v3959
    %v3962 = vmul.f32 %v3056, %v1509
    %v3965 = vunpack.c.l.s4 1983009808
    %v3966 = vunpack.c.0.s8 %v3965
    %v3967 = vlaneseq
    %v3968 = vshrl.u32 %v3967, 7
    %v3969 = vsub.s32 %v3966, %v3968
    %v3970 = vrot.slane %v3962, %v3969
    %v3971 = vcombine.high %v3970, %v3970
    %v3974 = vadd.f32 %v3960, %v3970
    %v3975 = vadd.f32 %v3961, %v3971
    %v3976 = vmul.f32 %v3844, %v1524
    %v3977 = vmul.f32 %v3845, %v1524
    %v3978 = vadd.f32 %v3974, %v3976
    %v3979 = vadd.f32 %v3975, %v3977
    %v3980 = vmul.f32 %v3852, %v1529
    %v3981 = vmul.f32 %v3853, %v1529
    %v3982 = vadd.f32 %v3978, %v3980
    %v3983 = vadd.f32 %v3979, %v3981
    %v3984 = vmul.f32 %v3860, %v1534
    %v3985 = vmul.f32 %v3861, %v1534
    %v3986 = vadd.f32 %v3982, %v3984
    %v3987 = vadd.f32 %v3983, %v3985
    %3988 = vrot.lane.b32.xlu0 %v3986, 16
    %v3989 = vpop.permute.xlu0 %3988
    %3990 = vrot.lane.b32.xlu0 %v3987, 16
    %v3991 = vpop.permute.xlu0 %3990
    %v3992 = vsel %vm693, %v3989, %v3991
    %v3993 = vsel %vm693, %v3991, %v3989
    %v3994 = vsel %vm452, %v3993, 0.0
    %v3995 = vsel %vm453, %v3992, 0.0
    %v3996 = vadd.f32 %v3950, %v3994
    %v3997 = vadd.f32 %v3951, %v3995
    %v3998 = vmul.f32 %v3820, %v1549
    %v3999 = vmul.f32 %v3821, %v1549
    %v4000 = vmul.f32 %v3828, %v1552
    %v4001 = vmul.f32 %v3829, %v1552
    %v4002 = vadd.f32 %v3998, %v4000
    %v4003 = vadd.f32 %v3999, %v4001
    %v4004 = vmul.f32 %v3836, %v1557
    %v4005 = vmul.f32 %v3837, %v1557
    %v4006 = vadd.f32 %v4002, %v4004
    %v4007 = vadd.f32 %v4003, %v4005
    %v4008 = vmul.f32 %v3056, %v1562
    %v4011 = vunpack.c.l.s4 1983009808
    %v4012 = vunpack.c.0.s8 %v4011
    %v4013 = vlaneseq
    %v4014 = vshrl.u32 %v4013, 7
    %v4015 = vsub.s32 %v4012, %v4014
    %v4016 = vrot.slane %v4008, %v4015
    %v4017 = vcombine.high %v4016, %v4016
    %v4020 = vadd.f32 %v4006, %v4016
    %v4021 = vadd.f32 %v4007, %v4017
    %v4022 = vmul.f32 %v3844, %v1577
    %v4023 = vmul.f32 %v3845, %v1577
    %v4024 = vadd.f32 %v4020, %v4022
    %v4025 = vadd.f32 %v4021, %v4023
    %v4026 = vmul.f32 %v3852, %v1582
    %v4027 = vmul.f32 %v3853, %v1582
    %v4028 = vadd.f32 %v4024, %v4026
    %v4029 = vadd.f32 %v4025, %v4027
    %v4030 = vmul.f32 %v3860, %v1587
    %v4031 = vmul.f32 %v3861, %v1587
    %v4032 = vadd.f32 %v4028, %v4030
    %v4033 = vadd.f32 %v4029, %v4031
    %v4034 = vadd.f32 %v3996, %v4032
    %v4035 = vadd.f32 %v3997, %v4033
    %v4036 = vmul.f32 %v3820, %v1594
    %v4037 = vmul.f32 %v3821, %v1594
    %v4038 = vmul.f32 %v3828, %v1597
    %v4039 = vmul.f32 %v3829, %v1597
    %v4040 = vadd.f32 %v4036, %v4038
    %v4041 = vadd.f32 %v4037, %v4039
    %v4042 = vmul.f32 %v3836, %v1602
    %v4043 = vmul.f32 %v3837, %v1602
    %v4044 = vadd.f32 %v4040, %v4042
    %v4045 = vadd.f32 %v4041, %v4043
    %v4046 = vmul.f32 %v3056, %v1607
    %v4049 = vunpack.c.l.s4 1983009808
    %v4050 = vunpack.c.0.s8 %v4049
    %v4051 = vlaneseq
    %v4052 = vshrl.u32 %v4051, 7
    %v4053 = vsub.s32 %v4050, %v4052
    %v4054 = vrot.slane %v4046, %v4053
    %v4055 = vcombine.high %v4054, %v4054
    %v4058 = vadd.f32 %v4044, %v4054
    %v4059 = vadd.f32 %v4045, %v4055
    %v4060 = vmul.f32 %v3844, %v1622
    %v4061 = vmul.f32 %v3845, %v1622
    %v4062 = vadd.f32 %v4058, %v4060
    %v4063 = vadd.f32 %v4059, %v4061
    %v4064 = vmul.f32 %v3852, %v1627
    %v4065 = vmul.f32 %v3853, %v1627
    %v4066 = vadd.f32 %v4062, %v4064
    %v4067 = vadd.f32 %v4063, %v4065
    %v4068 = vmul.f32 %v3860, %v1632
    %v4069 = vmul.f32 %v3861, %v1632
    %v4070 = vadd.f32 %v4066, %v4068
    %v4071 = vadd.f32 %v4067, %v4069
    %4072 = vrot.lane.b32.xlu0 %v4070, 112
    %v4073 = vpop.permute.xlu0 %4072
    %4074 = vrot.lane.b32.xlu0 %v4071, 112
    %v4075 = vpop.permute.xlu0 %4074
    %v4076 = vsel %vm792, %v4073, %v4075
    %v4077 = vsel %vm792, %v4075, %v4073
    %v4078 = vsel %vm450, %v4076, 0.0
    %v4079 = vsel %vm451, %v4077, 0.0
    %v4080 = vadd.f32 %v4034, %v4078
    %v4081 = vadd.f32 %v4035, %v4079
    %v4082 = vmul.f32 %v3820, %v1647
    %v4083 = vmul.f32 %v3821, %v1647
    %v4084 = vmul.f32 %v3828, %v1650
    %v4085 = vmul.f32 %v3829, %v1650
    %v4086 = vadd.f32 %v4082, %v4084
    %v4087 = vadd.f32 %v4083, %v4085
    %v4088 = vmul.f32 %v3836, %v1655
    %v4089 = vmul.f32 %v3837, %v1655
    %v4090 = vadd.f32 %v4086, %v4088
    %v4091 = vadd.f32 %v4087, %v4089
    %v4092 = vmul.f32 %v3056, %v1660
    %v4095 = vunpack.c.l.s4 1983009808
    %v4096 = vunpack.c.0.s8 %v4095
    %v4097 = vlaneseq
    %v4098 = vshrl.u32 %v4097, 7
    %v4099 = vsub.s32 %v4096, %v4098
    %v4100 = vrot.slane %v4092, %v4099
    %v4101 = vcombine.high %v4100, %v4100
    %v4104 = vadd.f32 %v4090, %v4100
    %v4105 = vadd.f32 %v4091, %v4101
    %v4106 = vmul.f32 %v3844, %v1675
    %v4107 = vmul.f32 %v3845, %v1675
    %v4108 = vadd.f32 %v4104, %v4106
    %v4109 = vadd.f32 %v4105, %v4107
    %v4110 = vmul.f32 %v3852, %v1680
    %v4111 = vmul.f32 %v3853, %v1680
    %v4112 = vadd.f32 %v4108, %v4110
    %v4113 = vadd.f32 %v4109, %v4111
    %v4114 = vmul.f32 %v3860, %v1685
    %v4115 = vmul.f32 %v3861, %v1685
    %v4116 = vadd.f32 %v4112, %v4114
    %v4117 = vadd.f32 %v4113, %v4115
    %4118 = vrot.lane.b32.xlu0 %v4116, 96
    %v4119 = vpop.permute.xlu0 %4118
    %4120 = vrot.lane.b32.xlu0 %v4117, 96
    %v4121 = vpop.permute.xlu0 %4120
    %v4122 = vsel %vm846, %v4119, %v4121
    %v4123 = vsel %vm846, %v4121, %v4119
    %v4124 = vsel %vm458, %v4122, 0.0
    %v4125 = vsel %vm459, %v4123, 0.0
    %v4126 = vadd.f32 %v4080, %v4124
    %v4127 = vadd.f32 %v4081, %v4125
    %v4128 = vmul.f32 %v3820, %v1700
    %v4129 = vmul.f32 %v3821, %v1700
    %v4130 = vmul.f32 %v3828, %v1703
    %v4131 = vmul.f32 %v3829, %v1703
    %v4132 = vadd.f32 %v4128, %v4130
    %v4133 = vadd.f32 %v4129, %v4131
    %v4134 = vmul.f32 %v3836, %v1708
    %v4135 = vmul.f32 %v3837, %v1708
    %v4136 = vadd.f32 %v4132, %v4134
    %v4137 = vadd.f32 %v4133, %v4135
    %v4138 = vmul.f32 %v3056, %v1713
    %v4141 = vunpack.c.l.s4 1983009808
    %v4142 = vunpack.c.0.s8 %v4141
    %v4143 = vlaneseq
    %v4144 = vshrl.u32 %v4143, 7
    %v4145 = vsub.s32 %v4142, %v4144
    %v4146 = vrot.slane %v4138, %v4145
    %v4147 = vcombine.high %v4146, %v4146
    %v4150 = vadd.f32 %v4136, %v4146
    %v4151 = vadd.f32 %v4137, %v4147
    %v4152 = vmul.f32 %v3844, %v1728
    %v4153 = vmul.f32 %v3845, %v1728
    %v4154 = vadd.f32 %v4150, %v4152
    %v4155 = vadd.f32 %v4151, %v4153
    %v4156 = vmul.f32 %v3852, %v1733
    %v4157 = vmul.f32 %v3853, %v1733
    %v4158 = vadd.f32 %v4154, %v4156
    %v4159 = vadd.f32 %v4155, %v4157
    %v4160 = vmul.f32 %v3860, %v1738
    %v4161 = vmul.f32 %v3861, %v1738
    %v4162 = vadd.f32 %v4158, %v4160
    %v4163 = vadd.f32 %v4159, %v4161
    %4164 = vrot.lane.b32.xlu0 %v4162, 80
    %v4165 = vpop.permute.xlu0 %4164
    %4166 = vrot.lane.b32.xlu0 %v4163, 80
    %v4167 = vpop.permute.xlu0 %4166
    %v4168 = vsel %vm900, %v4165, %v4167
    %v4169 = vsel %vm900, %v4167, %v4165
    %v4170 = vsel %vm466, %v4168, 0.0
    %v4171 = vsel %vm467, %v4169, 0.0
    %v4172 = vadd.f32 %v4126, %v4170
    %v4173 = vadd.f32 %v4127, %v4171
    %v4174 = vadd.f32 %v4172, %v1753
    %v4175 = vadd.f32 %v4173, %v1753
    %v4176 = vadd.f32 %v3428, %v3801
    %v4177 = vadd.f32 %v3429, %v3802
    %v4178 = vadd.f32 %v4176, %v4174
    %v4179 = vadd.f32 %v4177, %v4175
    %v4180 = vmul.f32 %v4178, 0.33333334
    %v4181 = vmul.f32 %v4179, 0.33333334
    %v4182 = vsub.f32 %v3428, %v4180
    %v4183 = vsub.f32 %v3429, %v4181
    %v4184 = vsub.f32 %v3801, %v4180
    %v4185 = vsub.f32 %v3802, %v4181
    %v4186 = vsub.f32 %v4174, %v4180
    %v4187 = vsub.f32 %v4175, %v4181
    %v4188 = vmul.f32 %v4182, %v4182
    %v4189 = vmul.f32 %v4183, %v4183
    %v4190 = vmul.f32 %v4184, %v4184
    %v4191 = vmul.f32 %v4185, %v4185
    %v4192 = vadd.f32 %v4188, %v4190
    %v4193 = vadd.f32 %v4189, %v4191
    %v4194 = vmul.f32 %v4186, %v4186
    %v4195 = vmul.f32 %v4187, %v4187
    %v4196 = vadd.f32 %v4192, %v4194
    %v4197 = vadd.f32 %v4193, %v4195
    %v4198 = vmul.f32 %v4196, 0.33333334
    %v4199 = vmul.f32 %v4197, 0.33333334
    %v4200 = vadd.f32 %v4198, 1e-06
    %v4201 = vadd.f32 %v4199, 1e-06
    %v4202 = vrsqrt.pop %v4200
    %v4203 = vrsqrt.pop %v4201
    %v4204 = vmul.f32 %v4182, %v4202
    %v4205 = vmul.f32 %v4183, %v4203
    %v4206 = vmul.f32 %v4204, %v1786
    %v4207 = vmul.f32 %v4205, %v1786
    %v4208 = vadd.f32 %v4206, %v1789
    %v4209 = vadd.f32 %v4207, %v1789
    %v4210 = vmul.f32 %v4184, %v4202
    %v4211 = vmul.f32 %v4185, %v4203
    %v4212 = vmul.f32 %v4210, %v1794
    %v4213 = vmul.f32 %v4211, %v1794
    %v4214 = vadd.f32 %v4212, %v1797
    %v4215 = vadd.f32 %v4213, %v1797
    %v4216 = vmul.f32 %v4186, %v4202
    %v4217 = vmul.f32 %v4187, %v4203
    %v4218 = vmul.f32 %v4216, %v1802
    %v4219 = vmul.f32 %v4217, %v1802
    %v4220 = vadd.f32 %v4218, %v1805
    %v4221 = vadd.f32 %v4219, %v1805
    %v4222 = vmul.f32 %v4208, %v1808
    %v4223 = vmul.f32 %v4209, %v1808
    %v4224 = vmul.f32 %v4214, %v1811
    %v4225 = vmul.f32 %v4215, %v1811
    %v4226 = vadd.f32 %v4222, %v4224
    %v4227 = vadd.f32 %v4223, %v4225
    %v4228 = vmul.f32 %v4220, %v1816
    %v4229 = vmul.f32 %v4221, %v1816
    %v4230 = vadd.f32 %v4226, %v4228
    %v4231 = vadd.f32 %v4227, %v4229
    %v4232 = vadd.f32 %v4230, %v1821
    %v4233 = vadd.f32 %v4231, %v1821
    %v4234 = vmul.f32 %v4232, 0.5
    %v4235 = vmul.f32 %v4233, 0.5
    %v4236 = vmul.f32 %v4232, 0.70710677
    %v4237 = vmul.f32 %v4233, 0.70710677
    %vm4238 = vcmp.ge.f32.partialorder %v4236, 0.0
    %vm4239 = vcmp.ge.f32.partialorder %v4237, 0.0
    %v4240 = vsel %vm4238, 1.0, -1.0
    %v4241 = vsel %vm4239, 1.0, -1.0
    %v4242 = vand.u32 2147483647, %v4236
    %v4243 = vand.u32 2147483647, %v4237
    %v4244 = vmul.f32 %v4242, 0.3275911
    %v4245 = vmul.f32 %v4243, 0.3275911
    %v4246 = vadd.f32 %v4244, 1.0
    %v4247 = vadd.f32 %v4245, 1.0
    %v4248 = vrcp.pop %v4246
    %v4249 = vrcp.pop %v4247
    %v4250 = vmul.f32 %v4248, 1.0614054
    %v4251 = vmul.f32 %v4249, 1.0614054
    %v4252 = vadd.f32 %v4250, -1.4531521
    %v4253 = vadd.f32 %v4251, -1.4531521
    %v4254 = vmul.f32 %v4252, %v4248
    %v4255 = vmul.f32 %v4253, %v4249
    %v4256 = vadd.f32 %v4254, 1.4214138
    %v4257 = vadd.f32 %v4255, 1.4214138
    %v4258 = vmul.f32 %v4256, %v4248
    %v4259 = vmul.f32 %v4257, %v4249
    %v4260 = vadd.f32 %v4258, -0.28449672
    %v4261 = vadd.f32 %v4259, -0.28449672
    %v4262 = vmul.f32 %v4260, %v4248
    %v4263 = vmul.f32 %v4261, %v4249
    %v4264 = vadd.f32 %v4262, 0.2548296
    %v4265 = vadd.f32 %v4263, 0.2548296
    %v4266 = vmul.f32 %v4264, %v4248
    %v4267 = vmul.f32 %v4265, %v4249
    %v4268 = vsub.f32 0.0, %v4242
    %v4269 = vsub.f32 0.0, %v4243
    %v4270 = vmul.f32 %v4268, %v4242
    %v4271 = vmul.f32 %v4269, %v4243
    %v4272 = vmul.f32 %v4270, 1.442695
    %v4273 = vpow.pop %v4272
    %v4274 = vmul.f32 %v4271, 1.442695
    %v4275 = vpow.pop %v4274
    %v4276 = vmul.f32 %v4266, %v4273
    %v4277 = vmul.f32 %v4267, %v4275
    %v4278 = vsub.f32 1.0, %v4276
    %v4279 = vsub.f32 1.0, %v4277
    %v4280 = vmul.f32 %v4240, %v4278
    %v4281 = vmul.f32 %v4241, %v4279
    %v4282 = vadd.f32 %v4280, 1.0
    %v4283 = vadd.f32 %v4281, 1.0
    %v4284 = vmul.f32 %v4234, %v4282
    %v4285 = vmul.f32 %v4235, %v4283
    %v4286 = vmul.f32 %v4284, %v1876
    %v4287 = vmul.f32 %v4285, %v1876
    %v4288 = vmul.f32 %v4284, %v1879
    %v4289 = vmul.f32 %v4285, %v1879
    %v4290 = vmul.f32 %v4284, %v1882
    %v4291 = vmul.f32 %v4285, %v1882
    %v4292 = vmul.f32 %v4208, %v1885
    %v4293 = vmul.f32 %v4209, %v1885
    %v4294 = vmul.f32 %v4214, %v1888
    %v4295 = vmul.f32 %v4215, %v1888
    %v4296 = vadd.f32 %v4292, %v4294
    %v4297 = vadd.f32 %v4293, %v4295
    %v4298 = vmul.f32 %v4220, %v1893
    %v4299 = vmul.f32 %v4221, %v1893
    %v4300 = vadd.f32 %v4296, %v4298
    %v4301 = vadd.f32 %v4297, %v4299
    %v4302 = vadd.f32 %v4300, %v1898
    %v4303 = vadd.f32 %v4301, %v1898
    %v4304 = vmul.f32 %v4302, 0.5
    %v4305 = vmul.f32 %v4303, 0.5
    %v4306 = vmul.f32 %v4302, 0.70710677
    %v4307 = vmul.f32 %v4303, 0.70710677
    %vm4308 = vcmp.ge.f32.partialorder %v4306, 0.0
    %vm4309 = vcmp.ge.f32.partialorder %v4307, 0.0
    %v4310 = vsel %vm4308, 1.0, -1.0
    %v4311 = vsel %vm4309, 1.0, -1.0
    %v4312 = vand.u32 2147483647, %v4306
    %v4313 = vand.u32 2147483647, %v4307
    %v4314 = vmul.f32 %v4312, 0.3275911
    %v4315 = vmul.f32 %v4313, 0.3275911
    %v4316 = vadd.f32 %v4314, 1.0
    %v4317 = vadd.f32 %v4315, 1.0
    %v4318 = vrcp.pop %v4316
    %v4319 = vrcp.pop %v4317
    %v4320 = vmul.f32 %v4318, 1.0614054
    %v4321 = vmul.f32 %v4319, 1.0614054
    %v4322 = vadd.f32 %v4320, -1.4531521
    %v4323 = vadd.f32 %v4321, -1.4531521
    %v4324 = vmul.f32 %v4322, %v4318
    %v4325 = vmul.f32 %v4323, %v4319
    %v4326 = vadd.f32 %v4324, 1.4214138
    %v4327 = vadd.f32 %v4325, 1.4214138
    %v4328 = vmul.f32 %v4326, %v4318
    %v4329 = vmul.f32 %v4327, %v4319
    %v4330 = vadd.f32 %v4328, -0.28449672
    %v4331 = vadd.f32 %v4329, -0.28449672
    %v4332 = vmul.f32 %v4330, %v4318
    %v4333 = vmul.f32 %v4331, %v4319
    %v4334 = vadd.f32 %v4332, 0.2548296
    %v4335 = vadd.f32 %v4333, 0.2548296
    %v4336 = vmul.f32 %v4334, %v4318
    %v4337 = vmul.f32 %v4335, %v4319
    %v4338 = vsub.f32 0.0, %v4312
    %v4339 = vsub.f32 0.0, %v4313
    %v4340 = vmul.f32 %v4338, %v4312
    %v4341 = vmul.f32 %v4339, %v4313
    %v4342 = vmul.f32 %v4340, 1.442695
    %v4343 = vpow.pop %v4342
    %v4344 = vmul.f32 %v4341, 1.442695
    %v4345 = vpow.pop %v4344
    %v4346 = vmul.f32 %v4336, %v4343
    %v4347 = vmul.f32 %v4337, %v4345
    %v4348 = vsub.f32 1.0, %v4346
    %v4349 = vsub.f32 1.0, %v4347
    %v4350 = vmul.f32 %v4310, %v4348
    %v4351 = vmul.f32 %v4311, %v4349
    %v4352 = vadd.f32 %v4350, 1.0
    %v4353 = vadd.f32 %v4351, 1.0
    %v4354 = vmul.f32 %v4304, %v4352
    %v4355 = vmul.f32 %v4305, %v4353
    %v4356 = vmul.f32 %v4354, %v1953
    %v4357 = vmul.f32 %v4355, %v1953
    %v4358 = vadd.f32 %v4286, %v4356
    %v4359 = vadd.f32 %v4287, %v4357
    %v4360 = vmul.f32 %v4354, %v1958
    %v4361 = vmul.f32 %v4355, %v1958
    %v4362 = vadd.f32 %v4288, %v4360
    %v4363 = vadd.f32 %v4289, %v4361
    %v4364 = vmul.f32 %v4354, %v1963
    %v4365 = vmul.f32 %v4355, %v1963
    %v4366 = vadd.f32 %v4290, %v4364
    %v4367 = vadd.f32 %v4291, %v4365
    %v4368 = vmul.f32 %v4208, %v1968
    %v4369 = vmul.f32 %v4209, %v1968
    %v4370 = vmul.f32 %v4214, %v1971
    %v4371 = vmul.f32 %v4215, %v1971
    %v4372 = vadd.f32 %v4368, %v4370
    %v4373 = vadd.f32 %v4369, %v4371
    %v4374 = vmul.f32 %v4220, %v1976
    %v4375 = vmul.f32 %v4221, %v1976
    %v4376 = vadd.f32 %v4372, %v4374
    %v4377 = vadd.f32 %v4373, %v4375
    %v4378 = vadd.f32 %v4376, %v1981
    %v4379 = vadd.f32 %v4377, %v1981
    %v4380 = vmul.f32 %v4378, 0.5
    %v4381 = vmul.f32 %v4379, 0.5
    %v4382 = vmul.f32 %v4378, 0.70710677
    %v4383 = vmul.f32 %v4379, 0.70710677
    %vm4384 = vcmp.ge.f32.partialorder %v4382, 0.0
    %vm4385 = vcmp.ge.f32.partialorder %v4383, 0.0
    %v4386 = vsel %vm4384, 1.0, -1.0
    %v4387 = vsel %vm4385, 1.0, -1.0
    %v4388 = vand.u32 2147483647, %v4382
    %v4389 = vand.u32 2147483647, %v4383
    %v4390 = vmul.f32 %v4388, 0.3275911
    %v4391 = vmul.f32 %v4389, 0.3275911
    %v4392 = vadd.f32 %v4390, 1.0
    %v4393 = vadd.f32 %v4391, 1.0
    %v4394 = vrcp.pop %v4392
    %v4395 = vrcp.pop %v4393
    %v4396 = vmul.f32 %v4394, 1.0614054
    %v4397 = vmul.f32 %v4395, 1.0614054
    %v4398 = vadd.f32 %v4396, -1.4531521
    %v4399 = vadd.f32 %v4397, -1.4531521
    %v4400 = vmul.f32 %v4398, %v4394
    %v4401 = vmul.f32 %v4399, %v4395
    %v4402 = vadd.f32 %v4400, 1.4214138
    %v4403 = vadd.f32 %v4401, 1.4214138
    %v4404 = vmul.f32 %v4402, %v4394
    %v4405 = vmul.f32 %v4403, %v4395
    %v4406 = vadd.f32 %v4404, -0.28449672
    %v4407 = vadd.f32 %v4405, -0.28449672
    %v4408 = vmul.f32 %v4406, %v4394
    %v4409 = vmul.f32 %v4407, %v4395
    %v4410 = vadd.f32 %v4408, 0.2548296
    %v4411 = vadd.f32 %v4409, 0.2548296
    %v4412 = vmul.f32 %v4410, %v4394
    %v4413 = vmul.f32 %v4411, %v4395
    %v4414 = vsub.f32 0.0, %v4388
    %v4415 = vsub.f32 0.0, %v4389
    %v4416 = vmul.f32 %v4414, %v4388
    %v4417 = vmul.f32 %v4415, %v4389
    %v4418 = vmul.f32 %v4416, 1.442695
    %v4419 = vpow.pop %v4418
    %v4420 = vmul.f32 %v4417, 1.442695
    %v4421 = vpow.pop %v4420
    %v4422 = vmul.f32 %v4412, %v4419
    %v4423 = vmul.f32 %v4413, %v4421
    %v4424 = vsub.f32 1.0, %v4422
    %v4425 = vsub.f32 1.0, %v4423
    %v4426 = vmul.f32 %v4386, %v4424
    %v4427 = vmul.f32 %v4387, %v4425
    %v4428 = vadd.f32 %v4426, 1.0
    %v4429 = vadd.f32 %v4427, 1.0
    %v4430 = vmul.f32 %v4380, %v4428
    %v4431 = vmul.f32 %v4381, %v4429
    %v4432 = vmul.f32 %v4430, %v2036
    %v4433 = vmul.f32 %v4431, %v2036
    %v4434 = vadd.f32 %v4358, %v4432
    %v4435 = vadd.f32 %v4359, %v4433
    %v4436 = vmul.f32 %v4430, %v2041
    %v4437 = vmul.f32 %v4431, %v2041
    %v4438 = vadd.f32 %v4362, %v4436
    %v4439 = vadd.f32 %v4363, %v4437
    %v4440 = vmul.f32 %v4430, %v2046
    %v4441 = vmul.f32 %v4431, %v2046
    %v4442 = vadd.f32 %v4366, %v4440
    %v4443 = vadd.f32 %v4367, %v4441
    %v4444 = vmul.f32 %v4208, %v2051
    %v4445 = vmul.f32 %v4209, %v2051
    %v4446 = vmul.f32 %v4214, %v2054
    %v4447 = vmul.f32 %v4215, %v2054
    %v4448 = vadd.f32 %v4444, %v4446
    %v4449 = vadd.f32 %v4445, %v4447
    %v4450 = vmul.f32 %v4220, %v2059
    %v4451 = vmul.f32 %v4221, %v2059
    %v4452 = vadd.f32 %v4448, %v4450
    %v4453 = vadd.f32 %v4449, %v4451
    %v4454 = vadd.f32 %v4452, %v2064
    %v4455 = vadd.f32 %v4453, %v2064
    %v4456 = vmul.f32 %v4454, 0.5
    %v4457 = vmul.f32 %v4455, 0.5
    %v4458 = vmul.f32 %v4454, 0.70710677
    %v4459 = vmul.f32 %v4455, 0.70710677
    %vm4460 = vcmp.ge.f32.partialorder %v4458, 0.0
    %vm4461 = vcmp.ge.f32.partialorder %v4459, 0.0
    %v4462 = vsel %vm4460, 1.0, -1.0
    %v4463 = vsel %vm4461, 1.0, -1.0
    %v4464 = vand.u32 2147483647, %v4458
    %v4465 = vand.u32 2147483647, %v4459
    %v4466 = vmul.f32 %v4464, 0.3275911
    %v4467 = vmul.f32 %v4465, 0.3275911
    %v4468 = vadd.f32 %v4466, 1.0
    %v4469 = vadd.f32 %v4467, 1.0
    %v4470 = vrcp.pop %v4468
    %v4471 = vrcp.pop %v4469
    %v4472 = vmul.f32 %v4470, 1.0614054
    %v4473 = vmul.f32 %v4471, 1.0614054
    %v4474 = vadd.f32 %v4472, -1.4531521
    %v4475 = vadd.f32 %v4473, -1.4531521
    %v4476 = vmul.f32 %v4474, %v4470
    %v4477 = vmul.f32 %v4475, %v4471
    %v4478 = vadd.f32 %v4476, 1.4214138
    %v4479 = vadd.f32 %v4477, 1.4214138
    %v4480 = vmul.f32 %v4478, %v4470
    %v4481 = vmul.f32 %v4479, %v4471
    %v4482 = vadd.f32 %v4480, -0.28449672
    %v4483 = vadd.f32 %v4481, -0.28449672
    %v4484 = vmul.f32 %v4482, %v4470
    %v4485 = vmul.f32 %v4483, %v4471
    %v4486 = vadd.f32 %v4484, 0.2548296
    %v4487 = vadd.f32 %v4485, 0.2548296
    %v4488 = vmul.f32 %v4486, %v4470
    %v4489 = vmul.f32 %v4487, %v4471
    %v4490 = vsub.f32 0.0, %v4464
    %v4491 = vsub.f32 0.0, %v4465
    %v4492 = vmul.f32 %v4490, %v4464
    %v4493 = vmul.f32 %v4491, %v4465
    %v4494 = vmul.f32 %v4492, 1.442695
    %v4495 = vpow.pop %v4494
    %v4496 = vmul.f32 %v4493, 1.442695
    %v4497 = vpow.pop %v4496
    %v4498 = vmul.f32 %v4488, %v4495
    %v4499 = vmul.f32 %v4489, %v4497
    %v4500 = vsub.f32 1.0, %v4498
    %v4501 = vsub.f32 1.0, %v4499
    %v4502 = vmul.f32 %v4462, %v4500
    %v4503 = vmul.f32 %v4463, %v4501
    %v4504 = vadd.f32 %v4502, 1.0
    %v4505 = vadd.f32 %v4503, 1.0
    %v4506 = vmul.f32 %v4456, %v4504
    %v4507 = vmul.f32 %v4457, %v4505
    %v4508 = vmul.f32 %v4506, %v2119
    %v4509 = vmul.f32 %v4507, %v2119
    %v4510 = vadd.f32 %v4434, %v4508
    %v4511 = vadd.f32 %v4435, %v4509
    %v4512 = vmul.f32 %v4506, %v2124
    %v4513 = vmul.f32 %v4507, %v2124
    %v4514 = vadd.f32 %v4438, %v4512
    %v4515 = vadd.f32 %v4439, %v4513
    %v4516 = vmul.f32 %v4506, %v2129
    %v4517 = vmul.f32 %v4507, %v2129
    %v4518 = vadd.f32 %v4442, %v4516
    %v4519 = vadd.f32 %v4443, %v4517
    %v4520 = vmul.f32 %v4208, %v2134
    %v4521 = vmul.f32 %v4209, %v2134
    %v4522 = vmul.f32 %v4214, %v2137
    %v4523 = vmul.f32 %v4215, %v2137
    %v4524 = vadd.f32 %v4520, %v4522
    %v4525 = vadd.f32 %v4521, %v4523
    %v4526 = vmul.f32 %v4220, %v2142
    %v4527 = vmul.f32 %v4221, %v2142
    %v4528 = vadd.f32 %v4524, %v4526
    %v4529 = vadd.f32 %v4525, %v4527
    %v4530 = vadd.f32 %v4528, %v2147
    %v4531 = vadd.f32 %v4529, %v2147
    %v4532 = vmul.f32 %v4530, 0.5
    %v4533 = vmul.f32 %v4531, 0.5
    %v4534 = vmul.f32 %v4530, 0.70710677
    %v4535 = vmul.f32 %v4531, 0.70710677
    %vm4536 = vcmp.ge.f32.partialorder %v4534, 0.0
    %vm4537 = vcmp.ge.f32.partialorder %v4535, 0.0
    %v4538 = vsel %vm4536, 1.0, -1.0
    %v4539 = vsel %vm4537, 1.0, -1.0
    %v4540 = vand.u32 2147483647, %v4534
    %v4541 = vand.u32 2147483647, %v4535
    %v4542 = vmul.f32 %v4540, 0.3275911
    %v4543 = vmul.f32 %v4541, 0.3275911
    %v4544 = vadd.f32 %v4542, 1.0
    %v4545 = vadd.f32 %v4543, 1.0
    %v4546 = vrcp.pop %v4544
    %v4547 = vrcp.pop %v4545
    %v4548 = vmul.f32 %v4546, 1.0614054
    %v4549 = vmul.f32 %v4547, 1.0614054
    %v4550 = vadd.f32 %v4548, -1.4531521
    %v4551 = vadd.f32 %v4549, -1.4531521
    %v4552 = vmul.f32 %v4550, %v4546
    %v4553 = vmul.f32 %v4551, %v4547
    %v4554 = vadd.f32 %v4552, 1.4214138
    %v4555 = vadd.f32 %v4553, 1.4214138
    %v4556 = vmul.f32 %v4554, %v4546
    %v4557 = vmul.f32 %v4555, %v4547
    %v4558 = vadd.f32 %v4556, -0.28449672
    %v4559 = vadd.f32 %v4557, -0.28449672
    %v4560 = vmul.f32 %v4558, %v4546
    %v4561 = vmul.f32 %v4559, %v4547
    %v4562 = vadd.f32 %v4560, 0.2548296
    %v4563 = vadd.f32 %v4561, 0.2548296
    %v4564 = vmul.f32 %v4562, %v4546
    %v4565 = vmul.f32 %v4563, %v4547
    %v4566 = vsub.f32 0.0, %v4540
    %v4567 = vsub.f32 0.0, %v4541
    %v4568 = vmul.f32 %v4566, %v4540
    %v4569 = vmul.f32 %v4567, %v4541
    %v4570 = vmul.f32 %v4568, 1.442695
    %v4571 = vpow.pop %v4570
    %v4572 = vmul.f32 %v4569, 1.442695
    %v4573 = vpow.pop %v4572
    %v4574 = vmul.f32 %v4564, %v4571
    %v4575 = vmul.f32 %v4565, %v4573
    %v4576 = vsub.f32 1.0, %v4574
    %v4577 = vsub.f32 1.0, %v4575
    %v4578 = vmul.f32 %v4538, %v4576
    %v4579 = vmul.f32 %v4539, %v4577
    %v4580 = vadd.f32 %v4578, 1.0
    %v4581 = vadd.f32 %v4579, 1.0
    %v4582 = vmul.f32 %v4532, %v4580
    %v4583 = vmul.f32 %v4533, %v4581
    %v4584 = vmul.f32 %v4582, %v2202
    %v4585 = vmul.f32 %v4583, %v2202
    %v4586 = vadd.f32 %v4510, %v4584
    %v4587 = vadd.f32 %v4511, %v4585
    %v4588 = vmul.f32 %v4582, %v2207
    %v4589 = vmul.f32 %v4583, %v2207
    %v4590 = vadd.f32 %v4514, %v4588
    %v4591 = vadd.f32 %v4515, %v4589
    %v4592 = vmul.f32 %v4582, %v2212
    %v4593 = vmul.f32 %v4583, %v2212
    %v4594 = vadd.f32 %v4518, %v4592
    %v4595 = vadd.f32 %v4519, %v4593
    %v4596 = vmul.f32 %v4208, %v2217
    %v4597 = vmul.f32 %v4209, %v2217
    %v4598 = vmul.f32 %v4214, %v2220
    %v4599 = vmul.f32 %v4215, %v2220
    %v4600 = vadd.f32 %v4596, %v4598
    %v4601 = vadd.f32 %v4597, %v4599
    %v4602 = vmul.f32 %v4220, %v2225
    %v4603 = vmul.f32 %v4221, %v2225
    %v4604 = vadd.f32 %v4600, %v4602
    %v4605 = vadd.f32 %v4601, %v4603
    %v4606 = vadd.f32 %v4604, %v2230
    %v4607 = vadd.f32 %v4605, %v2230
    %v4608 = vmul.f32 %v4606, 0.5
    %v4609 = vmul.f32 %v4607, 0.5
    %v4610 = vmul.f32 %v4606, 0.70710677
    %v4611 = vmul.f32 %v4607, 0.70710677
    %vm4612 = vcmp.ge.f32.partialorder %v4610, 0.0
    %vm4613 = vcmp.ge.f32.partialorder %v4611, 0.0
    %v4614 = vsel %vm4612, 1.0, -1.0
    %v4615 = vsel %vm4613, 1.0, -1.0
    %v4616 = vand.u32 2147483647, %v4610
    %v4617 = vand.u32 2147483647, %v4611
    %v4618 = vmul.f32 %v4616, 0.3275911
    %v4619 = vmul.f32 %v4617, 0.3275911
    %v4620 = vadd.f32 %v4618, 1.0
    %v4621 = vadd.f32 %v4619, 1.0
    %v4622 = vrcp.pop %v4620
    %v4623 = vrcp.pop %v4621
    %v4624 = vmul.f32 %v4622, 1.0614054
    %v4625 = vmul.f32 %v4623, 1.0614054
    %v4626 = vadd.f32 %v4624, -1.4531521
    %v4627 = vadd.f32 %v4625, -1.4531521
    %v4628 = vmul.f32 %v4626, %v4622
    %v4629 = vmul.f32 %v4627, %v4623
    %v4630 = vadd.f32 %v4628, 1.4214138
    %v4631 = vadd.f32 %v4629, 1.4214138
    %v4632 = vmul.f32 %v4630, %v4622
    %v4633 = vmul.f32 %v4631, %v4623
    %v4634 = vadd.f32 %v4632, -0.28449672
    %v4635 = vadd.f32 %v4633, -0.28449672
    %v4636 = vmul.f32 %v4634, %v4622
    %v4637 = vmul.f32 %v4635, %v4623
    %v4638 = vadd.f32 %v4636, 0.2548296
    %v4639 = vadd.f32 %v4637, 0.2548296
    %v4640 = vmul.f32 %v4638, %v4622
    %v4641 = vmul.f32 %v4639, %v4623
    %v4642 = vsub.f32 0.0, %v4616
    %v4643 = vsub.f32 0.0, %v4617
    %v4644 = vmul.f32 %v4642, %v4616
    %v4645 = vmul.f32 %v4643, %v4617
    %v4646 = vmul.f32 %v4644, 1.442695
    %v4647 = vpow.pop %v4646
    %v4648 = vmul.f32 %v4645, 1.442695
    %v4649 = vpow.pop %v4648
    %v4650 = vmul.f32 %v4640, %v4647
    %v4651 = vmul.f32 %v4641, %v4649
    %v4652 = vsub.f32 1.0, %v4650
    %v4653 = vsub.f32 1.0, %v4651
    %v4654 = vmul.f32 %v4614, %v4652
    %v4655 = vmul.f32 %v4615, %v4653
    %v4656 = vadd.f32 %v4654, 1.0
    %v4657 = vadd.f32 %v4655, 1.0
    %v4658 = vmul.f32 %v4608, %v4656
    %v4659 = vmul.f32 %v4609, %v4657
    %v4660 = vmul.f32 %v4658, %v2285
    %v4661 = vmul.f32 %v4659, %v2285
    %v4662 = vadd.f32 %v4586, %v4660
    %v4663 = vadd.f32 %v4587, %v4661
    %v4664 = vmul.f32 %v4658, %v2290
    %v4665 = vmul.f32 %v4659, %v2290
    %v4666 = vadd.f32 %v4590, %v4664
    %v4667 = vadd.f32 %v4591, %v4665
    %v4668 = vmul.f32 %v4658, %v2295
    %v4669 = vmul.f32 %v4659, %v2295
    %v4670 = vadd.f32 %v4594, %v4668
    %v4671 = vadd.f32 %v4595, %v4669
    %v4672 = vmul.f32 %v4208, %v2300
    %v4673 = vmul.f32 %v4209, %v2300
    %v4674 = vmul.f32 %v4214, %v2303
    %v4675 = vmul.f32 %v4215, %v2303
    %v4676 = vadd.f32 %v4672, %v4674
    %v4677 = vadd.f32 %v4673, %v4675
    %v4678 = vmul.f32 %v4220, %v2308
    %v4679 = vmul.f32 %v4221, %v2308
    %v4680 = vadd.f32 %v4676, %v4678
    %v4681 = vadd.f32 %v4677, %v4679
    %v4682 = vadd.f32 %v4680, %v2313
    %v4683 = vadd.f32 %v4681, %v2313
    %v4684 = vmul.f32 %v4682, 0.5
    %v4685 = vmul.f32 %v4683, 0.5
    %v4686 = vmul.f32 %v4682, 0.70710677
    %v4687 = vmul.f32 %v4683, 0.70710677
    %vm4688 = vcmp.ge.f32.partialorder %v4686, 0.0
    %vm4689 = vcmp.ge.f32.partialorder %v4687, 0.0
    %v4690 = vsel %vm4688, 1.0, -1.0
    %v4691 = vsel %vm4689, 1.0, -1.0
    %v4692 = vand.u32 2147483647, %v4686
    %v4693 = vand.u32 2147483647, %v4687
    %v4694 = vmul.f32 %v4692, 0.3275911
    %v4695 = vmul.f32 %v4693, 0.3275911
    %v4696 = vadd.f32 %v4694, 1.0
    %v4697 = vadd.f32 %v4695, 1.0
    %v4698 = vrcp.pop %v4696
    %v4699 = vrcp.pop %v4697
    %v4700 = vmul.f32 %v4698, 1.0614054
    %v4701 = vmul.f32 %v4699, 1.0614054
    %v4702 = vadd.f32 %v4700, -1.4531521
    %v4703 = vadd.f32 %v4701, -1.4531521
    %v4704 = vmul.f32 %v4702, %v4698
    %v4705 = vmul.f32 %v4703, %v4699
    %v4706 = vadd.f32 %v4704, 1.4214138
    %v4707 = vadd.f32 %v4705, 1.4214138
    %v4708 = vmul.f32 %v4706, %v4698
    %v4709 = vmul.f32 %v4707, %v4699
    %v4710 = vadd.f32 %v4708, -0.28449672
    %v4711 = vadd.f32 %v4709, -0.28449672
    %v4712 = vmul.f32 %v4710, %v4698
    %v4713 = vmul.f32 %v4711, %v4699
    %v4714 = vadd.f32 %v4712, 0.2548296
    %v4715 = vadd.f32 %v4713, 0.2548296
    %v4716 = vmul.f32 %v4714, %v4698
    %v4717 = vmul.f32 %v4715, %v4699
    %v4718 = vsub.f32 0.0, %v4692
    %v4719 = vsub.f32 0.0, %v4693
    %v4720 = vmul.f32 %v4718, %v4692
    %v4721 = vmul.f32 %v4719, %v4693
    %v4722 = vmul.f32 %v4720, 1.442695
    %v4723 = vpow.pop %v4722
    %v4724 = vmul.f32 %v4721, 1.442695
    %v4725 = vpow.pop %v4724
    %v4726 = vmul.f32 %v4716, %v4723
    %v4727 = vmul.f32 %v4717, %v4725
    %v4728 = vsub.f32 1.0, %v4726
    %v4729 = vsub.f32 1.0, %v4727
    %v4730 = vmul.f32 %v4690, %v4728
    %v4731 = vmul.f32 %v4691, %v4729
    %v4732 = vadd.f32 %v4730, 1.0
    %v4733 = vadd.f32 %v4731, 1.0
    %v4734 = vmul.f32 %v4684, %v4732
    %v4735 = vmul.f32 %v4685, %v4733
    %v4736 = vmul.f32 %v4734, %v2368
    %v4737 = vmul.f32 %v4735, %v2368
    %v4738 = vadd.f32 %v4662, %v4736
    %v4739 = vadd.f32 %v4663, %v4737
    %v4740 = vmul.f32 %v4734, %v2373
    %v4741 = vmul.f32 %v4735, %v2373
    %v4742 = vadd.f32 %v4666, %v4740
    %v4743 = vadd.f32 %v4667, %v4741
    %v4744 = vmul.f32 %v4734, %v2378
    %v4745 = vmul.f32 %v4735, %v2378
    %v4746 = vadd.f32 %v4670, %v4744
    %v4747 = vadd.f32 %v4671, %v4745
    %v4748 = vmul.f32 %v4208, %v2383
    %v4749 = vmul.f32 %v4209, %v2383
    %v4750 = vmul.f32 %v4214, %v2386
    %v4751 = vmul.f32 %v4215, %v2386
    %v4752 = vadd.f32 %v4748, %v4750
    %v4753 = vadd.f32 %v4749, %v4751
    %v4754 = vmul.f32 %v4220, %v2391
    %v4755 = vmul.f32 %v4221, %v2391
    %v4756 = vadd.f32 %v4752, %v4754
    %v4757 = vadd.f32 %v4753, %v4755
    %v4758 = vadd.f32 %v4756, %v2396
    %v4759 = vadd.f32 %v4757, %v2396
    %v4760 = vmul.f32 %v4758, 0.5
    %v4761 = vmul.f32 %v4759, 0.5
    %v4762 = vmul.f32 %v4758, 0.70710677
    %v4763 = vmul.f32 %v4759, 0.70710677
    %vm4764 = vcmp.ge.f32.partialorder %v4762, 0.0
    %vm4765 = vcmp.ge.f32.partialorder %v4763, 0.0
    %v4766 = vsel %vm4764, 1.0, -1.0
    %v4767 = vsel %vm4765, 1.0, -1.0
    %v4768 = vand.u32 2147483647, %v4762
    %v4769 = vand.u32 2147483647, %v4763
    %v4770 = vmul.f32 %v4768, 0.3275911
    %v4771 = vmul.f32 %v4769, 0.3275911
    %v4772 = vadd.f32 %v4770, 1.0
    %v4773 = vadd.f32 %v4771, 1.0
    %v4774 = vrcp.pop %v4772
    %v4775 = vrcp.pop %v4773
    %v4776 = vmul.f32 %v4774, 1.0614054
    %v4777 = vmul.f32 %v4775, 1.0614054
    %v4778 = vadd.f32 %v4776, -1.4531521
    %v4779 = vadd.f32 %v4777, -1.4531521
    %v4780 = vmul.f32 %v4778, %v4774
    %v4781 = vmul.f32 %v4779, %v4775
    %v4782 = vadd.f32 %v4780, 1.4214138
    %v4783 = vadd.f32 %v4781, 1.4214138
    %v4784 = vmul.f32 %v4782, %v4774
    %v4785 = vmul.f32 %v4783, %v4775
    %v4786 = vadd.f32 %v4784, -0.28449672
    %v4787 = vadd.f32 %v4785, -0.28449672
    %v4788 = vmul.f32 %v4786, %v4774
    %v4789 = vmul.f32 %v4787, %v4775
    %v4790 = vadd.f32 %v4788, 0.2548296
    %v4791 = vadd.f32 %v4789, 0.2548296
    %v4792 = vmul.f32 %v4790, %v4774
    %v4793 = vmul.f32 %v4791, %v4775
    %v4794 = vsub.f32 0.0, %v4768
    %v4795 = vsub.f32 0.0, %v4769
    %v4796 = vmul.f32 %v4794, %v4768
    %v4797 = vmul.f32 %v4795, %v4769
    %v4798 = vmul.f32 %v4796, 1.442695
    %v4799 = vpow.pop %v4798
    %v4800 = vmul.f32 %v4797, 1.442695
    %v4801 = vpow.pop %v4800
    %v4802 = vmul.f32 %v4792, %v4799
    %v4803 = vmul.f32 %v4793, %v4801
    %v4804 = vsub.f32 1.0, %v4802
    %v4805 = vsub.f32 1.0, %v4803
    %v4806 = vmul.f32 %v4766, %v4804
    %v4807 = vmul.f32 %v4767, %v4805
    %v4808 = vadd.f32 %v4806, 1.0
    %v4809 = vadd.f32 %v4807, 1.0
    %v4810 = vmul.f32 %v4760, %v4808
    %v4811 = vmul.f32 %v4761, %v4809
    %v4812 = vmul.f32 %v4810, %v2451
    %v4813 = vmul.f32 %v4811, %v2451
    %v4814 = vadd.f32 %v4738, %v4812
    %v4815 = vadd.f32 %v4739, %v4813
    %v4816 = vmul.f32 %v4810, %v2456
    %v4817 = vmul.f32 %v4811, %v2456
    %v4818 = vadd.f32 %v4742, %v4816
    %v4819 = vadd.f32 %v4743, %v4817
    %v4820 = vmul.f32 %v4810, %v2461
    %v4821 = vmul.f32 %v4811, %v2461
    %v4822 = vadd.f32 %v4746, %v4820
    %v4823 = vadd.f32 %v4747, %v4821
    %v4824 = vmul.f32 %v4208, %v2466
    %v4825 = vmul.f32 %v4209, %v2466
    %v4826 = vmul.f32 %v4214, %v2469
    %v4827 = vmul.f32 %v4215, %v2469
    %v4828 = vadd.f32 %v4824, %v4826
    %v4829 = vadd.f32 %v4825, %v4827
    %v4830 = vmul.f32 %v4220, %v2474
    %v4831 = vmul.f32 %v4221, %v2474
    %v4832 = vadd.f32 %v4828, %v4830
    %v4833 = vadd.f32 %v4829, %v4831
    %v4834 = vadd.f32 %v4832, %v2479
    %v4835 = vadd.f32 %v4833, %v2479
    %v4836 = vmul.f32 %v4834, 0.5
    %v4837 = vmul.f32 %v4835, 0.5
    %v4838 = vmul.f32 %v4834, 0.70710677
    %v4839 = vmul.f32 %v4835, 0.70710677
    %vm4840 = vcmp.ge.f32.partialorder %v4838, 0.0
    %vm4841 = vcmp.ge.f32.partialorder %v4839, 0.0
    %v4842 = vsel %vm4840, 1.0, -1.0
    %v4843 = vsel %vm4841, 1.0, -1.0
    %v4844 = vand.u32 2147483647, %v4838
    %v4845 = vand.u32 2147483647, %v4839
    %v4846 = vmul.f32 %v4844, 0.3275911
    %v4847 = vmul.f32 %v4845, 0.3275911
    %v4848 = vadd.f32 %v4846, 1.0
    %v4849 = vadd.f32 %v4847, 1.0
    %v4850 = vrcp.pop %v4848
    %v4851 = vrcp.pop %v4849
    %v4852 = vmul.f32 %v4850, 1.0614054
    %v4853 = vmul.f32 %v4851, 1.0614054
    %v4854 = vadd.f32 %v4852, -1.4531521
    %v4855 = vadd.f32 %v4853, -1.4531521
    %v4856 = vmul.f32 %v4854, %v4850
    %v4857 = vmul.f32 %v4855, %v4851
    %v4858 = vadd.f32 %v4856, 1.4214138
    %v4859 = vadd.f32 %v4857, 1.4214138
    %v4860 = vmul.f32 %v4858, %v4850
    %v4861 = vmul.f32 %v4859, %v4851
    %v4862 = vadd.f32 %v4860, -0.28449672
    %v4863 = vadd.f32 %v4861, -0.28449672
    %v4864 = vmul.f32 %v4862, %v4850
    %v4865 = vmul.f32 %v4863, %v4851
    %v4866 = vadd.f32 %v4864, 0.2548296
    %v4867 = vadd.f32 %v4865, 0.2548296
    %v4868 = vmul.f32 %v4866, %v4850
    %v4869 = vmul.f32 %v4867, %v4851
    %v4870 = vsub.f32 0.0, %v4844
    %v4871 = vsub.f32 0.0, %v4845
    %v4872 = vmul.f32 %v4870, %v4844
    %v4873 = vmul.f32 %v4871, %v4845
    %v4874 = vmul.f32 %v4872, 1.442695
    %v4875 = vpow.pop %v4874
    %v4876 = vmul.f32 %v4873, 1.442695
    %v4877 = vpow.pop %v4876
    %v4878 = vmul.f32 %v4868, %v4875
    %v4879 = vmul.f32 %v4869, %v4877
    %v4880 = vsub.f32 1.0, %v4878
    %v4881 = vsub.f32 1.0, %v4879
    %v4882 = vmul.f32 %v4842, %v4880
    %v4883 = vmul.f32 %v4843, %v4881
    %v4884 = vadd.f32 %v4882, 1.0
    %v4885 = vadd.f32 %v4883, 1.0
    %v4886 = vmul.f32 %v4836, %v4884
    %v4887 = vmul.f32 %v4837, %v4885
    %v4888 = vmul.f32 %v4886, %v2534
    %v4889 = vmul.f32 %v4887, %v2534
    %v4890 = vadd.f32 %v4814, %v4888
    %v4891 = vadd.f32 %v4815, %v4889
    %v4892 = vmul.f32 %v4886, %v2539
    %v4893 = vmul.f32 %v4887, %v2539
    %v4894 = vadd.f32 %v4818, %v4892
    %v4895 = vadd.f32 %v4819, %v4893
    %v4896 = vmul.f32 %v4886, %v2544
    %v4897 = vmul.f32 %v4887, %v2544
    %v4898 = vadd.f32 %v4822, %v4896
    %v4899 = vadd.f32 %v4823, %v4897
    %v4900 = vmul.f32 %v4208, %v2549
    %v4901 = vmul.f32 %v4209, %v2549
    %v4902 = vmul.f32 %v4214, %v2552
    %v4903 = vmul.f32 %v4215, %v2552
    %v4904 = vadd.f32 %v4900, %v4902
    %v4905 = vadd.f32 %v4901, %v4903
    %v4906 = vmul.f32 %v4220, %v2557
    %v4907 = vmul.f32 %v4221, %v2557
    %v4908 = vadd.f32 %v4904, %v4906
    %v4909 = vadd.f32 %v4905, %v4907
    %v4910 = vadd.f32 %v4908, %v2562
    %v4911 = vadd.f32 %v4909, %v2562
    %v4912 = vmul.f32 %v4910, 0.5
    %v4913 = vmul.f32 %v4911, 0.5
    %v4914 = vmul.f32 %v4910, 0.70710677
    %v4915 = vmul.f32 %v4911, 0.70710677
    %vm4916 = vcmp.ge.f32.partialorder %v4914, 0.0
    %vm4917 = vcmp.ge.f32.partialorder %v4915, 0.0
    %v4918 = vsel %vm4916, 1.0, -1.0
    %v4919 = vsel %vm4917, 1.0, -1.0
    %v4920 = vand.u32 2147483647, %v4914
    %v4921 = vand.u32 2147483647, %v4915
    %v4922 = vmul.f32 %v4920, 0.3275911
    %v4923 = vmul.f32 %v4921, 0.3275911
    %v4924 = vadd.f32 %v4922, 1.0
    %v4925 = vadd.f32 %v4923, 1.0
    %v4926 = vrcp.pop %v4924
    %v4927 = vrcp.pop %v4925
    %v4928 = vmul.f32 %v4926, 1.0614054
    %v4929 = vmul.f32 %v4927, 1.0614054
    %v4930 = vadd.f32 %v4928, -1.4531521
    %v4931 = vadd.f32 %v4929, -1.4531521
    %v4932 = vmul.f32 %v4930, %v4926
    %v4933 = vmul.f32 %v4931, %v4927
    %v4934 = vadd.f32 %v4932, 1.4214138
    %v4935 = vadd.f32 %v4933, 1.4214138
    %v4936 = vmul.f32 %v4934, %v4926
    %v4937 = vmul.f32 %v4935, %v4927
    %v4938 = vadd.f32 %v4936, -0.28449672
    %v4939 = vadd.f32 %v4937, -0.28449672
    %v4940 = vmul.f32 %v4938, %v4926
    %v4941 = vmul.f32 %v4939, %v4927
    %v4942 = vadd.f32 %v4940, 0.2548296
    %v4943 = vadd.f32 %v4941, 0.2548296
    %v4944 = vmul.f32 %v4942, %v4926
    %v4945 = vmul.f32 %v4943, %v4927
    %v4946 = vsub.f32 0.0, %v4920
    %v4947 = vsub.f32 0.0, %v4921
    %v4948 = vmul.f32 %v4946, %v4920
    %v4949 = vmul.f32 %v4947, %v4921
    %v4950 = vmul.f32 %v4948, 1.442695
    %v4951 = vpow.pop %v4950
    %v4952 = vmul.f32 %v4949, 1.442695
    %v4953 = vpow.pop %v4952
    %v4954 = vmul.f32 %v4944, %v4951
    %v4955 = vmul.f32 %v4945, %v4953
    %v4956 = vsub.f32 1.0, %v4954
    %v4957 = vsub.f32 1.0, %v4955
    %v4958 = vmul.f32 %v4918, %v4956
    %v4959 = vmul.f32 %v4919, %v4957
    %v4960 = vadd.f32 %v4958, 1.0
    %v4961 = vadd.f32 %v4959, 1.0
    %v4962 = vmul.f32 %v4912, %v4960
    %v4963 = vmul.f32 %v4913, %v4961
    %v4964 = vmul.f32 %v4962, %v2617
    %v4965 = vmul.f32 %v4963, %v2617
    %v4966 = vadd.f32 %v4890, %v4964
    %v4967 = vadd.f32 %v4891, %v4965
    %v4968 = vmul.f32 %v4962, %v2622
    %v4969 = vmul.f32 %v4963, %v2622
    %v4970 = vadd.f32 %v4894, %v4968
    %v4971 = vadd.f32 %v4895, %v4969
    %v4972 = vmul.f32 %v4962, %v2627
    %v4973 = vmul.f32 %v4963, %v2627
    %v4974 = vadd.f32 %v4898, %v4972
    %v4975 = vadd.f32 %v4899, %v4973
    %v4976 = vmul.f32 %v4208, %v2632
    %v4977 = vmul.f32 %v4209, %v2632
    %v4978 = vmul.f32 %v4214, %v2635
    %v4979 = vmul.f32 %v4215, %v2635
    %v4980 = vadd.f32 %v4976, %v4978
    %v4981 = vadd.f32 %v4977, %v4979
    %v4982 = vmul.f32 %v4220, %v2640
    %v4983 = vmul.f32 %v4221, %v2640
    %v4984 = vadd.f32 %v4980, %v4982
    %v4985 = vadd.f32 %v4981, %v4983
    %v4986 = vadd.f32 %v4984, %v2645
    %v4987 = vadd.f32 %v4985, %v2645
    %v4988 = vmul.f32 %v4986, 0.5
    %v4989 = vmul.f32 %v4987, 0.5
    %v4990 = vmul.f32 %v4986, 0.70710677
    %v4991 = vmul.f32 %v4987, 0.70710677
    %vm4992 = vcmp.ge.f32.partialorder %v4990, 0.0
    %vm4993 = vcmp.ge.f32.partialorder %v4991, 0.0
    %v4994 = vsel %vm4992, 1.0, -1.0
    %v4995 = vsel %vm4993, 1.0, -1.0
    %v4996 = vand.u32 2147483647, %v4990
    %v4997 = vand.u32 2147483647, %v4991
    %v4998 = vmul.f32 %v4996, 0.3275911
    %v4999 = vmul.f32 %v4997, 0.3275911
    %v5000 = vadd.f32 %v4998, 1.0
    %v5001 = vadd.f32 %v4999, 1.0
    %v5002 = vrcp.pop %v5000
    %v5003 = vrcp.pop %v5001
    %v5004 = vmul.f32 %v5002, 1.0614054
    %v5005 = vmul.f32 %v5003, 1.0614054
    %v5006 = vadd.f32 %v5004, -1.4531521
    %v5007 = vadd.f32 %v5005, -1.4531521
    %v5008 = vmul.f32 %v5006, %v5002
    %v5009 = vmul.f32 %v5007, %v5003
    %v5010 = vadd.f32 %v5008, 1.4214138
    %v5011 = vadd.f32 %v5009, 1.4214138
    %v5012 = vmul.f32 %v5010, %v5002
    %v5013 = vmul.f32 %v5011, %v5003
    %v5014 = vadd.f32 %v5012, -0.28449672
    %v5015 = vadd.f32 %v5013, -0.28449672
    %v5016 = vmul.f32 %v5014, %v5002
    %v5017 = vmul.f32 %v5015, %v5003
    %v5018 = vadd.f32 %v5016, 0.2548296
    %v5019 = vadd.f32 %v5017, 0.2548296
    %v5020 = vmul.f32 %v5018, %v5002
    %v5021 = vmul.f32 %v5019, %v5003
    %v5022 = vsub.f32 0.0, %v4996
    %v5023 = vsub.f32 0.0, %v4997
    %v5024 = vmul.f32 %v5022, %v4996
    %v5025 = vmul.f32 %v5023, %v4997
    %v5026 = vmul.f32 %v5024, 1.442695
    %v5027 = vpow.pop %v5026
    %v5028 = vmul.f32 %v5025, 1.442695
    %v5029 = vpow.pop %v5028
    %v5030 = vmul.f32 %v5020, %v5027
    %v5031 = vmul.f32 %v5021, %v5029
    %v5032 = vsub.f32 1.0, %v5030
    %v5033 = vsub.f32 1.0, %v5031
    %v5034 = vmul.f32 %v4994, %v5032
    %v5035 = vmul.f32 %v4995, %v5033
    %v5036 = vadd.f32 %v5034, 1.0
    %v5037 = vadd.f32 %v5035, 1.0
    %v5038 = vmul.f32 %v4988, %v5036
    %v5039 = vmul.f32 %v4989, %v5037
    %v5040 = vmul.f32 %v5038, %v2700
    %v5041 = vmul.f32 %v5039, %v2700
    %v5042 = vadd.f32 %v4966, %v5040
    %v5043 = vadd.f32 %v4967, %v5041
    %v5044 = vmul.f32 %v5038, %v2705
    %v5045 = vmul.f32 %v5039, %v2705
    %v5046 = vadd.f32 %v4970, %v5044
    %v5047 = vadd.f32 %v4971, %v5045
    %v5048 = vmul.f32 %v5038, %v2710
    %v5049 = vmul.f32 %v5039, %v2710
    %v5050 = vadd.f32 %v4974, %v5048
    %v5051 = vadd.f32 %v4975, %v5049
    %v5052 = vmul.f32 %v4208, %v2715
    %v5053 = vmul.f32 %v4209, %v2715
    %v5054 = vmul.f32 %v4214, %v2718
    %v5055 = vmul.f32 %v4215, %v2718
    %v5056 = vadd.f32 %v5052, %v5054
    %v5057 = vadd.f32 %v5053, %v5055
    %v5058 = vmul.f32 %v4220, %v2723
    %v5059 = vmul.f32 %v4221, %v2723
    %v5060 = vadd.f32 %v5056, %v5058
    %v5061 = vadd.f32 %v5057, %v5059
    %v5062 = vadd.f32 %v5060, %v2728
    %v5063 = vadd.f32 %v5061, %v2728
    %v5064 = vmul.f32 %v5062, 0.5
    %v5065 = vmul.f32 %v5063, 0.5
    %v5066 = vmul.f32 %v5062, 0.70710677
    %v5067 = vmul.f32 %v5063, 0.70710677
    %vm5068 = vcmp.ge.f32.partialorder %v5066, 0.0
    %vm5069 = vcmp.ge.f32.partialorder %v5067, 0.0
    %v5070 = vsel %vm5068, 1.0, -1.0
    %v5071 = vsel %vm5069, 1.0, -1.0
    %v5072 = vand.u32 2147483647, %v5066
    %v5073 = vand.u32 2147483647, %v5067
    %v5074 = vmul.f32 %v5072, 0.3275911
    %v5075 = vmul.f32 %v5073, 0.3275911
    %v5076 = vadd.f32 %v5074, 1.0
    %v5077 = vadd.f32 %v5075, 1.0
    %v5078 = vrcp.pop %v5076
    %v5079 = vrcp.pop %v5077
    %v5080 = vmul.f32 %v5078, 1.0614054
    %v5081 = vmul.f32 %v5079, 1.0614054
    %v5082 = vadd.f32 %v5080, -1.4531521
    %v5083 = vadd.f32 %v5081, -1.4531521
    %v5084 = vmul.f32 %v5082, %v5078
    %v5085 = vmul.f32 %v5083, %v5079
    %v5086 = vadd.f32 %v5084, 1.4214138
    %v5087 = vadd.f32 %v5085, 1.4214138
    %v5088 = vmul.f32 %v5086, %v5078
    %v5089 = vmul.f32 %v5087, %v5079
    %v5090 = vadd.f32 %v5088, -0.28449672
    %v5091 = vadd.f32 %v5089, -0.28449672
    %v5092 = vmul.f32 %v5090, %v5078
    %v5093 = vmul.f32 %v5091, %v5079
    %v5094 = vadd.f32 %v5092, 0.2548296
    %v5095 = vadd.f32 %v5093, 0.2548296
    %v5096 = vmul.f32 %v5094, %v5078
    %v5097 = vmul.f32 %v5095, %v5079
    %v5098 = vsub.f32 0.0, %v5072
    %v5099 = vsub.f32 0.0, %v5073
    %v5100 = vmul.f32 %v5098, %v5072
    %v5101 = vmul.f32 %v5099, %v5073
    %v5102 = vmul.f32 %v5100, 1.442695
    %v5103 = vpow.pop %v5102
    %v5104 = vmul.f32 %v5101, 1.442695
    %v5105 = vpow.pop %v5104
    %v5106 = vmul.f32 %v5096, %v5103
    %v5107 = vmul.f32 %v5097, %v5105
    %v5108 = vsub.f32 1.0, %v5106
    %v5109 = vsub.f32 1.0, %v5107
    %v5110 = vmul.f32 %v5070, %v5108
    %v5111 = vmul.f32 %v5071, %v5109
    %v5112 = vadd.f32 %v5110, 1.0
    %v5113 = vadd.f32 %v5111, 1.0
    %v5114 = vmul.f32 %v5064, %v5112
    %v5115 = vmul.f32 %v5065, %v5113
    %v5116 = vmul.f32 %v5114, %v2783
    %v5117 = vmul.f32 %v5115, %v2783
    %v5118 = vadd.f32 %v5042, %v5116
    %v5119 = vadd.f32 %v5043, %v5117
    %v5120 = vmul.f32 %v5114, %v2788
    %v5121 = vmul.f32 %v5115, %v2788
    %v5122 = vadd.f32 %v5046, %v5120
    %v5123 = vadd.f32 %v5047, %v5121
    %v5124 = vmul.f32 %v5114, %v2793
    %v5125 = vmul.f32 %v5115, %v2793
    %v5126 = vadd.f32 %v5050, %v5124
    %v5127 = vadd.f32 %v5051, %v5125
    %v5128 = vadd.f32 %v5118, %v2798
    %v5129 = vadd.f32 %v5119, %v2798
    %v5130 = vmul.f32 %v5128, %v2801
    %v5131 = vmul.f32 %v5129, %v2801
    %v5134 = vcombine.low %v5130, %v5131
    %v5136 = vunpack.c.l.s4 1983009808
    %v5137 = vunpack.c.0.s8 %v5136
    %v5138 = vlaneseq
    %v5139 = vshrl.u32 %v5138, 7
    %v5140 = vsub.s32 %v5137, %v5139
    %v5141 = vrot.slane %v5134, %v5140
    %v5143 = vadd.f32 %v2994, %v5141
    %v5144 = vadd.f32 %v5122, %v2816
    %v5145 = vadd.f32 %v5123, %v2816
    %v5146 = vmul.f32 %v5144, %v2819
    %v5147 = vmul.f32 %v5145, %v2819
    %v5150 = vcombine.low %v5146, %v5147
    %v5152 = vunpack.c.l.s4 1983009808
    %v5153 = vunpack.c.0.s8 %v5152
    %v5154 = vlaneseq
    %v5155 = vshrl.u32 %v5154, 7
    %v5156 = vsub.s32 %v5153, %v5155
    %v5157 = vrot.slane %v5150, %v5156
    %v5159 = vadd.f32 %v3025, %v5157
    %v5160 = vadd.f32 %v5126, %v2834
    %v5161 = vadd.f32 %v5127, %v2834
    %v5162 = vmul.f32 %v5160, %v2837
    %v5163 = vmul.f32 %v5161, %v2837
    %v5166 = vcombine.low %v5162, %v5163
    %v5168 = vunpack.c.l.s4 1983009808
    %v5169 = vunpack.c.0.s8 %v5168
    %v5170 = vlaneseq
    %v5171 = vshrl.u32 %v5170, 7
    %v5172 = vsub.s32 %v5169, %v5171
    %v5173 = vrot.slane %v5166, %v5172
    %v5175 = vadd.f32 %v3056, %v5173
    %5176 = vst [vmem:[%s12] sm:$0xf] %v5143
    %s5177 = scalar_lea.vmem %s12, 4
    %5178 = vst [vmem:[%s5177] sm:$0xf] %v5159
    %s5179 = scalar_lea.vmem %s12, 8
    %5180 = vst [vmem:[%s5179] sm:$0xf] %v5175
    // Predicated region
    $region94: #{augnet_forward.1} parent=1 // pred_check
      _
    $region95: #{augnet_forward.1} parent=1 // pred_check_branch
      %5182 = sbr.rel (0) target = $region97
    $region96: #{augnet_forward.1} parent=1 // pred_region
      _
    $region97: #{augnet_forward.1} parent=1 // pred_fallthru
      _
    // Predicated region
    $region98: #{augnet_forward.1} parent=1 // pred_check
      _
    $region99: #{augnet_forward.1} parent=1 // pred_check_branch
      %5184 = sbr.rel (0) target = $region101
    $region100: #{augnet_forward.1} parent=1 // pred_region
      _
    $region101: #{augnet_forward.1} parent=1 // pred_fallthru
      _
    %5185 = vsyncpa [#allocation3], 1
    %5186 = vsyncpa [#allocation5], 1
    %5187 = vsyncpa [#allocation8], 1
    %5188 = vsyncpa [#allocation11], 1
    %5189 = vsyncpa [#allocation14], 1
    %5190 = vsyncpa [#allocation17], 1

</llo_original>
